<compile_context>
chip_gen: v7x
topology: tpu7x:2x2x1
jax: 0.10.0
libtpu: 0.0.40
codegen_flags: <defaults>
</compile_context>

<pallas_src>
import functools

import jax
import jax.numpy as jnp
from jax import lax
from jax.experimental import pallas as pl
from jax.experimental.pallas import tpu as pltpu

_EPS = 1e-5
_NEG_SLOPE = 0.01
_LANE = 128


def _round_up(x, m):
    return (x + m - 1) // m * m


def _scale_shift(pstats, gamma, beta, count):
    """BatchNorm scale/shift from per-image partial stats.

    pstats: (N, 2, CP) f32, row 0 = per-image sum, row 1 = per-image sumsq.
    gamma/beta: (1, CP) f32.  count: static python int (# real positions).
    """
    inv = 1.0 / float(count)
    mean = jnp.sum(pstats[:, 0:1, :], axis=0) * inv                 # (1, CP)
    ex2 = jnp.sum(pstats[:, 1:2, :], axis=0) * inv                  # (1, CP)
    var = jnp.maximum(ex2 - mean * mean, 0.0)       # biased var (BatchNorm2d)
    scale = gamma * lax.rsqrt(var + _EPS)
    shift = beta - mean * scale
    return scale, shift


def _conv_core(x_bf16, w_ref, b_ref, o_ref, stats_ref, pad_ref, patch_ref, *,
               stride):
    """In-kernel im2col + folded-K matmul + bias + LeakyReLU + BN partials.

    x_bf16:    (H, W, C) bf16 values (already normalized by previous BN).
    w_ref:     (9*C, CP) bf16 folded conv weights.
    b_ref:     (1, CP)   f32 bias.
    o_ref:     (1, M, CP) bf16 pre-BN activation slab block (M = Ho * W).
    stats_ref: (1, 2, CP) f32 per-image (sum, sumsq) partials.
    pad_ref:   (H+2, W+2, C) bf16 VMEM halo scratch.
    patch_ref: (Ho, W, 9*C) bf16 VMEM folded-K patch scratch.
    """
    H, W, C = x_bf16.shape
    Ho = (H - 1) // stride + 1        # stride applies to H only; W is handled
    K = 9 * C                         # at stride 1 and decimated in glue.

    # Zero-padded halo buffer.  Zero every step: the grid axis is "parallel"
    # (may be split across cores), so no step-0-only border init.
    pad_ref[...] = jnp.zeros_like(pad_ref)
    pad_ref[1:H + 1, 1:W + 1, :] = x_bf16

    # Build the folded-K im2col tile entirely in VMEM (no HBM duplication).
    for dy in range(3):
        if stride == 1:
            rows = pad_ref[dy:dy + Ho, :, :]                    # (Ho, W+2, C)
        else:
            # Exact stride-2 row gather via single-row loads (major dim only).
            rows = jnp.stack(
                [pad_ref[dy + stride * k] for k in range(Ho)], axis=0)
        for dx in range(3):
            off = (dy * 3 + dx) * C
            patch_ref[:, :, off:off + C] = rows[:, dx:dx + W, :]

    patches = patch_ref[...].reshape(Ho * W, K)                 # (M, 9C) bf16

    # Single MXU matmul (bf16 in, f32 accumulate) + bias + LeakyReLU(0.01).
    acc = jnp.dot(patches, w_ref[...], preferred_element_type=jnp.float32)
    acc = acc + b_ref[...]
    y = jnp.where(acc > 0, acc, _NEG_SLOPE * acc)

    # Per-image BatchNorm partial statistics over the REAL output positions
    # (for stride 2, odd output columns are computed but dropped later, so
    # they must not contribute).
    if stride == 1:
        ym = y
    else:
        row = lax.broadcasted_iota(jnp.int32, (Ho * W, 1), 0)
        ym = jnp.where((row % W) % 2 == 0, y, 0.0)
    stats_ref[0, 0:1, :] = jnp.sum(ym, axis=0, keepdims=True)
    stats_ref[0, 1:2, :] = jnp.sum(ym * ym, axis=0, keepdims=True)

    # bf16 pre-BN slab (halves the dominant inter-pass HBM traffic).
    o_ref[0, :, :] = y.astype(o_ref.dtype)


def _conv1_kernel(x_ref, w_ref, b_ref, o_ref, stats_ref, pad_ref, patch_ref, *,
                  stride):
    _conv_core(x_ref[0], w_ref, b_ref, o_ref, stats_ref, pad_ref, patch_ref,
               stride=stride)


def _conv2_kernel(x_ref, pstats_ref, g_ref, be_ref, w_ref, b_ref,
                  o_ref, stats_ref, pad_ref, patch_ref, *,
                  stride, prev_count, c_real):
    """Fused BatchNorm (of the previous layer) prologue + conv layer."""
    scale, shift = _scale_shift(pstats_ref[...], g_ref[...], be_ref[...],
                                prev_count)
    xn = x_ref[0].astype(jnp.float32) * scale + shift             # (H, W, CP)
    x_in = xn[:, :, :c_real].astype(jnp.bfloat16)         # real channels only
    _conv_core(x_in, w_ref, b_ref, o_ref, stats_ref, pad_ref, patch_ref,
               stride=stride)


def _bn_final_kernel(y_ref, pstats_ref, g_ref, be_ref, o_ref, *, count):
    """Final BatchNorm2d normalize: y*scale + shift, f32 output."""
    scale, shift = _scale_shift(pstats_ref[...], g_ref[...], be_ref[...],
                                count)
    o_ref[0, :, :] = y_ref[0].astype(jnp.float32) * scale + shift


def convolution_block_forward(x_nchw, params):
    """Forward pass of ConvolutionBlock. Input/output are NCHW like PyTorch."""
    x = jnp.transpose(x_nchw, (0, 2, 3, 1)).astype(jnp.bfloat16)  # NHWC bf16
    N, H, W, Cin = x.shape
    Cout = params["w1"].shape[-1]
    CP = _round_up(Cout, _LANE)              # lane-dense compute channel count
    Ho2 = (H - 1) // 2 + 1
    Wo2 = (W - 1) // 2 + 1
    M1 = H * W                               # layer-1 rows per image
    M2 = Ho2 * W                             # layer-2 rows (full W, see above)

    def fold(w, cin):                        # (3,3,cin,Cout) -> (9*cin, CP)
        return jnp.pad(w.reshape(9 * cin, Cout),
                       ((0, 0), (0, CP - Cout))).astype(jnp.bfloat16)

    def vec(v):                              # (Cout,) -> (1, CP) f32
        return jnp.pad(v.astype(jnp.float32), (0, CP - Cout)).reshape(1, CP)

    w1, b1 = fold(params["w1"], Cin), vec(params["b1"])
    g1, be1 = vec(params["g1"]), vec(params["be1"])
    w2, b2 = fold(params["w2"], Cout), vec(params["b2"])
    g2, be2 = vec(params["g2"]), vec(params["be2"])

    cp = pltpu.CompilerParams(dimension_semantics=("parallel",))

    # ---- layer 1: conv3x3 s1 + LeakyReLU -> bf16 pre-BN slab + BN partials.
    slab1, stats1 = pl.pallas_call(
        functools.partial(_conv1_kernel, stride=1),
        grid=(N,),
        in_specs=[
            pl.BlockSpec((1, H, W, Cin), lambda n: (n, 0, 0, 0)),  # image
            pl.BlockSpec((9 * Cin, CP), lambda n: (0, 0)),         # weights
            pl.BlockSpec((1, CP), lambda n: (0, 0)),               # bias
        ],
        out_specs=[
            pl.BlockSpec((1, M1, CP), lambda n: (n, 0, 0)),
            pl.BlockSpec((1, 2, CP), lambda n: (n, 0, 0)),
        ],
        out_shape=[
            jax.ShapeDtypeStruct((N, M1, CP), jnp.bfloat16),
            jax.ShapeDtypeStruct((N, 2, CP), jnp.float32),
        ],
        scratch_shapes=[
            pltpu.VMEM((H + 2, W + 2, Cin), jnp.bfloat16),         # halo
            pltpu.VMEM((H, W, 9 * Cin), jnp.bfloat16),             # patches
        ],
        compiler_params=cp,
        cost_estimate=pl.CostEstimate(
            flops=2 * N * M1 * 9 * Cin * CP, transcendentals=0,
            bytes_accessed=N * (M1 * Cin * 2 + M1 * CP * 2) + 9 * Cin * CP * 2),
    )(x, w1, b1)

    # ---- layer 2: fused BN1 prologue + conv3x3 s2 + LeakyReLU -> slab + stats.
    slab2, stats2 = pl.pallas_call(
        functools.partial(_conv2_kernel, stride=2, prev_count=N * M1,
                          c_real=Cout),
        grid=(N,),
        in_specs=[
            pl.BlockSpec((1, H, W, CP), lambda n: (n, 0, 0, 0)),   # slab1
            pl.BlockSpec((N, 2, CP), lambda n: (0, 0, 0)),         # stats1
            pl.BlockSpec((1, CP), lambda n: (0, 0)),               # gamma1
            pl.BlockSpec((1, CP), lambda n: (0, 0)),               # beta1
            pl.BlockSpec((9 * Cout, CP), lambda n: (0, 0)),        # weights
            pl.BlockSpec((1, CP), lambda n: (0, 0)),               # bias
        ],
        out_specs=[
            pl.BlockSpec((1, M2, CP), lambda n: (n, 0, 0)),
            pl.BlockSpec((1, 2, CP), lambda n: (n, 0, 0)),
        ],
        out_shape=[
            jax.ShapeDtypeStruct((N, M2, CP), jnp.bfloat16),
            jax.ShapeDtypeStruct((N, 2, CP), jnp.float32),
        ],
        scratch_shapes=[
            pltpu.VMEM((H + 2, W + 2, Cout), jnp.bfloat16),
            pltpu.VMEM((Ho2, W, 9 * Cout), jnp.bfloat16),
        ],
        compiler_params=cp,
        cost_estimate=pl.CostEstimate(
            flops=2 * N * M2 * 9 * Cout * CP, transcendentals=0,
            bytes_accessed=N * (M1 * CP * 2 + M2 * CP * 2) + 9 * Cout * CP * 2),
    )(slab1.reshape(N, H, W, CP), stats1, g1, be1, w2, b2)

    # ---- final BatchNorm2d normalize (the block output), f32.
    ynorm = pl.pallas_call(
        functools.partial(_bn_final_kernel, count=N * Ho2 * Wo2),
        grid=(N,),
        in_specs=[
            pl.BlockSpec((1, M2, CP), lambda n: (n, 0, 0)),
            pl.BlockSpec((N, 2, CP), lambda n: (0, 0, 0)),
            pl.BlockSpec((1, CP), lambda n: (0, 0)),
            pl.BlockSpec((1, CP), lambda n: (0, 0)),
        ],
        out_specs=pl.BlockSpec((1, M2, CP), lambda n: (n, 0, 0)),
        out_shape=jax.ShapeDtypeStruct((N, M2, CP), jnp.float32),
        compiler_params=cp,
    )(slab2, stats2, g2, be2)

    # Glue epilogue (pure data movement): drop the odd output columns
    # (stride-2 W decimation), drop channel padding, NHWC -> NCHW.
    out = ynorm.reshape(N, Ho2, W, CP)[:, :, ::2, :Cout]
    return jnp.transpose(out, (0, 3, 1, 2))


def init_params(key, in_channels, out_channels):
    """Deterministic parameter init (PyTorch-like uniform bounds for conv)."""
    k1, k2, k3, k4 = jax.random.split(key, 4)
    bound1 = 1.0 / jnp.sqrt(in_channels * 9.0)
    bound2 = 1.0 / jnp.sqrt(out_channels * 9.0)
    return {
        # conv weights stored HWIO (3, 3, Cin, Cout)
        "w1": jax.random.uniform(k1, (3, 3, in_channels, out_channels),
                                 jnp.float32, -bound1, bound1),
        "b1": jax.random.uniform(k2, (out_channels,), jnp.float32,
                                 -bound1, bound1),
        "g1": jnp.ones((out_channels,), jnp.float32),
        "be1": jnp.zeros((out_channels,), jnp.float32),
        "w2": jax.random.uniform(k3, (3, 3, out_channels, out_channels),
                                 jnp.float32, -bound2, bound2),
        "b2": jax.random.uniform(k4, (out_channels,), jnp.float32,
                                 -bound2, bound2),
        "g2": jnp.ones((out_channels,), jnp.float32),
        "be2": jnp.zeros((out_channels,), jnp.float32),
    }


def _reference_forward(x_nchw, params):
    """Pure-JAX reference mirroring the kernel's bf16 cast points."""
    def layer(x_nhwc, w, b, g, be, stride):
        y = lax.conv_general_dilated(
            x_nhwc.astype(jnp.bfloat16), w.astype(jnp.bfloat16),
            window_strides=(stride, stride), padding=((1, 1), (1, 1)),
            dimension_numbers=("NHWC", "HWIO", "NHWC"),
            preferred_element_type=jnp.float32)
        y = y + b
        y = jnp.where(y > 0, y, _NEG_SLOPE * y)
        mean = jnp.mean(y, axis=(0, 1, 2), keepdims=True)
        var = jnp.mean(jnp.square(y - mean), axis=(0, 1, 2), keepdims=True)
        scale = g * lax.rsqrt(var + _EPS)
        shift = be - mean * scale
        yq = y.astype(jnp.bfloat16).astype(jnp.float32)  # bf16 slab storage
        return yq * scale + shift

    x = jnp.transpose(x_nchw, (0, 2, 3, 1))
    y1 = layer(x, params["w1"], params["b1"], params["g1"], params["be1"], 1)
    y2 = layer(y1, params["w2"], params["b2"], params["g2"], params["be2"], 2)
    return jnp.transpose(y2, (0, 3, 1, 2))


if __name__ == "__main__":
    key = jax.random.PRNGKey(0)
    k_x, k_p = jax.random.split(key)

    N, Cin, H, W = 2, 4, 16, 16
    Cout = 8
    x = jax.random.normal(k_x, (N, Cin, H, W), jnp.float32)
    params = init_params(k_p, Cin, Cout)

    fwd = jax.jit(convolution_block_forward)
    y = jax.block_until_ready(fwd(x, params))
    assert y.shape == (N, Cout, H // 2, W // 2), y.shape
    assert y.dtype == jnp.float32, y.dtype

    y_ref = jax.block_until_ready(_reference_forward(x, params))
    assert jnp.allclose(y, y_ref, rtol=1e-2, atol=1e-2), \
        ("mismatch vs reference", float(jnp.max(jnp.abs(y - y_ref))))

    print("KERNEL_OK")
</pallas_src>

<mosaic_0001>
module attributes {stable_mosaic.version = 11 : i64} {
  func.func @_conv1_kernel(%arg0: i32, %arg1: memref<1x16x16x4xbf16, #tpu.memory_space<vmem>>, %arg2: memref<36x128xbf16, #tpu.memory_space<vmem>>, %arg3: memref<1x128xf32, #tpu.memory_space<vmem>>, %arg4: memref<1x256x128xbf16, #tpu.memory_space<vmem>>, %arg5: memref<1x2x128xf32, #tpu.memory_space<vmem>>, %arg6: memref<18x18x4xbf16, #tpu.memory_space<vmem>>, %arg7: memref<16x16x36xbf16, #tpu.memory_space<vmem>>) attributes {dimension_semantics = [#tpu.dimension_semantics<parallel>], iteration_bounds = array<i64: 2>, scalar_prefetch = 0 : i64, scratch_operands = 2 : i64, tpu.core_type = #tpu.core_type<tc>, window_params = [{transform_indices = @transform_0, window_bounds = array<i64: 1, 16, 16, 4>}, {pipeline_mode = #tpu.pipeline_mode<synchronous>, transform_indices = @transform_1, window_bounds = array<i64: 36, 128>}, {pipeline_mode = #tpu.pipeline_mode<synchronous>, transform_indices = @transform_2, window_bounds = array<i64: 1, 128>}, {transform_indices = @transform_3, window_bounds = array<i64: 1, 256, 128>}, {transform_indices = @transform_4, window_bounds = array<i64: 1, 2, 128>}]} {
    %c0 = arith.constant 0 : index
    %c0_0 = arith.constant 0 : index
    %c0_1 = arith.constant 0 : index
    %c0_2 = arith.constant 0 : index
    %0 = vector.load %arg1[%c0, %c0_0, %c0_1, %c0_2] : memref<1x16x16x4xbf16, #tpu.memory_space<vmem>>, vector<1x16x16x4xbf16>
    %1 = vector.shape_cast %0 : vector<1x16x16x4xbf16> to vector<16x16x4xbf16>
    %cst = arith.constant 0.000000e+00 : bf16
    %2 = vector.broadcast %cst : bf16 to vector<18x18x4xbf16>
    %c0_3 = arith.constant 0 : index
    %c0_4 = arith.constant 0 : index
    %c0_5 = arith.constant 0 : index
    %3 = vector.load %arg6[%c0_3, %c0_4, %c0_5] : memref<18x18x4xbf16, #tpu.memory_space<vmem>>, vector<18x18x4xbf16>
    tpu.vector_store %arg6[%c0_3, %c0_4, %c0_5], %2 {strides = array<i32>} : memref<18x18x4xbf16, #tpu.memory_space<vmem>>, vector<18x18x4xbf16>,
    %c1 = arith.constant 1 : index
    %c1_6 = arith.constant 1 : index
    %c0_7 = arith.constant 0 : index
    %4 = vector.load %arg6[%c1, %c1_6, %c0_7] : memref<18x18x4xbf16, #tpu.memory_space<vmem>>, vector<16x16x4xbf16>
    tpu.vector_store %arg6[%c1, %c1_6, %c0_7], %1 {strides = array<i32>} : memref<18x18x4xbf16, #tpu.memory_space<vmem>>, vector<16x16x4xbf16>,
    %c0_8 = arith.constant 0 : index
    %c0_9 = arith.constant 0 : index
    %c0_10 = arith.constant 0 : index
    %5 = vector.load %arg6[%c0_8, %c0_9, %c0_10] : memref<18x18x4xbf16, #tpu.memory_space<vmem>>, vector<16x18x4xbf16>
    %6 = vector.extract_strided_slice %5 {offsets = [0, 0, 0], sizes = [16, 16, 4], strides = [1, 1, 1]} : vector<16x18x4xbf16> to vector<16x16x4xbf16>
    %c0_11 = arith.constant 0 : index
    %c0_12 = arith.constant 0 : index
    %c0_13 = arith.constant 0 : index
    %7 = vector.load %arg7[%c0_11, %c0_12, %c0_13] : memref<16x16x36xbf16, #tpu.memory_space<vmem>>, vector<16x16x4xbf16>
    tpu.vector_store %arg7[%c0_11, %c0_12, %c0_13], %6 {strides = array<i32>} : memref<16x16x36xbf16, #tpu.memory_space<vmem>>, vector<16x16x4xbf16>,
    %8 = vector.extract_strided_slice %5 {offsets = [0, 1, 0], sizes = [16, 16, 4], strides = [1, 1, 1]} : vector<16x18x4xbf16> to vector<16x16x4xbf16>
    %c0_14 = arith.constant 0 : index
    %c0_15 = arith.constant 0 : index
    %c4 = arith.constant 4 : index
    %9 = vector.load %arg7[%c0_14, %c0_15, %c4] : memref<16x16x36xbf16, #tpu.memory_space<vmem>>, vector<16x16x4xbf16>
    tpu.vector_store %arg7[%c0_14, %c0_15, %c4], %8 {strides = array<i32>} : memref<16x16x36xbf16, #tpu.memory_space<vmem>>, vector<16x16x4xbf16>,
    %10 = vector.extract_strided_slice %5 {offsets = [0, 2, 0], sizes = [16, 16, 4], strides = [1, 1, 1]} : vector<16x18x4xbf16> to vector<16x16x4xbf16>
    %c0_16 = arith.constant 0 : index
    %c0_17 = arith.constant 0 : index
    %c8 = arith.constant 8 : index
    %11 = vector.load %arg7[%c0_16, %c0_17, %c8] : memref<16x16x36xbf16, #tpu.memory_space<vmem>>, vector<16x16x4xbf16>
    tpu.vector_store %arg7[%c0_16, %c0_17, %c8], %10 {strides = array<i32>} : memref<16x16x36xbf16, #tpu.memory_space<vmem>>, vector<16x16x4xbf16>,
    %c1_18 = arith.constant 1 : index
    %c0_19 = arith.constant 0 : index
    %c0_20 = arith.constant 0 : index
    %12 = vector.load %arg6[%c1_18, %c0_19, %c0_20] : memref<18x18x4xbf16, #tpu.memory_space<vmem>>, vector<16x18x4xbf16>
    %13 = vector.extract_strided_slice %12 {offsets = [0, 0, 0], sizes = [16, 16, 4], strides = [1, 1, 1]} : vector<16x18x4xbf16> to vector<16x16x4xbf16>
    %c0_21 = arith.constant 0 : index
    %c0_22 = arith.constant 0 : index
    %c12 = arith.constant 12 : index
    %14 = vector.load %arg7[%c0_21, %c0_22, %c12] : memref<16x16x36xbf16, #tpu.memory_space<vmem>>, vector<16x16x4xbf16>
    tpu.vector_store %arg7[%c0_21, %c0_22, %c12], %13 {strides = array<i32>} : memref<16x16x36xbf16, #tpu.memory_space<vmem>>, vector<16x16x4xbf16>,
    %15 = vector.extract_strided_slice %12 {offsets = [0, 1, 0], sizes = [16, 16, 4], strides = [1, 1, 1]} : vector<16x18x4xbf16> to vector<16x16x4xbf16>
    %c0_23 = arith.constant 0 : index
    %c0_24 = arith.constant 0 : index
    %c16 = arith.constant 16 : index
    %16 = vector.load %arg7[%c0_23, %c0_24, %c16] : memref<16x16x36xbf16, #tpu.memory_space<vmem>>, vector<16x16x4xbf16>
    tpu.vector_store %arg7[%c0_23, %c0_24, %c16], %15 {strides = array<i32>} : memref<16x16x36xbf16, #tpu.memory_space<vmem>>, vector<16x16x4xbf16>,
    %17 = vector.extract_strided_slice %12 {offsets = [0, 2, 0], sizes = [16, 16, 4], strides = [1, 1, 1]} : vector<16x18x4xbf16> to vector<16x16x4xbf16>
    %c0_25 = arith.constant 0 : index
    %c0_26 = arith.constant 0 : index
    %c20 = arith.constant 20 : index
    %18 = vector.load %arg7[%c0_25, %c0_26, %c20] : memref<16x16x36xbf16, #tpu.memory_space<vmem>>, vector<16x16x4xbf16>
    tpu.vector_store %arg7[%c0_25, %c0_26, %c20], %17 {strides = array<i32>} : memref<16x16x36xbf16, #tpu.memory_space<vmem>>, vector<16x16x4xbf16>,
    %c2 = arith.constant 2 : index
    %c0_27 = arith.constant 0 : index
    %c0_28 = arith.constant 0 : index
    %19 = vector.load %arg6[%c2, %c0_27, %c0_28] : memref<18x18x4xbf16, #tpu.memory_space<vmem>>, vector<16x18x4xbf16>
    %20 = vector.extract_strided_slice %19 {offsets = [0, 0, 0], sizes = [16, 16, 4], strides = [1, 1, 1]} : vector<16x18x4xbf16> to vector<16x16x4xbf16>
    %c0_29 = arith.constant 0 : index
    %c0_30 = arith.constant 0 : index
    %c24 = arith.constant 24 : index
    %21 = vector.load %arg7[%c0_29, %c0_30, %c24] : memref<16x16x36xbf16, #tpu.memory_space<vmem>>, vector<16x16x4xbf16>
    tpu.vector_store %arg7[%c0_29, %c0_30, %c24], %20 {strides = array<i32>} : memref<16x16x36xbf16, #tpu.memory_space<vmem>>, vector<16x16x4xbf16>,
    %22 = vector.extract_strided_slice %19 {offsets = [0, 1, 0], sizes = [16, 16, 4], strides = [1, 1, 1]} : vector<16x18x4xbf16> to vector<16x16x4xbf16>
    %c0_31 = arith.constant 0 : index
    %c0_32 = arith.constant 0 : index
    %c28 = arith.constant 28 : index
    %23 = vector.load %arg7[%c0_31, %c0_32, %c28] : memref<16x16x36xbf16, #tpu.memory_space<vmem>>, vector<16x16x4xbf16>
    tpu.vector_store %arg7[%c0_31, %c0_32, %c28], %22 {strides = array<i32>} : memref<16x16x36xbf16, #tpu.memory_space<vmem>>, vector<16x16x4xbf16>,
    %24 = vector.extract_strided_slice %19 {offsets = [0, 2, 0], sizes = [16, 16, 4], strides = [1, 1, 1]} : vector<16x18x4xbf16> to vector<16x16x4xbf16>
    %c0_33 = arith.constant 0 : index
    %c0_34 = arith.constant 0 : index
    %c32 = arith.constant 32 : index
    %25 = vector.load %arg7[%c0_33, %c0_34, %c32] : memref<16x16x36xbf16, #tpu.memory_space<vmem>>, vector<16x16x4xbf16>
    tpu.vector_store %arg7[%c0_33, %c0_34, %c32], %24 {strides = array<i32>} : memref<16x16x36xbf16, #tpu.memory_space<vmem>>, vector<16x16x4xbf16>,
    %c0_35 = arith.constant 0 : index
    %c0_36 = arith.constant 0 : index
    %c0_37 = arith.constant 0 : index
    %26 = vector.load %arg7[%c0_35, %c0_36, %c0_37] : memref<16x16x36xbf16, #tpu.memory_space<vmem>>, vector<16x16x36xbf16>
    %27 = vector.shape_cast %26 : vector<16x16x36xbf16> to vector<256x36xbf16>
    %c0_38 = arith.constant 0 : index
    %c0_39 = arith.constant 0 : index
    %28 = vector.load %arg2[%c0_38, %c0_39] : memref<36x128xbf16, #tpu.memory_space<vmem>>, vector<36x128xbf16>
    %cst_40 = arith.constant dense<0.000000e+00> : vector<256x128xf32>
    %29 = tpu.matmul %27, %28, %cst_40 {dimension_numbers = #tpu.dot_dimension_numbers<[1], [0], [0], [1], [0, 0, 1, 1], [], []>} : vector<256x36xbf16>, vector<36x128xbf16>, vector<256x128xf32> -> vector<256x128xf32>
    %c0_41 = arith.constant 0 : index
    %c0_42 = arith.constant 0 : index
    %30 = vector.load %arg3[%c0_41, %c0_42] : memref<1x128xf32, #tpu.memory_space<vmem>>, vector<1x128xf32>
    %31 = vector.broadcast %30 : vector<1x128xf32> to vector<256x128xf32>
    %32 = arith.addf %29, %31 : vector<256x128xf32>
    %cst_43 = arith.constant 0.000000e+00 : f32
    %33 = vector.broadcast %cst_43 : f32 to vector<256x128xf32>
    %34 = arith.cmpf ogt, %32, %33 : vector<256x128xf32>
    %cst_44 = arith.constant 0.00999999977 : f32
    %35 = vector.broadcast %cst_44 : f32 to vector<256x128xf32>
    %36 = arith.mulf %35, %32 : vector<256x128xf32>
    %37 = arith.select %34, %32, %36 : vector<256x128xi1>, vector<256x128xf32>
    %cst_45 = arith.constant dense<0.000000e+00> : vector<128xf32>
    %38 = vector.multi_reduction <add>, %37, %cst_45 [0] : vector<256x128xf32> to vector<128xf32>
    %39 = vector.shape_cast %38 : vector<128xf32> to vector<1x128xf32>
    %c0_46 = arith.constant 0 : index
    %c0_47 = arith.constant 0 : index
    %c0_48 = arith.constant 0 : index
    %40 = vector.load %arg5[%c0_46, %c0_47, %c0_48] : memref<1x2x128xf32, #tpu.memory_space<vmem>>, vector<1x1x128xf32>
    %41 = vector.shape_cast %40 : vector<1x1x128xf32> to vector<1x128xf32>
    %42 = vector.shape_cast %39 : vector<1x128xf32> to vector<1x1x128xf32>
    tpu.vector_store %arg5[%c0_46, %c0_47, %c0_48], %42 {strides = array<i32>} : memref<1x2x128xf32, #tpu.memory_space<vmem>>, vector<1x1x128xf32>,
    %43 = arith.mulf %37, %37 : vector<256x128xf32>
    %cst_49 = arith.constant dense<0.000000e+00> : vector<128xf32>
    %44 = vector.multi_reduction <add>, %43, %cst_49 [0] : vector<256x128xf32> to vector<128xf32>
    %45 = vector.shape_cast %44 : vector<128xf32> to vector<1x128xf32>
    %c0_50 = arith.constant 0 : index
    %c1_51 = arith.constant 1 : index
    %c0_52 = arith.constant 0 : index
    %46 = vector.load %arg5[%c0_50, %c1_51, %c0_52] : memref<1x2x128xf32, #tpu.memory_space<vmem>>, vector<1x1x128xf32>
    %47 = vector.shape_cast %46 : vector<1x1x128xf32> to vector<1x128xf32>
    %48 = vector.shape_cast %45 : vector<1x128xf32> to vector<1x1x128xf32>
    tpu.vector_store %arg5[%c0_50, %c1_51, %c0_52], %48 {strides = array<i32>} : memref<1x2x128xf32, #tpu.memory_space<vmem>>, vector<1x1x128xf32>,
    %49 = arith.truncf %37 : vector<256x128xf32> to vector<256x128xbf16>
    %c0_53 = arith.constant 0 : index
    %c0_54 = arith.constant 0 : index
    %c0_55 = arith.constant 0 : index
    %50 = vector.load %arg4[%c0_53, %c0_54, %c0_55] : memref<1x256x128xbf16, #tpu.memory_space<vmem>>, vector<1x256x128xbf16>
    %51 = vector.shape_cast %50 : vector<1x256x128xbf16> to vector<256x128xbf16>
    %52 = vector.shape_cast %49 : vector<256x128xbf16> to vector<1x256x128xbf16>
    tpu.vector_store %arg4[%c0_53, %c0_54, %c0_55], %52 {strides = array<i32>} : memref<1x256x128xbf16, #tpu.memory_space<vmem>>, vector<1x256x128xbf16>,
    return
  }
  func.func @transform_0(%arg0: i32) -> (i32, i32, i32, i32) {
    %c0_i32 = arith.constant 0 : i32
    %c0_i32_0 = arith.constant 0 : i32
    %c0_i32_1 = arith.constant 0 : i32
    %c0_i32_2 = arith.constant 0 : i32
    return %arg0, %c0_i32, %c0_i32_0, %c0_i32_1 : i32, i32, i32, i32
  }
  func.func @transform_1(%arg0: i32) -> (i32, i32) {
    %c0_i32 = arith.constant 0 : i32
    %c0_i32_0 = arith.constant 0 : i32
    %c0_i32_1 = arith.constant 0 : i32
    return %c0_i32, %c0_i32_0 : i32, i32
  }
  func.func @transform_2(%arg0: i32) -> (i32, i32) {
    %c0_i32 = arith.constant 0 : i32
    %c0_i32_0 = arith.constant 0 : i32
    %c0_i32_1 = arith.constant 0 : i32
    return %c0_i32, %c0_i32_0 : i32, i32
  }
  func.func @transform_3(%arg0: i32) -> (i32, i32, i32) {
    %c0_i32 = arith.constant 0 : i32
    %c0_i32_0 = arith.constant 0 : i32
    %c0_i32_1 = arith.constant 0 : i32
    return %arg0, %c0_i32, %c0_i32_0 : i32, i32, i32
  }
  func.func @transform_4(%arg0: i32) -> (i32, i32, i32) {
    %c0_i32 = arith.constant 0 : i32
    %c0_i32_0 = arith.constant 0 : i32
    %c0_i32_1 = arith.constant 0 : i32
    return %arg0, %c0_i32, %c0_i32_0 : i32, i32, i32
  }
}

module attributes {stable_mosaic.version = 11 : i64} {
  func.func @_bn_final_kernel(%arg0: i32, %arg1: memref<1x128x128xbf16, #tpu.memory_space<vmem>>, %arg2: memref<2x2x128xf32, #tpu.memory_space<vmem>>, %arg3: memref<1x128xf32, #tpu.memory_space<vmem>>, %arg4: memref<1x128xf32, #tpu.memory_space<vmem>>, %arg5: memref<1x128x128xf32, #tpu.memory_space<vmem>>) attributes {dimension_semantics = [#tpu.dimension_semantics<parallel>], iteration_bounds = array<i64: 2>, scalar_prefetch = 0 : i64, scratch_operands = 0 : i64, tpu.core_type = #tpu.core_type<tc>, window_params = [{transform_indices = @transform_0, window_bounds = array<i64: 1, 128, 128>}, {pipeline_mode = #tpu.pipeline_mode<synchronous>, transform_indices = @transform_1, window_bounds = array<i64: 2, 2, 128>}, {pipeline_mode = #tpu.pipeline_mode<synchronous>, transform_indices = @transform_2, window_bounds = array<i64: 1, 128>}, {pipeline_mode = #tpu.pipeline_mode<synchronous>, transform_indices = @transform_3, window_bounds = array<i64: 1, 128>}, {transform_indices = @transform_4, window_bounds = array<i64: 1, 128, 128>}]} {
    %c0 = arith.constant 0 : index
    %c0_0 = arith.constant 0 : index
    %c0_1 = arith.constant 0 : index
    %0 = vector.load %arg2[%c0, %c0_0, %c0_1] : memref<2x2x128xf32, #tpu.memory_space<vmem>>, vector<2x2x128xf32>
    %c0_2 = arith.constant 0 : index
    %c0_3 = arith.constant 0 : index
    %1 = vector.load %arg3[%c0_2, %c0_3] : memref<1x128xf32, #tpu.memory_space<vmem>>, vector<1x128xf32>
    %c0_4 = arith.constant 0 : index
    %c0_5 = arith.constant 0 : index
    %2 = vector.load %arg4[%c0_4, %c0_5] : memref<1x128xf32, #tpu.memory_space<vmem>>, vector<1x128xf32>
    %3 = vector.extract_strided_slice %0 {offsets = [0, 0, 0], sizes = [2, 1, 128], strides = [1, 1, 1]} : vector<2x2x128xf32> to vector<2x1x128xf32>
    %cst = arith.constant dense<0.000000e+00> : vector<1x128xf32>
    %4 = vector.multi_reduction <add>, %3, %cst [0] : vector<2x1x128xf32> to vector<1x128xf32>
    %cst_6 = arith.constant 7.812500e-03 : f32
    %5 = vector.broadcast %cst_6 : f32 to vector<1x128xf32>
    %6 = arith.mulf %4, %5 : vector<1x128xf32>
    %7 = vector.extract_strided_slice %0 {offsets = [0, 1, 0], sizes = [2, 1, 128], strides = [1, 1, 1]} : vector<2x2x128xf32> to vector<2x1x128xf32>
    %cst_7 = arith.constant dense<0.000000e+00> : vector<1x128xf32>
    %8 = vector.multi_reduction <add>, %7, %cst_7 [0] : vector<2x1x128xf32> to vector<1x128xf32>
    %cst_8 = arith.constant 7.812500e-03 : f32
    %9 = vector.broadcast %cst_8 : f32 to vector<1x128xf32>
    %10 = arith.mulf %8, %9 : vector<1x128xf32>
    %11 = arith.mulf %6, %6 : vector<1x128xf32>
    %12 = arith.subf %10, %11 : vector<1x128xf32>
    %cst_9 = arith.constant 0.000000e+00 : f32
    %13 = vector.broadcast %cst_9 : f32 to vector<1x128xf32>
    %14 = arith.maximumf %12, %13 : vector<1x128xf32>
    %cst_10 = arith.constant 9.99999974E-6 : f32
    %15 = vector.broadcast %cst_10 : f32 to vector<1x128xf32>
    %16 = arith.addf %14, %15 : vector<1x128xf32>
    %17 = math.rsqrt %16 : vector<1x128xf32>
    %18 = arith.mulf %1, %17 : vector<1x128xf32>
    %19 = arith.mulf %6, %18 : vector<1x128xf32>
    %20 = arith.subf %2, %19 : vector<1x128xf32>
    %c0_11 = arith.constant 0 : index
    %c0_12 = arith.constant 0 : index
    %c0_13 = arith.constant 0 : index
    %21 = vector.load %arg1[%c0_11, %c0_12, %c0_13] : memref<1x128x128xbf16, #tpu.memory_space<vmem>>, vector<1x128x128xbf16>
    %22 = vector.shape_cast %21 : vector<1x128x128xbf16> to vector<128x128xbf16>
    %23 = arith.extf %22 : vector<128x128xbf16> to vector<128x128xf32>
    %24 = vector.broadcast %18 : vector<1x128xf32> to vector<128x128xf32>
    %25 = arith.mulf %23, %24 : vector<128x128xf32>
    %26 = vector.broadcast %20 : vector<1x128xf32> to vector<128x128xf32>
    %27 = arith.addf %25, %26 : vector<128x128xf32>
    %c0_14 = arith.constant 0 : index
    %c0_15 = arith.constant 0 : index
    %c0_16 = arith.constant 0 : index
    %28 = vector.load %arg5[%c0_14, %c0_15, %c0_16] : memref<1x128x128xf32, #tpu.memory_space<vmem>>, vector<1x128x128xf32>
    %29 = vector.shape_cast %28 : vector<1x128x128xf32> to vector<128x128xf32>
    %30 = vector.shape_cast %27 : vector<128x128xf32> to vector<1x128x128xf32>
    tpu.vector_store %arg5[%c0_14, %c0_15, %c0_16], %30 {strides = array<i32>} : memref<1x128x128xf32, #tpu.memory_space<vmem>>, vector<1x128x128xf32>,
    return
  }
  func.func @transform_0(%arg0: i32) -> (i32, i32, i32) {
    %c0_i32 = arith.constant 0 : i32
    %c0_i32_0 = arith.constant 0 : i32
    %c0_i32_1 = arith.constant 0 : i32
    return %arg0, %c0_i32, %c0_i32_0 : i32, i32, i32
  }
  func.func @transform_1(%arg0: i32) -> (i32, i32, i32) {
    %c0_i32 = arith.constant 0 : i32
    %c0_i32_0 = arith.constant 0 : i32
    %c0_i32_1 = arith.constant 0 : i32
    %c0_i32_2 = arith.constant 0 : i32
    return %c0_i32, %c0_i32_0, %c0_i32_1 : i32, i32, i32
  }
  func.func @transform_2(%arg0: i32) -> (i32, i32) {
    %c0_i32 = arith.constant 0 : i32
    %c0_i32_0 = arith.constant 0 : i32
    %c0_i32_1 = arith.constant 0 : i32
    return %c0_i32, %c0_i32_0 : i32, i32
  }
  func.func @transform_3(%arg0: i32) -> (i32, i32) {
    %c0_i32 = arith.constant 0 : i32
    %c0_i32_0 = arith.constant 0 : i32
    %c0_i32_1 = arith.constant 0 : i32
    return %c0_i32, %c0_i32_0 : i32, i32
  }
  func.func @transform_4(%arg0: i32) -> (i32, i32, i32) {
    %c0_i32 = arith.constant 0 : i32
    %c0_i32_0 = arith.constant 0 : i32
    %c0_i32_1 = arith.constant 0 : i32
    return %arg0, %c0_i32, %c0_i32_0 : i32, i32, i32
  }
}

module attributes {stable_mosaic.version = 11 : i64} {
  func.func @_conv2_kernel(%arg0: i32, %arg1: memref<1x16x16x128xbf16, #tpu.memory_space<vmem>>, %arg2: memref<2x2x128xf32, #tpu.memory_space<vmem>>, %arg3: memref<1x128xf32, #tpu.memory_space<vmem>>, %arg4: memref<1x128xf32, #tpu.memory_space<vmem>>, %arg5: memref<72x128xbf16, #tpu.memory_space<vmem>>, %arg6: memref<1x128xf32, #tpu.memory_space<vmem>>, %arg7: memref<1x128x128xbf16, #tpu.memory_space<vmem>>, %arg8: memref<1x2x128xf32, #tpu.memory_space<vmem>>, %arg9: memref<18x18x8xbf16, #tpu.memory_space<vmem>>, %arg10: memref<8x16x72xbf16, #tpu.memory_space<vmem>>) attributes {dimension_semantics = [#tpu.dimension_semantics<parallel>], iteration_bounds = array<i64: 2>, scalar_prefetch = 0 : i64, scratch_operands = 2 : i64, tpu.core_type = #tpu.core_type<tc>, window_params = [{transform_indices = @transform_0, window_bounds = array<i64: 1, 16, 16, 128>}, {pipeline_mode = #tpu.pipeline_mode<synchronous>, transform_indices = @transform_1, window_bounds = array<i64: 2, 2, 128>}, {pipeline_mode = #tpu.pipeline_mode<synchronous>, transform_indices = @transform_2, window_bounds = array<i64: 1, 128>}, {pipeline_mode = #tpu.pipeline_mode<synchronous>, transform_indices = @transform_3, window_bounds = array<i64: 1, 128>}, {pipeline_mode = #tpu.pipeline_mode<synchronous>, transform_indices = @transform_4, window_bounds = array<i64: 72, 128>}, {pipeline_mode = #tpu.pipeline_mode<synchronous>, transform_indices = @transform_5, window_bounds = array<i64: 1, 128>}, {transform_indices = @transform_6, window_bounds = array<i64: 1, 128, 128>}, {transform_indices = @transform_7, window_bounds = array<i64: 1, 2, 128>}]} {
    %c0 = arith.constant 0 : index
    %c0_0 = arith.constant 0 : index
    %c0_1 = arith.constant 0 : index
    %0 = vector.load %arg2[%c0, %c0_0, %c0_1] : memref<2x2x128xf32, #tpu.memory_space<vmem>>, vector<2x2x128xf32>
    %c0_2 = arith.constant 0 : index
    %c0_3 = arith.constant 0 : index
    %1 = vector.load %arg3[%c0_2, %c0_3] : memref<1x128xf32, #tpu.memory_space<vmem>>, vector<1x128xf32>
    %c0_4 = arith.constant 0 : index
    %c0_5 = arith.constant 0 : index
    %2 = vector.load %arg4[%c0_4, %c0_5] : memref<1x128xf32, #tpu.memory_space<vmem>>, vector<1x128xf32>
    %3 = vector.extract_strided_slice %0 {offsets = [0, 0, 0], sizes = [2, 1, 128], strides = [1, 1, 1]} : vector<2x2x128xf32> to vector<2x1x128xf32>
    %cst = arith.constant dense<0.000000e+00> : vector<1x128xf32>
    %4 = vector.multi_reduction <add>, %3, %cst [0] : vector<2x1x128xf32> to vector<1x128xf32>
    %cst_6 = arith.constant 0.001953125 : f32
    %5 = vector.broadcast %cst_6 : f32 to vector<1x128xf32>
    %6 = arith.mulf %4, %5 : vector<1x128xf32>
    %7 = vector.extract_strided_slice %0 {offsets = [0, 1, 0], sizes = [2, 1, 128], strides = [1, 1, 1]} : vector<2x2x128xf32> to vector<2x1x128xf32>
    %cst_7 = arith.constant dense<0.000000e+00> : vector<1x128xf32>
    %8 = vector.multi_reduction <add>, %7, %cst_7 [0] : vector<2x1x128xf32> to vector<1x128xf32>
    %cst_8 = arith.constant 0.001953125 : f32
    %9 = vector.broadcast %cst_8 : f32 to vector<1x128xf32>
    %10 = arith.mulf %8, %9 : vector<1x128xf32>
    %11 = arith.mulf %6, %6 : vector<1x128xf32>
    %12 = arith.subf %10, %11 : vector<1x128xf32>
    %cst_9 = arith.constant 0.000000e+00 : f32
    %13 = vector.broadcast %cst_9 : f32 to vector<1x128xf32>
    %14 = arith.maximumf %12, %13 : vector<1x128xf32>
    %cst_10 = arith.constant 9.99999974E-6 : f32
    %15 = vector.broadcast %cst_10 : f32 to vector<1x128xf32>
    %16 = arith.addf %14, %15 : vector<1x128xf32>
    %17 = math.rsqrt %16 : vector<1x128xf32>
    %18 = arith.mulf %1, %17 : vector<1x128xf32>
    %19 = arith.mulf %6, %18 : vector<1x128xf32>
    %20 = arith.subf %2, %19 : vector<1x128xf32>
    %c0_11 = arith.constant 0 : index
    %c0_12 = arith.constant 0 : index
    %c0_13 = arith.constant 0 : index
    %c0_14 = arith.constant 0 : index
    %21 = vector.load %arg1[%c0_11, %c0_12, %c0_13, %c0_14] : memref<1x16x16x128xbf16, #tpu.memory_space<vmem>>, vector<1x16x16x128xbf16>
    %22 = vector.shape_cast %21 : vector<1x16x16x128xbf16> to vector<16x16x128xbf16>
    %23 = arith.extf %22 : vector<16x16x128xbf16> to vector<16x16x128xf32>
    %24 = vector.shape_cast %18 : vector<1x128xf32> to vector<1x1x128xf32>
    %25 = vector.broadcast %24 : vector<1x1x128xf32> to vector<16x16x128xf32>
    %26 = arith.mulf %23, %25 : vector<16x16x128xf32>
    %27 = vector.shape_cast %20 : vector<1x128xf32> to vector<1x1x128xf32>
    %28 = vector.broadcast %27 : vector<1x1x128xf32> to vector<16x16x128xf32>
    %29 = arith.addf %26, %28 : vector<16x16x128xf32>
    %30 = vector.extract_strided_slice %29 {offsets = [0, 0, 0], sizes = [16, 16, 8], strides = [1, 1, 1]} : vector<16x16x128xf32> to vector<16x16x8xf32>
    %31 = arith.truncf %30 : vector<16x16x8xf32> to vector<16x16x8xbf16>
    %cst_15 = arith.constant 0.000000e+00 : bf16
    %32 = vector.broadcast %cst_15 : bf16 to vector<18x18x8xbf16>
    %c0_16 = arith.constant 0 : index
    %c0_17 = arith.constant 0 : index
    %c0_18 = arith.constant 0 : index
    %33 = vector.load %arg9[%c0_16, %c0_17, %c0_18] : memref<18x18x8xbf16, #tpu.memory_space<vmem>>, vector<18x18x8xbf16>
    tpu.vector_store %arg9[%c0_16, %c0_17, %c0_18], %32 {strides = array<i32>} : memref<18x18x8xbf16, #tpu.memory_space<vmem>>, vector<18x18x8xbf16>,
    %c1 = arith.constant 1 : index
    %c1_19 = arith.constant 1 : index
    %c0_20 = arith.constant 0 : index
    %34 = vector.load %arg9[%c1, %c1_19, %c0_20] : memref<18x18x8xbf16, #tpu.memory_space<vmem>>, vector<16x16x8xbf16>
    tpu.vector_store %arg9[%c1, %c1_19, %c0_20], %31 {strides = array<i32>} : memref<18x18x8xbf16, #tpu.memory_space<vmem>>, vector<16x16x8xbf16>,
    %c0_21 = arith.constant 0 : index
    %c0_22 = arith.constant 0 : index
    %c0_23 = arith.constant 0 : index
    %35 = vector.load %arg9[%c0_21, %c0_22, %c0_23] : memref<18x18x8xbf16, #tpu.memory_space<vmem>>, vector<1x18x8xbf16>
    %36 = vector.shape_cast %35 : vector<1x18x8xbf16> to vector<18x8xbf16>
    %c2 = arith.constant 2 : index
    %c0_24 = arith.constant 0 : index
    %c0_25 = arith.constant 0 : index
    %37 = vector.load %arg9[%c2, %c0_24, %c0_25] : memref<18x18x8xbf16, #tpu.memory_space<vmem>>, vector<1x18x8xbf16>
    %38 = vector.shape_cast %37 : vector<1x18x8xbf16> to vector<18x8xbf16>
    %c4 = arith.constant 4 : index
    %c0_26 = arith.constant 0 : index
    %c0_27 = arith.constant 0 : index
    %39 = vector.load %arg9[%c4, %c0_26, %c0_27] : memref<18x18x8xbf16, #tpu.memory_space<vmem>>, vector<1x18x8xbf16>
    %40 = vector.shape_cast %39 : vector<1x18x8xbf16> to vector<18x8xbf16>
    %c6 = arith.constant 6 : index
    %c0_28 = arith.constant 0 : index
    %c0_29 = arith.constant 0 : index
    %41 = vector.load %arg9[%c6, %c0_28, %c0_29] : memref<18x18x8xbf16, #tpu.memory_space<vmem>>, vector<1x18x8xbf16>
    %42 = vector.shape_cast %41 : vector<1x18x8xbf16> to vector<18x8xbf16>
    %c8 = arith.constant 8 : index
    %c0_30 = arith.constant 0 : index
    %c0_31 = arith.constant 0 : index
    %43 = vector.load %arg9[%c8, %c0_30, %c0_31] : memref<18x18x8xbf16, #tpu.memory_space<vmem>>, vector<1x18x8xbf16>
    %44 = vector.shape_cast %43 : vector<1x18x8xbf16> to vector<18x8xbf16>
    %c10 = arith.constant 10 : index
    %c0_32 = arith.constant 0 : index
    %c0_33 = arith.constant 0 : index
    %45 = vector.load %arg9[%c10, %c0_32, %c0_33] : memref<18x18x8xbf16, #tpu.memory_space<vmem>>, vector<1x18x8xbf16>
    %46 = vector.shape_cast %45 : vector<1x18x8xbf16> to vector<18x8xbf16>
    %c12 = arith.constant 12 : index
    %c0_34 = arith.constant 0 : index
    %c0_35 = arith.constant 0 : index
    %47 = vector.load %arg9[%c12, %c0_34, %c0_35] : memref<18x18x8xbf16, #tpu.memory_space<vmem>>, vector<1x18x8xbf16>
    %48 = vector.shape_cast %47 : vector<1x18x8xbf16> to vector<18x8xbf16>
    %c14 = arith.constant 14 : index
    %c0_36 = arith.constant 0 : index
    %c0_37 = arith.constant 0 : index
    %49 = vector.load %arg9[%c14, %c0_36, %c0_37] : memref<18x18x8xbf16, #tpu.memory_space<vmem>>, vector<1x18x8xbf16>
    %50 = vector.shape_cast %49 : vector<1x18x8xbf16> to vector<18x8xbf16>
    %51 = vector.shape_cast %36 : vector<18x8xbf16> to vector<1x18x8xbf16>
    %52 = vector.shape_cast %38 : vector<18x8xbf16> to vector<1x18x8xbf16>
    %53 = vector.shape_cast %40 : vector<18x8xbf16> to vector<1x18x8xbf16>
    %54 = vector.shape_cast %42 : vector<18x8xbf16> to vector<1x18x8xbf16>
    %55 = vector.shape_cast %44 : vector<18x8xbf16> to vector<1x18x8xbf16>
    %56 = vector.shape_cast %46 : vector<18x8xbf16> to vector<1x18x8xbf16>
    %57 = vector.shape_cast %48 : vector<18x8xbf16> to vector<1x18x8xbf16>
    %58 = vector.shape_cast %50 : vector<18x8xbf16> to vector<1x18x8xbf16>
    %59 = tpu.concatenate %51, %52, %53, %54, %55, %56, %57, %58 in 0 : vector<1x18x8xbf16>, vector<1x18x8xbf16>, vector<1x18x8xbf16>, vector<1x18x8xbf16>, vector<1x18x8xbf16>, vector<1x18x8xbf16>, vector<1x18x8xbf16>, vector<1x18x8xbf16> -> vector<8x18x8xbf16>
    %60 = vector.extract_strided_slice %59 {offsets = [0, 0, 0], sizes = [8, 16, 8], strides = [1, 1, 1]} : vector<8x18x8xbf16> to vector<8x16x8xbf16>
    %c0_38 = arith.constant 0 : index
    %c0_39 = arith.constant 0 : index
    %c0_40 = arith.constant 0 : index
    %61 = vector.load %arg10[%c0_38, %c0_39, %c0_40] : memref<8x16x72xbf16, #tpu.memory_space<vmem>>, vector<8x16x8xbf16>
    tpu.vector_store %arg10[%c0_38, %c0_39, %c0_40], %60 {strides = array<i32>} : memref<8x16x72xbf16, #tpu.memory_space<vmem>>, vector<8x16x8xbf16>,
    %62 = vector.extract_strided_slice %59 {offsets = [0, 1, 0], sizes = [8, 16, 8], strides = [1, 1, 1]} : vector<8x18x8xbf16> to vector<8x16x8xbf16>
    %c0_41 = arith.constant 0 : index
    %c0_42 = arith.constant 0 : index
    %c8_43 = arith.constant 8 : index
    %63 = vector.load %arg10[%c0_41, %c0_42, %c8_43] : memref<8x16x72xbf16, #tpu.memory_space<vmem>>, vector<8x16x8xbf16>
    tpu.vector_store %arg10[%c0_41, %c0_42, %c8_43], %62 {strides = array<i32>} : memref<8x16x72xbf16, #tpu.memory_space<vmem>>, vector<8x16x8xbf16>,
    %64 = vector.extract_strided_slice %59 {offsets = [0, 2, 0], sizes = [8, 16, 8], strides = [1, 1, 1]} : vector<8x18x8xbf16> to vector<8x16x8xbf16>
    %c0_44 = arith.constant 0 : index
    %c0_45 = arith.constant 0 : index
    %c16 = arith.constant 16 : index
    %65 = vector.load %arg10[%c0_44, %c0_45, %c16] : memref<8x16x72xbf16, #tpu.memory_space<vmem>>, vector<8x16x8xbf16>
    tpu.vector_store %arg10[%c0_44, %c0_45, %c16], %64 {strides = array<i32>} : memref<8x16x72xbf16, #tpu.memory_space<vmem>>, vector<8x16x8xbf16>,
    %c1_46 = arith.constant 1 : index
    %c0_47 = arith.constant 0 : index
    %c0_48 = arith.constant 0 : index
    %66 = vector.load %arg9[%c1_46, %c0_47, %c0_48] : memref<18x18x8xbf16, #tpu.memory_space<vmem>>, vector<1x18x8xbf16>
    %67 = vector.shape_cast %66 : vector<1x18x8xbf16> to vector<18x8xbf16>
    %c3 = arith.constant 3 : index
    %c0_49 = arith.constant 0 : index
    %c0_50 = arith.constant 0 : index
    %68 = vector.load %arg9[%c3, %c0_49, %c0_50] : memref<18x18x8xbf16, #tpu.memory_space<vmem>>, vector<1x18x8xbf16>
    %69 = vector.shape_cast %68 : vector<1x18x8xbf16> to vector<18x8xbf16>
    %c5 = arith.constant 5 : index
    %c0_51 = arith.constant 0 : index
    %c0_52 = arith.constant 0 : index
    %70 = vector.load %arg9[%c5, %c0_51, %c0_52] : memref<18x18x8xbf16, #tpu.memory_space<vmem>>, vector<1x18x8xbf16>
    %71 = vector.shape_cast %70 : vector<1x18x8xbf16> to vector<18x8xbf16>
    %c7 = arith.constant 7 : index
    %c0_53 = arith.constant 0 : index
    %c0_54 = arith.constant 0 : index
    %72 = vector.load %arg9[%c7, %c0_53, %c0_54] : memref<18x18x8xbf16, #tpu.memory_space<vmem>>, vector<1x18x8xbf16>
    %73 = vector.shape_cast %72 : vector<1x18x8xbf16> to vector<18x8xbf16>
    %c9 = arith.constant 9 : index
    %c0_55 = arith.constant 0 : index
    %c0_56 = arith.constant 0 : index
    %74 = vector.load %arg9[%c9, %c0_55, %c0_56] : memref<18x18x8xbf16, #tpu.memory_space<vmem>>, vector<1x18x8xbf16>
    %75 = vector.shape_cast %74 : vector<1x18x8xbf16> to vector<18x8xbf16>
    %c11 = arith.constant 11 : index
    %c0_57 = arith.constant 0 : index
    %c0_58 = arith.constant 0 : index
    %76 = vector.load %arg9[%c11, %c0_57, %c0_58] : memref<18x18x8xbf16, #tpu.memory_space<vmem>>, vector<1x18x8xbf16>
    %77 = vector.shape_cast %76 : vector<1x18x8xbf16> to vector<18x8xbf16>
    %c13 = arith.constant 13 : index
    %c0_59 = arith.constant 0 : index
    %c0_60 = arith.constant 0 : index
    %78 = vector.load %arg9[%c13, %c0_59, %c0_60] : memref<18x18x8xbf16, #tpu.memory_space<vmem>>, vector<1x18x8xbf16>
    %79 = vector.shape_cast %78 : vector<1x18x8xbf16> to vector<18x8xbf16>
    %c15 = arith.constant 15 : index
    %c0_61 = arith.constant 0 : index
    %c0_62 = arith.constant 0 : index
    %80 = vector.load %arg9[%c15, %c0_61, %c0_62] : memref<18x18x8xbf16, #tpu.memory_space<vmem>>, vector<1x18x8xbf16>
    %81 = vector.shape_cast %80 : vector<1x18x8xbf16> to vector<18x8xbf16>
    %82 = vector.shape_cast %67 : vector<18x8xbf16> to vector<1x18x8xbf16>
    %83 = vector.shape_cast %69 : vector<18x8xbf16> to vector<1x18x8xbf16>
    %84 = vector.shape_cast %71 : vector<18x8xbf16> to vector<1x18x8xbf16>
    %85 = vector.shape_cast %73 : vector<18x8xbf16> to vector<1x18x8xbf16>
    %86 = vector.shape_cast %75 : vector<18x8xbf16> to vector<1x18x8xbf16>
    %87 = vector.shape_cast %77 : vector<18x8xbf16> to vector<1x18x8xbf16>
    %88 = vector.shape_cast %79 : vector<18x8xbf16> to vector<1x18x8xbf16>
    %89 = vector.shape_cast %81 : vector<18x8xbf16> to vector<1x18x8xbf16>
    %90 = tpu.concatenate %82, %83, %84, %85, %86, %87, %88, %89 in 0 : vector<1x18x8xbf16>, vector<1x18x8xbf16>, vector<1x18x8xbf16>, vector<1x18x8xbf16>, vector<1x18x8xbf16>, vector<1x18x8xbf16>, vector<1x18x8xbf16>, vector<1x18x8xbf16> -> vector<8x18x8xbf16>
    %91 = vector.extract_strided_slice %90 {offsets = [0, 0, 0], sizes = [8, 16, 8], strides = [1, 1, 1]} : vector<8x18x8xbf16> to vector<8x16x8xbf16>
    %c0_63 = arith.constant 0 : index
    %c0_64 = arith.constant 0 : index
    %c24 = arith.constant 24 : index
    %92 = vector.load %arg10[%c0_63, %c0_64, %c24] : memref<8x16x72xbf16, #tpu.memory_space<vmem>>, vector<8x16x8xbf16>
    tpu.vector_store %arg10[%c0_63, %c0_64, %c24], %91 {strides = array<i32>} : memref<8x16x72xbf16, #tpu.memory_space<vmem>>, vector<8x16x8xbf16>,
    %93 = vector.extract_strided_slice %90 {offsets = [0, 1, 0], sizes = [8, 16, 8], strides = [1, 1, 1]} : vector<8x18x8xbf16> to vector<8x16x8xbf16>
    %c0_65 = arith.constant 0 : index
    %c0_66 = arith.constant 0 : index
    %c32 = arith.constant 32 : index
    %94 = vector.load %arg10[%c0_65, %c0_66, %c32] : memref<8x16x72xbf16, #tpu.memory_space<vmem>>, vector<8x16x8xbf16>
    tpu.vector_store %arg10[%c0_65, %c0_66, %c32], %93 {strides = array<i32>} : memref<8x16x72xbf16, #tpu.memory_space<vmem>>, vector<8x16x8xbf16>,
    %95 = vector.extract_strided_slice %90 {offsets = [0, 2, 0], sizes = [8, 16, 8], strides = [1, 1, 1]} : vector<8x18x8xbf16> to vector<8x16x8xbf16>
    %c0_67 = arith.constant 0 : index
    %c0_68 = arith.constant 0 : index
    %c40 = arith.constant 40 : index
    %96 = vector.load %arg10[%c0_67, %c0_68, %c40] : memref<8x16x72xbf16, #tpu.memory_space<vmem>>, vector<8x16x8xbf16>
    tpu.vector_store %arg10[%c0_67, %c0_68, %c40], %95 {strides = array<i32>} : memref<8x16x72xbf16, #tpu.memory_space<vmem>>, vector<8x16x8xbf16>,
    %c2_69 = arith.constant 2 : index
    %c0_70 = arith.constant 0 : index
    %c0_71 = arith.constant 0 : index
    %97 = vector.load %arg9[%c2_69, %c0_70, %c0_71] : memref<18x18x8xbf16, #tpu.memory_space<vmem>>, vector<1x18x8xbf16>
    %98 = vector.shape_cast %97 : vector<1x18x8xbf16> to vector<18x8xbf16>
    %c4_72 = arith.constant 4 : index
    %c0_73 = arith.constant 0 : index
    %c0_74 = arith.constant 0 : index
    %99 = vector.load %arg9[%c4_72, %c0_73, %c0_74] : memref<18x18x8xbf16, #tpu.memory_space<vmem>>, vector<1x18x8xbf16>
    %100 = vector.shape_cast %99 : vector<1x18x8xbf16> to vector<18x8xbf16>
    %c6_75 = arith.constant 6 : index
    %c0_76 = arith.constant 0 : index
    %c0_77 = arith.constant 0 : index
    %101 = vector.load %arg9[%c6_75, %c0_76, %c0_77] : memref<18x18x8xbf16, #tpu.memory_space<vmem>>, vector<1x18x8xbf16>
    %102 = vector.shape_cast %101 : vector<1x18x8xbf16> to vector<18x8xbf16>
    %c8_78 = arith.constant 8 : index
    %c0_79 = arith.constant 0 : index
    %c0_80 = arith.constant 0 : index
    %103 = vector.load %arg9[%c8_78, %c0_79, %c0_80] : memref<18x18x8xbf16, #tpu.memory_space<vmem>>, vector<1x18x8xbf16>
    %104 = vector.shape_cast %103 : vector<1x18x8xbf16> to vector<18x8xbf16>
    %c10_81 = arith.constant 10 : index
    %c0_82 = arith.constant 0 : index
    %c0_83 = arith.constant 0 : index
    %105 = vector.load %arg9[%c10_81, %c0_82, %c0_83] : memref<18x18x8xbf16, #tpu.memory_space<vmem>>, vector<1x18x8xbf16>
    %106 = vector.shape_cast %105 : vector<1x18x8xbf16> to vector<18x8xbf16>
    %c12_84 = arith.constant 12 : index
    %c0_85 = arith.constant 0 : index
    %c0_86 = arith.constant 0 : index
    %107 = vector.load %arg9[%c12_84, %c0_85, %c0_86] : memref<18x18x8xbf16, #tpu.memory_space<vmem>>, vector<1x18x8xbf16>
    %108 = vector.shape_cast %107 : vector<1x18x8xbf16> to vector<18x8xbf16>
    %c14_87 = arith.constant 14 : index
    %c0_88 = arith.constant 0 : index
    %c0_89 = arith.constant 0 : index
    %109 = vector.load %arg9[%c14_87, %c0_88, %c0_89] : memref<18x18x8xbf16, #tpu.memory_space<vmem>>, vector<1x18x8xbf16>
    %110 = vector.shape_cast %109 : vector<1x18x8xbf16> to vector<18x8xbf16>
    %c16_90 = arith.constant 16 : index
    %c0_91 = arith.constant 0 : index
    %c0_92 = arith.constant 0 : index
    %111 = vector.load %arg9[%c16_90, %c0_91, %c0_92] : memref<18x18x8xbf16, #tpu.memory_space<vmem>>, vector<1x18x8xbf16>
    %112 = vector.shape_cast %111 : vector<1x18x8xbf16> to vector<18x8xbf16>
    %113 = vector.shape_cast %98 : vector<18x8xbf16> to vector<1x18x8xbf16>
    %114 = vector.shape_cast %100 : vector<18x8xbf16> to vector<1x18x8xbf16>
    %115 = vector.shape_cast %102 : vector<18x8xbf16> to vector<1x18x8xbf16>
    %116 = vector.shape_cast %104 : vector<18x8xbf16> to vector<1x18x8xbf16>
    %117 = vector.shape_cast %106 : vector<18x8xbf16> to vector<1x18x8xbf16>
    %118 = vector.shape_cast %108 : vector<18x8xbf16> to vector<1x18x8xbf16>
    %119 = vector.shape_cast %110 : vector<18x8xbf16> to vector<1x18x8xbf16>
    %120 = vector.shape_cast %112 : vector<18x8xbf16> to vector<1x18x8xbf16>
    %121 = tpu.concatenate %113, %114, %115, %116, %117, %118, %119, %120 in 0 : vector<1x18x8xbf16>, vector<1x18x8xbf16>, vector<1x18x8xbf16>, vector<1x18x8xbf16>, vector<1x18x8xbf16>, vector<1x18x8xbf16>, vector<1x18x8xbf16>, vector<1x18x8xbf16> -> vector<8x18x8xbf16>
    %122 = vector.extract_strided_slice %121 {offsets = [0, 0, 0], sizes = [8, 16, 8], strides = [1, 1, 1]} : vector<8x18x8xbf16> to vector<8x16x8xbf16>
    %c0_93 = arith.constant 0 : index
    %c0_94 = arith.constant 0 : index
    %c48 = arith.constant 48 : index
    %123 = vector.load %arg10[%c0_93, %c0_94, %c48] : memref<8x16x72xbf16, #tpu.memory_space<vmem>>, vector<8x16x8xbf16>
    tpu.vector_store %arg10[%c0_93, %c0_94, %c48], %122 {strides = array<i32>} : memref<8x16x72xbf16, #tpu.memory_space<vmem>>, vector<8x16x8xbf16>,
    %124 = vector.extract_strided_slice %121 {offsets = [0, 1, 0], sizes = [8, 16, 8], strides = [1, 1, 1]} : vector<8x18x8xbf16> to vector<8x16x8xbf16>
    %c0_95 = arith.constant 0 : index
    %c0_96 = arith.constant 0 : index
    %c56 = arith.constant 56 : index
    %125 = vector.load %arg10[%c0_95, %c0_96, %c56] : memref<8x16x72xbf16, #tpu.memory_space<vmem>>, vector<8x16x8xbf16>
    tpu.vector_store %arg10[%c0_95, %c0_96, %c56], %124 {strides = array<i32>} : memref<8x16x72xbf16, #tpu.memory_space<vmem>>, vector<8x16x8xbf16>,
    %126 = vector.extract_strided_slice %121 {offsets = [0, 2, 0], sizes = [8, 16, 8], strides = [1, 1, 1]} : vector<8x18x8xbf16> to vector<8x16x8xbf16>
    %c0_97 = arith.constant 0 : index
    %c0_98 = arith.constant 0 : index
    %c64 = arith.constant 64 : index
    %127 = vector.load %arg10[%c0_97, %c0_98, %c64] : memref<8x16x72xbf16, #tpu.memory_space<vmem>>, vector<8x16x8xbf16>
    tpu.vector_store %arg10[%c0_97, %c0_98, %c64], %126 {strides = array<i32>} : memref<8x16x72xbf16, #tpu.memory_space<vmem>>, vector<8x16x8xbf16>,
    %c0_99 = arith.constant 0 : index
    %c0_100 = arith.constant 0 : index
    %c0_101 = arith.constant 0 : index
    %128 = vector.load %arg10[%c0_99, %c0_100, %c0_101] : memref<8x16x72xbf16, #tpu.memory_space<vmem>>, vector<8x16x72xbf16>
    %129 = vector.shape_cast %128 : vector<8x16x72xbf16> to vector<128x72xbf16>
    %c0_102 = arith.constant 0 : index
    %c0_103 = arith.constant 0 : index
    %130 = vector.load %arg5[%c0_102, %c0_103] : memref<72x128xbf16, #tpu.memory_space<vmem>>, vector<72x128xbf16>
    %cst_104 = arith.constant dense<0.000000e+00> : vector<128x128xf32>
    %131 = tpu.matmul %129, %130, %cst_104 {dimension_numbers = #tpu.dot_dimension_numbers<[1], [0], [0], [1], [0, 0, 1, 1], [], []>} : vector<128x72xbf16>, vector<72x128xbf16>, vector<128x128xf32> -> vector<128x128xf32>
    %c0_105 = arith.constant 0 : index
    %c0_106 = arith.constant 0 : index
    %132 = vector.load %arg6[%c0_105, %c0_106] : memref<1x128xf32, #tpu.memory_space<vmem>>, vector<1x128xf32>
    %133 = vector.broadcast %132 : vector<1x128xf32> to vector<128x128xf32>
    %134 = arith.addf %131, %133 : vector<128x128xf32>
    %cst_107 = arith.constant 0.000000e+00 : f32
    %135 = vector.broadcast %cst_107 : f32 to vector<128x128xf32>
    %136 = arith.cmpf ogt, %134, %135 : vector<128x128xf32>
    %cst_108 = arith.constant 0.00999999977 : f32
    %137 = vector.broadcast %cst_108 : f32 to vector<128x128xf32>
    %138 = arith.mulf %137, %134 : vector<128x128xf32>
    %139 = arith.select %136, %134, %138 : vector<128x128xi1>, vector<128x128xf32>
    %140 = tpu.iota {dimensions = array<i32: 0>} : vector<128x1xi32>
    %c16_i32 = arith.constant 16 : i32
    %c0_i32 = arith.constant 0 : i32
    %141 = arith.cmpi eq, %c16_i32, %c0_i32 : i32
    %c1_i32 = arith.constant 1 : i32
    %142 = arith.select %141, %c1_i32, %c16_i32 : i32
    %143 = vector.broadcast %142 : i32 to vector<128x1xi32>
    %144 = arith.remsi %140, %143 : vector<128x1xi32>
    %c0_i32_109 = arith.constant 0 : i32
    %145 = vector.broadcast %c0_i32_109 : i32 to vector<128x1xi32>
    %146 = arith.cmpi ne, %144, %145 : vector<128x1xi32>
    %c0_i32_110 = arith.constant 0 : i32
    %147 = vector.broadcast %c0_i32_110 : i32 to vector<128x1xi32>
    %148 = arith.cmpi slt, %144, %147 : vector<128x1xi32>
    %c0_i32_111 = arith.constant 0 : i32
    %149 = arith.cmpi slt, %142, %c0_i32_111 : i32
    %150 = vector.broadcast %149 : i1 to vector<128x1xi1>
    %151 = vector.broadcast %150 : vector<128x1xi1> to vector<128x1xi1>
    %152 = arith.xori %148, %151 : vector<128x1xi1>
    %153 = arith.andi %152, %146 : vector<128x1xi1>
    %154 = vector.broadcast %142 : i32 to vector<128x1xi32>
    %155 = arith.addi %144, %154 : vector<128x1xi32>
    %156 = arith.select %153, %155, %144 : vector<128x1xi1>, vector<128x1xi32>
    %c2_i32 = arith.constant 2 : i32
    %c0_i32_112 = arith.constant 0 : i32
    %157 = arith.cmpi eq, %c2_i32, %c0_i32_112 : i32
    %c1_i32_113 = arith.constant 1 : i32
    %158 = arith.select %157, %c1_i32_113, %c2_i32 : i32
    %159 = vector.broadcast %158 : i32 to vector<128x1xi32>
    %160 = arith.remsi %156, %159 : vector<128x1xi32>
    %c0_i32_114 = arith.constant 0 : i32
    %161 = vector.broadcast %c0_i32_114 : i32 to vector<128x1xi32>
    %162 = arith.cmpi ne, %160, %161 : vector<128x1xi32>
    %c0_i32_115 = arith.constant 0 : i32
    %163 = vector.broadcast %c0_i32_115 : i32 to vector<128x1xi32>
    %164 = arith.cmpi slt, %160, %163 : vector<128x1xi32>
    %c0_i32_116 = arith.constant 0 : i32
    %165 = arith.cmpi slt, %158, %c0_i32_116 : i32
    %166 = vector.broadcast %165 : i1 to vector<128x1xi1>
    %167 = vector.broadcast %166 : vector<128x1xi1> to vector<128x1xi1>
    %168 = arith.xori %164, %167 : vector<128x1xi1>
    %169 = arith.andi %168, %162 : vector<128x1xi1>
    %170 = vector.broadcast %158 : i32 to vector<128x1xi32>
    %171 = arith.addi %160, %170 : vector<128x1xi32>
    %172 = arith.select %169, %171, %160 : vector<128x1xi1>, vector<128x1xi32>
    %c0_i32_117 = arith.constant 0 : i32
    %173 = vector.broadcast %c0_i32_117 : i32 to vector<128x1xi32>
    %174 = arith.cmpi eq, %172, %173 : vector<128x1xi32>
    %cst_118 = arith.constant 0.000000e+00 : f32
    %175 = vector.shape_cast %174 : vector<128x1xi1> to vector<128x1xi1>
    %176 = vector.broadcast %175 : vector<128x1xi1> to vector<128x128xi1>
    %177 = vector.broadcast %cst_118 : f32 to vector<128x128xf32>
    %178 = arith.select %176, %139, %177 : vector<128x128xi1>, vector<128x128xf32>
    %cst_119 = arith.constant dense<0.000000e+00> : vector<128xf32>
    %179 = vector.multi_reduction <add>, %178, %cst_119 [0] : vector<128x128xf32> to vector<128xf32>
    %180 = vector.shape_cast %179 : vector<128xf32> to vector<1x128xf32>
    %c0_120 = arith.constant 0 : index
    %c0_121 = arith.constant 0 : index
    %c0_122 = arith.constant 0 : index
    %181 = vector.load %arg8[%c0_120, %c0_121, %c0_122] : memref<1x2x128xf32, #tpu.memory_space<vmem>>, vector<1x1x128xf32>
    %182 = vector.shape_cast %181 : vector<1x1x128xf32> to vector<1x128xf32>
    %183 = vector.shape_cast %180 : vector<1x128xf32> to vector<1x1x128xf32>
    tpu.vector_store %arg8[%c0_120, %c0_121, %c0_122], %183 {strides = array<i32>} : memref<1x2x128xf32, #tpu.memory_space<vmem>>, vector<1x1x128xf32>,
    %184 = arith.mulf %178, %178 : vector<128x128xf32>
    %cst_123 = arith.constant dense<0.000000e+00> : vector<128xf32>
    %185 = vector.multi_reduction <add>, %184, %cst_123 [0] : vector<128x128xf32> to vector<128xf32>
    %186 = vector.shape_cast %185 : vector<128xf32> to vector<1x128xf32>
    %c0_124 = arith.constant 0 : index
    %c1_125 = arith.constant 1 : index
    %c0_126 = arith.constant 0 : index
    %187 = vector.load %arg8[%c0_124, %c1_125, %c0_126] : memref<1x2x128xf32, #tpu.memory_space<vmem>>, vector<1x1x128xf32>
    %188 = vector.shape_cast %187 : vector<1x1x128xf32> to vector<1x128xf32>
    %189 = vector.shape_cast %186 : vector<1x128xf32> to vector<1x1x128xf32>
    tpu.vector_store %arg8[%c0_124, %c1_125, %c0_126], %189 {strides = array<i32>} : memref<1x2x128xf32, #tpu.memory_space<vmem>>, vector<1x1x128xf32>,
    %190 = arith.truncf %139 : vector<128x128xf32> to vector<128x128xbf16>
    %c0_127 = arith.constant 0 : index
    %c0_128 = arith.constant 0 : index
    %c0_129 = arith.constant 0 : index
    %191 = vector.load %arg7[%c0_127, %c0_128, %c0_129] : memref<1x128x128xbf16, #tpu.memory_space<vmem>>, vector<1x128x128xbf16>
    %192 = vector.shape_cast %191 : vector<1x128x128xbf16> to vector<128x128xbf16>
    %193 = vector.shape_cast %190 : vector<128x128xbf16> to vector<1x128x128xbf16>
    tpu.vector_store %arg7[%c0_127, %c0_128, %c0_129], %193 {strides = array<i32>} : memref<1x128x128xbf16, #tpu.memory_space<vmem>>, vector<1x128x128xbf16>,
    return
  }
  func.func @transform_0(%arg0: i32) -> (i32, i32, i32, i32) {
    %c0_i32 = arith.constant 0 : i32
    %c0_i32_0 = arith.constant 0 : i32
    %c0_i32_1 = arith.constant 0 : i32
    %c0_i32_2 = arith.constant 0 : i32
    return %arg0, %c0_i32, %c0_i32_0, %c0_i32_1 : i32, i32, i32, i32
  }
  func.func @transform_1(%arg0: i32) -> (i32, i32, i32) {
    %c0_i32 = arith.constant 0 : i32
    %c0_i32_0 = arith.constant 0 : i32
    %c0_i32_1 = arith.constant 0 : i32
    %c0_i32_2 = arith.constant 0 : i32
    return %c0_i32, %c0_i32_0, %c0_i32_1 : i32, i32, i32
  }
  func.func @transform_2(%arg0: i32) -> (i32, i32) {
    %c0_i32 = arith.constant 0 : i32
    %c0_i32_0 = arith.constant 0 : i32
    %c0_i32_1 = arith.constant 0 : i32
    return %c0_i32, %c0_i32_0 : i32, i32
  }
  func.func @transform_3(%arg0: i32) -> (i32, i32) {
    %c0_i32 = arith.constant 0 : i32
    %c0_i32_0 = arith.constant 0 : i32
    %c0_i32_1 = arith.constant 0 : i32
    return %c0_i32, %c0_i32_0 : i32, i32
  }
  func.func @transform_4(%arg0: i32) -> (i32, i32) {
    %c0_i32 = arith.constant 0 : i32
    %c0_i32_0 = arith.constant 0 : i32
    %c0_i32_1 = arith.constant 0 : i32
    return %c0_i32, %c0_i32_0 : i32, i32
  }
  func.func @transform_5(%arg0: i32) -> (i32, i32) {
    %c0_i32 = arith.constant 0 : i32
    %c0_i32_0 = arith.constant 0 : i32
    %c0_i32_1 = arith.constant 0 : i32
    return %c0_i32, %c0_i32_0 : i32, i32
  }
  func.func @transform_6(%arg0: i32) -> (i32, i32, i32) {
    %c0_i32 = arith.constant 0 : i32
    %c0_i32_0 = arith.constant 0 : i32
    %c0_i32_1 = arith.constant 0 : i32
    return %arg0, %c0_i32, %c0_i32_0 : i32, i32, i32
  }
  func.func @transform_7(%arg0: i32) -> (i32, i32, i32) {
    %c0_i32 = arith.constant 0 : i32
    %c0_i32_0 = arith.constant 0 : i32
    %c0_i32_1 = arith.constant 0 : i32
    return %arg0, %c0_i32, %c0_i32_0 : i32, i32, i32
  }
}

</mosaic_0001>

<llo_original>
// kernel: convolution_block_forward.5
$region0: #{convolution_block_forward.5}
  #allocation0 [shape = 'u32[]', space=smem, size = 0x4, offset = 0x4, fixed_abs, tag = 'smem constant byte address 0x4 - core index']
  #allocation1 [shape = 'u32[144,128]{1,0:T(1,128)}', space=vmem, size = 0x12000, scoped, tag = 'internal scratch']
  %s0 = inlined_call_operand.vmem [shape: bf16[2,128,128], index: 0, kind: input, shape index: {}]
  %s1 = inlined_call_operand.vmem [shape: f32[2,2,128], index: 1, kind: input, shape index: {}]
  %s2 = inlined_call_operand.vmem [shape: f32[1,128], index: 2, kind: input, shape index: {}]
  %s3 = inlined_call_operand.vmem [shape: f32[1,128], index: 3, kind: input, shape index: {}]
  %s4 = inlined_call_operand.vmem [shape: f32[2,128,128], index: 4, kind: output, shape index: {}]
  %s5 = sld [smem:[#allocation0]]
  $region49: #{convolution_block_forward.5} parent=0
    _
  %s7 = ssub.s32 1, %s5
  %s8 = scalar_select 0, %s7, %s5
  loop: start=0, step=1, limit=4
  $region2: #{convolution_block_forward.5} parent=0 // loop_pre_header
    _
  $region3: #{convolution_block_forward.5} parent=0 // loop_header
    %s10 = sphi 0, %s14
    %p11 = scmp.ge.s32.totalorder %s10, 4
    %s20 = sphi 0, %s22
    %s23 = sphi 0, %s20
    %s24 = sphi 0, %s23
    %s40 = sphi 0, %s24
    %s44 = sphi 0, %s44
    %s46 = sphi 0, %s44
    %s47 = sphi 0, %s46
    %s61 = sphi 0, %s47
    %s65 = sphi 0, %s65
    %s67 = sphi 0, %s65
    %s68 = sphi 0, %s67
    %s82 = sphi 0, %s68
    %s86 = sphi 0, %s86
    %s88 = sphi 0, %s86
    %s89 = sphi 0, %s88
    %s103 = sphi 0, %s89
    %s109 = sphi 0, %s111
    %s112 = sphi 0, %s109
    %s113 = sphi 0, %s112
    %s129 = sphi 0, %s113
  $region4: #{convolution_block_forward.5} parent=0 // loop_header_branch
    %13 = sbr.rel (%p11) target = $region8
  $region5: #{convolution_block_forward.5} parent=0 // loop_body
    %s15 = ssub.s32 %s10, 1
    %s16 = ssub.s32 %s10, 2
    %s17 = sadd.s32 %s10, 1
    %s18 = ssub.s32 %s10, %s17
    %p19 = scmp.eq.s32.totalorder %s18, 0
    %s21 = sadd.s32 %s20, 1
    %s22 = scalar_select %p19, %s20, %s21
    %p25 = pneg %p19
    %p26 = scmp.eq.s32.totalorder %s10, 1
    %p27 = por %p25, %p26
    %p28 = scmp.ne.s32.totalorder %s20, %s23
    %p29 = scmp.eq.s32.totalorder %s10, 0
    %p30 = por %p28, %p29
    %p31 = scmp.ne.s32.totalorder %s20, %s23
    %p32 = scmp.eq.s32.totalorder %s15, 1
    %p33 = por %p31, %p32
    %p34 = scmp.ne.s32.totalorder %s23, %s24
    %p35 = scmp.eq.s32.totalorder %s15, 0
    %p36 = por %p34, %p35
    %p37 = scmp.ne.s32.totalorder %s23, %s24
    %p38 = scmp.eq.s32.totalorder %s16, 1
    %p39 = por %p37, %p38
    %p41 = scmp.ne.s32.totalorder %s24, %s40
    %p42 = scmp.eq.s32.totalorder %s16, 0
    %p43 = por %p41, %p42
    %s45 = sadd.s32 %s44, 1
    %p48 = scmp.eq.s32.totalorder %s10, 1
    %p49 = scmp.ne.s32.totalorder %s44, %s46
    %p50 = scmp.eq.s32.totalorder %s10, 0
    %p51 = por %p49, %p50
    %p52 = scmp.ne.s32.totalorder %s44, %s46
    %p53 = scmp.eq.s32.totalorder %s15, 1
    %p54 = por %p52, %p53
    %p55 = scmp.ne.s32.totalorder %s46, %s47
    %p56 = scmp.eq.s32.totalorder %s15, 0
    %p57 = por %p55, %p56
    %p58 = scmp.ne.s32.totalorder %s46, %s47
    %p59 = scmp.eq.s32.totalorder %s16, 1
    %p60 = por %p58, %p59
    %p62 = scmp.ne.s32.totalorder %s47, %s61
    %p63 = scmp.eq.s32.totalorder %s16, 0
    %p64 = por %p62, %p63
    %s66 = sadd.s32 %s65, 1
    %p69 = scmp.eq.s32.totalorder %s10, 1
    %p70 = scmp.ne.s32.totalorder %s65, %s67
    %p71 = scmp.eq.s32.totalorder %s10, 0
    %p72 = por %p70, %p71
    %p73 = scmp.ne.s32.totalorder %s65, %s67
    %p74 = scmp.eq.s32.totalorder %s15, 1
    %p75 = por %p73, %p74
    %p76 = scmp.ne.s32.totalorder %s67, %s68
    %p77 = scmp.eq.s32.totalorder %s15, 0
    %p78 = por %p76, %p77
    %p79 = scmp.ne.s32.totalorder %s67, %s68
    %p80 = scmp.eq.s32.totalorder %s16, 1
    %p81 = por %p79, %p80
    %p83 = scmp.ne.s32.totalorder %s68, %s82
    %p84 = scmp.eq.s32.totalorder %s16, 0
    %p85 = por %p83, %p84
    %s87 = sadd.s32 %s86, 1
    %p90 = scmp.eq.s32.totalorder %s10, 1
    %p91 = scmp.ne.s32.totalorder %s86, %s88
    %p92 = scmp.eq.s32.totalorder %s10, 0
    %p93 = por %p91, %p92
    %p94 = scmp.ne.s32.totalorder %s86, %s88
    %p95 = scmp.eq.s32.totalorder %s15, 1
    %p96 = por %p94, %p95
    %p97 = scmp.ne.s32.totalorder %s88, %s89
    %p98 = scmp.eq.s32.totalorder %s15, 0
    %p99 = por %p97, %p98
    %p100 = scmp.ne.s32.totalorder %s88, %s89
    %p101 = scmp.eq.s32.totalorder %s16, 1
    %p102 = por %p100, %p101
    %p104 = scmp.ne.s32.totalorder %s89, %s103
    %p105 = scmp.eq.s32.totalorder %s16, 0
    %p106 = por %p104, %p105
    %s107 = ssub.s32 %s10, %s17
    %p108 = scmp.eq.s32.totalorder %s107, 0
    %s110 = sadd.s32 %s109, 1
    %s111 = scalar_select %p108, %s109, %s110
    %p114 = pneg %p108
    %p115 = scmp.eq.s32.totalorder %s10, 1
    %p116 = por %p114, %p115
    %p117 = scmp.ne.s32.totalorder %s109, %s112
    %p118 = scmp.eq.s32.totalorder %s10, 0
    %p119 = por %p117, %p118
    %p120 = scmp.ne.s32.totalorder %s109, %s112
    %p121 = scmp.eq.s32.totalorder %s15, 1
    %p122 = por %p120, %p121
    %p123 = scmp.ne.s32.totalorder %s112, %s113
    %p124 = scmp.eq.s32.totalorder %s15, 0
    %p125 = por %p123, %p124
    %p126 = scmp.ne.s32.totalorder %s112, %s113
    %p127 = scmp.eq.s32.totalorder %s16, 1
    %p128 = por %p126, %p127
    %p130 = scmp.ne.s32.totalorder %s113, %s129
    %p131 = scmp.eq.s32.totalorder %s16, 0
    %p132 = por %p130, %p131
    %p133 = scmp.le.s32.totalorder 1, %s10
    %p134 = scmp.lt.s32.totalorder %s10, 3
    %p135 = pnand %p133, %p134
    %p136 = pneg %p135
    // Predicated region
    $region9: #{convolution_block_forward.5} parent=5 // pred_check
      _
    $region10: #{convolution_block_forward.5} parent=5 // pred_check_branch
      %138 = sbr.rel (%p135) target = $region12
    $region11: #{convolution_block_forward.5} parent=5 // pred_region
      %s139 = ssub.s32 %s10, 1
      // Predicated region
      $region13: #{convolution_block_forward.5} parent=11 // pred_check
        %p140 = pneg %p57
      $region14: #{convolution_block_forward.5} parent=11 // pred_check_branch
        %142 = sbr.rel (%p140) target = $region16
      $region15: #{convolution_block_forward.5} parent=11 // pred_region
        _
      $region16: #{convolution_block_forward.5} parent=11 // pred_fallthru
        _
      // Predicated region
      $region17: #{convolution_block_forward.5} parent=11 // pred_check
        %p143 = pneg %p78
      $region18: #{convolution_block_forward.5} parent=11 // pred_check_branch
        %145 = sbr.rel (%p143) target = $region20
      $region19: #{convolution_block_forward.5} parent=11 // pred_region
        _
      $region20: #{convolution_block_forward.5} parent=11 // pred_fallthru
        _
      // Predicated region
      $region21: #{convolution_block_forward.5} parent=11 // pred_check
        %p146 = pneg %p99
      $region22: #{convolution_block_forward.5} parent=11 // pred_check_branch
        %148 = sbr.rel (%p146) target = $region24
      $region23: #{convolution_block_forward.5} parent=11 // pred_region
        _
      $region24: #{convolution_block_forward.5} parent=11 // pred_fallthru
        _
    $region12: #{convolution_block_forward.5} parent=5 // pred_fallthru
      _
    %p149 = scmp.lt.s32.totalorder %s10, 2
    // Predicated region
    $region25: #{convolution_block_forward.5} parent=5 // pred_check
      %p150 = pneg %p149
    $region26: #{convolution_block_forward.5} parent=5 // pred_check_branch
      %152 = sbr.rel (%p150) target = $region28
    $region27: #{convolution_block_forward.5} parent=5 // pred_region
      // Predicated region
      $region29: #{convolution_block_forward.5} parent=27 // pred_check
        %p153 = pneg %p30
      $region30: #{convolution_block_forward.5} parent=27 // pred_check_branch
        %155 = sbr.rel (%p153) target = $region32
      $region31: #{convolution_block_forward.5} parent=27 // pred_region
        %p156 = scmp.lt.s32.totalorder %s10, 1
        %s157 = scalar_select %p156, %s10, 1
        %s158 = smul.addr %s157, 16
        %s159 = smul.addr %s158, 4
        %s160 = scalar_lea.vmem %s0, %s159
      $region32: #{convolution_block_forward.5} parent=27 // pred_fallthru
        _
    $region28: #{convolution_block_forward.5} parent=5 // pred_fallthru
      _
    %p161 = scmp.le.s32.totalorder 1, %s10
    %p162 = scmp.lt.s32.totalorder %s10, 3
    %p163 = pnand %p161, %p162
    %p164 = pneg %p163
    // Predicated region
    $region33: #{convolution_block_forward.5} parent=5 // pred_check
      _
    $region34: #{convolution_block_forward.5} parent=5 // pred_check_branch
      %166 = sbr.rel (%p163) target = $region36
    $region35: #{convolution_block_forward.5} parent=5 // pred_region
      %s167 = ssub.s32 %s10, 1
      %p168 = scmp.lt.s32.totalorder %s15, 1
      %s169 = scalar_select %p168, %s15, 1
      %s170 = smul.addr %s169, 16
      %s171 = smul.addr %s170, 4
      %s172 = scalar_lea.vmem %s0, %s171
      %p173 = pneg %p36
      %p174 = pneg %p33
      %p175 = pneg %p57
      %p176 = pneg %p54
      %p177 = pneg %p78
      %p178 = pneg %p75
      %p179 = pneg %p99
      %p180 = pneg %p96
      %p181 = pneg %p125
      %p182 = pneg %p122
      %p183 = scmp.lt.s32.totalorder %s15, 1
      %s184 = scalar_select %p183, %s15, 1
      %s185 = smul.addr %s184, 16
      %s186 = smul.addr %s185, 8
      %s187 = scalar_lea.vmem %s4, %s186
      %p188 = scmp.lt.s32.totalorder %s15, 1
      %s189 = scalar_select %p188, %s15, 1
      %s190 = smul.addr %s189, 16
      %s191 = smul.addr %s190, 4
      %s192 = scalar_lea.vmem %s0, %s191
      %p193 = scmp.lt.s32.totalorder %s15, 1
      %s194 = scalar_select %p193, %s15, 1
      %s195 = smul.addr %s194, 16
      %s196 = smul.addr %s195, 8
      %s197 = scalar_lea.vmem %s4, %s196
      %v198 = vld [vmem:[%s1] sm:$0x3]
      %v199 = vld [vmem:[%s1 + $0x2] sm:$0x3]
      %v200 = vld [vmem:[%s2] sm:$0x1]
      %v201 = vld [vmem:[%s3] sm:$0x1]
      %vm202 = vcmask 1040384
      %v203 = vsel %vm202, %v198, 0.0
      %v204 = vsel %vm202, %v199, 0.0
      %v205 = vadd.f32 %v203, %v204
      %v206 = vmul.f32 %v205, 0.0078125
      %vm207 = vcmask 1041409
      %v208 = vsel %vm207, %v198, 0.0
      %v209 = vsel %vm207, %v199, 0.0
      %v210 = vadd.f32 %v208, %v209
      %v211 = vmul.f32 %v210, 0.0078125
      %v212 = vmul.f32 %v206, %v206
      %v214 = vrot.slane %v212, 7
      %v216 = vsub.f32 %v211, %v214
      %v217 = vmax.f32 %v216, 0.0
      %v218 = vadd.f32 %v217, 1e-05
      %v219 = vrsqrt.pop %v218
      %v222 = vunpack.c.l.s4 1966171168
      %v223 = vunpack.c.0.s8 %v222
      %v224 = vlaneseq
      %v225 = vshrl.u32 %v224, 7
      %v226 = vsub.s32 %v223, %v225
      %v227 = vrot.slane %v219, %v226
      %v228 = vcombine.high %v227, %v227
      %v230 = vunpack.c.l.s4 1966171168
      %v231 = vunpack.c.0.s8 %v230
      %v232 = vlaneseq
      %v233 = vshrl.u32 %v232, 7
      %v234 = vsub.s32 %v231, %v233
      %v235 = vrot.slane %v228, %v234
      %v237 = vmul.f32 %v200, %v235
      %v238 = vmul.f32 %v206, %v237
      %v239 = vsub.f32 %v201, %v238
      %v240 = vld [vmem:[%s192] sm:$0xf]
      %v241 = vld [vmem:[%s192 + $0x4] sm:$0xf]
      %v242 = vld [vmem:[%s192 + $0x8] sm:$0xf]
      %v243 = vld [vmem:[%s192 + $0xc] sm:$0xf]
      %v244 = vld [vmem:[%s192 + $0x10] sm:$0xf]
      %v245 = vld [vmem:[%s192 + $0x14] sm:$0xf]
      %v246 = vld [vmem:[%s192 + $0x18] sm:$0xf]
      %v247 = vld [vmem:[%s192 + $0x1c] sm:$0xf]
      %v248 = vld [vmem:[%s192 + $0x20] sm:$0xf]
      %v249 = vld [vmem:[%s192 + $0x24] sm:$0xf]
      %v250 = vld [vmem:[%s192 + $0x28] sm:$0xf]
      %v251 = vld [vmem:[%s192 + $0x2c] sm:$0xf]
      %v252 = vld [vmem:[%s192 + $0x30] sm:$0xf]
      %v253 = vld [vmem:[%s192 + $0x34] sm:$0xf]
      %v254 = vld [vmem:[%s192 + $0x38] sm:$0xf]
      %v255 = vld [vmem:[%s192 + $0x3c] sm:$0xf]
      %v256 = vunpack.c.l.bf16 %v240
      %v257 = vunpack.c.l.bf16 %v241
      %v258 = vunpack.c.l.bf16 %v242
      %v259 = vunpack.c.l.bf16 %v243
      %v260 = vunpack.c.l.bf16 %v244
      %v261 = vunpack.c.l.bf16 %v245
      %v262 = vunpack.c.l.bf16 %v246
      %v263 = vunpack.c.l.bf16 %v247
      %v264 = vunpack.c.l.bf16 %v248
      %v265 = vunpack.c.l.bf16 %v249
      %v266 = vunpack.c.l.bf16 %v250
      %v267 = vunpack.c.l.bf16 %v251
      %v268 = vunpack.c.l.bf16 %v252
      %v269 = vunpack.c.l.bf16 %v253
      %v270 = vunpack.c.l.bf16 %v254
      %v271 = vunpack.c.l.bf16 %v255
      %v273 = vlaneseq
      %v274 = vshrl.u32 %v273, 7
      %v275 = vsub.s32 0, %v274
      %v276 = vrot.slane %v237, %v275
      %v278 = vmul.f32 %v256, %v276
      %v279 = vmul.f32 %v257, %v276
      %v280 = vmul.f32 %v258, %v276
      %v281 = vmul.f32 %v259, %v276
      %v282 = vmul.f32 %v260, %v276
      %v283 = vmul.f32 %v261, %v276
      %v284 = vmul.f32 %v262, %v276
      %v285 = vmul.f32 %v263, %v276
      %v286 = vmul.f32 %v264, %v276
      %v287 = vmul.f32 %v265, %v276
      %v288 = vmul.f32 %v266, %v276
      %v289 = vmul.f32 %v267, %v276
      %v290 = vmul.f32 %v268, %v276
      %v291 = vmul.f32 %v269, %v276
      %v292 = vmul.f32 %v270, %v276
      %v293 = vmul.f32 %v271, %v276
      %v295 = vlaneseq
      %v296 = vshrl.u32 %v295, 7
      %v297 = vsub.s32 0, %v296
      %v298 = vrot.slane %v239, %v297
      %v300 = vadd.f32 %v278, %v298
      %v301 = vadd.f32 %v279, %v298
      %v302 = vadd.f32 %v280, %v298
      %v303 = vadd.f32 %v281, %v298
      %v304 = vadd.f32 %v282, %v298
      %v305 = vadd.f32 %v283, %v298
      %v306 = vadd.f32 %v284, %v298
      %v307 = vadd.f32 %v285, %v298
      %v308 = vadd.f32 %v286, %v298
      %v309 = vadd.f32 %v287, %v298
      %v310 = vadd.f32 %v288, %v298
      %v311 = vadd.f32 %v289, %v298
      %v312 = vadd.f32 %v290, %v298
      %v313 = vadd.f32 %v291, %v298
      %v314 = vadd.f32 %v292, %v298
      %v315 = vadd.f32 %v293, %v298
      %316 = vst [vmem:[%s197] sm:$0xff] %v300
      %317 = vst [vmem:[%s197 + $0x8] sm:$0xff] %v301
      %318 = vst [vmem:[%s197 + $0x10] sm:$0xff] %v302
      %319 = vst [vmem:[%s197 + $0x18] sm:$0xff] %v303
      %320 = vst [vmem:[%s197 + $0x20] sm:$0xff] %v304
      %321 = vst [vmem:[%s197 + $0x28] sm:$0xff] %v305
      %322 = vst [vmem:[%s197 + $0x30] sm:$0xff] %v306
      %323 = vst [vmem:[%s197 + $0x38] sm:$0xff] %v307
      %324 = vst [vmem:[%s197 + $0x40] sm:$0xff] %v308
      %325 = vst [vmem:[%s197 + $0x48] sm:$0xff] %v309
      %326 = vst [vmem:[%s197 + $0x50] sm:$0xff] %v310
      %327 = vst [vmem:[%s197 + $0x58] sm:$0xff] %v311
      %328 = vst [vmem:[%s197 + $0x60] sm:$0xff] %v312
      %329 = vst [vmem:[%s197 + $0x68] sm:$0xff] %v313
      %330 = vst [vmem:[%s197 + $0x70] sm:$0xff] %v314
      %331 = vst [vmem:[%s197 + $0x78] sm:$0xff] %v315
      %p332 = scmp.lt.s32.totalorder %s15, 1
      %s333 = scalar_select %p332, %s15, 1
      %s334 = smul.addr %s333, 16
      %s335 = smul.addr %s334, 8
      %s336 = scalar_lea.vmem %s4, %s335
      // Predicated region
      $region37: #{convolution_block_forward.5} parent=35 // pred_check
        %p337 = pneg %p122
      $region38: #{convolution_block_forward.5} parent=35 // pred_check_branch
        %339 = sbr.rel (%p337) target = $region40
      $region39: #{convolution_block_forward.5} parent=35 // pred_region
        _
      $region40: #{convolution_block_forward.5} parent=35 // pred_fallthru
        _
    $region36: #{convolution_block_forward.5} parent=5 // pred_fallthru
      _
    %p340 = scmp.le.s32.totalorder 2, %s10
    // Predicated region
    $region41: #{convolution_block_forward.5} parent=5 // pred_check
      %p341 = pneg %p340
    $region42: #{convolution_block_forward.5} parent=5 // pred_check_branch
      %343 = sbr.rel (%p341) target = $region44
    $region43: #{convolution_block_forward.5} parent=5 // pred_region
      %s344 = ssub.s32 %s10, 2
      // Predicated region
      $region45: #{convolution_block_forward.5} parent=43 // pred_check
        %p345 = pneg %p128
      $region46: #{convolution_block_forward.5} parent=43 // pred_check_branch
        %347 = sbr.rel (%p345) target = $region48
      $region47: #{convolution_block_forward.5} parent=43 // pred_region
        %p348 = scmp.lt.s32.totalorder %s16, 1
        %s349 = scalar_select %p348, %s16, 1
        %s350 = smul.addr %s349, 16
        %s351 = smul.addr %s350, 8
        %s352 = scalar_lea.vmem %s4, %s351
      $region48: #{convolution_block_forward.5} parent=43 // pred_fallthru
        _
    $region44: #{convolution_block_forward.5} parent=5 // pred_fallthru
      _
  $region6: #{convolution_block_forward.5} parent=0 // loop_footer
    %s14 = sadd.s32 1, %s10
  $region7: #{convolution_block_forward.5} parent=0 // loop_footer_branch
    %9 = sbr.rel target = $region3
  $region8: #{convolution_block_forward.5} parent=0 // loop_exit
    _

// kernel: convolution_block_forward.4
$region0: #{convolution_block_forward.4}
  #allocation0 [shape = 'u32[]', space=smem, size = 0x4, offset = 0x4, fixed_abs, tag = 'smem constant byte address 0x4 - core index']
  #allocation1 [shape = 'u32[144,128]{1,0:T(1,128)}', space=vmem, size = 0x12000, scoped, tag = 'internal scratch']
  #allocation2 [shape = 'bf16[18,18,8]{2,1,0:T(8,128)(2,1)}', space=vmem, size = 0x1b000, scoped, tag = 'scratch operand']
  #allocation3 [shape = 'bf16[8,16,72]{2,1,0:T(16,128)(2,1)}', space=vmem, size = 0x8000, scoped, tag = 'scratch operand']
  %s0 = inlined_call_operand.vmem [shape: bf16[2,16,16,128], index: 0, kind: input, shape index: {}]
  %s1 = inlined_call_operand.vmem [shape: f32[2,2,128], index: 1, kind: input, shape index: {}]
  %s2 = inlined_call_operand.vmem [shape: f32[1,128], index: 2, kind: input, shape index: {}]
  %s3 = inlined_call_operand.vmem [shape: f32[1,128], index: 3, kind: input, shape index: {}]
  %s4 = inlined_call_operand.vmem [shape: bf16[72,128], index: 4, kind: input, shape index: {}]
  %s5 = inlined_call_operand.vmem [shape: f32[1,128], index: 5, kind: input, shape index: {}]
  %s6 = inlined_call_operand.vmem [shape: bf16[2,128,128], index: 6, kind: output, shape index: {0}]
  %s7 = inlined_call_operand.vmem [shape: f32[2,2,128], index: 7, kind: output, shape index: {1}]
  %8 = xla_tuple %s6, %s7
  %s9 = sld [smem:[#allocation0]]
  $region65: #{convolution_block_forward.4} parent=0
    _
  %s11 = ssub.s32 1, %s9
  %s12 = scalar_select 0, %s11, %s9
  loop: start=0, step=1, limit=4
  $region2: #{convolution_block_forward.4} parent=0 // loop_pre_header
    _
  $region3: #{convolution_block_forward.4} parent=0 // loop_header
    %s14 = sphi 0, %s18
    %p15 = scmp.ge.s32.totalorder %s14, 4
    %s24 = sphi 0, %s26
    %s27 = sphi 0, %s24
    %s28 = sphi 0, %s27
    %s44 = sphi 0, %s28
    %s48 = sphi 0, %s48
    %s50 = sphi 0, %s48
    %s51 = sphi 0, %s50
    %s65 = sphi 0, %s51
    %s69 = sphi 0, %s69
    %s71 = sphi 0, %s69
    %s72 = sphi 0, %s71
    %s86 = sphi 0, %s72
    %s90 = sphi 0, %s90
    %s92 = sphi 0, %s90
    %s93 = sphi 0, %s92
    %s107 = sphi 0, %s93
    %s111 = sphi 0, %s111
    %s113 = sphi 0, %s111
    %s114 = sphi 0, %s113
    %s128 = sphi 0, %s114
    %s132 = sphi 0, %s132
    %s134 = sphi 0, %s132
    %s135 = sphi 0, %s134
    %s149 = sphi 0, %s135
    %s155 = sphi 0, %s157
    %s158 = sphi 0, %s155
    %s159 = sphi 0, %s158
    %s175 = sphi 0, %s159
    %s181 = sphi 0, %s183
    %s184 = sphi 0, %s181
    %s185 = sphi 0, %s184
    %s201 = sphi 0, %s185
  $region4: #{convolution_block_forward.4} parent=0 // loop_header_branch
    %17 = sbr.rel (%p15) target = $region8
  $region5: #{convolution_block_forward.4} parent=0 // loop_body
    %s19 = ssub.s32 %s14, 1
    %s20 = ssub.s32 %s14, 2
    %s21 = sadd.s32 %s14, 1
    %s22 = ssub.s32 %s14, %s21
    %p23 = scmp.eq.s32.totalorder %s22, 0
    %s25 = sadd.s32 %s24, 1
    %s26 = scalar_select %p23, %s24, %s25
    %p29 = pneg %p23
    %p30 = scmp.eq.s32.totalorder %s14, 1
    %p31 = por %p29, %p30
    %p32 = scmp.ne.s32.totalorder %s24, %s27
    %p33 = scmp.eq.s32.totalorder %s14, 0
    %p34 = por %p32, %p33
    %p35 = scmp.ne.s32.totalorder %s24, %s27
    %p36 = scmp.eq.s32.totalorder %s19, 1
    %p37 = por %p35, %p36
    %p38 = scmp.ne.s32.totalorder %s27, %s28
    %p39 = scmp.eq.s32.totalorder %s19, 0
    %p40 = por %p38, %p39
    %p41 = scmp.ne.s32.totalorder %s27, %s28
    %p42 = scmp.eq.s32.totalorder %s20, 1
    %p43 = por %p41, %p42
    %p45 = scmp.ne.s32.totalorder %s28, %s44
    %p46 = scmp.eq.s32.totalorder %s20, 0
    %p47 = por %p45, %p46
    %s49 = sadd.s32 %s48, 1
    %p52 = scmp.eq.s32.totalorder %s14, 1
    %p53 = scmp.ne.s32.totalorder %s48, %s50
    %p54 = scmp.eq.s32.totalorder %s14, 0
    %p55 = por %p53, %p54
    %p56 = scmp.ne.s32.totalorder %s48, %s50
    %p57 = scmp.eq.s32.totalorder %s19, 1
    %p58 = por %p56, %p57
    %p59 = scmp.ne.s32.totalorder %s50, %s51
    %p60 = scmp.eq.s32.totalorder %s19, 0
    %p61 = por %p59, %p60
    %p62 = scmp.ne.s32.totalorder %s50, %s51
    %p63 = scmp.eq.s32.totalorder %s20, 1
    %p64 = por %p62, %p63
    %p66 = scmp.ne.s32.totalorder %s51, %s65
    %p67 = scmp.eq.s32.totalorder %s20, 0
    %p68 = por %p66, %p67
    %s70 = sadd.s32 %s69, 1
    %p73 = scmp.eq.s32.totalorder %s14, 1
    %p74 = scmp.ne.s32.totalorder %s69, %s71
    %p75 = scmp.eq.s32.totalorder %s14, 0
    %p76 = por %p74, %p75
    %p77 = scmp.ne.s32.totalorder %s69, %s71
    %p78 = scmp.eq.s32.totalorder %s19, 1
    %p79 = por %p77, %p78
    %p80 = scmp.ne.s32.totalorder %s71, %s72
    %p81 = scmp.eq.s32.totalorder %s19, 0
    %p82 = por %p80, %p81
    %p83 = scmp.ne.s32.totalorder %s71, %s72
    %p84 = scmp.eq.s32.totalorder %s20, 1
    %p85 = por %p83, %p84
    %p87 = scmp.ne.s32.totalorder %s72, %s86
    %p88 = scmp.eq.s32.totalorder %s20, 0
    %p89 = por %p87, %p88
    %s91 = sadd.s32 %s90, 1
    %p94 = scmp.eq.s32.totalorder %s14, 1
    %p95 = scmp.ne.s32.totalorder %s90, %s92
    %p96 = scmp.eq.s32.totalorder %s14, 0
    %p97 = por %p95, %p96
    %p98 = scmp.ne.s32.totalorder %s90, %s92
    %p99 = scmp.eq.s32.totalorder %s19, 1
    %p100 = por %p98, %p99
    %p101 = scmp.ne.s32.totalorder %s92, %s93
    %p102 = scmp.eq.s32.totalorder %s19, 0
    %p103 = por %p101, %p102
    %p104 = scmp.ne.s32.totalorder %s92, %s93
    %p105 = scmp.eq.s32.totalorder %s20, 1
    %p106 = por %p104, %p105
    %p108 = scmp.ne.s32.totalorder %s93, %s107
    %p109 = scmp.eq.s32.totalorder %s20, 0
    %p110 = por %p108, %p109
    %s112 = sadd.s32 %s111, 1
    %p115 = scmp.eq.s32.totalorder %s14, 1
    %p116 = scmp.ne.s32.totalorder %s111, %s113
    %p117 = scmp.eq.s32.totalorder %s14, 0
    %p118 = por %p116, %p117
    %p119 = scmp.ne.s32.totalorder %s111, %s113
    %p120 = scmp.eq.s32.totalorder %s19, 1
    %p121 = por %p119, %p120
    %p122 = scmp.ne.s32.totalorder %s113, %s114
    %p123 = scmp.eq.s32.totalorder %s19, 0
    %p124 = por %p122, %p123
    %p125 = scmp.ne.s32.totalorder %s113, %s114
    %p126 = scmp.eq.s32.totalorder %s20, 1
    %p127 = por %p125, %p126
    %p129 = scmp.ne.s32.totalorder %s114, %s128
    %p130 = scmp.eq.s32.totalorder %s20, 0
    %p131 = por %p129, %p130
    %s133 = sadd.s32 %s132, 1
    %p136 = scmp.eq.s32.totalorder %s14, 1
    %p137 = scmp.ne.s32.totalorder %s132, %s134
    %p138 = scmp.eq.s32.totalorder %s14, 0
    %p139 = por %p137, %p138
    %p140 = scmp.ne.s32.totalorder %s132, %s134
    %p141 = scmp.eq.s32.totalorder %s19, 1
    %p142 = por %p140, %p141
    %p143 = scmp.ne.s32.totalorder %s134, %s135
    %p144 = scmp.eq.s32.totalorder %s19, 0
    %p145 = por %p143, %p144
    %p146 = scmp.ne.s32.totalorder %s134, %s135
    %p147 = scmp.eq.s32.totalorder %s20, 1
    %p148 = por %p146, %p147
    %p150 = scmp.ne.s32.totalorder %s135, %s149
    %p151 = scmp.eq.s32.totalorder %s20, 0
    %p152 = por %p150, %p151
    %s153 = ssub.s32 %s14, %s21
    %p154 = scmp.eq.s32.totalorder %s153, 0
    %s156 = sadd.s32 %s155, 1
    %s157 = scalar_select %p154, %s155, %s156
    %p160 = pneg %p154
    %p161 = scmp.eq.s32.totalorder %s14, 1
    %p162 = por %p160, %p161
    %p163 = scmp.ne.s32.totalorder %s155, %s158
    %p164 = scmp.eq.s32.totalorder %s14, 0
    %p165 = por %p163, %p164
    %p166 = scmp.ne.s32.totalorder %s155, %s158
    %p167 = scmp.eq.s32.totalorder %s19, 1
    %p168 = por %p166, %p167
    %p169 = scmp.ne.s32.totalorder %s158, %s159
    %p170 = scmp.eq.s32.totalorder %s19, 0
    %p171 = por %p169, %p170
    %p172 = scmp.ne.s32.totalorder %s158, %s159
    %p173 = scmp.eq.s32.totalorder %s20, 1
    %p174 = por %p172, %p173
    %p176 = scmp.ne.s32.totalorder %s159, %s175
    %p177 = scmp.eq.s32.totalorder %s20, 0
    %p178 = por %p176, %p177
    %s179 = ssub.s32 %s14, %s21
    %p180 = scmp.eq.s32.totalorder %s179, 0
    %s182 = sadd.s32 %s181, 1
    %s183 = scalar_select %p180, %s181, %s182
    %p186 = pneg %p180
    %p187 = scmp.eq.s32.totalorder %s14, 1
    %p188 = por %p186, %p187
    %p189 = scmp.ne.s32.totalorder %s181, %s184
    %p190 = scmp.eq.s32.totalorder %s14, 0
    %p191 = por %p189, %p190
    %p192 = scmp.ne.s32.totalorder %s181, %s184
    %p193 = scmp.eq.s32.totalorder %s19, 1
    %p194 = por %p192, %p193
    %p195 = scmp.ne.s32.totalorder %s184, %s185
    %p196 = scmp.eq.s32.totalorder %s19, 0
    %p197 = por %p195, %p196
    %p198 = scmp.ne.s32.totalorder %s184, %s185
    %p199 = scmp.eq.s32.totalorder %s20, 1
    %p200 = por %p198, %p199
    %p202 = scmp.ne.s32.totalorder %s185, %s201
    %p203 = scmp.eq.s32.totalorder %s20, 0
    %p204 = por %p202, %p203
    %p205 = scmp.le.s32.totalorder 1, %s14
    %p206 = scmp.lt.s32.totalorder %s14, 3
    %p207 = pnand %p205, %p206
    %p208 = pneg %p207
    // Predicated region
    $region9: #{convolution_block_forward.4} parent=5 // pred_check
      _
    $region10: #{convolution_block_forward.4} parent=5 // pred_check_branch
      %210 = sbr.rel (%p207) target = $region12
    $region11: #{convolution_block_forward.4} parent=5 // pred_region
      %s211 = ssub.s32 %s14, 1
      // Predicated region
      $region13: #{convolution_block_forward.4} parent=11 // pred_check
        %p212 = pneg %p61
      $region14: #{convolution_block_forward.4} parent=11 // pred_check_branch
        %214 = sbr.rel (%p212) target = $region16
      $region15: #{convolution_block_forward.4} parent=11 // pred_region
        _
      $region16: #{convolution_block_forward.4} parent=11 // pred_fallthru
        _
      // Predicated region
      $region17: #{convolution_block_forward.4} parent=11 // pred_check
        %p215 = pneg %p82
      $region18: #{convolution_block_forward.4} parent=11 // pred_check_branch
        %217 = sbr.rel (%p215) target = $region20
      $region19: #{convolution_block_forward.4} parent=11 // pred_region
        _
      $region20: #{convolution_block_forward.4} parent=11 // pred_fallthru
        _
      // Predicated region
      $region21: #{convolution_block_forward.4} parent=11 // pred_check
        %p218 = pneg %p103
      $region22: #{convolution_block_forward.4} parent=11 // pred_check_branch
        %220 = sbr.rel (%p218) target = $region24
      $region23: #{convolution_block_forward.4} parent=11 // pred_region
        _
      $region24: #{convolution_block_forward.4} parent=11 // pred_fallthru
        _
      // Predicated region
      $region25: #{convolution_block_forward.4} parent=11 // pred_check
        %p221 = pneg %p124
      $region26: #{convolution_block_forward.4} parent=11 // pred_check_branch
        %223 = sbr.rel (%p221) target = $region28
      $region27: #{convolution_block_forward.4} parent=11 // pred_region
        _
      $region28: #{convolution_block_forward.4} parent=11 // pred_fallthru
        _
      // Predicated region
      $region29: #{convolution_block_forward.4} parent=11 // pred_check
        %p224 = pneg %p145
      $region30: #{convolution_block_forward.4} parent=11 // pred_check_branch
        %226 = sbr.rel (%p224) target = $region32
      $region31: #{convolution_block_forward.4} parent=11 // pred_region
        _
      $region32: #{convolution_block_forward.4} parent=11 // pred_fallthru
        _
    $region12: #{convolution_block_forward.4} parent=5 // pred_fallthru
      _
    %p227 = scmp.lt.s32.totalorder %s14, 2
    // Predicated region
    $region33: #{convolution_block_forward.4} parent=5 // pred_check
      %p228 = pneg %p227
    $region34: #{convolution_block_forward.4} parent=5 // pred_check_branch
      %230 = sbr.rel (%p228) target = $region36
    $region35: #{convolution_block_forward.4} parent=5 // pred_region
      // Predicated region
      $region37: #{convolution_block_forward.4} parent=35 // pred_check
        %p231 = pneg %p34
      $region38: #{convolution_block_forward.4} parent=35 // pred_check_branch
        %233 = sbr.rel (%p231) target = $region40
      $region39: #{convolution_block_forward.4} parent=35 // pred_region
        %p234 = scmp.lt.s32.totalorder %s14, 1
        %s235 = scalar_select %p234, %s14, 1
        %s236 = smul.addr %s235, 32
        %s237 = smul.addr %s236, 4
        %s238 = scalar_lea.vmem %s0, %s237
      $region40: #{convolution_block_forward.4} parent=35 // pred_fallthru
        _
    $region36: #{convolution_block_forward.4} parent=5 // pred_fallthru
      _
    %p239 = scmp.le.s32.totalorder 1, %s14
    %p240 = scmp.lt.s32.totalorder %s14, 3
    %p241 = pnand %p239, %p240
    %p242 = pneg %p241
    // Predicated region
    $region41: #{convolution_block_forward.4} parent=5 // pred_check
      _
    $region42: #{convolution_block_forward.4} parent=5 // pred_check_branch
      %244 = sbr.rel (%p241) target = $region44
    $region43: #{convolution_block_forward.4} parent=5 // pred_region
      %s245 = ssub.s32 %s14, 1
      %p246 = scmp.lt.s32.totalorder %s19, 1
      %s247 = scalar_select %p246, %s19, 1
      %s248 = smul.addr %s247, 32
      %s249 = smul.addr %s248, 4
      %s250 = scalar_lea.vmem %s0, %s249
      %p251 = pneg %p40
      %p252 = pneg %p37
      %p253 = pneg %p61
      %p254 = pneg %p58
      %p255 = pneg %p82
      %p256 = pneg %p79
      %p257 = pneg %p103
      %p258 = pneg %p100
      %p259 = pneg %p124
      %p260 = pneg %p121
      %p261 = pneg %p145
      %p262 = pneg %p142
      %p263 = pneg %p171
      %p264 = pneg %p168
      %p265 = scmp.lt.s32.totalorder %s19, 1
      %s266 = scalar_select %p265, %s19, 1
      %s267 = smul.addr %s266, 16
      %s268 = smul.addr %s267, 4
      %s269 = scalar_lea.vmem %s6, %s268
      %p270 = pneg %p197
      %p271 = pneg %p194
      %p272 = scmp.lt.s32.totalorder %s19, 1
      %s273 = scalar_select %p272, %s19, 1
      %s274 = smul.addr %s273, 2
      %s275 = scalar_lea.vmem %s7, %s274
      %p276 = scmp.lt.s32.totalorder %s19, 1
      %s277 = scalar_select %p276, %s19, 1
      %s278 = smul.addr %s277, 32
      %s279 = smul.addr %s278, 4
      %s280 = scalar_lea.vmem %s0, %s279
      %p281 = scmp.lt.s32.totalorder %s19, 1
      %s282 = scalar_select %p281, %s19, 1
      %s283 = smul.addr %s282, 16
      %s284 = smul.addr %s283, 4
      %s285 = scalar_lea.vmem %s6, %s284
      %p286 = scmp.lt.s32.totalorder %s19, 1
      %s287 = scalar_select %p286, %s19, 1
      %s288 = smul.addr %s287, 2
      %s289 = scalar_lea.vmem %s7, %s288
      %v291 = vld [vmem:[%s1] sm:$0x3]
      %v292 = vld [vmem:[%s1 + $0x2] sm:$0x3]
      %v293 = vld [vmem:[%s2] sm:$0x1]
      %v294 = vld [vmem:[%s3] sm:$0x1]
      %vm295 = vcmask 1040384
      %v296 = vsel %vm295, %v291, 0.0
      %v297 = vsel %vm295, %v292, 0.0
      %v298 = vadd.f32 %v296, %v297
      %v299 = vmul.f32 %v298, 0.001953125
      %vm300 = vcmask 1041409
      %v301 = vsel %vm300, %v291, 0.0
      %v302 = vsel %vm300, %v292, 0.0
      %v303 = vadd.f32 %v301, %v302
      %v304 = vmul.f32 %v303, 0.001953125
      %v305 = vmul.f32 %v299, %v299
      %v307 = vrot.slane %v305, 7
      %v309 = vsub.f32 %v304, %v307
      %v310 = vmax.f32 %v309, 0.0
      %v311 = vadd.f32 %v310, 1e-05
      %v312 = vrsqrt.pop %v311
      %v315 = vunpack.c.l.s4 1966171168
      %v316 = vunpack.c.0.s8 %v315
      %v317 = vlaneseq
      %v318 = vshrl.u32 %v317, 7
      %v319 = vsub.s32 %v316, %v318
      %v320 = vrot.slane %v312, %v319
      %v321 = vcombine.high %v320, %v320
      %v323 = vunpack.c.l.s4 1966171168
      %v324 = vunpack.c.0.s8 %v323
      %v325 = vlaneseq
      %v326 = vshrl.u32 %v325, 7
      %v327 = vsub.s32 %v324, %v326
      %v328 = vrot.slane %v321, %v327
      %v330 = vmul.f32 %v293, %v328
      %v331 = vmul.f32 %v299, %v330
      %v332 = vsub.f32 %v294, %v331
      %v333 = vld [vmem:[%s280] sm:$0xf]
      %v334 = vld [vmem:[%s280 + $0x4] sm:$0xf]
      %v335 = vld [vmem:[%s280 + $0x8] sm:$0xf]
      %v336 = vld [vmem:[%s280 + $0xc] sm:$0xf]
      %v337 = vld [vmem:[%s280 + $0x10] sm:$0xf]
      %v338 = vld [vmem:[%s280 + $0x14] sm:$0xf]
      %v339 = vld [vmem:[%s280 + $0x18] sm:$0xf]
      %v340 = vld [vmem:[%s280 + $0x1c] sm:$0xf]
      %v341 = vld [vmem:[%s280 + $0x20] sm:$0xf]
      %v342 = vld [vmem:[%s280 + $0x24] sm:$0xf]
      %v343 = vld [vmem:[%s280 + $0x28] sm:$0xf]
      %v344 = vld [vmem:[%s280 + $0x2c] sm:$0xf]
      %v345 = vld [vmem:[%s280 + $0x30] sm:$0xf]
      %v346 = vld [vmem:[%s280 + $0x34] sm:$0xf]
      %v347 = vld [vmem:[%s280 + $0x38] sm:$0xf]
      %v348 = vld [vmem:[%s280 + $0x3c] sm:$0xf]
      %v349 = vld [vmem:[%s280 + $0x40] sm:$0xf]
      %v350 = vld [vmem:[%s280 + $0x44] sm:$0xf]
      %v351 = vld [vmem:[%s280 + $0x48] sm:$0xf]
      %v352 = vld [vmem:[%s280 + $0x4c] sm:$0xf]
      %v353 = vld [vmem:[%s280 + $0x50] sm:$0xf]
      %v354 = vld [vmem:[%s280 + $0x54] sm:$0xf]
      %v355 = vld [vmem:[%s280 + $0x58] sm:$0xf]
      %v356 = vld [vmem:[%s280 + $0x5c] sm:$0xf]
      %v357 = vld [vmem:[%s280 + $0x60] sm:$0xf]
      %v358 = vld [vmem:[%s280 + $0x64] sm:$0xf]
      %v359 = vld [vmem:[%s280 + $0x68] sm:$0xf]
      %v360 = vld [vmem:[%s280 + $0x6c] sm:$0xf]
      %v361 = vld [vmem:[%s280 + $0x70] sm:$0xf]
      %v362 = vld [vmem:[%s280 + $0x74] sm:$0xf]
      %v363 = vld [vmem:[%s280 + $0x78] sm:$0xf]
      %v364 = vld [vmem:[%s280 + $0x7c] sm:$0xf]
      %v365 = vunpack.c.l.bf16 %v333
      %v366 = vunpack.c.l.bf16 %v334
      %v367 = vunpack.c.l.bf16 %v335
      %v368 = vunpack.c.l.bf16 %v336
      %v369 = vunpack.c.l.bf16 %v337
      %v370 = vunpack.c.l.bf16 %v338
      %v371 = vunpack.c.l.bf16 %v339
      %v372 = vunpack.c.l.bf16 %v340
      %v373 = vunpack.c.l.bf16 %v341
      %v374 = vunpack.c.l.bf16 %v342
      %v375 = vunpack.c.l.bf16 %v343
      %v376 = vunpack.c.l.bf16 %v344
      %v377 = vunpack.c.l.bf16 %v345
      %v378 = vunpack.c.l.bf16 %v346
      %v379 = vunpack.c.l.bf16 %v347
      %v380 = vunpack.c.l.bf16 %v348
      %v381 = vunpack.c.l.bf16 %v349
      %v382 = vunpack.c.l.bf16 %v350
      %v383 = vunpack.c.l.bf16 %v351
      %v384 = vunpack.c.l.bf16 %v352
      %v385 = vunpack.c.l.bf16 %v353
      %v386 = vunpack.c.l.bf16 %v354
      %v387 = vunpack.c.l.bf16 %v355
      %v388 = vunpack.c.l.bf16 %v356
      %v389 = vunpack.c.l.bf16 %v357
      %v390 = vunpack.c.l.bf16 %v358
      %v391 = vunpack.c.l.bf16 %v359
      %v392 = vunpack.c.l.bf16 %v360
      %v393 = vunpack.c.l.bf16 %v361
      %v394 = vunpack.c.l.bf16 %v362
      %v395 = vunpack.c.l.bf16 %v363
      %v396 = vunpack.c.l.bf16 %v364
      %v398 = vlaneseq
      %v399 = vshrl.u32 %v398, 7
      %v400 = vsub.s32 0, %v399
      %v401 = vrot.slane %v330, %v400
      %v403 = vmul.f32 %v365, %v401
      %v404 = vmul.f32 %v366, %v401
      %v405 = vmul.f32 %v367, %v401
      %v406 = vmul.f32 %v368, %v401
      %v407 = vmul.f32 %v369, %v401
      %v408 = vmul.f32 %v370, %v401
      %v409 = vmul.f32 %v371, %v401
      %v410 = vmul.f32 %v372, %v401
      %v411 = vmul.f32 %v373, %v401
      %v412 = vmul.f32 %v374, %v401
      %v413 = vmul.f32 %v375, %v401
      %v414 = vmul.f32 %v376, %v401
      %v415 = vmul.f32 %v377, %v401
      %v416 = vmul.f32 %v378, %v401
      %v417 = vmul.f32 %v379, %v401
      %v418 = vmul.f32 %v380, %v401
      %v419 = vmul.f32 %v381, %v401
      %v420 = vmul.f32 %v382, %v401
      %v421 = vmul.f32 %v383, %v401
      %v422 = vmul.f32 %v384, %v401
      %v423 = vmul.f32 %v385, %v401
      %v424 = vmul.f32 %v386, %v401
      %v425 = vmul.f32 %v387, %v401
      %v426 = vmul.f32 %v388, %v401
      %v427 = vmul.f32 %v389, %v401
      %v428 = vmul.f32 %v390, %v401
      %v429 = vmul.f32 %v391, %v401
      %v430 = vmul.f32 %v392, %v401
      %v431 = vmul.f32 %v393, %v401
      %v432 = vmul.f32 %v394, %v401
      %v433 = vmul.f32 %v395, %v401
      %v434 = vmul.f32 %v396, %v401
      %v436 = vlaneseq
      %v437 = vshrl.u32 %v436, 7
      %v438 = vsub.s32 0, %v437
      %v439 = vrot.slane %v332, %v438
      %v441 = vadd.f32 %v403, %v439
      %v442 = vadd.f32 %v404, %v439
      %v443 = vadd.f32 %v405, %v439
      %v444 = vadd.f32 %v406, %v439
      %v445 = vadd.f32 %v407, %v439
      %v446 = vadd.f32 %v408, %v439
      %v447 = vadd.f32 %v409, %v439
      %v448 = vadd.f32 %v410, %v439
      %v449 = vadd.f32 %v411, %v439
      %v450 = vadd.f32 %v412, %v439
      %v451 = vadd.f32 %v413, %v439
      %v452 = vadd.f32 %v414, %v439
      %v453 = vadd.f32 %v415, %v439
      %v454 = vadd.f32 %v416, %v439
      %v455 = vadd.f32 %v417, %v439
      %v456 = vadd.f32 %v418, %v439
      %v457 = vadd.f32 %v419, %v439
      %v458 = vadd.f32 %v420, %v439
      %v459 = vadd.f32 %v421, %v439
      %v460 = vadd.f32 %v422, %v439
      %v461 = vadd.f32 %v423, %v439
      %v462 = vadd.f32 %v424, %v439
      %v463 = vadd.f32 %v425, %v439
      %v464 = vadd.f32 %v426, %v439
      %v465 = vadd.f32 %v427, %v439
      %v466 = vadd.f32 %v428, %v439
      %v467 = vadd.f32 %v429, %v439
      %v468 = vadd.f32 %v430, %v439
      %v469 = vadd.f32 %v431, %v439
      %v470 = vadd.f32 %v432, %v439
      %v471 = vadd.f32 %v433, %v439
      %v472 = vadd.f32 %v434, %v439
      %v473 = vpack.c.bf16 %v442, %v441
      %v474 = vpack.c.bf16 %v444, %v443
      %v475 = vpack.c.bf16 %v446, %v445
      %v476 = vpack.c.bf16 %v448, %v447
      %v477 = vpack.c.bf16 %v450, %v449
      %v478 = vpack.c.bf16 %v452, %v451
      %v479 = vpack.c.bf16 %v454, %v453
      %v480 = vpack.c.bf16 %v456, %v455
      %v481 = vpack.c.bf16 %v458, %v457
      %v482 = vpack.c.bf16 %v460, %v459
      %v483 = vpack.c.bf16 %v462, %v461
      %v484 = vpack.c.bf16 %v464, %v463
      %v485 = vpack.c.bf16 %v466, %v465
      %v486 = vpack.c.bf16 %v468, %v467
      %v487 = vpack.c.bf16 %v470, %v469
      %v488 = vpack.c.bf16 %v472, %v471
      %vm489 = vcmask 60416
      %490 = vst.msk [vmem:[#allocation2] sm:$0xf] %vm489, 0
      %491 = vst.msk [vmem:[#allocation2 + $0x4] sm:$0xf] %vm489, 0
      %vm492 = vcmask 57344
      %493 = vst.msk [vmem:[#allocation2 + $0x8] sm:$0x1] %vm492, 0
      %494 = vst.msk [vmem:[#allocation2 + $0xc] sm:$0xf] %vm489, 0
      %495 = vst.msk [vmem:[#allocation2 + $0x10] sm:$0xf] %vm489, 0
      %496 = vst.msk [vmem:[#allocation2 + $0x14] sm:$0x1] %vm492, 0
      %497 = vst.msk [vmem:[#allocation2 + $0x18] sm:$0xf] %vm489, 0
      %498 = vst.msk [vmem:[#allocation2 + $0x1c] sm:$0xf] %vm489, 0
      %499 = vst.msk [vmem:[#allocation2 + $0x20] sm:$0x1] %vm492, 0
      %500 = vst.msk [vmem:[#allocation2 + $0x24] sm:$0xf] %vm489, 0
      %501 = vst.msk [vmem:[#allocation2 + $0x28] sm:$0xf] %vm489, 0
      %502 = vst.msk [vmem:[#allocation2 + $0x2c] sm:$0x1] %vm492, 0
      %503 = vst.msk [vmem:[#allocation2 + $0x30] sm:$0xf] %vm489, 0
      %504 = vst.msk [vmem:[#allocation2 + $0x34] sm:$0xf] %vm489, 0
      %505 = vst.msk [vmem:[#allocation2 + $0x38] sm:$0x1] %vm492, 0
      %506 = vst.msk [vmem:[#allocation2 + $0x3c] sm:$0xf] %vm489, 0
      %507 = vst.msk [vmem:[#allocation2 + $0x40] sm:$0xf] %vm489, 0
      %508 = vst.msk [vmem:[#allocation2 + $0x44] sm:$0x1] %vm492, 0
      %509 = vst.msk [vmem:[#allocation2 + $0x48] sm:$0xf] %vm489, 0
      %510 = vst.msk [vmem:[#allocation2 + $0x4c] sm:$0xf] %vm489, 0
      %511 = vst.msk [vmem:[#allocation2 + $0x50] sm:$0x1] %vm492, 0
      %512 = vst.msk [vmem:[#allocation2 + $0x54] sm:$0xf] %vm489, 0
      %513 = vst.msk [vmem:[#allocation2 + $0x58] sm:$0xf] %vm489, 0
      %514 = vst.msk [vmem:[#allocation2 + $0x5c] sm:$0x1] %vm492, 0
      %515 = vst.msk [vmem:[#allocation2 + $0x60] sm:$0xf] %vm489, 0
      %516 = vst.msk [vmem:[#allocation2 + $0x64] sm:$0xf] %vm489, 0
      %517 = vst.msk [vmem:[#allocation2 + $0x68] sm:$0x1] %vm492, 0
      %518 = vst.msk [vmem:[#allocation2 + $0x6c] sm:$0xf] %vm489, 0
      %519 = vst.msk [vmem:[#allocation2 + $0x70] sm:$0xf] %vm489, 0
      %520 = vst.msk [vmem:[#allocation2 + $0x74] sm:$0x1] %vm492, 0
      %521 = vst.msk [vmem:[#allocation2 + $0x78] sm:$0xf] %vm489, 0
      %522 = vst.msk [vmem:[#allocation2 + $0x7c] sm:$0xf] %vm489, 0
      %523 = vst.msk [vmem:[#allocation2 + $0x80] sm:$0x1] %vm492, 0
      %524 = vst.msk [vmem:[#allocation2 + $0x84] sm:$0xf] %vm489, 0
      %525 = vst.msk [vmem:[#allocation2 + $0x88] sm:$0xf] %vm489, 0
      %526 = vst.msk [vmem:[#allocation2 + $0x8c] sm:$0x1] %vm492, 0
      %527 = vst.msk [vmem:[#allocation2 + $0x90] sm:$0xf] %vm489, 0
      %528 = vst.msk [vmem:[#allocation2 + $0x94] sm:$0xf] %vm489, 0
      %529 = vst.msk [vmem:[#allocation2 + $0x98] sm:$0x1] %vm492, 0
      %530 = vst.msk [vmem:[#allocation2 + $0x9c] sm:$0xf] %vm489, 0
      %531 = vst.msk [vmem:[#allocation2 + $0xa0] sm:$0xf] %vm489, 0
      %532 = vst.msk [vmem:[#allocation2 + $0xa4] sm:$0x1] %vm492, 0
      %533 = vst.msk [vmem:[#allocation2 + $0xa8] sm:$0xf] %vm489, 0
      %534 = vst.msk [vmem:[#allocation2 + $0xac] sm:$0xf] %vm489, 0
      %535 = vst.msk [vmem:[#allocation2 + $0xb0] sm:$0x1] %vm492, 0
      %536 = vst.msk [vmem:[#allocation2 + $0xb4] sm:$0xf] %vm489, 0
      %537 = vst.msk [vmem:[#allocation2 + $0xb8] sm:$0xf] %vm489, 0
      %538 = vst.msk [vmem:[#allocation2 + $0xbc] sm:$0x1] %vm492, 0
      %539 = vst.msk [vmem:[#allocation2 + $0xc0] sm:$0xf] %vm489, 0
      %540 = vst.msk [vmem:[#allocation2 + $0xc4] sm:$0xf] %vm489, 0
      %541 = vst.msk [vmem:[#allocation2 + $0xc8] sm:$0x1] %vm492, 0
      %542 = vst.msk [vmem:[#allocation2 + $0xcc] sm:$0xf] %vm489, 0
      %543 = vst.msk [vmem:[#allocation2 + $0xd0] sm:$0xf] %vm489, 0
      %544 = vst.msk [vmem:[#allocation2 + $0xd4] sm:$0x1] %vm492, 0
      %v561 = vunpack.c.l.b16 %v473
      %v562 = vunpack.c.h.b16 %v473
      %v563 = vunpack.c.l.b16 %v474
      %v564 = vunpack.c.h.b16 %v474
      %v565 = vunpack.c.l.b16 %v475
      %v566 = vunpack.c.h.b16 %v475
      %v567 = vunpack.c.l.b16 %v476
      %v568 = vunpack.c.h.b16 %v476
      %v569 = vunpack.c.l.b16 %v477
      %v570 = vunpack.c.h.b16 %v477
      %v571 = vunpack.c.l.b16 %v478
      %v572 = vunpack.c.h.b16 %v478
      %v573 = vunpack.c.l.b16 %v479
      %v574 = vunpack.c.h.b16 %v479
      %v575 = vunpack.c.l.b16 %v480
      %v576 = vunpack.c.h.b16 %v480
      %v577 = vunpack.c.l.b16 %v481
      %v578 = vunpack.c.h.b16 %v481
      %v579 = vunpack.c.l.b16 %v482
      %v580 = vunpack.c.h.b16 %v482
      %v581 = vunpack.c.l.b16 %v483
      %v582 = vunpack.c.h.b16 %v483
      %v583 = vunpack.c.l.b16 %v484
      %v584 = vunpack.c.h.b16 %v484
      %v585 = vunpack.c.l.b16 %v485
      %v586 = vunpack.c.h.b16 %v485
      %v587 = vunpack.c.l.b16 %v486
      %v588 = vunpack.c.h.b16 %v486
      %v589 = vunpack.c.l.b16 %v487
      %v590 = vunpack.c.h.b16 %v487
      %v591 = vunpack.c.l.b16 %v488
      %v592 = vunpack.c.h.b16 %v488
      %v593 = vpack.c.b16 %v561, %v561
      %v594 = vpack.c.b16 %v562, %v562
      %v595 = vpack.c.b16 %v563, %v563
      %v596 = vpack.c.b16 %v564, %v564
      %v597 = vpack.c.b16 %v565, %v565
      %v598 = vpack.c.b16 %v566, %v566
      %v599 = vpack.c.b16 %v567, %v567
      %v600 = vpack.c.b16 %v568, %v568
      %v601 = vpack.c.b16 %v569, %v569
      %v602 = vpack.c.b16 %v570, %v570
      %v603 = vpack.c.b16 %v571, %v571
      %v604 = vpack.c.b16 %v572, %v572
      %v605 = vpack.c.b16 %v573, %v573
      %v606 = vpack.c.b16 %v574, %v574
      %v607 = vpack.c.b16 %v575, %v575
      %v608 = vpack.c.b16 %v576, %v576
      %v609 = vpack.c.b16 %v577, %v577
      %v610 = vpack.c.b16 %v578, %v578
      %v611 = vpack.c.b16 %v579, %v579
      %v612 = vpack.c.b16 %v580, %v580
      %v613 = vpack.c.b16 %v581, %v581
      %v614 = vpack.c.b16 %v582, %v582
      %v615 = vpack.c.b16 %v583, %v583
      %v616 = vpack.c.b16 %v584, %v584
      %v617 = vpack.c.b16 %v585, %v585
      %v618 = vpack.c.b16 %v586, %v586
      %v619 = vpack.c.b16 %v587, %v587
      %v620 = vpack.c.b16 %v588, %v588
      %v621 = vpack.c.b16 %v589, %v589
      %v622 = vpack.c.b16 %v590, %v590
      %v623 = vpack.c.b16 %v591, %v591
      %v624 = vpack.c.b16 %v592, %v592
      %vm625 = vsmask.f32 256
      %vm626 = vsmask.f32 4368
      %vm627 = vmor %vm625, %vm626
      %v629 = vshrl.u32 %v593, 16
      %v631 = vrot.slane %v629, 7
      %v632 = vshll.u32 %v593, 16
      %v634 = vor.u32 %v631, %v632
      %v635 = vrot.slane %v631, 4
      %v637 = vshrl.u32 %v594, 16
      %v639 = vrot.slane %v637, 7
      %v640 = vshll.u32 %v594, 16
      %v642 = vor.u32 %v639, %v640
      %v643 = vsel %vm627, %v635, %v642
      %v644 = vrot.slane %v639, 4
      %v646 = vshrl.u32 %v595, 16
      %v648 = vrot.slane %v646, 7
      %v649 = vshll.u32 %v595, 16
      %v651 = vor.u32 %v648, %v649
      %v652 = vrot.slane %v648, 4
      %v654 = vshrl.u32 %v596, 16
      %v656 = vrot.slane %v654, 7
      %v657 = vshll.u32 %v596, 16
      %v659 = vor.u32 %v656, %v657
      %v660 = vsel %vm627, %v652, %v659
      %v661 = vrot.slane %v656, 4
      %v663 = vshrl.u32 %v597, 16
      %v665 = vrot.slane %v663, 7
      %v666 = vshll.u32 %v597, 16
      %v668 = vor.u32 %v665, %v666
      %v669 = vrot.slane %v665, 4
      %v671 = vshrl.u32 %v598, 16
      %v673 = vrot.slane %v671, 7
      %v674 = vshll.u32 %v598, 16
      %v676 = vor.u32 %v673, %v674
      %v677 = vsel %vm627, %v669, %v676
      %v678 = vrot.slane %v673, 4
      %v680 = vshrl.u32 %v599, 16
      %v682 = vrot.slane %v680, 7
      %v683 = vshll.u32 %v599, 16
      %v685 = vor.u32 %v682, %v683
      %v686 = vrot.slane %v682, 4
      %v688 = vshrl.u32 %v600, 16
      %v690 = vrot.slane %v688, 7
      %v691 = vshll.u32 %v600, 16
      %v693 = vor.u32 %v690, %v691
      %v694 = vsel %vm627, %v686, %v693
      %v695 = vrot.slane %v690, 4
      %v697 = vshrl.u32 %v601, 16
      %v699 = vrot.slane %v697, 7
      %v700 = vshll.u32 %v601, 16
      %v702 = vor.u32 %v699, %v700
      %v703 = vrot.slane %v699, 4
      %v705 = vshrl.u32 %v602, 16
      %v707 = vrot.slane %v705, 7
      %v708 = vshll.u32 %v602, 16
      %v710 = vor.u32 %v707, %v708
      %v711 = vsel %vm627, %v703, %v710
      %v712 = vrot.slane %v707, 4
      %v714 = vshrl.u32 %v603, 16
      %v716 = vrot.slane %v714, 7
      %v717 = vshll.u32 %v603, 16
      %v719 = vor.u32 %v716, %v717
      %v720 = vrot.slane %v716, 4
      %v722 = vshrl.u32 %v604, 16
      %v724 = vrot.slane %v722, 7
      %v725 = vshll.u32 %v604, 16
      %v727 = vor.u32 %v724, %v725
      %v728 = vsel %vm627, %v720, %v727
      %v729 = vrot.slane %v724, 4
      %v731 = vshrl.u32 %v605, 16
      %v733 = vrot.slane %v731, 7
      %v734 = vshll.u32 %v605, 16
      %v736 = vor.u32 %v733, %v734
      %v737 = vrot.slane %v733, 4
      %v739 = vshrl.u32 %v606, 16
      %v741 = vrot.slane %v739, 7
      %v742 = vshll.u32 %v606, 16
      %v744 = vor.u32 %v741, %v742
      %v745 = vsel %vm627, %v737, %v744
      %v746 = vrot.slane %v741, 4
      %v748 = vshrl.u32 %v607, 16
      %v750 = vrot.slane %v748, 7
      %v751 = vshll.u32 %v607, 16
      %v753 = vor.u32 %v750, %v751
      %v754 = vrot.slane %v750, 4
      %v756 = vshrl.u32 %v608, 16
      %v758 = vrot.slane %v756, 7
      %v759 = vshll.u32 %v608, 16
      %v761 = vor.u32 %v758, %v759
      %v762 = vsel %vm627, %v754, %v761
      %v763 = vrot.slane %v758, 4
      %v765 = vshrl.u32 %v609, 16
      %v767 = vrot.slane %v765, 7
      %v768 = vshll.u32 %v609, 16
      %v770 = vor.u32 %v767, %v768
      %v771 = vrot.slane %v767, 4
      %v773 = vshrl.u32 %v610, 16
      %v775 = vrot.slane %v773, 7
      %v776 = vshll.u32 %v610, 16
      %v778 = vor.u32 %v775, %v776
      %v779 = vsel %vm627, %v771, %v778
      %v780 = vrot.slane %v775, 4
      %v782 = vshrl.u32 %v611, 16
      %v784 = vrot.slane %v782, 7
      %v785 = vshll.u32 %v611, 16
      %v787 = vor.u32 %v784, %v785
      %v788 = vrot.slane %v784, 4
      %v790 = vshrl.u32 %v612, 16
      %v792 = vrot.slane %v790, 7
      %v793 = vshll.u32 %v612, 16
      %v795 = vor.u32 %v792, %v793
      %v796 = vsel %vm627, %v788, %v795
      %v797 = vrot.slane %v792, 4
      %v799 = vshrl.u32 %v613, 16
      %v801 = vrot.slane %v799, 7
      %v802 = vshll.u32 %v613, 16
      %v804 = vor.u32 %v801, %v802
      %v805 = vrot.slane %v801, 4
      %v807 = vshrl.u32 %v614, 16
      %v809 = vrot.slane %v807, 7
      %v810 = vshll.u32 %v614, 16
      %v812 = vor.u32 %v809, %v810
      %v813 = vsel %vm627, %v805, %v812
      %v814 = vrot.slane %v809, 4
      %v816 = vshrl.u32 %v615, 16
      %v818 = vrot.slane %v816, 7
      %v819 = vshll.u32 %v615, 16
      %v821 = vor.u32 %v818, %v819
      %v822 = vrot.slane %v818, 4
      %v824 = vshrl.u32 %v616, 16
      %v826 = vrot.slane %v824, 7
      %v827 = vshll.u32 %v616, 16
      %v829 = vor.u32 %v826, %v827
      %v830 = vsel %vm627, %v822, %v829
      %v831 = vrot.slane %v826, 4
      %v833 = vshrl.u32 %v617, 16
      %v835 = vrot.slane %v833, 7
      %v836 = vshll.u32 %v617, 16
      %v838 = vor.u32 %v835, %v836
      %v839 = vrot.slane %v835, 4
      %v841 = vshrl.u32 %v618, 16
      %v843 = vrot.slane %v841, 7
      %v844 = vshll.u32 %v618, 16
      %v846 = vor.u32 %v843, %v844
      %v847 = vsel %vm627, %v839, %v846
      %v848 = vrot.slane %v843, 4
      %v850 = vshrl.u32 %v619, 16
      %v852 = vrot.slane %v850, 7
      %v853 = vshll.u32 %v619, 16
      %v855 = vor.u32 %v852, %v853
      %v856 = vrot.slane %v852, 4
      %v858 = vshrl.u32 %v620, 16
      %v860 = vrot.slane %v858, 7
      %v861 = vshll.u32 %v620, 16
      %v863 = vor.u32 %v860, %v861
      %v864 = vsel %vm627, %v856, %v863
      %v865 = vrot.slane %v860, 4
      %v867 = vshrl.u32 %v621, 16
      %v869 = vrot.slane %v867, 7
      %v870 = vshll.u32 %v621, 16
      %v872 = vor.u32 %v869, %v870
      %v873 = vrot.slane %v869, 4
      %v875 = vshrl.u32 %v622, 16
      %v877 = vrot.slane %v875, 7
      %v878 = vshll.u32 %v622, 16
      %v880 = vor.u32 %v877, %v878
      %v881 = vsel %vm627, %v873, %v880
      %v882 = vrot.slane %v877, 4
      %v884 = vshrl.u32 %v623, 16
      %v886 = vrot.slane %v884, 7
      %v887 = vshll.u32 %v623, 16
      %v889 = vor.u32 %v886, %v887
      %v890 = vrot.slane %v886, 4
      %v892 = vshrl.u32 %v624, 16
      %v894 = vrot.slane %v892, 7
      %v895 = vshll.u32 %v624, 16
      %v897 = vor.u32 %v894, %v895
      %v898 = vsel %vm627, %v890, %v897
      %v899 = vrot.slane %v894, 4
      %s948 = scalar_lea.vmem [#allocation2], 12
      %vm949 = vcmask 60416
      %vm950 = vsmask.f32 7938
      %vm951 = vmand %vm949, %vm950
      %v952 = vld [vmem:[%s948] sm:$0xf]
      %v953 = vsel %vm951, %v634, %v952
      %954 = vst [vmem:[%s948] sm:$0xf] %v953
      %955 = vst.msk [vmem:[%s948 + $0x4] sm:$0xf] %vm489, %v643
      %vm956 = vcmask 57344
      %vm957 = vmand %vm956, %vm625
      %v958 = vld [vmem:[%s948 + $0x8] sm:$0x1]
      %v959 = vsel %vm957, %v644, %v958
      %960 = vst [vmem:[%s948 + $0x8] sm:$0x1] %v959
      %v961 = vld [vmem:[%s948 + $0xc] sm:$0xf]
      %v962 = vsel %vm951, %v651, %v961
      %963 = vst [vmem:[%s948 + $0xc] sm:$0xf] %v962
      %964 = vst.msk [vmem:[%s948 + $0x10] sm:$0xf] %vm489, %v660
      %v965 = vld [vmem:[%s948 + $0x14] sm:$0x1]
      %v966 = vsel %vm957, %v661, %v965
      %967 = vst [vmem:[%s948 + $0x14] sm:$0x1] %v966
      %v968 = vld [vmem:[%s948 + $0x18] sm:$0xf]
      %v969 = vsel %vm951, %v668, %v968
      %970 = vst [vmem:[%s948 + $0x18] sm:$0xf] %v969
      %971 = vst.msk [vmem:[%s948 + $0x1c] sm:$0xf] %vm489, %v677
      %v972 = vld [vmem:[%s948 + $0x20] sm:$0x1]
      %v973 = vsel %vm957, %v678, %v972
      %974 = vst [vmem:[%s948 + $0x20] sm:$0x1] %v973
      %v975 = vld [vmem:[%s948 + $0x24] sm:$0xf]
      %v976 = vsel %vm951, %v685, %v975
      %977 = vst [vmem:[%s948 + $0x24] sm:$0xf] %v976
      %978 = vst.msk [vmem:[%s948 + $0x28] sm:$0xf] %vm489, %v694
      %v979 = vld [vmem:[%s948 + $0x2c] sm:$0x1]
      %v980 = vsel %vm957, %v695, %v979
      %981 = vst [vmem:[%s948 + $0x2c] sm:$0x1] %v980
      %v982 = vld [vmem:[%s948 + $0x30] sm:$0xf]
      %v983 = vsel %vm951, %v702, %v982
      %984 = vst [vmem:[%s948 + $0x30] sm:$0xf] %v983
      %985 = vst.msk [vmem:[%s948 + $0x34] sm:$0xf] %vm489, %v711
      %v986 = vld [vmem:[%s948 + $0x38] sm:$0x1]
      %v987 = vsel %vm957, %v712, %v986
      %988 = vst [vmem:[%s948 + $0x38] sm:$0x1] %v987
      %v989 = vld [vmem:[%s948 + $0x3c] sm:$0xf]
      %v990 = vsel %vm951, %v719, %v989
      %991 = vst [vmem:[%s948 + $0x3c] sm:$0xf] %v990
      %992 = vst.msk [vmem:[%s948 + $0x40] sm:$0xf] %vm489, %v728
      %v993 = vld [vmem:[%s948 + $0x44] sm:$0x1]
      %v994 = vsel %vm957, %v729, %v993
      %995 = vst [vmem:[%s948 + $0x44] sm:$0x1] %v994
      %v996 = vld [vmem:[%s948 + $0x48] sm:$0xf]
      %v997 = vsel %vm951, %v736, %v996
      %998 = vst [vmem:[%s948 + $0x48] sm:$0xf] %v997
      %999 = vst.msk [vmem:[%s948 + $0x4c] sm:$0xf] %vm489, %v745
      %v1000 = vld [vmem:[%s948 + $0x50] sm:$0x1]
      %v1001 = vsel %vm957, %v746, %v1000
      %1002 = vst [vmem:[%s948 + $0x50] sm:$0x1] %v1001
      %v1003 = vld [vmem:[%s948 + $0x54] sm:$0xf]
      %v1004 = vsel %vm951, %v753, %v1003
      %1005 = vst [vmem:[%s948 + $0x54] sm:$0xf] %v1004
      %1006 = vst.msk [vmem:[%s948 + $0x58] sm:$0xf] %vm489, %v762
      %v1007 = vld [vmem:[%s948 + $0x5c] sm:$0x1]
      %v1008 = vsel %vm957, %v763, %v1007
      %1009 = vst [vmem:[%s948 + $0x5c] sm:$0x1] %v1008
      %v1010 = vld [vmem:[%s948 + $0x60] sm:$0xf]
      %v1011 = vsel %vm951, %v770, %v1010
      %1012 = vst [vmem:[%s948 + $0x60] sm:$0xf] %v1011
      %1013 = vst.msk [vmem:[%s948 + $0x64] sm:$0xf] %vm489, %v779
      %v1014 = vld [vmem:[%s948 + $0x68] sm:$0x1]
      %v1015 = vsel %vm957, %v780, %v1014
      %1016 = vst [vmem:[%s948 + $0x68] sm:$0x1] %v1015
      %v1017 = vld [vmem:[%s948 + $0x6c] sm:$0xf]
      %v1018 = vsel %vm951, %v787, %v1017
      %1019 = vst [vmem:[%s948 + $0x6c] sm:$0xf] %v1018
      %1020 = vst.msk [vmem:[%s948 + $0x70] sm:$0xf] %vm489, %v796
      %v1021 = vld [vmem:[%s948 + $0x74] sm:$0x1]
      %v1022 = vsel %vm957, %v797, %v1021
      %1023 = vst [vmem:[%s948 + $0x74] sm:$0x1] %v1022
      %v1024 = vld [vmem:[%s948 + $0x78] sm:$0xf]
      %v1025 = vsel %vm951, %v804, %v1024
      %1026 = vst [vmem:[%s948 + $0x78] sm:$0xf] %v1025
      %1027 = vst.msk [vmem:[%s948 + $0x7c] sm:$0xf] %vm489, %v813
      %v1028 = vld [vmem:[%s948 + $0x80] sm:$0x1]
      %v1029 = vsel %vm957, %v814, %v1028
      %1030 = vst [vmem:[%s948 + $0x80] sm:$0x1] %v1029
      %v1031 = vld [vmem:[%s948 + $0x84] sm:$0xf]
      %v1032 = vsel %vm951, %v821, %v1031
      %1033 = vst [vmem:[%s948 + $0x84] sm:$0xf] %v1032
      %1034 = vst.msk [vmem:[%s948 + $0x88] sm:$0xf] %vm489, %v830
      %v1035 = vld [vmem:[%s948 + $0x8c] sm:$0x1]
      %v1036 = vsel %vm957, %v831, %v1035
      %1037 = vst [vmem:[%s948 + $0x8c] sm:$0x1] %v1036
      %v1038 = vld [vmem:[%s948 + $0x90] sm:$0xf]
      %v1039 = vsel %vm951, %v838, %v1038
      %1040 = vst [vmem:[%s948 + $0x90] sm:$0xf] %v1039
      %1041 = vst.msk [vmem:[%s948 + $0x94] sm:$0xf] %vm489, %v847
      %v1042 = vld [vmem:[%s948 + $0x98] sm:$0x1]
      %v1043 = vsel %vm957, %v848, %v1042
      %1044 = vst [vmem:[%s948 + $0x98] sm:$0x1] %v1043
      %v1045 = vld [vmem:[%s948 + $0x9c] sm:$0xf]
      %v1046 = vsel %vm951, %v855, %v1045
      %1047 = vst [vmem:[%s948 + $0x9c] sm:$0xf] %v1046
      %1048 = vst.msk [vmem:[%s948 + $0xa0] sm:$0xf] %vm489, %v864
      %v1049 = vld [vmem:[%s948 + $0xa4] sm:$0x1]
      %v1050 = vsel %vm957, %v865, %v1049
      %1051 = vst [vmem:[%s948 + $0xa4] sm:$0x1] %v1050
      %v1052 = vld [vmem:[%s948 + $0xa8] sm:$0xf]
      %v1053 = vsel %vm951, %v872, %v1052
      %1054 = vst [vmem:[%s948 + $0xa8] sm:$0xf] %v1053
      %1055 = vst.msk [vmem:[%s948 + $0xac] sm:$0xf] %vm489, %v881
      %v1056 = vld [vmem:[%s948 + $0xb0] sm:$0x1]
      %v1057 = vsel %vm957, %v882, %v1056
      %1058 = vst [vmem:[%s948 + $0xb0] sm:$0x1] %v1057
      %v1059 = vld [vmem:[%s948 + $0xb4] sm:$0xf]
      %v1060 = vsel %vm951, %v889, %v1059
      %1061 = vst [vmem:[%s948 + $0xb4] sm:$0xf] %v1060
      %1062 = vst.msk [vmem:[%s948 + $0xb8] sm:$0xf] %vm489, %v898
      %v1063 = vld [vmem:[%s948 + $0xbc] sm:$0x1]
      %v1064 = vsel %vm957, %v899, %v1063
      %1065 = vst [vmem:[%s948 + $0xbc] sm:$0x1] %v1064
      %v1066 = vld [vmem:[#allocation2] sm:$0xf]
      %v1067 = vld [vmem:[#allocation2 + $0x4] sm:$0xf]
      %v1068 = vld [vmem:[#allocation2 + $0x8] sm:$0x1]
      %s1069 = scalar_lea.vmem [#allocation2], 24
      %v1070 = vld [vmem:[%s1069] sm:$0xf]
      %v1071 = vld [vmem:[%s1069 + $0x4] sm:$0xf]
      %v1072 = vld [vmem:[%s1069 + $0x8] sm:$0x1]
      %s1073 = scalar_lea.vmem [#allocation2], 48
      %v1074 = vld [vmem:[%s1073] sm:$0xf]
      %v1075 = vld [vmem:[%s1073 + $0x4] sm:$0xf]
      %v1076 = vld [vmem:[%s1073 + $0x8] sm:$0x1]
      %s1077 = scalar_lea.vmem [#allocation2], 72
      %v1078 = vld [vmem:[%s1077] sm:$0xf]
      %v1079 = vld [vmem:[%s1077 + $0x4] sm:$0xf]
      %v1080 = vld [vmem:[%s1077 + $0x8] sm:$0x1]
      %s1081 = scalar_lea.vmem [#allocation2], 96
      %v1082 = vld [vmem:[%s1081] sm:$0xf]
      %v1083 = vld [vmem:[%s1081 + $0x4] sm:$0xf]
      %v1084 = vld [vmem:[%s1081 + $0x8] sm:$0x1]
      %s1085 = scalar_lea.vmem [#allocation2], 120
      %v1086 = vld [vmem:[%s1085] sm:$0xf]
      %v1087 = vld [vmem:[%s1085 + $0x4] sm:$0xf]
      %v1088 = vld [vmem:[%s1085 + $0x8] sm:$0x1]
      %s1089 = scalar_lea.vmem [#allocation2], 144
      %v1090 = vld [vmem:[%s1089] sm:$0xf]
      %v1091 = vld [vmem:[%s1089 + $0x4] sm:$0xf]
      %v1092 = vld [vmem:[%s1089 + $0x8] sm:$0x1]
      %s1093 = scalar_lea.vmem [#allocation2], 168
      %v1094 = vld [vmem:[%s1093] sm:$0xf]
      %v1095 = vld [vmem:[%s1093 + $0x4] sm:$0xf]
      %v1096 = vld [vmem:[%s1093 + $0x8] sm:$0x1]
      %v1113 = vunpack.c.l.b16 %v1066
      %v1114 = vunpack.c.l.b16 %v1067
      %v1115 = vunpack.c.l.b16 %v1070
      %v1116 = vunpack.c.l.b16 %v1071
      %v1117 = vunpack.c.l.b16 %v1074
      %v1118 = vunpack.c.l.b16 %v1075
      %v1119 = vunpack.c.l.b16 %v1078
      %v1120 = vunpack.c.l.b16 %v1079
      %v1121 = vunpack.c.l.b16 %v1082
      %v1122 = vunpack.c.l.b16 %v1083
      %v1123 = vunpack.c.l.b16 %v1086
      %v1124 = vunpack.c.l.b16 %v1087
      %v1125 = vunpack.c.l.b16 %v1090
      %v1126 = vunpack.c.l.b16 %v1091
      %v1127 = vunpack.c.l.b16 %v1094
      %v1128 = vunpack.c.l.b16 %v1095
      %v1129 = vpack.c.b16 %v1114, %v1113
      %v1130 = vpack.c.b16 %v1116, %v1115
      %v1131 = vpack.c.b16 %v1118, %v1117
      %v1132 = vpack.c.b16 %v1120, %v1119
      %v1133 = vpack.c.b16 %v1122, %v1121
      %v1134 = vpack.c.b16 %v1124, %v1123
      %v1135 = vpack.c.b16 %v1126, %v1125
      %v1136 = vpack.c.b16 %v1128, %v1127
      %vm1145 = vcmask 64512
      %1146 = vst.msk [vmem:[#allocation3] sm:$0xff] %vm1145, %v1129
      %1147 = vst.msk [vmem:[#allocation3 + $0x8] sm:$0xff] %vm1145, %v1130
      %1148 = vst.msk [vmem:[#allocation3 + $0x10] sm:$0xff] %vm1145, %v1131
      %1149 = vst.msk [vmem:[#allocation3 + $0x18] sm:$0xff] %vm1145, %v1132
      %1150 = vst.msk [vmem:[#allocation3 + $0x20] sm:$0xff] %vm1145, %v1133
      %1151 = vst.msk [vmem:[#allocation3 + $0x28] sm:$0xff] %vm1145, %v1134
      %1152 = vst.msk [vmem:[#allocation3 + $0x30] sm:$0xff] %vm1145, %v1135
      %1153 = vst.msk [vmem:[#allocation3 + $0x38] sm:$0xff] %vm1145, %v1136
      %v1162 = vunpack.c.l.b16 %v1068
      %v1163 = vunpack.c.l.b16 %v1072
      %v1164 = vunpack.c.l.b16 %v1076
      %v1165 = vunpack.c.l.b16 %v1080
      %v1166 = vunpack.c.l.b16 %v1084
      %v1167 = vunpack.c.l.b16 %v1088
      %v1168 = vunpack.c.l.b16 %v1092
      %v1169 = vunpack.c.l.b16 %v1096
      %v1170 = vpack.c.b16 %v1162, %v1162
      %v1171 = vpack.c.b16 %v1163, %v1163
      %v1172 = vpack.c.b16 %v1164, %v1164
      %v1173 = vpack.c.b16 %v1165, %v1165
      %v1174 = vpack.c.b16 %v1166, %v1166
      %v1175 = vpack.c.b16 %v1167, %v1167
      %v1176 = vpack.c.b16 %v1168, %v1168
      %v1177 = vpack.c.b16 %v1169, %v1169
      %vm1178 = vsmask.f32 7424
      %v1180 = vshrl.u32 %v1129, 16
      %v1182 = vshll.u32 %v1129, 16
      %v1184 = vrot.slane %v1182, 1
      %v1185 = vor.u32 %v1180, %v1184
      %v1187 = vshll.u32 %v1170, 16
      %v1189 = vrot.slane %v1187, 1
      %v1190 = vsel %vm1178, %v1185, %v1189
      %v1192 = vshrl.u32 %v1130, 16
      %v1194 = vshll.u32 %v1130, 16
      %v1196 = vrot.slane %v1194, 1
      %v1197 = vor.u32 %v1192, %v1196
      %v1199 = vshll.u32 %v1171, 16
      %v1201 = vrot.slane %v1199, 1
      %v1202 = vsel %vm1178, %v1197, %v1201
      %v1204 = vshrl.u32 %v1131, 16
      %v1206 = vshll.u32 %v1131, 16
      %v1208 = vrot.slane %v1206, 1
      %v1209 = vor.u32 %v1204, %v1208
      %v1211 = vshll.u32 %v1172, 16
      %v1213 = vrot.slane %v1211, 1
      %v1214 = vsel %vm1178, %v1209, %v1213
      %v1216 = vshrl.u32 %v1132, 16
      %v1218 = vshll.u32 %v1132, 16
      %v1220 = vrot.slane %v1218, 1
      %v1221 = vor.u32 %v1216, %v1220
      %v1223 = vshll.u32 %v1173, 16
      %v1225 = vrot.slane %v1223, 1
      %v1226 = vsel %vm1178, %v1221, %v1225
      %v1228 = vshrl.u32 %v1133, 16
      %v1230 = vshll.u32 %v1133, 16
      %v1232 = vrot.slane %v1230, 1
      %v1233 = vor.u32 %v1228, %v1232
      %v1235 = vshll.u32 %v1174, 16
      %v1237 = vrot.slane %v1235, 1
      %v1238 = vsel %vm1178, %v1233, %v1237
      %v1240 = vshrl.u32 %v1134, 16
      %v1242 = vshll.u32 %v1134, 16
      %v1244 = vrot.slane %v1242, 1
      %v1245 = vor.u32 %v1240, %v1244
      %v1247 = vshll.u32 %v1175, 16
      %v1249 = vrot.slane %v1247, 1
      %v1250 = vsel %vm1178, %v1245, %v1249
      %v1252 = vshrl.u32 %v1135, 16
      %v1254 = vshll.u32 %v1135, 16
      %v1256 = vrot.slane %v1254, 1
      %v1257 = vor.u32 %v1252, %v1256
      %v1259 = vshll.u32 %v1176, 16
      %v1261 = vrot.slane %v1259, 1
      %v1262 = vsel %vm1178, %v1257, %v1261
      %v1264 = vshrl.u32 %v1136, 16
      %v1266 = vshll.u32 %v1136, 16
      %v1268 = vrot.slane %v1266, 1
      %v1269 = vor.u32 %v1264, %v1268
      %v1271 = vshll.u32 %v1177, 16
      %v1273 = vrot.slane %v1271, 1
      %v1274 = vsel %vm1178, %v1269, %v1273
      %1275 = vrot.lane.b32.xlu0 %v1190, 8
      %v1276 = vpop.permute.xlu0 %1275
      %1277 = vrot.lane.b32.xlu0 %v1202, 8
      %v1278 = vpop.permute.xlu0 %1277
      %1279 = vrot.lane.b32.xlu0 %v1214, 8
      %v1280 = vpop.permute.xlu0 %1279
      %1281 = vrot.lane.b32.xlu0 %v1226, 8
      %v1282 = vpop.permute.xlu0 %1281
      %1283 = vrot.lane.b32.xlu0 %v1238, 8
      %v1284 = vpop.permute.xlu0 %1283
      %1285 = vrot.lane.b32.xlu0 %v1250, 8
      %v1286 = vpop.permute.xlu0 %1285
      %1287 = vrot.lane.b32.xlu0 %v1262, 8
      %v1288 = vpop.permute.xlu0 %1287
      %1289 = vrot.lane.b32.xlu0 %v1274, 8
      %v1290 = vpop.permute.xlu0 %1289
      %vm1299 = vcmask 130112
      %1300 = vst.msk [vmem:[#allocation3] sm:$0xff] %vm1299, %v1276
      %1301 = vst.msk [vmem:[#allocation3 + $0x8] sm:$0xff] %vm1299, %v1278
      %1302 = vst.msk [vmem:[#allocation3 + $0x10] sm:$0xff] %vm1299, %v1280
      %1303 = vst.msk [vmem:[#allocation3 + $0x18] sm:$0xff] %vm1299, %v1282
      %1304 = vst.msk [vmem:[#allocation3 + $0x20] sm:$0xff] %vm1299, %v1284
      %1305 = vst.msk [vmem:[#allocation3 + $0x28] sm:$0xff] %vm1299, %v1286
      %1306 = vst.msk [vmem:[#allocation3 + $0x30] sm:$0xff] %vm1299, %v1288
      %1307 = vst.msk [vmem:[#allocation3 + $0x38] sm:$0xff] %vm1299, %v1290
      %vm1308 = vcmask 1046528
      %v1309 = vrot.slane %v1129, 1
      %v1310 = vrot.slane %v1170, 1
      %v1311 = vsel %vm1308, %v1309, %v1310
      %v1312 = vrot.slane %v1130, 1
      %v1313 = vrot.slane %v1171, 1
      %v1314 = vsel %vm1308, %v1312, %v1313
      %v1315 = vrot.slane %v1131, 1
      %v1316 = vrot.slane %v1172, 1
      %v1317 = vsel %vm1308, %v1315, %v1316
      %v1318 = vrot.slane %v1132, 1
      %v1319 = vrot.slane %v1173, 1
      %v1320 = vsel %vm1308, %v1318, %v1319
      %v1321 = vrot.slane %v1133, 1
      %v1322 = vrot.slane %v1174, 1
      %v1323 = vsel %vm1308, %v1321, %v1322
      %v1324 = vrot.slane %v1134, 1
      %v1325 = vrot.slane %v1175, 1
      %v1326 = vsel %vm1308, %v1324, %v1325
      %v1327 = vrot.slane %v1135, 1
      %v1328 = vrot.slane %v1176, 1
      %v1329 = vsel %vm1308, %v1327, %v1328
      %v1330 = vrot.slane %v1136, 1
      %v1331 = vrot.slane %v1177, 1
      %v1332 = vsel %vm1308, %v1330, %v1331
      %1333 = vrot.lane.b32.xlu0 %v1311, 16
      %v1334 = vpop.permute.xlu0 %1333
      %1335 = vrot.lane.b32.xlu0 %v1314, 16
      %v1336 = vpop.permute.xlu0 %1335
      %1337 = vrot.lane.b32.xlu0 %v1317, 16
      %v1338 = vpop.permute.xlu0 %1337
      %1339 = vrot.lane.b32.xlu0 %v1320, 16
      %v1340 = vpop.permute.xlu0 %1339
      %1341 = vrot.lane.b32.xlu0 %v1323, 16
      %v1342 = vpop.permute.xlu0 %1341
      %1343 = vrot.lane.b32.xlu0 %v1326, 16
      %v1344 = vpop.permute.xlu0 %1343
      %1345 = vrot.lane.b32.xlu0 %v1329, 16
      %v1346 = vpop.permute.xlu0 %1345
      %1347 = vrot.lane.b32.xlu0 %v1332, 16
      %v1348 = vpop.permute.xlu0 %1347
      %vm1357 = vcmask 195712
      %1358 = vst.msk [vmem:[#allocation3] sm:$0xff] %vm1357, %v1334
      %1359 = vst.msk [vmem:[#allocation3 + $0x8] sm:$0xff] %vm1357, %v1336
      %1360 = vst.msk [vmem:[#allocation3 + $0x10] sm:$0xff] %vm1357, %v1338
      %1361 = vst.msk [vmem:[#allocation3 + $0x18] sm:$0xff] %vm1357, %v1340
      %1362 = vst.msk [vmem:[#allocation3 + $0x20] sm:$0xff] %vm1357, %v1342
      %1363 = vst.msk [vmem:[#allocation3 + $0x28] sm:$0xff] %vm1357, %v1344
      %1364 = vst.msk [vmem:[#allocation3 + $0x30] sm:$0xff] %vm1357, %v1346
      %1365 = vst.msk [vmem:[#allocation3 + $0x38] sm:$0xff] %vm1357, %v1348
      %v1366 = vld [vmem:[%s948] sm:$0xf]
      %v1367 = vld [vmem:[%s948 + $0x4] sm:$0xf]
      %v1368 = vld [vmem:[%s948 + $0x8] sm:$0x1]
      %s1369 = scalar_lea.vmem [#allocation2], 36
      %v1370 = vld [vmem:[%s1369] sm:$0xf]
      %v1371 = vld [vmem:[%s1369 + $0x4] sm:$0xf]
      %v1372 = vld [vmem:[%s1369 + $0x8] sm:$0x1]
      %s1373 = scalar_lea.vmem [#allocation2], 60
      %v1374 = vld [vmem:[%s1373] sm:$0xf]
      %v1375 = vld [vmem:[%s1373 + $0x4] sm:$0xf]
      %v1376 = vld [vmem:[%s1373 + $0x8] sm:$0x1]
      %s1377 = scalar_lea.vmem [#allocation2], 84
      %v1378 = vld [vmem:[%s1377] sm:$0xf]
      %v1379 = vld [vmem:[%s1377 + $0x4] sm:$0xf]
      %v1380 = vld [vmem:[%s1377 + $0x8] sm:$0x1]
      %s1381 = scalar_lea.vmem [#allocation2], 108
      %v1382 = vld [vmem:[%s1381] sm:$0xf]
      %v1383 = vld [vmem:[%s1381 + $0x4] sm:$0xf]
      %v1384 = vld [vmem:[%s1381 + $0x8] sm:$0x1]
      %s1385 = scalar_lea.vmem [#allocation2], 132
      %v1386 = vld [vmem:[%s1385] sm:$0xf]
      %v1387 = vld [vmem:[%s1385 + $0x4] sm:$0xf]
      %v1388 = vld [vmem:[%s1385 + $0x8] sm:$0x1]
      %s1389 = scalar_lea.vmem [#allocation2], 156
      %v1390 = vld [vmem:[%s1389] sm:$0xf]
      %v1391 = vld [vmem:[%s1389 + $0x4] sm:$0xf]
      %v1392 = vld [vmem:[%s1389 + $0x8] sm:$0x1]
      %s1393 = scalar_lea.vmem [#allocation2], 180
      %v1394 = vld [vmem:[%s1393] sm:$0xf]
      %v1395 = vld [vmem:[%s1393 + $0x4] sm:$0xf]
      %v1396 = vld [vmem:[%s1393 + $0x8] sm:$0x1]
      %v1413 = vunpack.c.l.b16 %v1366
      %v1414 = vunpack.c.l.b16 %v1367
      %v1415 = vunpack.c.l.b16 %v1370
      %v1416 = vunpack.c.l.b16 %v1371
      %v1417 = vunpack.c.l.b16 %v1374
      %v1418 = vunpack.c.l.b16 %v1375
      %v1419 = vunpack.c.l.b16 %v1378
      %v1420 = vunpack.c.l.b16 %v1379
      %v1421 = vunpack.c.l.b16 %v1382
      %v1422 = vunpack.c.l.b16 %v1383
      %v1423 = vunpack.c.l.b16 %v1386
      %v1424 = vunpack.c.l.b16 %v1387
      %v1425 = vunpack.c.l.b16 %v1390
      %v1426 = vunpack.c.l.b16 %v1391
      %v1427 = vunpack.c.l.b16 %v1394
      %v1428 = vunpack.c.l.b16 %v1395
      %v1429 = vpack.c.b16 %v1414, %v1413
      %v1430 = vpack.c.b16 %v1416, %v1415
      %v1431 = vpack.c.b16 %v1418, %v1417
      %v1432 = vpack.c.b16 %v1420, %v1419
      %v1433 = vpack.c.b16 %v1422, %v1421
      %v1434 = vpack.c.b16 %v1424, %v1423
      %v1435 = vpack.c.b16 %v1426, %v1425
      %v1436 = vpack.c.b16 %v1428, %v1427
      %1437 = vrot.lane.b32.xlu0 %v1429, 24
      %v1438 = vpop.permute.xlu0 %1437
      %1439 = vrot.lane.b32.xlu0 %v1430, 24
      %v1440 = vpop.permute.xlu0 %1439
      %1441 = vrot.lane.b32.xlu0 %v1431, 24
      %v1442 = vpop.permute.xlu0 %1441
      %1443 = vrot.lane.b32.xlu0 %v1432, 24
      %v1444 = vpop.permute.xlu0 %1443
      %1445 = vrot.lane.b32.xlu0 %v1433, 24
      %v1446 = vpop.permute.xlu0 %1445
      %1447 = vrot.lane.b32.xlu0 %v1434, 24
      %v1448 = vpop.permute.xlu0 %1447
      %1449 = vrot.lane.b32.xlu0 %v1435, 24
      %v1450 = vpop.permute.xlu0 %1449
      %1451 = vrot.lane.b32.xlu0 %v1436, 24
      %v1452 = vpop.permute.xlu0 %1451
      %vm1461 = vcmask 261312
      %1462 = vst.msk [vmem:[#allocation3] sm:$0xff] %vm1461, %v1438
      %1463 = vst.msk [vmem:[#allocation3 + $0x8] sm:$0xff] %vm1461, %v1440
      %1464 = vst.msk [vmem:[#allocation3 + $0x10] sm:$0xff] %vm1461, %v1442
      %1465 = vst.msk [vmem:[#allocation3 + $0x18] sm:$0xff] %vm1461, %v1444
      %1466 = vst.msk [vmem:[#allocation3 + $0x20] sm:$0xff] %vm1461, %v1446
      %1467 = vst.msk [vmem:[#allocation3 + $0x28] sm:$0xff] %vm1461, %v1448
      %1468 = vst.msk [vmem:[#allocation3 + $0x30] sm:$0xff] %vm1461, %v1450
      %1469 = vst.msk [vmem:[#allocation3 + $0x38] sm:$0xff] %vm1461, %v1452
      %v1478 = vunpack.c.l.b16 %v1368
      %v1479 = vunpack.c.l.b16 %v1372
      %v1480 = vunpack.c.l.b16 %v1376
      %v1481 = vunpack.c.l.b16 %v1380
      %v1482 = vunpack.c.l.b16 %v1384
      %v1483 = vunpack.c.l.b16 %v1388
      %v1484 = vunpack.c.l.b16 %v1392
      %v1485 = vunpack.c.l.b16 %v1396
      %v1486 = vpack.c.b16 %v1478, %v1478
      %v1487 = vpack.c.b16 %v1479, %v1479
      %v1488 = vpack.c.b16 %v1480, %v1480
      %v1489 = vpack.c.b16 %v1481, %v1481
      %v1490 = vpack.c.b16 %v1482, %v1482
      %v1491 = vpack.c.b16 %v1483, %v1483
      %v1492 = vpack.c.b16 %v1484, %v1484
      %v1493 = vpack.c.b16 %v1485, %v1485
      %v1495 = vshrl.u32 %v1429, 16
      %v1497 = vshll.u32 %v1429, 16
      %v1499 = vrot.slane %v1497, 1
      %v1500 = vor.u32 %v1495, %v1499
      %v1502 = vshll.u32 %v1486, 16
      %v1504 = vrot.slane %v1502, 1
      %v1505 = vsel %vm1178, %v1500, %v1504
      %v1507 = vshrl.u32 %v1430, 16
      %v1509 = vshll.u32 %v1430, 16
      %v1511 = vrot.slane %v1509, 1
      %v1512 = vor.u32 %v1507, %v1511
      %v1514 = vshll.u32 %v1487, 16
      %v1516 = vrot.slane %v1514, 1
      %v1517 = vsel %vm1178, %v1512, %v1516
      %v1519 = vshrl.u32 %v1431, 16
      %v1521 = vshll.u32 %v1431, 16
      %v1523 = vrot.slane %v1521, 1
      %v1524 = vor.u32 %v1519, %v1523
      %v1526 = vshll.u32 %v1488, 16
      %v1528 = vrot.slane %v1526, 1
      %v1529 = vsel %vm1178, %v1524, %v1528
      %v1531 = vshrl.u32 %v1432, 16
      %v1533 = vshll.u32 %v1432, 16
      %v1535 = vrot.slane %v1533, 1
      %v1536 = vor.u32 %v1531, %v1535
      %v1538 = vshll.u32 %v1489, 16
      %v1540 = vrot.slane %v1538, 1
      %v1541 = vsel %vm1178, %v1536, %v1540
      %v1543 = vshrl.u32 %v1433, 16
      %v1545 = vshll.u32 %v1433, 16
      %v1547 = vrot.slane %v1545, 1
      %v1548 = vor.u32 %v1543, %v1547
      %v1550 = vshll.u32 %v1490, 16
      %v1552 = vrot.slane %v1550, 1
      %v1553 = vsel %vm1178, %v1548, %v1552
      %v1555 = vshrl.u32 %v1434, 16
      %v1557 = vshll.u32 %v1434, 16
      %v1559 = vrot.slane %v1557, 1
      %v1560 = vor.u32 %v1555, %v1559
      %v1562 = vshll.u32 %v1491, 16
      %v1564 = vrot.slane %v1562, 1
      %v1565 = vsel %vm1178, %v1560, %v1564
      %v1567 = vshrl.u32 %v1435, 16
      %v1569 = vshll.u32 %v1435, 16
      %v1571 = vrot.slane %v1569, 1
      %v1572 = vor.u32 %v1567, %v1571
      %v1574 = vshll.u32 %v1492, 16
      %v1576 = vrot.slane %v1574, 1
      %v1577 = vsel %vm1178, %v1572, %v1576
      %v1579 = vshrl.u32 %v1436, 16
      %v1581 = vshll.u32 %v1436, 16
      %v1583 = vrot.slane %v1581, 1
      %v1584 = vor.u32 %v1579, %v1583
      %v1586 = vshll.u32 %v1493, 16
      %v1588 = vrot.slane %v1586, 1
      %v1589 = vsel %vm1178, %v1584, %v1588
      %1590 = vrot.lane.b32.xlu0 %v1505, 32
      %v1591 = vpop.permute.xlu0 %1590
      %1592 = vrot.lane.b32.xlu0 %v1517, 32
      %v1593 = vpop.permute.xlu0 %1592
      %1594 = vrot.lane.b32.xlu0 %v1529, 32
      %v1595 = vpop.permute.xlu0 %1594
      %1596 = vrot.lane.b32.xlu0 %v1541, 32
      %v1597 = vpop.permute.xlu0 %1596
      %1598 = vrot.lane.b32.xlu0 %v1553, 32
      %v1599 = vpop.permute.xlu0 %1598
      %1600 = vrot.lane.b32.xlu0 %v1565, 32
      %v1601 = vpop.permute.xlu0 %1600
      %1602 = vrot.lane.b32.xlu0 %v1577, 32
      %v1603 = vpop.permute.xlu0 %1602
      %1604 = vrot.lane.b32.xlu0 %v1589, 32
      %v1605 = vpop.permute.xlu0 %1604
      %vm1614 = vcmask 326912
      %1615 = vst.msk [vmem:[#allocation3] sm:$0xff] %vm1614, %v1591
      %1616 = vst.msk [vmem:[#allocation3 + $0x8] sm:$0xff] %vm1614, %v1593
      %1617 = vst.msk [vmem:[#allocation3 + $0x10] sm:$0xff] %vm1614, %v1595
      %1618 = vst.msk [vmem:[#allocation3 + $0x18] sm:$0xff] %vm1614, %v1597
      %1619 = vst.msk [vmem:[#allocation3 + $0x20] sm:$0xff] %vm1614, %v1599
      %1620 = vst.msk [vmem:[#allocation3 + $0x28] sm:$0xff] %vm1614, %v1601
      %1621 = vst.msk [vmem:[#allocation3 + $0x30] sm:$0xff] %vm1614, %v1603
      %1622 = vst.msk [vmem:[#allocation3 + $0x38] sm:$0xff] %vm1614, %v1605
      %v1623 = vrot.slane %v1429, 1
      %v1624 = vrot.slane %v1486, 1
      %v1625 = vsel %vm1308, %v1623, %v1624
      %v1626 = vrot.slane %v1430, 1
      %v1627 = vrot.slane %v1487, 1
      %v1628 = vsel %vm1308, %v1626, %v1627
      %v1629 = vrot.slane %v1431, 1
      %v1630 = vrot.slane %v1488, 1
      %v1631 = vsel %vm1308, %v1629, %v1630
      %v1632 = vrot.slane %v1432, 1
      %v1633 = vrot.slane %v1489, 1
      %v1634 = vsel %vm1308, %v1632, %v1633
      %v1635 = vrot.slane %v1433, 1
      %v1636 = vrot.slane %v1490, 1
      %v1637 = vsel %vm1308, %v1635, %v1636
      %v1638 = vrot.slane %v1434, 1
      %v1639 = vrot.slane %v1491, 1
      %v1640 = vsel %vm1308, %v1638, %v1639
      %v1641 = vrot.slane %v1435, 1
      %v1642 = vrot.slane %v1492, 1
      %v1643 = vsel %vm1308, %v1641, %v1642
      %v1644 = vrot.slane %v1436, 1
      %v1645 = vrot.slane %v1493, 1
      %v1646 = vsel %vm1308, %v1644, %v1645
      %1647 = vrot.lane.b32.xlu0 %v1625, 40
      %v1648 = vpop.permute.xlu0 %1647
      %1649 = vrot.lane.b32.xlu0 %v1628, 40
      %v1650 = vpop.permute.xlu0 %1649
      %1651 = vrot.lane.b32.xlu0 %v1631, 40
      %v1652 = vpop.permute.xlu0 %1651
      %1653 = vrot.lane.b32.xlu0 %v1634, 40
      %v1654 = vpop.permute.xlu0 %1653
      %1655 = vrot.lane.b32.xlu0 %v1637, 40
      %v1656 = vpop.permute.xlu0 %1655
      %1657 = vrot.lane.b32.xlu0 %v1640, 40
      %v1658 = vpop.permute.xlu0 %1657
      %1659 = vrot.lane.b32.xlu0 %v1643, 40
      %v1660 = vpop.permute.xlu0 %1659
      %1661 = vrot.lane.b32.xlu0 %v1646, 40
      %v1662 = vpop.permute.xlu0 %1661
      %vm1671 = vcmask 392512
      %1672 = vst.msk [vmem:[#allocation3] sm:$0xff] %vm1671, %v1648
      %1673 = vst.msk [vmem:[#allocation3 + $0x8] sm:$0xff] %vm1671, %v1650
      %1674 = vst.msk [vmem:[#allocation3 + $0x10] sm:$0xff] %vm1671, %v1652
      %1675 = vst.msk [vmem:[#allocation3 + $0x18] sm:$0xff] %vm1671, %v1654
      %1676 = vst.msk [vmem:[#allocation3 + $0x20] sm:$0xff] %vm1671, %v1656
      %1677 = vst.msk [vmem:[#allocation3 + $0x28] sm:$0xff] %vm1671, %v1658
      %1678 = vst.msk [vmem:[#allocation3 + $0x30] sm:$0xff] %vm1671, %v1660
      %1679 = vst.msk [vmem:[#allocation3 + $0x38] sm:$0xff] %vm1671, %v1662
      %v1680 = vld [vmem:[%s1069] sm:$0xf]
      %v1681 = vld [vmem:[%s1069 + $0x4] sm:$0xf]
      %v1682 = vld [vmem:[%s1069 + $0x8] sm:$0x1]
      %v1683 = vld [vmem:[%s1073] sm:$0xf]
      %v1684 = vld [vmem:[%s1073 + $0x4] sm:$0xf]
      %v1685 = vld [vmem:[%s1073 + $0x8] sm:$0x1]
      %v1686 = vld [vmem:[%s1077] sm:$0xf]
      %v1687 = vld [vmem:[%s1077 + $0x4] sm:$0xf]
      %v1688 = vld [vmem:[%s1077 + $0x8] sm:$0x1]
      %v1689 = vld [vmem:[%s1081] sm:$0xf]
      %v1690 = vld [vmem:[%s1081 + $0x4] sm:$0xf]
      %v1691 = vld [vmem:[%s1081 + $0x8] sm:$0x1]
      %v1692 = vld [vmem:[%s1085] sm:$0xf]
      %v1693 = vld [vmem:[%s1085 + $0x4] sm:$0xf]
      %v1694 = vld [vmem:[%s1085 + $0x8] sm:$0x1]
      %v1695 = vld [vmem:[%s1089] sm:$0xf]
      %v1696 = vld [vmem:[%s1089 + $0x4] sm:$0xf]
      %v1697 = vld [vmem:[%s1089 + $0x8] sm:$0x1]
      %v1698 = vld [vmem:[%s1093] sm:$0xf]
      %v1699 = vld [vmem:[%s1093 + $0x4] sm:$0xf]
      %v1700 = vld [vmem:[%s1093 + $0x8] sm:$0x1]
      %s1701 = scalar_lea.vmem [#allocation2], 192
      %v1702 = vld [vmem:[%s1701] sm:$0xf]
      %v1703 = vld [vmem:[%s1701 + $0x4] sm:$0xf]
      %v1704 = vld [vmem:[%s1701 + $0x8] sm:$0x1]
      %v1721 = vunpack.c.l.b16 %v1680
      %v1722 = vunpack.c.l.b16 %v1681
      %v1723 = vunpack.c.l.b16 %v1683
      %v1724 = vunpack.c.l.b16 %v1684
      %v1725 = vunpack.c.l.b16 %v1686
      %v1726 = vunpack.c.l.b16 %v1687
      %v1727 = vunpack.c.l.b16 %v1689
      %v1728 = vunpack.c.l.b16 %v1690
      %v1729 = vunpack.c.l.b16 %v1692
      %v1730 = vunpack.c.l.b16 %v1693
      %v1731 = vunpack.c.l.b16 %v1695
      %v1732 = vunpack.c.l.b16 %v1696
      %v1733 = vunpack.c.l.b16 %v1698
      %v1734 = vunpack.c.l.b16 %v1699
      %v1735 = vunpack.c.l.b16 %v1702
      %v1736 = vunpack.c.l.b16 %v1703
      %v1737 = vpack.c.b16 %v1722, %v1721
      %v1738 = vpack.c.b16 %v1724, %v1723
      %v1739 = vpack.c.b16 %v1726, %v1725
      %v1740 = vpack.c.b16 %v1728, %v1727
      %v1741 = vpack.c.b16 %v1730, %v1729
      %v1742 = vpack.c.b16 %v1732, %v1731
      %v1743 = vpack.c.b16 %v1734, %v1733
      %v1744 = vpack.c.b16 %v1736, %v1735
      %1745 = vrot.lane.b32.xlu0 %v1737, 48
      %v1746 = vpop.permute.xlu0 %1745
      %1747 = vrot.lane.b32.xlu0 %v1738, 48
      %v1748 = vpop.permute.xlu0 %1747
      %1749 = vrot.lane.b32.xlu0 %v1739, 48
      %v1750 = vpop.permute.xlu0 %1749
      %1751 = vrot.lane.b32.xlu0 %v1740, 48
      %v1752 = vpop.permute.xlu0 %1751
      %1753 = vrot.lane.b32.xlu0 %v1741, 48
      %v1754 = vpop.permute.xlu0 %1753
      %1755 = vrot.lane.b32.xlu0 %v1742, 48
      %v1756 = vpop.permute.xlu0 %1755
      %1757 = vrot.lane.b32.xlu0 %v1743, 48
      %v1758 = vpop.permute.xlu0 %1757
      %1759 = vrot.lane.b32.xlu0 %v1744, 48
      %v1760 = vpop.permute.xlu0 %1759
      %vm1769 = vcmask 458112
      %1770 = vst.msk [vmem:[#allocation3] sm:$0xff] %vm1769, %v1746
      %1771 = vst.msk [vmem:[#allocation3 + $0x8] sm:$0xff] %vm1769, %v1748
      %1772 = vst.msk [vmem:[#allocation3 + $0x10] sm:$0xff] %vm1769, %v1750
      %1773 = vst.msk [vmem:[#allocation3 + $0x18] sm:$0xff] %vm1769, %v1752
      %1774 = vst.msk [vmem:[#allocation3 + $0x20] sm:$0xff] %vm1769, %v1754
      %1775 = vst.msk [vmem:[#allocation3 + $0x28] sm:$0xff] %vm1769, %v1756
      %1776 = vst.msk [vmem:[#allocation3 + $0x30] sm:$0xff] %vm1769, %v1758
      %1777 = vst.msk [vmem:[#allocation3 + $0x38] sm:$0xff] %vm1769, %v1760
      %v1786 = vunpack.c.l.b16 %v1682
      %v1787 = vunpack.c.l.b16 %v1685
      %v1788 = vunpack.c.l.b16 %v1688
      %v1789 = vunpack.c.l.b16 %v1691
      %v1790 = vunpack.c.l.b16 %v1694
      %v1791 = vunpack.c.l.b16 %v1697
      %v1792 = vunpack.c.l.b16 %v1700
      %v1793 = vunpack.c.l.b16 %v1704
      %v1794 = vpack.c.b16 %v1786, %v1786
      %v1795 = vpack.c.b16 %v1787, %v1787
      %v1796 = vpack.c.b16 %v1788, %v1788
      %v1797 = vpack.c.b16 %v1789, %v1789
      %v1798 = vpack.c.b16 %v1790, %v1790
      %v1799 = vpack.c.b16 %v1791, %v1791
      %v1800 = vpack.c.b16 %v1792, %v1792
      %v1801 = vpack.c.b16 %v1793, %v1793
      %v1803 = vshrl.u32 %v1737, 16
      %v1805 = vshll.u32 %v1737, 16
      %v1807 = vrot.slane %v1805, 1
      %v1808 = vor.u32 %v1803, %v1807
      %v1810 = vshll.u32 %v1794, 16
      %v1812 = vrot.slane %v1810, 1
      %v1813 = vsel %vm1178, %v1808, %v1812
      %v1815 = vshrl.u32 %v1738, 16
      %v1817 = vshll.u32 %v1738, 16
      %v1819 = vrot.slane %v1817, 1
      %v1820 = vor.u32 %v1815, %v1819
      %v1822 = vshll.u32 %v1795, 16
      %v1824 = vrot.slane %v1822, 1
      %v1825 = vsel %vm1178, %v1820, %v1824
      %v1827 = vshrl.u32 %v1739, 16
      %v1829 = vshll.u32 %v1739, 16
      %v1831 = vrot.slane %v1829, 1
      %v1832 = vor.u32 %v1827, %v1831
      %v1834 = vshll.u32 %v1796, 16
      %v1836 = vrot.slane %v1834, 1
      %v1837 = vsel %vm1178, %v1832, %v1836
      %v1839 = vshrl.u32 %v1740, 16
      %v1841 = vshll.u32 %v1740, 16
      %v1843 = vrot.slane %v1841, 1
      %v1844 = vor.u32 %v1839, %v1843
      %v1846 = vshll.u32 %v1797, 16
      %v1848 = vrot.slane %v1846, 1
      %v1849 = vsel %vm1178, %v1844, %v1848
      %v1851 = vshrl.u32 %v1741, 16
      %v1853 = vshll.u32 %v1741, 16
      %v1855 = vrot.slane %v1853, 1
      %v1856 = vor.u32 %v1851, %v1855
      %v1858 = vshll.u32 %v1798, 16
      %v1860 = vrot.slane %v1858, 1
      %v1861 = vsel %vm1178, %v1856, %v1860
      %v1863 = vshrl.u32 %v1742, 16
      %v1865 = vshll.u32 %v1742, 16
      %v1867 = vrot.slane %v1865, 1
      %v1868 = vor.u32 %v1863, %v1867
      %v1870 = vshll.u32 %v1799, 16
      %v1872 = vrot.slane %v1870, 1
      %v1873 = vsel %vm1178, %v1868, %v1872
      %v1875 = vshrl.u32 %v1743, 16
      %v1877 = vshll.u32 %v1743, 16
      %v1879 = vrot.slane %v1877, 1
      %v1880 = vor.u32 %v1875, %v1879
      %v1882 = vshll.u32 %v1800, 16
      %v1884 = vrot.slane %v1882, 1
      %v1885 = vsel %vm1178, %v1880, %v1884
      %v1887 = vshrl.u32 %v1744, 16
      %v1889 = vshll.u32 %v1744, 16
      %v1891 = vrot.slane %v1889, 1
      %v1892 = vor.u32 %v1887, %v1891
      %v1894 = vshll.u32 %v1801, 16
      %v1896 = vrot.slane %v1894, 1
      %v1897 = vsel %vm1178, %v1892, %v1896
      %1898 = vrot.lane.b32.xlu0 %v1813, 56
      %v1899 = vpop.permute.xlu0 %1898
      %1900 = vrot.lane.b32.xlu0 %v1825, 56
      %v1901 = vpop.permute.xlu0 %1900
      %1902 = vrot.lane.b32.xlu0 %v1837, 56
      %v1903 = vpop.permute.xlu0 %1902
      %1904 = vrot.lane.b32.xlu0 %v1849, 56
      %v1905 = vpop.permute.xlu0 %1904
      %1906 = vrot.lane.b32.xlu0 %v1861, 56
      %v1907 = vpop.permute.xlu0 %1906
      %1908 = vrot.lane.b32.xlu0 %v1873, 56
      %v1909 = vpop.permute.xlu0 %1908
      %1910 = vrot.lane.b32.xlu0 %v1885, 56
      %v1911 = vpop.permute.xlu0 %1910
      %1912 = vrot.lane.b32.xlu0 %v1897, 56
      %v1913 = vpop.permute.xlu0 %1912
      %vm1922 = vcmask 523712
      %1923 = vst.msk [vmem:[#allocation3] sm:$0xff] %vm1922, %v1899
      %1924 = vst.msk [vmem:[#allocation3 + $0x8] sm:$0xff] %vm1922, %v1901
      %1925 = vst.msk [vmem:[#allocation3 + $0x10] sm:$0xff] %vm1922, %v1903
      %1926 = vst.msk [vmem:[#allocation3 + $0x18] sm:$0xff] %vm1922, %v1905
      %1927 = vst.msk [vmem:[#allocation3 + $0x20] sm:$0xff] %vm1922, %v1907
      %1928 = vst.msk [vmem:[#allocation3 + $0x28] sm:$0xff] %vm1922, %v1909
      %1929 = vst.msk [vmem:[#allocation3 + $0x30] sm:$0xff] %vm1922, %v1911
      %1930 = vst.msk [vmem:[#allocation3 + $0x38] sm:$0xff] %vm1922, %v1913
      %v1931 = vrot.slane %v1737, 1
      %v1932 = vrot.slane %v1794, 1
      %v1933 = vsel %vm1308, %v1931, %v1932
      %v1934 = vrot.slane %v1738, 1
      %v1935 = vrot.slane %v1795, 1
      %v1936 = vsel %vm1308, %v1934, %v1935
      %v1937 = vrot.slane %v1739, 1
      %v1938 = vrot.slane %v1796, 1
      %v1939 = vsel %vm1308, %v1937, %v1938
      %v1940 = vrot.slane %v1740, 1
      %v1941 = vrot.slane %v1797, 1
      %v1942 = vsel %vm1308, %v1940, %v1941
      %v1943 = vrot.slane %v1741, 1
      %v1944 = vrot.slane %v1798, 1
      %v1945 = vsel %vm1308, %v1943, %v1944
      %v1946 = vrot.slane %v1742, 1
      %v1947 = vrot.slane %v1799, 1
      %v1948 = vsel %vm1308, %v1946, %v1947
      %v1949 = vrot.slane %v1743, 1
      %v1950 = vrot.slane %v1800, 1
      %v1951 = vsel %vm1308, %v1949, %v1950
      %v1952 = vrot.slane %v1744, 1
      %v1953 = vrot.slane %v1801, 1
      %v1954 = vsel %vm1308, %v1952, %v1953
      %1955 = vrot.lane.b32.xlu0 %v1933, 64
      %v1956 = vpop.permute.xlu0 %1955
      %1957 = vrot.lane.b32.xlu0 %v1936, 64
      %v1958 = vpop.permute.xlu0 %1957
      %1959 = vrot.lane.b32.xlu0 %v1939, 64
      %v1960 = vpop.permute.xlu0 %1959
      %1961 = vrot.lane.b32.xlu0 %v1942, 64
      %v1962 = vpop.permute.xlu0 %1961
      %1963 = vrot.lane.b32.xlu0 %v1945, 64
      %v1964 = vpop.permute.xlu0 %1963
      %1965 = vrot.lane.b32.xlu0 %v1948, 64
      %v1966 = vpop.permute.xlu0 %1965
      %1967 = vrot.lane.b32.xlu0 %v1951, 64
      %v1968 = vpop.permute.xlu0 %1967
      %1969 = vrot.lane.b32.xlu0 %v1954, 64
      %v1970 = vpop.permute.xlu0 %1969
      %vm1979 = vcmask 589312
      %1980 = vst.msk [vmem:[#allocation3] sm:$0xff] %vm1979, %v1956
      %1981 = vst.msk [vmem:[#allocation3 + $0x8] sm:$0xff] %vm1979, %v1958
      %1982 = vst.msk [vmem:[#allocation3 + $0x10] sm:$0xff] %vm1979, %v1960
      %1983 = vst.msk [vmem:[#allocation3 + $0x18] sm:$0xff] %vm1979, %v1962
      %1984 = vst.msk [vmem:[#allocation3 + $0x20] sm:$0xff] %vm1979, %v1964
      %1985 = vst.msk [vmem:[#allocation3 + $0x28] sm:$0xff] %vm1979, %v1966
      %1986 = vst.msk [vmem:[#allocation3 + $0x30] sm:$0xff] %vm1979, %v1968
      %1987 = vst.msk [vmem:[#allocation3 + $0x38] sm:$0xff] %vm1979, %v1970
      %v1988 = vld [vmem:[#allocation3] sm:$0xff]
      %v1989 = vld [vmem:[#allocation3 + $0x8] sm:$0xff]
      %v1990 = vld [vmem:[#allocation3 + $0x10] sm:$0xff]
      %v1991 = vld [vmem:[#allocation3 + $0x18] sm:$0xff]
      %v1992 = vld [vmem:[#allocation3 + $0x20] sm:$0xff]
      %v1993 = vld [vmem:[#allocation3 + $0x28] sm:$0xff]
      %v1994 = vld [vmem:[#allocation3 + $0x30] sm:$0xff]
      %v1995 = vld [vmem:[#allocation3 + $0x38] sm:$0xff]
      %v1996 = vld [vmem:[%s4] sm:$0xf]
      %v1997 = vld [vmem:[%s4 + $0x4] sm:$0xf]
      %v1998 = vld [vmem:[%s4 + $0x8] sm:$0xf]
      %v1999 = vld [vmem:[%s4 + $0xc] sm:$0xf]
      %v2000 = vld [vmem:[%s4 + $0x10] sm:$0xf]
      %v2001 = vld [vmem:[%s4 + $0x14] sm:$0xf]
      %v2002 = vld [vmem:[%s4 + $0x18] sm:$0xf]
      %v2003 = vld [vmem:[%s4 + $0x1c] sm:$0xf]
      %v2004 = vld [vmem:[%s4 + $0x20] sm:$0xf]
      %v2005 = vld [vmem:[%s5] sm:$0x1]
      %v2007 = vlaneseq
      %v2008 = vshrl.u32 %v2007, 7
      %v2009 = vsub.s32 0, %v2008
      %v2010 = vrot.slane %v2005, %v2009
      %v2021 = vunpack.c.l.b16 %v1996
      %v2022 = vunpack.c.l.b16 %v1997
      %v2023 = vunpack.c.l.b16 %v1998
      %v2024 = vunpack.c.l.b16 %v1999
      %v2025 = vunpack.c.l.b16 %v2000
      %v2026 = vunpack.c.l.b16 %v2001
      %v2027 = vunpack.c.l.b16 %v2002
      %v2028 = vunpack.c.l.b16 %v2003
      %v2029 = vunpack.c.l.b16 %v2004
      %v2030 = vpack.c.b16 %v2022, %v2021
      %v2031 = vpack.c.b16 %v2024, %v2023
      %v2032 = vpack.c.b16 %v2026, %v2025
      %v2033 = vpack.c.b16 %v2028, %v2027
      %v2034 = vpack.c.b16 %v2029, %v2029
      %vm2039 = vcmask 588800
      %v2041 = vsel %vm2039, %v1988, 0
      %v2044 = vsel %vm2039, %v1989, 0
      %v2047 = vsel %vm2039, %v1990, 0
      %v2050 = vsel %vm2039, %v1991, 0
      %v2053 = vsel %vm2039, %v1992, 0
      %v2056 = vsel %vm2039, %v1993, 0
      %v2059 = vsel %vm2039, %v1994, 0
      %v2062 = vsel %vm2039, %v1995, 0
      %vm2064 = vcmask 1043456
      %v2066 = vsel %vm2064, %v2034, 0
      %2068 = vmatprep.subr.bf16.mxu0 0
      %2069 = vmatpush1.bf16.msra.mxu0 %v2030
      %2070 = vmatprep.subr.bf16.mxu0 0
      %2071 = vmatpush1.bf16.msra.mxu0 %v2031
      %2072 = vmatprep.subr.bf16.mxu0 0
      %2073 = vmatpush1.bf16.msra.mxu0 %v2032
      %2074 = vmatprep.subr.bf16.mxu0 0
      %2075 = vmatpush1.bf16.msra.mxu0 %v2033
      %2076 = vmatprep.subr.bf16.mxu0 0
      %2077 = vmatpush1.bf16.msra.mxu0 %v2066
      %2078 = vmatprep.subr.bf16.mxu0 0
      %2079 = vmatpush1.bf16.msra.mxu0 0
      %2080 = vmatprep.subr.bf16.mxu0 0
      %2081 = vmatpush1.bf16.msra.mxu0 0
      %2082 = vmatprep.subr.bf16.mxu0 0
      %2083 = vmatpush1.bf16.msra.mxu0 0
      %2084 = vmatprep.subr.bf16.mxu0 0
      %2085 = vmatpush1.bf16.msra.mxu0 0
      %2086 = vmatprep.subr.bf16.mxu0 0
      %2087 = vmatpush1.bf16.msra.mxu0 0
      %2088 = vmatprep.subr.bf16.mxu0 0
      %2089 = vmatpush1.bf16.msra.mxu0 0
      %2090 = vmatprep.subr.bf16.mxu0 0
      %2091 = vmatpush1.bf16.msra.mxu0 0
      %2092 = vmatprep.subr.bf16.mxu0 0
      %2093 = vmatpush1.bf16.msra.mxu0 0
      %2094 = vmatprep.subr.bf16.mxu0 0
      %2095 = vmatpush1.bf16.msra.mxu0 0
      %2096 = vmatprep.subr.bf16.mxu0 0
      %2097 = vmatpush1.bf16.msra.mxu0 0
      %2098 = vmatprep.subr.bf16.mxu0 0
      %2099 = vmatpush1.bf16.msra.mxu0 0
      %2100 = vmatprep.mubr.bf16.mxu0 0
      %2101 = vmatmul.mubr.bf16.gmra.mrb[0].mxu0 %v2041
      %v2102 = vpop.f32.mrb[0].mxu0
      %v2103 = vadd.f32 %v2010, %v2102
      %v2104 = vpop.f32.mrb[0].mxu0
      %v2105 = vpop.f32.mrb[0].mxu0
      %v2106 = vadd.f32 %v2010, %v2105
      %v2107 = vpop.f32.mrb[0].mxu0
      %2108 = vmatprep.mubr.bf16.mxu0 0
      %2109 = vmatmul.mubr.bf16.gmra.mrb[0].mxu0 %v2044
      %v2110 = vpop.f32.mrb[0].mxu0
      %v2111 = vadd.f32 %v2010, %v2110
      %v2112 = vpop.f32.mrb[0].mxu0
      %v2113 = vpop.f32.mrb[0].mxu0
      %v2114 = vadd.f32 %v2010, %v2113
      %v2115 = vpop.f32.mrb[0].mxu0
      %2116 = vmatprep.mubr.bf16.mxu0 0
      %2117 = vmatmul.mubr.bf16.gmra.mrb[0].mxu0 %v2047
      %v2118 = vpop.f32.mrb[0].mxu0
      %v2119 = vadd.f32 %v2010, %v2118
      %v2120 = vpop.f32.mrb[0].mxu0
      %v2121 = vpop.f32.mrb[0].mxu0
      %v2122 = vadd.f32 %v2010, %v2121
      %v2123 = vpop.f32.mrb[0].mxu0
      %2124 = vmatprep.mubr.bf16.mxu0 0
      %2125 = vmatmul.mubr.bf16.gmra.mrb[0].mxu0 %v2050
      %v2126 = vpop.f32.mrb[0].mxu0
      %v2127 = vadd.f32 %v2010, %v2126
      %v2128 = vpop.f32.mrb[0].mxu0
      %v2129 = vpop.f32.mrb[0].mxu0
      %v2130 = vadd.f32 %v2010, %v2129
      %v2131 = vpop.f32.mrb[0].mxu0
      %2132 = vmatprep.mubr.bf16.mxu0 0
      %2133 = vmatmul.mubr.bf16.gmra.mrb[0].mxu0 %v2053
      %v2134 = vpop.f32.mrb[0].mxu0
      %v2135 = vadd.f32 %v2010, %v2134
      %v2136 = vpop.f32.mrb[0].mxu0
      %v2137 = vpop.f32.mrb[0].mxu0
      %v2138 = vadd.f32 %v2010, %v2137
      %v2139 = vpop.f32.mrb[0].mxu0
      %2140 = vmatprep.mubr.bf16.mxu0 0
      %2141 = vmatmul.mubr.bf16.gmra.mrb[0].mxu0 %v2056
      %v2142 = vpop.f32.mrb[0].mxu0
      %v2143 = vadd.f32 %v2010, %v2142
      %v2144 = vpop.f32.mrb[0].mxu0
      %v2145 = vpop.f32.mrb[0].mxu0
      %v2146 = vadd.f32 %v2010, %v2145
      %v2147 = vpop.f32.mrb[0].mxu0
      %2148 = vmatprep.mubr.bf16.mxu0 0
      %2149 = vmatmul.mubr.bf16.gmra.mrb[0].mxu0 %v2059
      %v2150 = vpop.f32.mrb[0].mxu0
      %v2151 = vadd.f32 %v2010, %v2150
      %v2152 = vpop.f32.mrb[0].mxu0
      %v2153 = vpop.f32.mrb[0].mxu0
      %v2154 = vadd.f32 %v2010, %v2153
      %v2155 = vpop.f32.mrb[0].mxu0
      %2156 = vmatprep.mubr.bf16.mxu0 0
      %2157 = vmatmul.mubr.bf16.gmra.mrb[0].mxu0 %v2062
      %v2158 = vpop.f32.mrb[0].mxu0
      %v2159 = vadd.f32 %v2010, %v2158
      %v2160 = vpop.f32.mrb[0].mxu0
      %v2161 = vpop.f32.mrb[0].mxu0
      %v2162 = vadd.f32 %v2010, %v2161
      %v2163 = vpop.f32.mrb[0].mxu0
      %2164 = vdwg.mxu0
      %vm2165 = vcmp.gt.f32.partialorder %v2103, 0.0
      %vm2166 = vcmp.gt.f32.partialorder %v2106, 0.0
      %vm2167 = vcmp.gt.f32.partialorder %v2111, 0.0
      %vm2168 = vcmp.gt.f32.partialorder %v2114, 0.0
      %vm2169 = vcmp.gt.f32.partialorder %v2119, 0.0
      %vm2170 = vcmp.gt.f32.partialorder %v2122, 0.0
      %vm2171 = vcmp.gt.f32.partialorder %v2127, 0.0
      %vm2172 = vcmp.gt.f32.partialorder %v2130, 0.0
      %vm2173 = vcmp.gt.f32.partialorder %v2135, 0.0
      %vm2174 = vcmp.gt.f32.partialorder %v2138, 0.0
      %vm2175 = vcmp.gt.f32.partialorder %v2143, 0.0
      %vm2176 = vcmp.gt.f32.partialorder %v2146, 0.0
      %vm2177 = vcmp.gt.f32.partialorder %v2151, 0.0
      %vm2178 = vcmp.gt.f32.partialorder %v2154, 0.0
      %vm2179 = vcmp.gt.f32.partialorder %v2159, 0.0
      %vm2180 = vcmp.gt.f32.partialorder %v2162, 0.0
      %v2181 = vmul.f32 %v2103, 0.01
      %v2182 = vmul.f32 %v2106, 0.01
      %v2183 = vmul.f32 %v2111, 0.01
      %v2184 = vmul.f32 %v2114, 0.01
      %v2185 = vmul.f32 %v2119, 0.01
      %v2186 = vmul.f32 %v2122, 0.01
      %v2187 = vmul.f32 %v2127, 0.01
      %v2188 = vmul.f32 %v2130, 0.01
      %v2189 = vmul.f32 %v2135, 0.01
      %v2190 = vmul.f32 %v2138, 0.01
      %v2191 = vmul.f32 %v2143, 0.01
      %v2192 = vmul.f32 %v2146, 0.01
      %v2193 = vmul.f32 %v2151, 0.01
      %v2194 = vmul.f32 %v2154, 0.01
      %v2195 = vmul.f32 %v2159, 0.01
      %v2196 = vmul.f32 %v2162, 0.01
      %v2197 = vsel %vm2165, %v2103, %v2181
      %v2198 = vsel %vm2166, %v2106, %v2182
      %v2199 = vsel %vm2167, %v2111, %v2183
      %v2200 = vsel %vm2168, %v2114, %v2184
      %v2201 = vsel %vm2169, %v2119, %v2185
      %v2202 = vsel %vm2170, %v2122, %v2186
      %v2203 = vsel %vm2171, %v2127, %v2187
      %v2204 = vsel %vm2172, %v2130, %v2188
      %v2205 = vsel %vm2173, %v2135, %v2189
      %v2206 = vsel %vm2174, %v2138, %v2190
      %v2207 = vsel %vm2175, %v2143, %v2191
      %v2208 = vsel %vm2176, %v2146, %v2192
      %v2209 = vsel %vm2177, %v2151, %v2193
      %v2210 = vsel %vm2178, %v2154, %v2194
      %v2211 = vsel %vm2179, %v2159, %v2195
      %v2212 = vsel %vm2180, %v2162, %v2196
      %v2213 = vlaneseq
      %v2214 = vshrl.u32 %v2213, 7
      %v2215 = vadd.s32 %v2214, 8
      %v2216 = vadd.s32 %v2214, 16
      %v2217 = vadd.s32 %v2214, 24
      %v2218 = vadd.s32 %v2214, 32
      %v2219 = vadd.s32 %v2214, 40
      %v2220 = vadd.s32 %v2214, 48
      %v2221 = vadd.s32 %v2214, 56
      %v2222 = vadd.s32 %v2214, 64
      %v2223 = vadd.s32 %v2214, 72
      %v2224 = vadd.s32 %v2214, 80
      %v2225 = vadd.s32 %v2214, 88
      %v2226 = vadd.s32 %v2214, 96
      %v2227 = vadd.s32 %v2214, 104
      %v2228 = vadd.s32 %v2214, 112
      %v2229 = vadd.s32 %v2214, 120
      %vm2230 = vcmp.lt.s32.totalorder %v2214, 0
      %v2231 = vsub.s32 0, %v2214
      %v2232 = vsel %vm2230, %v2231, %v2214
      %v2233 = vshrl.u32 %v2232, 4
      %v2234 = vand.u32 %v2232, 15
      %v2235 = vsub.s32 0, %v2234
      %v2236 = vsel %vm2230, %v2235, %v2234
      %vm2237 = vcmp.lt.s32.totalorder %v2215, 0
      %v2238 = vsub.s32 0, %v2215
      %v2239 = vsel %vm2237, %v2238, %v2215
      %v2240 = vshrl.u32 %v2239, 4
      %v2241 = vand.u32 %v2239, 15
      %v2242 = vsub.s32 0, %v2241
      %v2243 = vsel %vm2237, %v2242, %v2241
      %vm2244 = vcmp.lt.s32.totalorder %v2216, 0
      %v2245 = vsub.s32 0, %v2216
      %v2246 = vsel %vm2244, %v2245, %v2216
      %v2247 = vshrl.u32 %v2246, 4
      %v2248 = vand.u32 %v2246, 15
      %v2249 = vsub.s32 0, %v2248
      %v2250 = vsel %vm2244, %v2249, %v2248
      %vm2251 = vcmp.lt.s32.totalorder %v2217, 0
      %v2252 = vsub.s32 0, %v2217
      %v2253 = vsel %vm2251, %v2252, %v2217
      %v2254 = vshrl.u32 %v2253, 4
      %v2255 = vand.u32 %v2253, 15
      %v2256 = vsub.s32 0, %v2255
      %v2257 = vsel %vm2251, %v2256, %v2255
      %vm2258 = vcmp.lt.s32.totalorder %v2218, 0
      %v2259 = vsub.s32 0, %v2218
      %v2260 = vsel %vm2258, %v2259, %v2218
      %v2261 = vshrl.u32 %v2260, 4
      %v2262 = vand.u32 %v2260, 15
      %v2263 = vsub.s32 0, %v2262
      %v2264 = vsel %vm2258, %v2263, %v2262
      %vm2265 = vcmp.lt.s32.totalorder %v2219, 0
      %v2266 = vsub.s32 0, %v2219
      %v2267 = vsel %vm2265, %v2266, %v2219
      %v2268 = vshrl.u32 %v2267, 4
      %v2269 = vand.u32 %v2267, 15
      %v2270 = vsub.s32 0, %v2269
      %v2271 = vsel %vm2265, %v2270, %v2269
      %vm2272 = vcmp.lt.s32.totalorder %v2220, 0
      %v2273 = vsub.s32 0, %v2220
      %v2274 = vsel %vm2272, %v2273, %v2220
      %v2275 = vshrl.u32 %v2274, 4
      %v2276 = vand.u32 %v2274, 15
      %v2277 = vsub.s32 0, %v2276
      %v2278 = vsel %vm2272, %v2277, %v2276
      %vm2279 = vcmp.lt.s32.totalorder %v2221, 0
      %v2280 = vsub.s32 0, %v2221
      %v2281 = vsel %vm2279, %v2280, %v2221
      %v2282 = vshrl.u32 %v2281, 4
      %v2283 = vand.u32 %v2281, 15
      %v2284 = vsub.s32 0, %v2283
      %v2285 = vsel %vm2279, %v2284, %v2283
      %vm2286 = vcmp.lt.s32.totalorder %v2222, 0
      %v2287 = vsub.s32 0, %v2222
      %v2288 = vsel %vm2286, %v2287, %v2222
      %v2289 = vshrl.u32 %v2288, 4
      %v2290 = vand.u32 %v2288, 15
      %v2291 = vsub.s32 0, %v2290
      %v2292 = vsel %vm2286, %v2291, %v2290
      %vm2293 = vcmp.lt.s32.totalorder %v2223, 0
      %v2294 = vsub.s32 0, %v2223
      %v2295 = vsel %vm2293, %v2294, %v2223
      %v2296 = vshrl.u32 %v2295, 4
      %v2297 = vand.u32 %v2295, 15
      %v2298 = vsub.s32 0, %v2297
      %v2299 = vsel %vm2293, %v2298, %v2297
      %vm2300 = vcmp.lt.s32.totalorder %v2224, 0
      %v2301 = vsub.s32 0, %v2224
      %v2302 = vsel %vm2300, %v2301, %v2224
      %v2303 = vshrl.u32 %v2302, 4
      %v2304 = vand.u32 %v2302, 15
      %v2305 = vsub.s32 0, %v2304
      %v2306 = vsel %vm2300, %v2305, %v2304
      %vm2307 = vcmp.lt.s32.totalorder %v2225, 0
      %v2308 = vsub.s32 0, %v2225
      %v2309 = vsel %vm2307, %v2308, %v2225
      %v2310 = vshrl.u32 %v2309, 4
      %v2311 = vand.u32 %v2309, 15
      %v2312 = vsub.s32 0, %v2311
      %v2313 = vsel %vm2307, %v2312, %v2311
      %vm2314 = vcmp.lt.s32.totalorder %v2226, 0
      %v2315 = vsub.s32 0, %v2226
      %v2316 = vsel %vm2314, %v2315, %v2226
      %v2317 = vshrl.u32 %v2316, 4
      %v2318 = vand.u32 %v2316, 15
      %v2319 = vsub.s32 0, %v2318
      %v2320 = vsel %vm2314, %v2319, %v2318
      %vm2321 = vcmp.lt.s32.totalorder %v2227, 0
      %v2322 = vsub.s32 0, %v2227
      %v2323 = vsel %vm2321, %v2322, %v2227
      %v2324 = vshrl.u32 %v2323, 4
      %v2325 = vand.u32 %v2323, 15
      %v2326 = vsub.s32 0, %v2325
      %v2327 = vsel %vm2321, %v2326, %v2325
      %vm2328 = vcmp.lt.s32.totalorder %v2228, 0
      %v2329 = vsub.s32 0, %v2228
      %v2330 = vsel %vm2328, %v2329, %v2228
      %v2331 = vshrl.u32 %v2330, 4
      %v2332 = vand.u32 %v2330, 15
      %v2333 = vsub.s32 0, %v2332
      %v2334 = vsel %vm2328, %v2333, %v2332
      %vm2335 = vcmp.lt.s32.totalorder %v2229, 0
      %v2336 = vsub.s32 0, %v2229
      %v2337 = vsel %vm2335, %v2336, %v2229
      %v2338 = vshrl.u32 %v2337, 4
      %v2339 = vand.u32 %v2337, 15
      %v2340 = vsub.s32 0, %v2339
      %v2341 = vsel %vm2335, %v2340, %v2339
      %vm2342 = vcmp.ne.s32.totalorder %v2236, 0
      %vm2343 = vcmp.ne.s32.totalorder %v2243, 0
      %vm2344 = vcmp.ne.s32.totalorder %v2250, 0
      %vm2345 = vcmp.ne.s32.totalorder %v2257, 0
      %vm2346 = vcmp.ne.s32.totalorder %v2264, 0
      %vm2347 = vcmp.ne.s32.totalorder %v2271, 0
      %vm2348 = vcmp.ne.s32.totalorder %v2278, 0
      %vm2349 = vcmp.ne.s32.totalorder %v2285, 0
      %vm2350 = vcmp.ne.s32.totalorder %v2292, 0
      %vm2351 = vcmp.ne.s32.totalorder %v2299, 0
      %vm2352 = vcmp.ne.s32.totalorder %v2306, 0
      %vm2353 = vcmp.ne.s32.totalorder %v2313, 0
      %vm2354 = vcmp.ne.s32.totalorder %v2320, 0
      %vm2355 = vcmp.ne.s32.totalorder %v2327, 0
      %vm2356 = vcmp.ne.s32.totalorder %v2334, 0
      %vm2357 = vcmp.ne.s32.totalorder %v2341, 0
      %vm2358 = vcmp.lt.s32.totalorder %v2236, 0
      %vm2359 = vcmp.lt.s32.totalorder %v2243, 0
      %vm2360 = vcmp.lt.s32.totalorder %v2250, 0
      %vm2361 = vcmp.lt.s32.totalorder %v2257, 0
      %vm2362 = vcmp.lt.s32.totalorder %v2264, 0
      %vm2363 = vcmp.lt.s32.totalorder %v2271, 0
      %vm2364 = vcmp.lt.s32.totalorder %v2278, 0
      %vm2365 = vcmp.lt.s32.totalorder %v2285, 0
      %vm2366 = vcmp.lt.s32.totalorder %v2292, 0
      %vm2367 = vcmp.lt.s32.totalorder %v2299, 0
      %vm2368 = vcmp.lt.s32.totalorder %v2306, 0
      %vm2369 = vcmp.lt.s32.totalorder %v2313, 0
      %vm2370 = vcmp.lt.s32.totalorder %v2320, 0
      %vm2371 = vcmp.lt.s32.totalorder %v2327, 0
      %vm2372 = vcmp.lt.s32.totalorder %v2334, 0
      %vm2373 = vcmp.lt.s32.totalorder %v2341, 0
      %vm2374 = vmand %vm2358, %vm2342
      %vm2375 = vmand %vm2359, %vm2343
      %vm2376 = vmand %vm2360, %vm2344
      %vm2377 = vmand %vm2361, %vm2345
      %vm2378 = vmand %vm2362, %vm2346
      %vm2379 = vmand %vm2363, %vm2347
      %vm2380 = vmand %vm2364, %vm2348
      %vm2381 = vmand %vm2365, %vm2349
      %vm2382 = vmand %vm2366, %vm2350
      %vm2383 = vmand %vm2367, %vm2351
      %vm2384 = vmand %vm2368, %vm2352
      %vm2385 = vmand %vm2369, %vm2353
      %vm2386 = vmand %vm2370, %vm2354
      %vm2387 = vmand %vm2371, %vm2355
      %vm2388 = vmand %vm2372, %vm2356
      %vm2389 = vmand %vm2373, %vm2357
      %v2390 = vadd.s32 %v2236, 16
      %v2391 = vadd.s32 %v2243, 16
      %v2392 = vadd.s32 %v2250, 16
      %v2393 = vadd.s32 %v2257, 16
      %v2394 = vadd.s32 %v2264, 16
      %v2395 = vadd.s32 %v2271, 16
      %v2396 = vadd.s32 %v2278, 16
      %v2397 = vadd.s32 %v2285, 16
      %v2398 = vadd.s32 %v2292, 16
      %v2399 = vadd.s32 %v2299, 16
      %v2400 = vadd.s32 %v2306, 16
      %v2401 = vadd.s32 %v2313, 16
      %v2402 = vadd.s32 %v2320, 16
      %v2403 = vadd.s32 %v2327, 16
      %v2404 = vadd.s32 %v2334, 16
      %v2405 = vadd.s32 %v2341, 16
      %v2406 = vsel %vm2374, %v2390, %v2236
      %v2407 = vsel %vm2375, %v2391, %v2243
      %v2408 = vsel %vm2376, %v2392, %v2250
      %v2409 = vsel %vm2377, %v2393, %v2257
      %v2410 = vsel %vm2378, %v2394, %v2264
      %v2411 = vsel %vm2379, %v2395, %v2271
      %v2412 = vsel %vm2380, %v2396, %v2278
      %v2413 = vsel %vm2381, %v2397, %v2285
      %v2414 = vsel %vm2382, %v2398, %v2292
      %v2415 = vsel %vm2383, %v2399, %v2299
      %v2416 = vsel %vm2384, %v2400, %v2306
      %v2417 = vsel %vm2385, %v2401, %v2313
      %v2418 = vsel %vm2386, %v2402, %v2320
      %v2419 = vsel %vm2387, %v2403, %v2327
      %v2420 = vsel %vm2388, %v2404, %v2334
      %v2421 = vsel %vm2389, %v2405, %v2341
      %vm2422 = vcmp.lt.s32.totalorder %v2406, 0
      %v2423 = vsub.s32 0, %v2406
      %v2424 = vsel %vm2422, %v2423, %v2406
      %v2425 = vshrl.u32 %v2424, 1
      %v2426 = vand.u32 %v2424, 1
      %v2427 = vsub.s32 0, %v2426
      %v2428 = vsel %vm2422, %v2427, %v2426
      %vm2429 = vcmp.lt.s32.totalorder %v2407, 0
      %v2430 = vsub.s32 0, %v2407
      %v2431 = vsel %vm2429, %v2430, %v2407
      %v2432 = vshrl.u32 %v2431, 1
      %v2433 = vand.u32 %v2431, 1
      %v2434 = vsub.s32 0, %v2433
      %v2435 = vsel %vm2429, %v2434, %v2433
      %vm2436 = vcmp.lt.s32.totalorder %v2408, 0
      %v2437 = vsub.s32 0, %v2408
      %v2438 = vsel %vm2436, %v2437, %v2408
      %v2439 = vshrl.u32 %v2438, 1
      %v2440 = vand.u32 %v2438, 1
      %v2441 = vsub.s32 0, %v2440
      %v2442 = vsel %vm2436, %v2441, %v2440
      %vm2443 = vcmp.lt.s32.totalorder %v2409, 0
      %v2444 = vsub.s32 0, %v2409
      %v2445 = vsel %vm2443, %v2444, %v2409
      %v2446 = vshrl.u32 %v2445, 1
      %v2447 = vand.u32 %v2445, 1
      %v2448 = vsub.s32 0, %v2447
      %v2449 = vsel %vm2443, %v2448, %v2447
      %vm2450 = vcmp.lt.s32.totalorder %v2410, 0
      %v2451 = vsub.s32 0, %v2410
      %v2452 = vsel %vm2450, %v2451, %v2410
      %v2453 = vshrl.u32 %v2452, 1
      %v2454 = vand.u32 %v2452, 1
      %v2455 = vsub.s32 0, %v2454
      %v2456 = vsel %vm2450, %v2455, %v2454
      %vm2457 = vcmp.lt.s32.totalorder %v2411, 0
      %v2458 = vsub.s32 0, %v2411
      %v2459 = vsel %vm2457, %v2458, %v2411
      %v2460 = vshrl.u32 %v2459, 1
      %v2461 = vand.u32 %v2459, 1
      %v2462 = vsub.s32 0, %v2461
      %v2463 = vsel %vm2457, %v2462, %v2461
      %vm2464 = vcmp.lt.s32.totalorder %v2412, 0
      %v2465 = vsub.s32 0, %v2412
      %v2466 = vsel %vm2464, %v2465, %v2412
      %v2467 = vshrl.u32 %v2466, 1
      %v2468 = vand.u32 %v2466, 1
      %v2469 = vsub.s32 0, %v2468
      %v2470 = vsel %vm2464, %v2469, %v2468
      %vm2471 = vcmp.lt.s32.totalorder %v2413, 0
      %v2472 = vsub.s32 0, %v2413
      %v2473 = vsel %vm2471, %v2472, %v2413
      %v2474 = vshrl.u32 %v2473, 1
      %v2475 = vand.u32 %v2473, 1
      %v2476 = vsub.s32 0, %v2475
      %v2477 = vsel %vm2471, %v2476, %v2475
      %vm2478 = vcmp.lt.s32.totalorder %v2414, 0
      %v2479 = vsub.s32 0, %v2414
      %v2480 = vsel %vm2478, %v2479, %v2414
      %v2481 = vshrl.u32 %v2480, 1
      %v2482 = vand.u32 %v2480, 1
      %v2483 = vsub.s32 0, %v2482
      %v2484 = vsel %vm2478, %v2483, %v2482
      %vm2485 = vcmp.lt.s32.totalorder %v2415, 0
      %v2486 = vsub.s32 0, %v2415
      %v2487 = vsel %vm2485, %v2486, %v2415
      %v2488 = vshrl.u32 %v2487, 1
      %v2489 = vand.u32 %v2487, 1
      %v2490 = vsub.s32 0, %v2489
      %v2491 = vsel %vm2485, %v2490, %v2489
      %vm2492 = vcmp.lt.s32.totalorder %v2416, 0
      %v2493 = vsub.s32 0, %v2416
      %v2494 = vsel %vm2492, %v2493, %v2416
      %v2495 = vshrl.u32 %v2494, 1
      %v2496 = vand.u32 %v2494, 1
      %v2497 = vsub.s32 0, %v2496
      %v2498 = vsel %vm2492, %v2497, %v2496
      %vm2499 = vcmp.lt.s32.totalorder %v2417, 0
      %v2500 = vsub.s32 0, %v2417
      %v2501 = vsel %vm2499, %v2500, %v2417
      %v2502 = vshrl.u32 %v2501, 1
      %v2503 = vand.u32 %v2501, 1
      %v2504 = vsub.s32 0, %v2503
      %v2505 = vsel %vm2499, %v2504, %v2503
      %vm2506 = vcmp.lt.s32.totalorder %v2418, 0
      %v2507 = vsub.s32 0, %v2418
      %v2508 = vsel %vm2506, %v2507, %v2418
      %v2509 = vshrl.u32 %v2508, 1
      %v2510 = vand.u32 %v2508, 1
      %v2511 = vsub.s32 0, %v2510
      %v2512 = vsel %vm2506, %v2511, %v2510
      %vm2513 = vcmp.lt.s32.totalorder %v2419, 0
      %v2514 = vsub.s32 0, %v2419
      %v2515 = vsel %vm2513, %v2514, %v2419
      %v2516 = vshrl.u32 %v2515, 1
      %v2517 = vand.u32 %v2515, 1
      %v2518 = vsub.s32 0, %v2517
      %v2519 = vsel %vm2513, %v2518, %v2517
      %vm2520 = vcmp.lt.s32.totalorder %v2420, 0
      %v2521 = vsub.s32 0, %v2420
      %v2522 = vsel %vm2520, %v2521, %v2420
      %v2523 = vshrl.u32 %v2522, 1
      %v2524 = vand.u32 %v2522, 1
      %v2525 = vsub.s32 0, %v2524
      %v2526 = vsel %vm2520, %v2525, %v2524
      %vm2527 = vcmp.lt.s32.totalorder %v2421, 0
      %v2528 = vsub.s32 0, %v2421
      %v2529 = vsel %vm2527, %v2528, %v2421
      %v2530 = vshrl.u32 %v2529, 1
      %v2531 = vand.u32 %v2529, 1
      %v2532 = vsub.s32 0, %v2531
      %v2533 = vsel %vm2527, %v2532, %v2531
      %vm2534 = vcmp.ne.s32.totalorder %v2428, 0
      %vm2535 = vcmp.ne.s32.totalorder %v2435, 0
      %vm2536 = vcmp.ne.s32.totalorder %v2442, 0
      %vm2537 = vcmp.ne.s32.totalorder %v2449, 0
      %vm2538 = vcmp.ne.s32.totalorder %v2456, 0
      %vm2539 = vcmp.ne.s32.totalorder %v2463, 0
      %vm2540 = vcmp.ne.s32.totalorder %v2470, 0
      %vm2541 = vcmp.ne.s32.totalorder %v2477, 0
      %vm2542 = vcmp.ne.s32.totalorder %v2484, 0
      %vm2543 = vcmp.ne.s32.totalorder %v2491, 0
      %vm2544 = vcmp.ne.s32.totalorder %v2498, 0
      %vm2545 = vcmp.ne.s32.totalorder %v2505, 0
      %vm2546 = vcmp.ne.s32.totalorder %v2512, 0
      %vm2547 = vcmp.ne.s32.totalorder %v2519, 0
      %vm2548 = vcmp.ne.s32.totalorder %v2526, 0
      %vm2549 = vcmp.ne.s32.totalorder %v2533, 0
      %vm2550 = vcmp.lt.s32.totalorder %v2428, 0
      %vm2551 = vcmp.lt.s32.totalorder %v2435, 0
      %vm2552 = vcmp.lt.s32.totalorder %v2442, 0
      %vm2553 = vcmp.lt.s32.totalorder %v2449, 0
      %vm2554 = vcmp.lt.s32.totalorder %v2456, 0
      %vm2555 = vcmp.lt.s32.totalorder %v2463, 0
      %vm2556 = vcmp.lt.s32.totalorder %v2470, 0
      %vm2557 = vcmp.lt.s32.totalorder %v2477, 0
      %vm2558 = vcmp.lt.s32.totalorder %v2484, 0
      %vm2559 = vcmp.lt.s32.totalorder %v2491, 0
      %vm2560 = vcmp.lt.s32.totalorder %v2498, 0
      %vm2561 = vcmp.lt.s32.totalorder %v2505, 0
      %vm2562 = vcmp.lt.s32.totalorder %v2512, 0
      %vm2563 = vcmp.lt.s32.totalorder %v2519, 0
      %vm2564 = vcmp.lt.s32.totalorder %v2526, 0
      %vm2565 = vcmp.lt.s32.totalorder %v2533, 0
      %vm2566 = vmand %vm2550, %vm2534
      %vm2567 = vmand %vm2551, %vm2535
      %vm2568 = vmand %vm2552, %vm2536
      %vm2569 = vmand %vm2553, %vm2537
      %vm2570 = vmand %vm2554, %vm2538
      %vm2571 = vmand %vm2555, %vm2539
      %vm2572 = vmand %vm2556, %vm2540
      %vm2573 = vmand %vm2557, %vm2541
      %vm2574 = vmand %vm2558, %vm2542
      %vm2575 = vmand %vm2559, %vm2543
      %vm2576 = vmand %vm2560, %vm2544
      %vm2577 = vmand %vm2561, %vm2545
      %vm2578 = vmand %vm2562, %vm2546
      %vm2579 = vmand %vm2563, %vm2547
      %vm2580 = vmand %vm2564, %vm2548
      %vm2581 = vmand %vm2565, %vm2549
      %v2582 = vadd.s32 %v2428, 2
      %v2583 = vadd.s32 %v2435, 2
      %v2584 = vadd.s32 %v2442, 2
      %v2585 = vadd.s32 %v2449, 2
      %v2586 = vadd.s32 %v2456, 2
      %v2587 = vadd.s32 %v2463, 2
      %v2588 = vadd.s32 %v2470, 2
      %v2589 = vadd.s32 %v2477, 2
      %v2590 = vadd.s32 %v2484, 2
      %v2591 = vadd.s32 %v2491, 2
      %v2592 = vadd.s32 %v2498, 2
      %v2593 = vadd.s32 %v2505, 2
      %v2594 = vadd.s32 %v2512, 2
      %v2595 = vadd.s32 %v2519, 2
      %v2596 = vadd.s32 %v2526, 2
      %v2597 = vadd.s32 %v2533, 2
      %v2598 = vsel %vm2566, %v2582, %v2428
      %v2599 = vsel %vm2567, %v2583, %v2435
      %v2600 = vsel %vm2568, %v2584, %v2442
      %v2601 = vsel %vm2569, %v2585, %v2449
      %v2602 = vsel %vm2570, %v2586, %v2456
      %v2603 = vsel %vm2571, %v2587, %v2463
      %v2604 = vsel %vm2572, %v2588, %v2470
      %v2605 = vsel %vm2573, %v2589, %v2477
      %v2606 = vsel %vm2574, %v2590, %v2484
      %v2607 = vsel %vm2575, %v2591, %v2491
      %v2608 = vsel %vm2576, %v2592, %v2498
      %v2609 = vsel %vm2577, %v2593, %v2505
      %v2610 = vsel %vm2578, %v2594, %v2512
      %v2611 = vsel %vm2579, %v2595, %v2519
      %v2612 = vsel %vm2580, %v2596, %v2526
      %v2613 = vsel %vm2581, %v2597, %v2533
      %vm2614 = vcmp.eq.s32.totalorder %v2598, 0
      %vm2615 = vcmp.eq.s32.totalorder %v2599, 0
      %vm2616 = vcmp.eq.s32.totalorder %v2600, 0
      %vm2617 = vcmp.eq.s32.totalorder %v2601, 0
      %vm2618 = vcmp.eq.s32.totalorder %v2602, 0
      %vm2619 = vcmp.eq.s32.totalorder %v2603, 0
      %vm2620 = vcmp.eq.s32.totalorder %v2604, 0
      %vm2621 = vcmp.eq.s32.totalorder %v2605, 0
      %vm2622 = vcmp.eq.s32.totalorder %v2606, 0
      %vm2623 = vcmp.eq.s32.totalorder %v2607, 0
      %vm2624 = vcmp.eq.s32.totalorder %v2608, 0
      %vm2625 = vcmp.eq.s32.totalorder %v2609, 0
      %vm2626 = vcmp.eq.s32.totalorder %v2610, 0
      %vm2627 = vcmp.eq.s32.totalorder %v2611, 0
      %vm2628 = vcmp.eq.s32.totalorder %v2612, 0
      %vm2629 = vcmp.eq.s32.totalorder %v2613, 0
      %v2630 = vsel %vm2614, 1, 0
      %v2631 = vsel %vm2615, 1, 0
      %v2632 = vsel %vm2616, 1, 0
      %v2633 = vsel %vm2617, 1, 0
      %v2634 = vsel %vm2618, 1, 0
      %v2635 = vsel %vm2619, 1, 0
      %v2636 = vsel %vm2620, 1, 0
      %v2637 = vsel %vm2621, 1, 0
      %v2638 = vsel %vm2622, 1, 0
      %v2639 = vsel %vm2623, 1, 0
      %v2640 = vsel %vm2624, 1, 0
      %v2641 = vsel %vm2625, 1, 0
      %v2642 = vsel %vm2626, 1, 0
      %v2643 = vsel %vm2627, 1, 0
      %v2644 = vsel %vm2628, 1, 0
      %v2645 = vsel %vm2629, 1, 0
      %vm2646 = vcmp.eq.s32.totalorder %v2630, 1
      %vm2647 = vcmp.eq.s32.totalorder %v2631, 1
      %vm2648 = vcmp.eq.s32.totalorder %v2632, 1
      %vm2649 = vcmp.eq.s32.totalorder %v2633, 1
      %vm2650 = vcmp.eq.s32.totalorder %v2634, 1
      %vm2651 = vcmp.eq.s32.totalorder %v2635, 1
      %vm2652 = vcmp.eq.s32.totalorder %v2636, 1
      %vm2653 = vcmp.eq.s32.totalorder %v2637, 1
      %vm2654 = vcmp.eq.s32.totalorder %v2638, 1
      %vm2655 = vcmp.eq.s32.totalorder %v2639, 1
      %vm2656 = vcmp.eq.s32.totalorder %v2640, 1
      %vm2657 = vcmp.eq.s32.totalorder %v2641, 1
      %vm2658 = vcmp.eq.s32.totalorder %v2642, 1
      %vm2659 = vcmp.eq.s32.totalorder %v2643, 1
      %vm2660 = vcmp.eq.s32.totalorder %v2644, 1
      %vm2661 = vcmp.eq.s32.totalorder %v2645, 1
      %v2662 = vsel %vm2646, %v2197, 0.0
      %v2663 = vsel %vm2647, %v2198, 0.0
      %v2664 = vsel %vm2648, %v2199, 0.0
      %v2665 = vsel %vm2649, %v2200, 0.0
      %v2666 = vsel %vm2650, %v2201, 0.0
      %v2667 = vsel %vm2651, %v2202, 0.0
      %v2668 = vsel %vm2652, %v2203, 0.0
      %v2669 = vsel %vm2653, %v2204, 0.0
      %v2670 = vsel %vm2654, %v2205, 0.0
      %v2671 = vsel %vm2655, %v2206, 0.0
      %v2672 = vsel %vm2656, %v2207, 0.0
      %v2673 = vsel %vm2657, %v2208, 0.0
      %v2674 = vsel %vm2658, %v2209, 0.0
      %v2675 = vsel %vm2659, %v2210, 0.0
      %v2676 = vsel %vm2660, %v2211, 0.0
      %v2677 = vsel %vm2661, %v2212, 0.0
      %v2678 = vadd.f32 %v2662, %v2663
      %v2679 = vadd.f32 %v2678, %v2664
      %v2680 = vadd.f32 %v2679, %v2665
      %v2681 = vadd.f32 %v2680, %v2666
      %v2682 = vadd.f32 %v2681, %v2667
      %v2683 = vadd.f32 %v2682, %v2668
      %v2684 = vadd.f32 %v2683, %v2669
      %v2685 = vadd.f32 %v2684, %v2670
      %v2686 = vadd.f32 %v2685, %v2671
      %v2687 = vadd.f32 %v2686, %v2672
      %v2688 = vadd.f32 %v2687, %v2673
      %v2689 = vadd.f32 %v2688, %v2674
      %v2690 = vadd.f32 %v2689, %v2675
      %v2691 = vadd.f32 %v2690, %v2676
      %v2692 = vadd.f32 %v2691, %v2677
      %v2693 = vrot.slane %v2692, 4
      %v2694 = vadd.f32 %v2692, %v2693
      %v2695 = vrot.slane %v2694, 2
      %v2696 = vadd.f32 %v2694, %v2695
      %v2697 = vrot.slane %v2696, 1
      %v2698 = vadd.f32 %v2696, %v2697
      %2699 = vst [vmem:[%s289] sm:$0x1] %v2698
      %v2700 = vmul.f32 %v2662, %v2662
      %v2701 = vmul.f32 %v2663, %v2663
      %v2702 = vmul.f32 %v2664, %v2664
      %v2703 = vmul.f32 %v2665, %v2665
      %v2704 = vmul.f32 %v2666, %v2666
      %v2705 = vmul.f32 %v2667, %v2667
      %v2706 = vmul.f32 %v2668, %v2668
      %v2707 = vmul.f32 %v2669, %v2669
      %v2708 = vmul.f32 %v2670, %v2670
      %v2709 = vmul.f32 %v2671, %v2671
      %v2710 = vmul.f32 %v2672, %v2672
      %v2711 = vmul.f32 %v2673, %v2673
      %v2712 = vmul.f32 %v2674, %v2674
      %v2713 = vmul.f32 %v2675, %v2675
      %v2714 = vmul.f32 %v2676, %v2676
      %v2715 = vmul.f32 %v2677, %v2677
      %v2716 = vadd.f32 %v2700, %v2701
      %v2717 = vadd.f32 %v2716, %v2702
      %v2718 = vadd.f32 %v2717, %v2703
      %v2719 = vadd.f32 %v2718, %v2704
      %v2720 = vadd.f32 %v2719, %v2705
      %v2721 = vadd.f32 %v2720, %v2706
      %v2722 = vadd.f32 %v2721, %v2707
      %v2723 = vadd.f32 %v2722, %v2708
      %v2724 = vadd.f32 %v2723, %v2709
      %v2725 = vadd.f32 %v2724, %v2710
      %v2726 = vadd.f32 %v2725, %v2711
      %v2727 = vadd.f32 %v2726, %v2712
      %v2728 = vadd.f32 %v2727, %v2713
      %v2729 = vadd.f32 %v2728, %v2714
      %v2730 = vadd.f32 %v2729, %v2715
      %v2731 = vrot.slane %v2730, 4
      %v2732 = vadd.f32 %v2730, %v2731
      %v2733 = vrot.slane %v2732, 2
      %v2734 = vadd.f32 %v2732, %v2733
      %v2735 = vrot.slane %v2734, 1
      %v2736 = vadd.f32 %v2734, %v2735
      %2737 = vst [vmem:[%s289 + $0x1] sm:$0x1] %v2736
      %v2738 = vpack.c.bf16 %v2198, %v2197
      %v2739 = vpack.c.bf16 %v2200, %v2199
      %v2740 = vpack.c.bf16 %v2202, %v2201
      %v2741 = vpack.c.bf16 %v2204, %v2203
      %v2742 = vpack.c.bf16 %v2206, %v2205
      %v2743 = vpack.c.bf16 %v2208, %v2207
      %v2744 = vpack.c.bf16 %v2210, %v2209
      %v2745 = vpack.c.bf16 %v2212, %v2211
      %v2754 = vunpack.c.l.b16 %v2738
      %v2755 = vunpack.c.h.b16 %v2738
      %v2756 = vunpack.c.l.b16 %v2739
      %v2757 = vunpack.c.h.b16 %v2739
      %v2758 = vunpack.c.l.b16 %v2740
      %v2759 = vunpack.c.h.b16 %v2740
      %v2760 = vunpack.c.l.b16 %v2741
      %v2761 = vunpack.c.h.b16 %v2741
      %v2762 = vunpack.c.l.b16 %v2742
      %v2763 = vunpack.c.h.b16 %v2742
      %v2764 = vunpack.c.l.b16 %v2743
      %v2765 = vunpack.c.h.b16 %v2743
      %v2766 = vunpack.c.l.b16 %v2744
      %v2767 = vunpack.c.h.b16 %v2744
      %v2768 = vunpack.c.l.b16 %v2745
      %v2769 = vunpack.c.h.b16 %v2745
      %v2770 = vpack.c.b16 %v2754, %v2754
      %v2771 = vpack.c.b16 %v2755, %v2755
      %v2772 = vpack.c.b16 %v2756, %v2756
      %v2773 = vpack.c.b16 %v2757, %v2757
      %v2774 = vpack.c.b16 %v2758, %v2758
      %v2775 = vpack.c.b16 %v2759, %v2759
      %v2776 = vpack.c.b16 %v2760, %v2760
      %v2777 = vpack.c.b16 %v2761, %v2761
      %v2778 = vpack.c.b16 %v2762, %v2762
      %v2779 = vpack.c.b16 %v2763, %v2763
      %v2780 = vpack.c.b16 %v2764, %v2764
      %v2781 = vpack.c.b16 %v2765, %v2765
      %v2782 = vpack.c.b16 %v2766, %v2766
      %v2783 = vpack.c.b16 %v2767, %v2767
      %v2784 = vpack.c.b16 %v2768, %v2768
      %v2785 = vpack.c.b16 %v2769, %v2769
      %2802 = vst [vmem:[%s285] sm:$0xf] %v2770
      %2803 = vst [vmem:[%s285 + $0x4] sm:$0xf] %v2771
      %2804 = vst [vmem:[%s285 + $0x8] sm:$0xf] %v2772
      %2805 = vst [vmem:[%s285 + $0xc] sm:$0xf] %v2773
      %2806 = vst [vmem:[%s285 + $0x10] sm:$0xf] %v2774
      %2807 = vst [vmem:[%s285 + $0x14] sm:$0xf] %v2775
      %2808 = vst [vmem:[%s285 + $0x18] sm:$0xf] %v2776
      %2809 = vst [vmem:[%s285 + $0x1c] sm:$0xf] %v2777
      %2810 = vst [vmem:[%s285 + $0x20] sm:$0xf] %v2778
      %2811 = vst [vmem:[%s285 + $0x24] sm:$0xf] %v2779
      %2812 = vst [vmem:[%s285 + $0x28] sm:$0xf] %v2780
      %2813 = vst [vmem:[%s285 + $0x2c] sm:$0xf] %v2781
      %2814 = vst [vmem:[%s285 + $0x30] sm:$0xf] %v2782
      %2815 = vst [vmem:[%s285 + $0x34] sm:$0xf] %v2783
      %2816 = vst [vmem:[%s285 + $0x38] sm:$0xf] %v2784
      %2817 = vst [vmem:[%s285 + $0x3c] sm:$0xf] %v2785
      %p2818 = scmp.lt.s32.totalorder %s19, 1
      %s2819 = scalar_select %p2818, %s19, 1
      %s2820 = smul.addr %s2819, 16
      %s2821 = smul.addr %s2820, 4
      %s2822 = scalar_lea.vmem %s6, %s2821
      %p2823 = scmp.lt.s32.totalorder %s19, 1
      %s2824 = scalar_select %p2823, %s19, 1
      %s2825 = smul.addr %s2824, 2
      %s2826 = scalar_lea.vmem %s7, %s2825
      // Predicated region
      $region45: #{convolution_block_forward.4} parent=43 // pred_check
        %p2827 = pneg %p168
      $region46: #{convolution_block_forward.4} parent=43 // pred_check_branch
        %2829 = sbr.rel (%p2827) target = $region48
      $region47: #{convolution_block_forward.4} parent=43 // pred_region
        _
      $region48: #{convolution_block_forward.4} parent=43 // pred_fallthru
        _
      // Predicated region
      $region49: #{convolution_block_forward.4} parent=43 // pred_check
        %p2830 = pneg %p194
      $region50: #{convolution_block_forward.4} parent=43 // pred_check_branch
        %2832 = sbr.rel (%p2830) target = $region52
      $region51: #{convolution_block_forward.4} parent=43 // pred_region
        _
      $region52: #{convolution_block_forward.4} parent=43 // pred_fallthru
        _
    $region44: #{convolution_block_forward.4} parent=5 // pred_fallthru
      _
    %p2833 = scmp.le.s32.totalorder 2, %s14
    // Predicated region
    $region53: #{convolution_block_forward.4} parent=5 // pred_check
      %p2834 = pneg %p2833
    $region54: #{convolution_block_forward.4} parent=5 // pred_check_branch
      %2836 = sbr.rel (%p2834) target = $region56
    $region55: #{convolution_block_forward.4} parent=5 // pred_region
      %s2837 = ssub.s32 %s14, 2
      // Predicated region
      $region57: #{convolution_block_forward.4} parent=55 // pred_check
        %p2838 = pneg %p174
      $region58: #{convolution_block_forward.4} parent=55 // pred_check_branch
        %2840 = sbr.rel (%p2838) target = $region60
      $region59: #{convolution_block_forward.4} parent=55 // pred_region
        %p2841 = scmp.lt.s32.totalorder %s20, 1
        %s2842 = scalar_select %p2841, %s20, 1
        %s2843 = smul.addr %s2842, 16
        %s2844 = smul.addr %s2843, 4
        %s2845 = scalar_lea.vmem %s6, %s2844
      $region60: #{convolution_block_forward.4} parent=55 // pred_fallthru
        _
      // Predicated region
      $region61: #{convolution_block_forward.4} parent=55 // pred_check
        %p2846 = pneg %p200
      $region62: #{convolution_block_forward.4} parent=55 // pred_check_branch
        %2848 = sbr.rel (%p2846) target = $region64
      $region63: #{convolution_block_forward.4} parent=55 // pred_region
        %p2849 = scmp.lt.s32.totalorder %s20, 1
        %s2850 = scalar_select %p2849, %s20, 1
        %s2851 = smul.addr %s2850, 2
        %s2852 = scalar_lea.vmem %s7, %s2851
      $region64: #{convolution_block_forward.4} parent=55 // pred_fallthru
        _
    $region56: #{convolution_block_forward.4} parent=5 // pred_fallthru
      _
  $region6: #{convolution_block_forward.4} parent=0 // loop_footer
    %s18 = sadd.s32 1, %s14
  $region7: #{convolution_block_forward.4} parent=0 // loop_footer_branch
    %13 = sbr.rel target = $region3
  $region8: #{convolution_block_forward.4} parent=0 // loop_exit
    _

// kernel: convolution_block_forward.3
$region0: #{convolution_block_forward.3}
  #allocation0 [shape = 'u32[]', space=smem, size = 0x4, offset = 0x4, fixed_abs, tag = 'smem constant byte address 0x4 - core index']
  #allocation1 [shape = 'u32[144,128]{1,0:T(1,128)}', space=vmem, size = 0x12000, scoped, tag = 'internal scratch']
  #allocation2 [shape = 'bf16[18,18,4]{2,1,0:T(8,128)(2,1)}', space=vmem, size = 0x1b000, scoped, tag = 'scratch operand']
  #allocation3 [shape = 'bf16[16,16,36]{2,1,0:T(16,128)(2,1)}', space=vmem, size = 0x10000, scoped, tag = 'scratch operand']
  %s0 = inlined_call_operand.vmem [shape: bf16[2,16,16,4], index: 0, kind: input, shape index: {}]
  %s1 = inlined_call_operand.vmem [shape: bf16[36,128], index: 1, kind: input, shape index: {}]
  %s2 = inlined_call_operand.vmem [shape: f32[1,128], index: 2, kind: input, shape index: {}]
  %s3 = inlined_call_operand.vmem [shape: bf16[2,256,128], index: 3, kind: output, shape index: {0}]
  %s4 = inlined_call_operand.vmem [shape: f32[2,2,128], index: 4, kind: output, shape index: {1}]
  %5 = xla_tuple %s3, %s4
  %s6 = sld [smem:[#allocation0]]
  $region53: #{convolution_block_forward.3} parent=0
    _
  %s8 = ssub.s32 1, %s6
  %s9 = scalar_select 0, %s8, %s6
  loop: start=0, step=1, limit=4
  $region2: #{convolution_block_forward.3} parent=0 // loop_pre_header
    _
  $region3: #{convolution_block_forward.3} parent=0 // loop_header
    %s11 = sphi 0, %s15
    %p12 = scmp.ge.s32.totalorder %s11, 4
    %s21 = sphi 0, %s23
    %s24 = sphi 0, %s21
    %s25 = sphi 0, %s24
    %s41 = sphi 0, %s25
    %s45 = sphi 0, %s45
    %s47 = sphi 0, %s45
    %s48 = sphi 0, %s47
    %s62 = sphi 0, %s48
    %s66 = sphi 0, %s66
    %s68 = sphi 0, %s66
    %s69 = sphi 0, %s68
    %s83 = sphi 0, %s69
    %s89 = sphi 0, %s91
    %s92 = sphi 0, %s89
    %s93 = sphi 0, %s92
    %s109 = sphi 0, %s93
    %s115 = sphi 0, %s117
    %s118 = sphi 0, %s115
    %s119 = sphi 0, %s118
    %s135 = sphi 0, %s119
  $region4: #{convolution_block_forward.3} parent=0 // loop_header_branch
    %14 = sbr.rel (%p12) target = $region8
  $region5: #{convolution_block_forward.3} parent=0 // loop_body
    %s16 = ssub.s32 %s11, 1
    %s17 = ssub.s32 %s11, 2
    %s18 = sadd.s32 %s11, 1
    %s19 = ssub.s32 %s11, %s18
    %p20 = scmp.eq.s32.totalorder %s19, 0
    %s22 = sadd.s32 %s21, 1
    %s23 = scalar_select %p20, %s21, %s22
    %p26 = pneg %p20
    %p27 = scmp.eq.s32.totalorder %s11, 1
    %p28 = por %p26, %p27
    %p29 = scmp.ne.s32.totalorder %s21, %s24
    %p30 = scmp.eq.s32.totalorder %s11, 0
    %p31 = por %p29, %p30
    %p32 = scmp.ne.s32.totalorder %s21, %s24
    %p33 = scmp.eq.s32.totalorder %s16, 1
    %p34 = por %p32, %p33
    %p35 = scmp.ne.s32.totalorder %s24, %s25
    %p36 = scmp.eq.s32.totalorder %s16, 0
    %p37 = por %p35, %p36
    %p38 = scmp.ne.s32.totalorder %s24, %s25
    %p39 = scmp.eq.s32.totalorder %s17, 1
    %p40 = por %p38, %p39
    %p42 = scmp.ne.s32.totalorder %s25, %s41
    %p43 = scmp.eq.s32.totalorder %s17, 0
    %p44 = por %p42, %p43
    %s46 = sadd.s32 %s45, 1
    %p49 = scmp.eq.s32.totalorder %s11, 1
    %p50 = scmp.ne.s32.totalorder %s45, %s47
    %p51 = scmp.eq.s32.totalorder %s11, 0
    %p52 = por %p50, %p51
    %p53 = scmp.ne.s32.totalorder %s45, %s47
    %p54 = scmp.eq.s32.totalorder %s16, 1
    %p55 = por %p53, %p54
    %p56 = scmp.ne.s32.totalorder %s47, %s48
    %p57 = scmp.eq.s32.totalorder %s16, 0
    %p58 = por %p56, %p57
    %p59 = scmp.ne.s32.totalorder %s47, %s48
    %p60 = scmp.eq.s32.totalorder %s17, 1
    %p61 = por %p59, %p60
    %p63 = scmp.ne.s32.totalorder %s48, %s62
    %p64 = scmp.eq.s32.totalorder %s17, 0
    %p65 = por %p63, %p64
    %s67 = sadd.s32 %s66, 1
    %p70 = scmp.eq.s32.totalorder %s11, 1
    %p71 = scmp.ne.s32.totalorder %s66, %s68
    %p72 = scmp.eq.s32.totalorder %s11, 0
    %p73 = por %p71, %p72
    %p74 = scmp.ne.s32.totalorder %s66, %s68
    %p75 = scmp.eq.s32.totalorder %s16, 1
    %p76 = por %p74, %p75
    %p77 = scmp.ne.s32.totalorder %s68, %s69
    %p78 = scmp.eq.s32.totalorder %s16, 0
    %p79 = por %p77, %p78
    %p80 = scmp.ne.s32.totalorder %s68, %s69
    %p81 = scmp.eq.s32.totalorder %s17, 1
    %p82 = por %p80, %p81
    %p84 = scmp.ne.s32.totalorder %s69, %s83
    %p85 = scmp.eq.s32.totalorder %s17, 0
    %p86 = por %p84, %p85
    %s87 = ssub.s32 %s11, %s18
    %p88 = scmp.eq.s32.totalorder %s87, 0
    %s90 = sadd.s32 %s89, 1
    %s91 = scalar_select %p88, %s89, %s90
    %p94 = pneg %p88
    %p95 = scmp.eq.s32.totalorder %s11, 1
    %p96 = por %p94, %p95
    %p97 = scmp.ne.s32.totalorder %s89, %s92
    %p98 = scmp.eq.s32.totalorder %s11, 0
    %p99 = por %p97, %p98
    %p100 = scmp.ne.s32.totalorder %s89, %s92
    %p101 = scmp.eq.s32.totalorder %s16, 1
    %p102 = por %p100, %p101
    %p103 = scmp.ne.s32.totalorder %s92, %s93
    %p104 = scmp.eq.s32.totalorder %s16, 0
    %p105 = por %p103, %p104
    %p106 = scmp.ne.s32.totalorder %s92, %s93
    %p107 = scmp.eq.s32.totalorder %s17, 1
    %p108 = por %p106, %p107
    %p110 = scmp.ne.s32.totalorder %s93, %s109
    %p111 = scmp.eq.s32.totalorder %s17, 0
    %p112 = por %p110, %p111
    %s113 = ssub.s32 %s11, %s18
    %p114 = scmp.eq.s32.totalorder %s113, 0
    %s116 = sadd.s32 %s115, 1
    %s117 = scalar_select %p114, %s115, %s116
    %p120 = pneg %p114
    %p121 = scmp.eq.s32.totalorder %s11, 1
    %p122 = por %p120, %p121
    %p123 = scmp.ne.s32.totalorder %s115, %s118
    %p124 = scmp.eq.s32.totalorder %s11, 0
    %p125 = por %p123, %p124
    %p126 = scmp.ne.s32.totalorder %s115, %s118
    %p127 = scmp.eq.s32.totalorder %s16, 1
    %p128 = por %p126, %p127
    %p129 = scmp.ne.s32.totalorder %s118, %s119
    %p130 = scmp.eq.s32.totalorder %s16, 0
    %p131 = por %p129, %p130
    %p132 = scmp.ne.s32.totalorder %s118, %s119
    %p133 = scmp.eq.s32.totalorder %s17, 1
    %p134 = por %p132, %p133
    %p136 = scmp.ne.s32.totalorder %s119, %s135
    %p137 = scmp.eq.s32.totalorder %s17, 0
    %p138 = por %p136, %p137
    %p139 = scmp.le.s32.totalorder 1, %s11
    %p140 = scmp.lt.s32.totalorder %s11, 3
    %p141 = pnand %p139, %p140
    %p142 = pneg %p141
    // Predicated region
    $region9: #{convolution_block_forward.3} parent=5 // pred_check
      _
    $region10: #{convolution_block_forward.3} parent=5 // pred_check_branch
      %144 = sbr.rel (%p141) target = $region12
    $region11: #{convolution_block_forward.3} parent=5 // pred_region
      %s145 = ssub.s32 %s11, 1
      // Predicated region
      $region13: #{convolution_block_forward.3} parent=11 // pred_check
        %p146 = pneg %p58
      $region14: #{convolution_block_forward.3} parent=11 // pred_check_branch
        %148 = sbr.rel (%p146) target = $region16
      $region15: #{convolution_block_forward.3} parent=11 // pred_region
        _
      $region16: #{convolution_block_forward.3} parent=11 // pred_fallthru
        _
      // Predicated region
      $region17: #{convolution_block_forward.3} parent=11 // pred_check
        %p149 = pneg %p79
      $region18: #{convolution_block_forward.3} parent=11 // pred_check_branch
        %151 = sbr.rel (%p149) target = $region20
      $region19: #{convolution_block_forward.3} parent=11 // pred_region
        _
      $region20: #{convolution_block_forward.3} parent=11 // pred_fallthru
        _
    $region12: #{convolution_block_forward.3} parent=5 // pred_fallthru
      _
    %p152 = scmp.lt.s32.totalorder %s11, 2
    // Predicated region
    $region21: #{convolution_block_forward.3} parent=5 // pred_check
      %p153 = pneg %p152
    $region22: #{convolution_block_forward.3} parent=5 // pred_check_branch
      %155 = sbr.rel (%p153) target = $region24
    $region23: #{convolution_block_forward.3} parent=5 // pred_region
      // Predicated region
      $region25: #{convolution_block_forward.3} parent=23 // pred_check
        %p156 = pneg %p31
      $region26: #{convolution_block_forward.3} parent=23 // pred_check_branch
        %158 = sbr.rel (%p156) target = $region28
      $region27: #{convolution_block_forward.3} parent=23 // pred_region
        %p159 = scmp.lt.s32.totalorder %s11, 1
        %s160 = scalar_select %p159, %s11, 1
        %s161 = smul.addr %s160, 32
        %s162 = smul.addr %s161, 4
        %s163 = scalar_lea.vmem %s0, %s162
      $region28: #{convolution_block_forward.3} parent=23 // pred_fallthru
        _
    $region24: #{convolution_block_forward.3} parent=5 // pred_fallthru
      _
    %p164 = scmp.le.s32.totalorder 1, %s11
    %p165 = scmp.lt.s32.totalorder %s11, 3
    %p166 = pnand %p164, %p165
    %p167 = pneg %p166
    // Predicated region
    $region29: #{convolution_block_forward.3} parent=5 // pred_check
      _
    $region30: #{convolution_block_forward.3} parent=5 // pred_check_branch
      %169 = sbr.rel (%p166) target = $region32
    $region31: #{convolution_block_forward.3} parent=5 // pred_region
      %s170 = ssub.s32 %s11, 1
      %p171 = scmp.lt.s32.totalorder %s16, 1
      %s172 = scalar_select %p171, %s16, 1
      %s173 = smul.addr %s172, 32
      %s174 = smul.addr %s173, 4
      %s175 = scalar_lea.vmem %s0, %s174
      %p176 = pneg %p37
      %p177 = pneg %p34
      %p178 = pneg %p58
      %p179 = pneg %p55
      %p180 = pneg %p79
      %p181 = pneg %p76
      %p182 = pneg %p105
      %p183 = pneg %p102
      %p184 = scmp.lt.s32.totalorder %s16, 1
      %s185 = scalar_select %p184, %s16, 1
      %s186 = smul.addr %s185, 32
      %s187 = smul.addr %s186, 4
      %s188 = scalar_lea.vmem %s3, %s187
      %p189 = pneg %p131
      %p190 = pneg %p128
      %p191 = scmp.lt.s32.totalorder %s16, 1
      %s192 = scalar_select %p191, %s16, 1
      %s193 = smul.addr %s192, 2
      %s194 = scalar_lea.vmem %s4, %s193
      %p195 = scmp.lt.s32.totalorder %s16, 1
      %s196 = scalar_select %p195, %s16, 1
      %s197 = smul.addr %s196, 32
      %s198 = smul.addr %s197, 4
      %s199 = scalar_lea.vmem %s0, %s198
      %p200 = scmp.lt.s32.totalorder %s16, 1
      %s201 = scalar_select %p200, %s16, 1
      %s202 = smul.addr %s201, 32
      %s203 = smul.addr %s202, 4
      %s204 = scalar_lea.vmem %s3, %s203
      %p205 = scmp.lt.s32.totalorder %s16, 1
      %s206 = scalar_select %p205, %s16, 1
      %s207 = smul.addr %s206, 2
      %s208 = scalar_lea.vmem %s4, %s207
      %v210 = vld [vmem:[%s199] sm:$0xf]
      %v211 = vld [vmem:[%s199 + $0x4] sm:$0xf]
      %v212 = vld [vmem:[%s199 + $0x8] sm:$0xf]
      %v213 = vld [vmem:[%s199 + $0xc] sm:$0xf]
      %v214 = vld [vmem:[%s199 + $0x10] sm:$0xf]
      %v215 = vld [vmem:[%s199 + $0x14] sm:$0xf]
      %v216 = vld [vmem:[%s199 + $0x18] sm:$0xf]
      %v217 = vld [vmem:[%s199 + $0x1c] sm:$0xf]
      %v218 = vld [vmem:[%s199 + $0x20] sm:$0xf]
      %v219 = vld [vmem:[%s199 + $0x24] sm:$0xf]
      %v220 = vld [vmem:[%s199 + $0x28] sm:$0xf]
      %v221 = vld [vmem:[%s199 + $0x2c] sm:$0xf]
      %v222 = vld [vmem:[%s199 + $0x30] sm:$0xf]
      %v223 = vld [vmem:[%s199 + $0x34] sm:$0xf]
      %v224 = vld [vmem:[%s199 + $0x38] sm:$0xf]
      %v225 = vld [vmem:[%s199 + $0x3c] sm:$0xf]
      %v226 = vld [vmem:[%s199 + $0x40] sm:$0xf]
      %v227 = vld [vmem:[%s199 + $0x44] sm:$0xf]
      %v228 = vld [vmem:[%s199 + $0x48] sm:$0xf]
      %v229 = vld [vmem:[%s199 + $0x4c] sm:$0xf]
      %v230 = vld [vmem:[%s199 + $0x50] sm:$0xf]
      %v231 = vld [vmem:[%s199 + $0x54] sm:$0xf]
      %v232 = vld [vmem:[%s199 + $0x58] sm:$0xf]
      %v233 = vld [vmem:[%s199 + $0x5c] sm:$0xf]
      %v234 = vld [vmem:[%s199 + $0x60] sm:$0xf]
      %v235 = vld [vmem:[%s199 + $0x64] sm:$0xf]
      %v236 = vld [vmem:[%s199 + $0x68] sm:$0xf]
      %v237 = vld [vmem:[%s199 + $0x6c] sm:$0xf]
      %v238 = vld [vmem:[%s199 + $0x70] sm:$0xf]
      %v239 = vld [vmem:[%s199 + $0x74] sm:$0xf]
      %v240 = vld [vmem:[%s199 + $0x78] sm:$0xf]
      %v241 = vld [vmem:[%s199 + $0x7c] sm:$0xf]
      %vm242 = vcmask 27648
      %243 = vst.msk [vmem:[#allocation2] sm:$0xf] %vm242, 0
      %244 = vst.msk [vmem:[#allocation2 + $0x4] sm:$0xf] %vm242, 0
      %vm245 = vcmask 24576
      %246 = vst.msk [vmem:[#allocation2 + $0x8] sm:$0x1] %vm245, 0
      %247 = vst.msk [vmem:[#allocation2 + $0xc] sm:$0xf] %vm242, 0
      %248 = vst.msk [vmem:[#allocation2 + $0x10] sm:$0xf] %vm242, 0
      %249 = vst.msk [vmem:[#allocation2 + $0x14] sm:$0x1] %vm245, 0
      %250 = vst.msk [vmem:[#allocation2 + $0x18] sm:$0xf] %vm242, 0
      %251 = vst.msk [vmem:[#allocation2 + $0x1c] sm:$0xf] %vm242, 0
      %252 = vst.msk [vmem:[#allocation2 + $0x20] sm:$0x1] %vm245, 0
      %253 = vst.msk [vmem:[#allocation2 + $0x24] sm:$0xf] %vm242, 0
      %254 = vst.msk [vmem:[#allocation2 + $0x28] sm:$0xf] %vm242, 0
      %255 = vst.msk [vmem:[#allocation2 + $0x2c] sm:$0x1] %vm245, 0
      %256 = vst.msk [vmem:[#allocation2 + $0x30] sm:$0xf] %vm242, 0
      %257 = vst.msk [vmem:[#allocation2 + $0x34] sm:$0xf] %vm242, 0
      %258 = vst.msk [vmem:[#allocation2 + $0x38] sm:$0x1] %vm245, 0
      %259 = vst.msk [vmem:[#allocation2 + $0x3c] sm:$0xf] %vm242, 0
      %260 = vst.msk [vmem:[#allocation2 + $0x40] sm:$0xf] %vm242, 0
      %261 = vst.msk [vmem:[#allocation2 + $0x44] sm:$0x1] %vm245, 0
      %262 = vst.msk [vmem:[#allocation2 + $0x48] sm:$0xf] %vm242, 0
      %263 = vst.msk [vmem:[#allocation2 + $0x4c] sm:$0xf] %vm242, 0
      %264 = vst.msk [vmem:[#allocation2 + $0x50] sm:$0x1] %vm245, 0
      %265 = vst.msk [vmem:[#allocation2 + $0x54] sm:$0xf] %vm242, 0
      %266 = vst.msk [vmem:[#allocation2 + $0x58] sm:$0xf] %vm242, 0
      %267 = vst.msk [vmem:[#allocation2 + $0x5c] sm:$0x1] %vm245, 0
      %268 = vst.msk [vmem:[#allocation2 + $0x60] sm:$0xf] %vm242, 0
      %269 = vst.msk [vmem:[#allocation2 + $0x64] sm:$0xf] %vm242, 0
      %270 = vst.msk [vmem:[#allocation2 + $0x68] sm:$0x1] %vm245, 0
      %271 = vst.msk [vmem:[#allocation2 + $0x6c] sm:$0xf] %vm242, 0
      %272 = vst.msk [vmem:[#allocation2 + $0x70] sm:$0xf] %vm242, 0
      %273 = vst.msk [vmem:[#allocation2 + $0x74] sm:$0x1] %vm245, 0
      %274 = vst.msk [vmem:[#allocation2 + $0x78] sm:$0xf] %vm242, 0
      %275 = vst.msk [vmem:[#allocation2 + $0x7c] sm:$0xf] %vm242, 0
      %276 = vst.msk [vmem:[#allocation2 + $0x80] sm:$0x1] %vm245, 0
      %277 = vst.msk [vmem:[#allocation2 + $0x84] sm:$0xf] %vm242, 0
      %278 = vst.msk [vmem:[#allocation2 + $0x88] sm:$0xf] %vm242, 0
      %279 = vst.msk [vmem:[#allocation2 + $0x8c] sm:$0x1] %vm245, 0
      %280 = vst.msk [vmem:[#allocation2 + $0x90] sm:$0xf] %vm242, 0
      %281 = vst.msk [vmem:[#allocation2 + $0x94] sm:$0xf] %vm242, 0
      %282 = vst.msk [vmem:[#allocation2 + $0x98] sm:$0x1] %vm245, 0
      %283 = vst.msk [vmem:[#allocation2 + $0x9c] sm:$0xf] %vm242, 0
      %284 = vst.msk [vmem:[#allocation2 + $0xa0] sm:$0xf] %vm242, 0
      %285 = vst.msk [vmem:[#allocation2 + $0xa4] sm:$0x1] %vm245, 0
      %286 = vst.msk [vmem:[#allocation2 + $0xa8] sm:$0xf] %vm242, 0
      %287 = vst.msk [vmem:[#allocation2 + $0xac] sm:$0xf] %vm242, 0
      %288 = vst.msk [vmem:[#allocation2 + $0xb0] sm:$0x1] %vm245, 0
      %289 = vst.msk [vmem:[#allocation2 + $0xb4] sm:$0xf] %vm242, 0
      %290 = vst.msk [vmem:[#allocation2 + $0xb8] sm:$0xf] %vm242, 0
      %291 = vst.msk [vmem:[#allocation2 + $0xbc] sm:$0x1] %vm245, 0
      %292 = vst.msk [vmem:[#allocation2 + $0xc0] sm:$0xf] %vm242, 0
      %293 = vst.msk [vmem:[#allocation2 + $0xc4] sm:$0xf] %vm242, 0
      %294 = vst.msk [vmem:[#allocation2 + $0xc8] sm:$0x1] %vm245, 0
      %295 = vst.msk [vmem:[#allocation2 + $0xcc] sm:$0xf] %vm242, 0
      %296 = vst.msk [vmem:[#allocation2 + $0xd0] sm:$0xf] %vm242, 0
      %297 = vst.msk [vmem:[#allocation2 + $0xd4] sm:$0x1] %vm245, 0
      %vm298 = vsmask.f32 256
      %vm299 = vsmask.f32 4368
      %vm300 = vmor %vm298, %vm299
      %v302 = vshrl.u32 %v210, 16
      %v304 = vrot.slane %v302, 7
      %v305 = vshll.u32 %v210, 16
      %v307 = vor.u32 %v304, %v305
      %v308 = vrot.slane %v304, 4
      %v310 = vshrl.u32 %v211, 16
      %v312 = vrot.slane %v310, 7
      %v313 = vshll.u32 %v211, 16
      %v315 = vor.u32 %v312, %v313
      %v316 = vsel %vm300, %v308, %v315
      %v317 = vrot.slane %v312, 4
      %v319 = vshrl.u32 %v212, 16
      %v321 = vrot.slane %v319, 7
      %v322 = vshll.u32 %v212, 16
      %v324 = vor.u32 %v321, %v322
      %v325 = vrot.slane %v321, 4
      %v327 = vshrl.u32 %v213, 16
      %v329 = vrot.slane %v327, 7
      %v330 = vshll.u32 %v213, 16
      %v332 = vor.u32 %v329, %v330
      %v333 = vsel %vm300, %v325, %v332
      %v334 = vrot.slane %v329, 4
      %v336 = vshrl.u32 %v214, 16
      %v338 = vrot.slane %v336, 7
      %v339 = vshll.u32 %v214, 16
      %v341 = vor.u32 %v338, %v339
      %v342 = vrot.slane %v338, 4
      %v344 = vshrl.u32 %v215, 16
      %v346 = vrot.slane %v344, 7
      %v347 = vshll.u32 %v215, 16
      %v349 = vor.u32 %v346, %v347
      %v350 = vsel %vm300, %v342, %v349
      %v351 = vrot.slane %v346, 4
      %v353 = vshrl.u32 %v216, 16
      %v355 = vrot.slane %v353, 7
      %v356 = vshll.u32 %v216, 16
      %v358 = vor.u32 %v355, %v356
      %v359 = vrot.slane %v355, 4
      %v361 = vshrl.u32 %v217, 16
      %v363 = vrot.slane %v361, 7
      %v364 = vshll.u32 %v217, 16
      %v366 = vor.u32 %v363, %v364
      %v367 = vsel %vm300, %v359, %v366
      %v368 = vrot.slane %v363, 4
      %v370 = vshrl.u32 %v218, 16
      %v372 = vrot.slane %v370, 7
      %v373 = vshll.u32 %v218, 16
      %v375 = vor.u32 %v372, %v373
      %v376 = vrot.slane %v372, 4
      %v378 = vshrl.u32 %v219, 16
      %v380 = vrot.slane %v378, 7
      %v381 = vshll.u32 %v219, 16
      %v383 = vor.u32 %v380, %v381
      %v384 = vsel %vm300, %v376, %v383
      %v385 = vrot.slane %v380, 4
      %v387 = vshrl.u32 %v220, 16
      %v389 = vrot.slane %v387, 7
      %v390 = vshll.u32 %v220, 16
      %v392 = vor.u32 %v389, %v390
      %v393 = vrot.slane %v389, 4
      %v395 = vshrl.u32 %v221, 16
      %v397 = vrot.slane %v395, 7
      %v398 = vshll.u32 %v221, 16
      %v400 = vor.u32 %v397, %v398
      %v401 = vsel %vm300, %v393, %v400
      %v402 = vrot.slane %v397, 4
      %v404 = vshrl.u32 %v222, 16
      %v406 = vrot.slane %v404, 7
      %v407 = vshll.u32 %v222, 16
      %v409 = vor.u32 %v406, %v407
      %v410 = vrot.slane %v406, 4
      %v412 = vshrl.u32 %v223, 16
      %v414 = vrot.slane %v412, 7
      %v415 = vshll.u32 %v223, 16
      %v417 = vor.u32 %v414, %v415
      %v418 = vsel %vm300, %v410, %v417
      %v419 = vrot.slane %v414, 4
      %v421 = vshrl.u32 %v224, 16
      %v423 = vrot.slane %v421, 7
      %v424 = vshll.u32 %v224, 16
      %v426 = vor.u32 %v423, %v424
      %v427 = vrot.slane %v423, 4
      %v429 = vshrl.u32 %v225, 16
      %v431 = vrot.slane %v429, 7
      %v432 = vshll.u32 %v225, 16
      %v434 = vor.u32 %v431, %v432
      %v435 = vsel %vm300, %v427, %v434
      %v436 = vrot.slane %v431, 4
      %v438 = vshrl.u32 %v226, 16
      %v440 = vrot.slane %v438, 7
      %v441 = vshll.u32 %v226, 16
      %v443 = vor.u32 %v440, %v441
      %v444 = vrot.slane %v440, 4
      %v446 = vshrl.u32 %v227, 16
      %v448 = vrot.slane %v446, 7
      %v449 = vshll.u32 %v227, 16
      %v451 = vor.u32 %v448, %v449
      %v452 = vsel %vm300, %v444, %v451
      %v453 = vrot.slane %v448, 4
      %v455 = vshrl.u32 %v228, 16
      %v457 = vrot.slane %v455, 7
      %v458 = vshll.u32 %v228, 16
      %v460 = vor.u32 %v457, %v458
      %v461 = vrot.slane %v457, 4
      %v463 = vshrl.u32 %v229, 16
      %v465 = vrot.slane %v463, 7
      %v466 = vshll.u32 %v229, 16
      %v468 = vor.u32 %v465, %v466
      %v469 = vsel %vm300, %v461, %v468
      %v470 = vrot.slane %v465, 4
      %v472 = vshrl.u32 %v230, 16
      %v474 = vrot.slane %v472, 7
      %v475 = vshll.u32 %v230, 16
      %v477 = vor.u32 %v474, %v475
      %v478 = vrot.slane %v474, 4
      %v480 = vshrl.u32 %v231, 16
      %v482 = vrot.slane %v480, 7
      %v483 = vshll.u32 %v231, 16
      %v485 = vor.u32 %v482, %v483
      %v486 = vsel %vm300, %v478, %v485
      %v487 = vrot.slane %v482, 4
      %v489 = vshrl.u32 %v232, 16
      %v491 = vrot.slane %v489, 7
      %v492 = vshll.u32 %v232, 16
      %v494 = vor.u32 %v491, %v492
      %v495 = vrot.slane %v491, 4
      %v497 = vshrl.u32 %v233, 16
      %v499 = vrot.slane %v497, 7
      %v500 = vshll.u32 %v233, 16
      %v502 = vor.u32 %v499, %v500
      %v503 = vsel %vm300, %v495, %v502
      %v504 = vrot.slane %v499, 4
      %v506 = vshrl.u32 %v234, 16
      %v508 = vrot.slane %v506, 7
      %v509 = vshll.u32 %v234, 16
      %v511 = vor.u32 %v508, %v509
      %v512 = vrot.slane %v508, 4
      %v514 = vshrl.u32 %v235, 16
      %v516 = vrot.slane %v514, 7
      %v517 = vshll.u32 %v235, 16
      %v519 = vor.u32 %v516, %v517
      %v520 = vsel %vm300, %v512, %v519
      %v521 = vrot.slane %v516, 4
      %v523 = vshrl.u32 %v236, 16
      %v525 = vrot.slane %v523, 7
      %v526 = vshll.u32 %v236, 16
      %v528 = vor.u32 %v525, %v526
      %v529 = vrot.slane %v525, 4
      %v531 = vshrl.u32 %v237, 16
      %v533 = vrot.slane %v531, 7
      %v534 = vshll.u32 %v237, 16
      %v536 = vor.u32 %v533, %v534
      %v537 = vsel %vm300, %v529, %v536
      %v538 = vrot.slane %v533, 4
      %v540 = vshrl.u32 %v238, 16
      %v542 = vrot.slane %v540, 7
      %v543 = vshll.u32 %v238, 16
      %v545 = vor.u32 %v542, %v543
      %v546 = vrot.slane %v542, 4
      %v548 = vshrl.u32 %v239, 16
      %v550 = vrot.slane %v548, 7
      %v551 = vshll.u32 %v239, 16
      %v553 = vor.u32 %v550, %v551
      %v554 = vsel %vm300, %v546, %v553
      %v555 = vrot.slane %v550, 4
      %v557 = vshrl.u32 %v240, 16
      %v559 = vrot.slane %v557, 7
      %v560 = vshll.u32 %v240, 16
      %v562 = vor.u32 %v559, %v560
      %v563 = vrot.slane %v559, 4
      %v565 = vshrl.u32 %v241, 16
      %v567 = vrot.slane %v565, 7
      %v568 = vshll.u32 %v241, 16
      %v570 = vor.u32 %v567, %v568
      %v571 = vsel %vm300, %v563, %v570
      %v572 = vrot.slane %v567, 4
      %s621 = scalar_lea.vmem [#allocation2], 12
      %vm622 = vcmask 27648
      %vm623 = vsmask.f32 7938
      %vm624 = vmand %vm622, %vm623
      %v625 = vld [vmem:[%s621] sm:$0xf]
      %v626 = vsel %vm624, %v307, %v625
      %627 = vst [vmem:[%s621] sm:$0xf] %v626
      %628 = vst.msk [vmem:[%s621 + $0x4] sm:$0xf] %vm242, %v316
      %vm629 = vcmask 24576
      %vm630 = vmand %vm629, %vm298
      %v631 = vld [vmem:[%s621 + $0x8] sm:$0x1]
      %v632 = vsel %vm630, %v317, %v631
      %633 = vst [vmem:[%s621 + $0x8] sm:$0x1] %v632
      %v634 = vld [vmem:[%s621 + $0xc] sm:$0xf]
      %v635 = vsel %vm624, %v324, %v634
      %636 = vst [vmem:[%s621 + $0xc] sm:$0xf] %v635
      %637 = vst.msk [vmem:[%s621 + $0x10] sm:$0xf] %vm242, %v333
      %v638 = vld [vmem:[%s621 + $0x14] sm:$0x1]
      %v639 = vsel %vm630, %v334, %v638
      %640 = vst [vmem:[%s621 + $0x14] sm:$0x1] %v639
      %v641 = vld [vmem:[%s621 + $0x18] sm:$0xf]
      %v642 = vsel %vm624, %v341, %v641
      %643 = vst [vmem:[%s621 + $0x18] sm:$0xf] %v642
      %644 = vst.msk [vmem:[%s621 + $0x1c] sm:$0xf] %vm242, %v350
      %v645 = vld [vmem:[%s621 + $0x20] sm:$0x1]
      %v646 = vsel %vm630, %v351, %v645
      %647 = vst [vmem:[%s621 + $0x20] sm:$0x1] %v646
      %v648 = vld [vmem:[%s621 + $0x24] sm:$0xf]
      %v649 = vsel %vm624, %v358, %v648
      %650 = vst [vmem:[%s621 + $0x24] sm:$0xf] %v649
      %651 = vst.msk [vmem:[%s621 + $0x28] sm:$0xf] %vm242, %v367
      %v652 = vld [vmem:[%s621 + $0x2c] sm:$0x1]
      %v653 = vsel %vm630, %v368, %v652
      %654 = vst [vmem:[%s621 + $0x2c] sm:$0x1] %v653
      %v655 = vld [vmem:[%s621 + $0x30] sm:$0xf]
      %v656 = vsel %vm624, %v375, %v655
      %657 = vst [vmem:[%s621 + $0x30] sm:$0xf] %v656
      %658 = vst.msk [vmem:[%s621 + $0x34] sm:$0xf] %vm242, %v384
      %v659 = vld [vmem:[%s621 + $0x38] sm:$0x1]
      %v660 = vsel %vm630, %v385, %v659
      %661 = vst [vmem:[%s621 + $0x38] sm:$0x1] %v660
      %v662 = vld [vmem:[%s621 + $0x3c] sm:$0xf]
      %v663 = vsel %vm624, %v392, %v662
      %664 = vst [vmem:[%s621 + $0x3c] sm:$0xf] %v663
      %665 = vst.msk [vmem:[%s621 + $0x40] sm:$0xf] %vm242, %v401
      %v666 = vld [vmem:[%s621 + $0x44] sm:$0x1]
      %v667 = vsel %vm630, %v402, %v666
      %668 = vst [vmem:[%s621 + $0x44] sm:$0x1] %v667
      %v669 = vld [vmem:[%s621 + $0x48] sm:$0xf]
      %v670 = vsel %vm624, %v409, %v669
      %671 = vst [vmem:[%s621 + $0x48] sm:$0xf] %v670
      %672 = vst.msk [vmem:[%s621 + $0x4c] sm:$0xf] %vm242, %v418
      %v673 = vld [vmem:[%s621 + $0x50] sm:$0x1]
      %v674 = vsel %vm630, %v419, %v673
      %675 = vst [vmem:[%s621 + $0x50] sm:$0x1] %v674
      %v676 = vld [vmem:[%s621 + $0x54] sm:$0xf]
      %v677 = vsel %vm624, %v426, %v676
      %678 = vst [vmem:[%s621 + $0x54] sm:$0xf] %v677
      %679 = vst.msk [vmem:[%s621 + $0x58] sm:$0xf] %vm242, %v435
      %v680 = vld [vmem:[%s621 + $0x5c] sm:$0x1]
      %v681 = vsel %vm630, %v436, %v680
      %682 = vst [vmem:[%s621 + $0x5c] sm:$0x1] %v681
      %v683 = vld [vmem:[%s621 + $0x60] sm:$0xf]
      %v684 = vsel %vm624, %v443, %v683
      %685 = vst [vmem:[%s621 + $0x60] sm:$0xf] %v684
      %686 = vst.msk [vmem:[%s621 + $0x64] sm:$0xf] %vm242, %v452
      %v687 = vld [vmem:[%s621 + $0x68] sm:$0x1]
      %v688 = vsel %vm630, %v453, %v687
      %689 = vst [vmem:[%s621 + $0x68] sm:$0x1] %v688
      %v690 = vld [vmem:[%s621 + $0x6c] sm:$0xf]
      %v691 = vsel %vm624, %v460, %v690
      %692 = vst [vmem:[%s621 + $0x6c] sm:$0xf] %v691
      %693 = vst.msk [vmem:[%s621 + $0x70] sm:$0xf] %vm242, %v469
      %v694 = vld [vmem:[%s621 + $0x74] sm:$0x1]
      %v695 = vsel %vm630, %v470, %v694
      %696 = vst [vmem:[%s621 + $0x74] sm:$0x1] %v695
      %v697 = vld [vmem:[%s621 + $0x78] sm:$0xf]
      %v698 = vsel %vm624, %v477, %v697
      %699 = vst [vmem:[%s621 + $0x78] sm:$0xf] %v698
      %700 = vst.msk [vmem:[%s621 + $0x7c] sm:$0xf] %vm242, %v486
      %v701 = vld [vmem:[%s621 + $0x80] sm:$0x1]
      %v702 = vsel %vm630, %v487, %v701
      %703 = vst [vmem:[%s621 + $0x80] sm:$0x1] %v702
      %v704 = vld [vmem:[%s621 + $0x84] sm:$0xf]
      %v705 = vsel %vm624, %v494, %v704
      %706 = vst [vmem:[%s621 + $0x84] sm:$0xf] %v705
      %707 = vst.msk [vmem:[%s621 + $0x88] sm:$0xf] %vm242, %v503
      %v708 = vld [vmem:[%s621 + $0x8c] sm:$0x1]
      %v709 = vsel %vm630, %v504, %v708
      %710 = vst [vmem:[%s621 + $0x8c] sm:$0x1] %v709
      %v711 = vld [vmem:[%s621 + $0x90] sm:$0xf]
      %v712 = vsel %vm624, %v511, %v711
      %713 = vst [vmem:[%s621 + $0x90] sm:$0xf] %v712
      %714 = vst.msk [vmem:[%s621 + $0x94] sm:$0xf] %vm242, %v520
      %v715 = vld [vmem:[%s621 + $0x98] sm:$0x1]
      %v716 = vsel %vm630, %v521, %v715
      %717 = vst [vmem:[%s621 + $0x98] sm:$0x1] %v716
      %v718 = vld [vmem:[%s621 + $0x9c] sm:$0xf]
      %v719 = vsel %vm624, %v528, %v718
      %720 = vst [vmem:[%s621 + $0x9c] sm:$0xf] %v719
      %721 = vst.msk [vmem:[%s621 + $0xa0] sm:$0xf] %vm242, %v537
      %v722 = vld [vmem:[%s621 + $0xa4] sm:$0x1]
      %v723 = vsel %vm630, %v538, %v722
      %724 = vst [vmem:[%s621 + $0xa4] sm:$0x1] %v723
      %v725 = vld [vmem:[%s621 + $0xa8] sm:$0xf]
      %v726 = vsel %vm624, %v545, %v725
      %727 = vst [vmem:[%s621 + $0xa8] sm:$0xf] %v726
      %728 = vst.msk [vmem:[%s621 + $0xac] sm:$0xf] %vm242, %v554
      %v729 = vld [vmem:[%s621 + $0xb0] sm:$0x1]
      %v730 = vsel %vm630, %v555, %v729
      %731 = vst [vmem:[%s621 + $0xb0] sm:$0x1] %v730
      %v732 = vld [vmem:[%s621 + $0xb4] sm:$0xf]
      %v733 = vsel %vm624, %v562, %v732
      %734 = vst [vmem:[%s621 + $0xb4] sm:$0xf] %v733
      %735 = vst.msk [vmem:[%s621 + $0xb8] sm:$0xf] %vm242, %v571
      %v736 = vld [vmem:[%s621 + $0xbc] sm:$0x1]
      %v737 = vsel %vm630, %v572, %v736
      %738 = vst [vmem:[%s621 + $0xbc] sm:$0x1] %v737
      %v739 = vld [vmem:[#allocation2] sm:$0xf]
      %v740 = vld [vmem:[#allocation2 + $0x4] sm:$0xf]
      %v741 = vld [vmem:[#allocation2 + $0x8] sm:$0x1]
      %v742 = vld [vmem:[#allocation2 + $0xc] sm:$0xf]
      %v743 = vld [vmem:[#allocation2 + $0x10] sm:$0xf]
      %v744 = vld [vmem:[#allocation2 + $0x14] sm:$0x1]
      %v745 = vld [vmem:[#allocation2 + $0x18] sm:$0xf]
      %v746 = vld [vmem:[#allocation2 + $0x1c] sm:$0xf]
      %v747 = vld [vmem:[#allocation2 + $0x20] sm:$0x1]
      %v748 = vld [vmem:[#allocation2 + $0x24] sm:$0xf]
      %v749 = vld [vmem:[#allocation2 + $0x28] sm:$0xf]
      %v750 = vld [vmem:[#allocation2 + $0x2c] sm:$0x1]
      %v751 = vld [vmem:[#allocation2 + $0x30] sm:$0xf]
      %v752 = vld [vmem:[#allocation2 + $0x34] sm:$0xf]
      %v753 = vld [vmem:[#allocation2 + $0x38] sm:$0x1]
      %v754 = vld [vmem:[#allocation2 + $0x3c] sm:$0xf]
      %v755 = vld [vmem:[#allocation2 + $0x40] sm:$0xf]
      %v756 = vld [vmem:[#allocation2 + $0x44] sm:$0x1]
      %v757 = vld [vmem:[#allocation2 + $0x48] sm:$0xf]
      %v758 = vld [vmem:[#allocation2 + $0x4c] sm:$0xf]
      %v759 = vld [vmem:[#allocation2 + $0x50] sm:$0x1]
      %v760 = vld [vmem:[#allocation2 + $0x54] sm:$0xf]
      %v761 = vld [vmem:[#allocation2 + $0x58] sm:$0xf]
      %v762 = vld [vmem:[#allocation2 + $0x5c] sm:$0x1]
      %v763 = vld [vmem:[#allocation2 + $0x60] sm:$0xf]
      %v764 = vld [vmem:[#allocation2 + $0x64] sm:$0xf]
      %v765 = vld [vmem:[#allocation2 + $0x68] sm:$0x1]
      %v766 = vld [vmem:[#allocation2 + $0x6c] sm:$0xf]
      %v767 = vld [vmem:[#allocation2 + $0x70] sm:$0xf]
      %v768 = vld [vmem:[#allocation2 + $0x74] sm:$0x1]
      %v769 = vld [vmem:[#allocation2 + $0x78] sm:$0xf]
      %v770 = vld [vmem:[#allocation2 + $0x7c] sm:$0xf]
      %v771 = vld [vmem:[#allocation2 + $0x80] sm:$0x1]
      %v772 = vld [vmem:[#allocation2 + $0x84] sm:$0xf]
      %v773 = vld [vmem:[#allocation2 + $0x88] sm:$0xf]
      %v774 = vld [vmem:[#allocation2 + $0x8c] sm:$0x1]
      %v775 = vld [vmem:[#allocation2 + $0x90] sm:$0xf]
      %v776 = vld [vmem:[#allocation2 + $0x94] sm:$0xf]
      %v777 = vld [vmem:[#allocation2 + $0x98] sm:$0x1]
      %v778 = vld [vmem:[#allocation2 + $0x9c] sm:$0xf]
      %v779 = vld [vmem:[#allocation2 + $0xa0] sm:$0xf]
      %v780 = vld [vmem:[#allocation2 + $0xa4] sm:$0x1]
      %v781 = vld [vmem:[#allocation2 + $0xa8] sm:$0xf]
      %v782 = vld [vmem:[#allocation2 + $0xac] sm:$0xf]
      %v783 = vld [vmem:[#allocation2 + $0xb0] sm:$0x1]
      %v784 = vld [vmem:[#allocation2 + $0xb4] sm:$0xf]
      %v785 = vld [vmem:[#allocation2 + $0xb8] sm:$0xf]
      %v786 = vld [vmem:[#allocation2 + $0xbc] sm:$0x1]
      %v819 = vunpack.c.l.b16 %v739
      %v820 = vunpack.c.l.b16 %v740
      %v821 = vunpack.c.l.b16 %v742
      %v822 = vunpack.c.l.b16 %v743
      %v823 = vunpack.c.l.b16 %v745
      %v824 = vunpack.c.l.b16 %v746
      %v825 = vunpack.c.l.b16 %v748
      %v826 = vunpack.c.l.b16 %v749
      %v827 = vunpack.c.l.b16 %v751
      %v828 = vunpack.c.l.b16 %v752
      %v829 = vunpack.c.l.b16 %v754
      %v830 = vunpack.c.l.b16 %v755
      %v831 = vunpack.c.l.b16 %v757
      %v832 = vunpack.c.l.b16 %v758
      %v833 = vunpack.c.l.b16 %v760
      %v834 = vunpack.c.l.b16 %v761
      %v835 = vunpack.c.l.b16 %v763
      %v836 = vunpack.c.l.b16 %v764
      %v837 = vunpack.c.l.b16 %v766
      %v838 = vunpack.c.l.b16 %v767
      %v839 = vunpack.c.l.b16 %v769
      %v840 = vunpack.c.l.b16 %v770
      %v841 = vunpack.c.l.b16 %v772
      %v842 = vunpack.c.l.b16 %v773
      %v843 = vunpack.c.l.b16 %v775
      %v844 = vunpack.c.l.b16 %v776
      %v845 = vunpack.c.l.b16 %v778
      %v846 = vunpack.c.l.b16 %v779
      %v847 = vunpack.c.l.b16 %v781
      %v848 = vunpack.c.l.b16 %v782
      %v849 = vunpack.c.l.b16 %v784
      %v850 = vunpack.c.l.b16 %v785
      %v851 = vpack.c.b16 %v820, %v819
      %v852 = vpack.c.b16 %v822, %v821
      %v853 = vpack.c.b16 %v824, %v823
      %v854 = vpack.c.b16 %v826, %v825
      %v855 = vpack.c.b16 %v828, %v827
      %v856 = vpack.c.b16 %v830, %v829
      %v857 = vpack.c.b16 %v832, %v831
      %v858 = vpack.c.b16 %v834, %v833
      %v859 = vpack.c.b16 %v836, %v835
      %v860 = vpack.c.b16 %v838, %v837
      %v861 = vpack.c.b16 %v840, %v839
      %v862 = vpack.c.b16 %v842, %v841
      %v863 = vpack.c.b16 %v844, %v843
      %v864 = vpack.c.b16 %v846, %v845
      %v865 = vpack.c.b16 %v848, %v847
      %v866 = vpack.c.b16 %v850, %v849
      %vm883 = vcmask 31744
      %884 = vst.msk [vmem:[#allocation3] sm:$0xff] %vm883, %v851
      %885 = vst.msk [vmem:[#allocation3 + $0x8] sm:$0xff] %vm883, %v852
      %886 = vst.msk [vmem:[#allocation3 + $0x10] sm:$0xff] %vm883, %v853
      %887 = vst.msk [vmem:[#allocation3 + $0x18] sm:$0xff] %vm883, %v854
      %888 = vst.msk [vmem:[#allocation3 + $0x20] sm:$0xff] %vm883, %v855
      %889 = vst.msk [vmem:[#allocation3 + $0x28] sm:$0xff] %vm883, %v856
      %890 = vst.msk [vmem:[#allocation3 + $0x30] sm:$0xff] %vm883, %v857
      %891 = vst.msk [vmem:[#allocation3 + $0x38] sm:$0xff] %vm883, %v858
      %892 = vst.msk [vmem:[#allocation3 + $0x40] sm:$0xff] %vm883, %v859
      %893 = vst.msk [vmem:[#allocation3 + $0x48] sm:$0xff] %vm883, %v860
      %894 = vst.msk [vmem:[#allocation3 + $0x50] sm:$0xff] %vm883, %v861
      %895 = vst.msk [vmem:[#allocation3 + $0x58] sm:$0xff] %vm883, %v862
      %896 = vst.msk [vmem:[#allocation3 + $0x60] sm:$0xff] %vm883, %v863
      %897 = vst.msk [vmem:[#allocation3 + $0x68] sm:$0xff] %vm883, %v864
      %898 = vst.msk [vmem:[#allocation3 + $0x70] sm:$0xff] %vm883, %v865
      %899 = vst.msk [vmem:[#allocation3 + $0x78] sm:$0xff] %vm883, %v866
      %v916 = vunpack.c.l.b16 %v741
      %v917 = vunpack.c.l.b16 %v744
      %v918 = vunpack.c.l.b16 %v747
      %v919 = vunpack.c.l.b16 %v750
      %v920 = vunpack.c.l.b16 %v753
      %v921 = vunpack.c.l.b16 %v756
      %v922 = vunpack.c.l.b16 %v759
      %v923 = vunpack.c.l.b16 %v762
      %v924 = vunpack.c.l.b16 %v765
      %v925 = vunpack.c.l.b16 %v768
      %v926 = vunpack.c.l.b16 %v771
      %v927 = vunpack.c.l.b16 %v774
      %v928 = vunpack.c.l.b16 %v777
      %v929 = vunpack.c.l.b16 %v780
      %v930 = vunpack.c.l.b16 %v783
      %v931 = vunpack.c.l.b16 %v786
      %v932 = vpack.c.b16 %v916, %v916
      %v933 = vpack.c.b16 %v917, %v917
      %v934 = vpack.c.b16 %v918, %v918
      %v935 = vpack.c.b16 %v919, %v919
      %v936 = vpack.c.b16 %v920, %v920
      %v937 = vpack.c.b16 %v921, %v921
      %v938 = vpack.c.b16 %v922, %v922
      %v939 = vpack.c.b16 %v923, %v923
      %v940 = vpack.c.b16 %v924, %v924
      %v941 = vpack.c.b16 %v925, %v925
      %v942 = vpack.c.b16 %v926, %v926
      %v943 = vpack.c.b16 %v927, %v927
      %v944 = vpack.c.b16 %v928, %v928
      %v945 = vpack.c.b16 %v929, %v929
      %v946 = vpack.c.b16 %v930, %v930
      %v947 = vpack.c.b16 %v931, %v931
      %vm948 = vsmask.f32 7424
      %v950 = vshrl.u32 %v851, 16
      %v952 = vshll.u32 %v851, 16
      %v954 = vrot.slane %v952, 1
      %v955 = vor.u32 %v950, %v954
      %v957 = vshll.u32 %v932, 16
      %v959 = vrot.slane %v957, 1
      %v960 = vsel %vm948, %v955, %v959
      %v962 = vshrl.u32 %v852, 16
      %v964 = vshll.u32 %v852, 16
      %v966 = vrot.slane %v964, 1
      %v967 = vor.u32 %v962, %v966
      %v969 = vshll.u32 %v933, 16
      %v971 = vrot.slane %v969, 1
      %v972 = vsel %vm948, %v967, %v971
      %v974 = vshrl.u32 %v853, 16
      %v976 = vshll.u32 %v853, 16
      %v978 = vrot.slane %v976, 1
      %v979 = vor.u32 %v974, %v978
      %v981 = vshll.u32 %v934, 16
      %v983 = vrot.slane %v981, 1
      %v984 = vsel %vm948, %v979, %v983
      %v986 = vshrl.u32 %v854, 16
      %v988 = vshll.u32 %v854, 16
      %v990 = vrot.slane %v988, 1
      %v991 = vor.u32 %v986, %v990
      %v993 = vshll.u32 %v935, 16
      %v995 = vrot.slane %v993, 1
      %v996 = vsel %vm948, %v991, %v995
      %v998 = vshrl.u32 %v855, 16
      %v1000 = vshll.u32 %v855, 16
      %v1002 = vrot.slane %v1000, 1
      %v1003 = vor.u32 %v998, %v1002
      %v1005 = vshll.u32 %v936, 16
      %v1007 = vrot.slane %v1005, 1
      %v1008 = vsel %vm948, %v1003, %v1007
      %v1010 = vshrl.u32 %v856, 16
      %v1012 = vshll.u32 %v856, 16
      %v1014 = vrot.slane %v1012, 1
      %v1015 = vor.u32 %v1010, %v1014
      %v1017 = vshll.u32 %v937, 16
      %v1019 = vrot.slane %v1017, 1
      %v1020 = vsel %vm948, %v1015, %v1019
      %v1022 = vshrl.u32 %v857, 16
      %v1024 = vshll.u32 %v857, 16
      %v1026 = vrot.slane %v1024, 1
      %v1027 = vor.u32 %v1022, %v1026
      %v1029 = vshll.u32 %v938, 16
      %v1031 = vrot.slane %v1029, 1
      %v1032 = vsel %vm948, %v1027, %v1031
      %v1034 = vshrl.u32 %v858, 16
      %v1036 = vshll.u32 %v858, 16
      %v1038 = vrot.slane %v1036, 1
      %v1039 = vor.u32 %v1034, %v1038
      %v1041 = vshll.u32 %v939, 16
      %v1043 = vrot.slane %v1041, 1
      %v1044 = vsel %vm948, %v1039, %v1043
      %v1046 = vshrl.u32 %v859, 16
      %v1048 = vshll.u32 %v859, 16
      %v1050 = vrot.slane %v1048, 1
      %v1051 = vor.u32 %v1046, %v1050
      %v1053 = vshll.u32 %v940, 16
      %v1055 = vrot.slane %v1053, 1
      %v1056 = vsel %vm948, %v1051, %v1055
      %v1058 = vshrl.u32 %v860, 16
      %v1060 = vshll.u32 %v860, 16
      %v1062 = vrot.slane %v1060, 1
      %v1063 = vor.u32 %v1058, %v1062
      %v1065 = vshll.u32 %v941, 16
      %v1067 = vrot.slane %v1065, 1
      %v1068 = vsel %vm948, %v1063, %v1067
      %v1070 = vshrl.u32 %v861, 16
      %v1072 = vshll.u32 %v861, 16
      %v1074 = vrot.slane %v1072, 1
      %v1075 = vor.u32 %v1070, %v1074
      %v1077 = vshll.u32 %v942, 16
      %v1079 = vrot.slane %v1077, 1
      %v1080 = vsel %vm948, %v1075, %v1079
      %v1082 = vshrl.u32 %v862, 16
      %v1084 = vshll.u32 %v862, 16
      %v1086 = vrot.slane %v1084, 1
      %v1087 = vor.u32 %v1082, %v1086
      %v1089 = vshll.u32 %v943, 16
      %v1091 = vrot.slane %v1089, 1
      %v1092 = vsel %vm948, %v1087, %v1091
      %v1094 = vshrl.u32 %v863, 16
      %v1096 = vshll.u32 %v863, 16
      %v1098 = vrot.slane %v1096, 1
      %v1099 = vor.u32 %v1094, %v1098
      %v1101 = vshll.u32 %v944, 16
      %v1103 = vrot.slane %v1101, 1
      %v1104 = vsel %vm948, %v1099, %v1103
      %v1106 = vshrl.u32 %v864, 16
      %v1108 = vshll.u32 %v864, 16
      %v1110 = vrot.slane %v1108, 1
      %v1111 = vor.u32 %v1106, %v1110
      %v1113 = vshll.u32 %v945, 16
      %v1115 = vrot.slane %v1113, 1
      %v1116 = vsel %vm948, %v1111, %v1115
      %v1118 = vshrl.u32 %v865, 16
      %v1120 = vshll.u32 %v865, 16
      %v1122 = vrot.slane %v1120, 1
      %v1123 = vor.u32 %v1118, %v1122
      %v1125 = vshll.u32 %v946, 16
      %v1127 = vrot.slane %v1125, 1
      %v1128 = vsel %vm948, %v1123, %v1127
      %v1130 = vshrl.u32 %v866, 16
      %v1132 = vshll.u32 %v866, 16
      %v1134 = vrot.slane %v1132, 1
      %v1135 = vor.u32 %v1130, %v1134
      %v1137 = vshll.u32 %v947, 16
      %v1139 = vrot.slane %v1137, 1
      %v1140 = vsel %vm948, %v1135, %v1139
      %1141 = vrot.lane.b32.xlu0 %v960, 4
      %v1142 = vpop.permute.xlu0 %1141
      %1143 = vrot.lane.b32.xlu0 %v972, 4
      %v1144 = vpop.permute.xlu0 %1143
      %1145 = vrot.lane.b32.xlu0 %v984, 4
      %v1146 = vpop.permute.xlu0 %1145
      %1147 = vrot.lane.b32.xlu0 %v996, 4
      %v1148 = vpop.permute.xlu0 %1147
      %1149 = vrot.lane.b32.xlu0 %v1008, 4
      %v1150 = vpop.permute.xlu0 %1149
      %1151 = vrot.lane.b32.xlu0 %v1020, 4
      %v1152 = vpop.permute.xlu0 %1151
      %1153 = vrot.lane.b32.xlu0 %v1032, 4
      %v1154 = vpop.permute.xlu0 %1153
      %1155 = vrot.lane.b32.xlu0 %v1044, 4
      %v1156 = vpop.permute.xlu0 %1155
      %1157 = vrot.lane.b32.xlu0 %v1056, 4
      %v1158 = vpop.permute.xlu0 %1157
      %1159 = vrot.lane.b32.xlu0 %v1068, 4
      %v1160 = vpop.permute.xlu0 %1159
      %1161 = vrot.lane.b32.xlu0 %v1080, 4
      %v1162 = vpop.permute.xlu0 %1161
      %1163 = vrot.lane.b32.xlu0 %v1092, 4
      %v1164 = vpop.permute.xlu0 %1163
      %1165 = vrot.lane.b32.xlu0 %v1104, 4
      %v1166 = vpop.permute.xlu0 %1165
      %1167 = vrot.lane.b32.xlu0 %v1116, 4
      %v1168 = vpop.permute.xlu0 %1167
      %1169 = vrot.lane.b32.xlu0 %v1128, 4
      %v1170 = vpop.permute.xlu0 %1169
      %1171 = vrot.lane.b32.xlu0 %v1140, 4
      %v1172 = vpop.permute.xlu0 %1171
      %vm1189 = vcmask 64544
      %1190 = vst.msk [vmem:[#allocation3] sm:$0xff] %vm1189, %v1142
      %1191 = vst.msk [vmem:[#allocation3 + $0x8] sm:$0xff] %vm1189, %v1144
      %1192 = vst.msk [vmem:[#allocation3 + $0x10] sm:$0xff] %vm1189, %v1146
      %1193 = vst.msk [vmem:[#allocation3 + $0x18] sm:$0xff] %vm1189, %v1148
      %1194 = vst.msk [vmem:[#allocation3 + $0x20] sm:$0xff] %vm1189, %v1150
      %1195 = vst.msk [vmem:[#allocation3 + $0x28] sm:$0xff] %vm1189, %v1152
      %1196 = vst.msk [vmem:[#allocation3 + $0x30] sm:$0xff] %vm1189, %v1154
      %1197 = vst.msk [vmem:[#allocation3 + $0x38] sm:$0xff] %vm1189, %v1156
      %1198 = vst.msk [vmem:[#allocation3 + $0x40] sm:$0xff] %vm1189, %v1158
      %1199 = vst.msk [vmem:[#allocation3 + $0x48] sm:$0xff] %vm1189, %v1160
      %1200 = vst.msk [vmem:[#allocation3 + $0x50] sm:$0xff] %vm1189, %v1162
      %1201 = vst.msk [vmem:[#allocation3 + $0x58] sm:$0xff] %vm1189, %v1164
      %1202 = vst.msk [vmem:[#allocation3 + $0x60] sm:$0xff] %vm1189, %v1166
      %1203 = vst.msk [vmem:[#allocation3 + $0x68] sm:$0xff] %vm1189, %v1168
      %1204 = vst.msk [vmem:[#allocation3 + $0x70] sm:$0xff] %vm1189, %v1170
      %1205 = vst.msk [vmem:[#allocation3 + $0x78] sm:$0xff] %vm1189, %v1172
      %vm1206 = vcmask 1046528
      %v1207 = vrot.slane %v851, 1
      %v1208 = vrot.slane %v932, 1
      %v1209 = vsel %vm1206, %v1207, %v1208
      %v1210 = vrot.slane %v852, 1
      %v1211 = vrot.slane %v933, 1
      %v1212 = vsel %vm1206, %v1210, %v1211
      %v1213 = vrot.slane %v853, 1
      %v1214 = vrot.slane %v934, 1
      %v1215 = vsel %vm1206, %v1213, %v1214
      %v1216 = vrot.slane %v854, 1
      %v1217 = vrot.slane %v935, 1
      %v1218 = vsel %vm1206, %v1216, %v1217
      %v1219 = vrot.slane %v855, 1
      %v1220 = vrot.slane %v936, 1
      %v1221 = vsel %vm1206, %v1219, %v1220
      %v1222 = vrot.slane %v856, 1
      %v1223 = vrot.slane %v937, 1
      %v1224 = vsel %vm1206, %v1222, %v1223
      %v1225 = vrot.slane %v857, 1
      %v1226 = vrot.slane %v938, 1
      %v1227 = vsel %vm1206, %v1225, %v1226
      %v1228 = vrot.slane %v858, 1
      %v1229 = vrot.slane %v939, 1
      %v1230 = vsel %vm1206, %v1228, %v1229
      %v1231 = vrot.slane %v859, 1
      %v1232 = vrot.slane %v940, 1
      %v1233 = vsel %vm1206, %v1231, %v1232
      %v1234 = vrot.slane %v860, 1
      %v1235 = vrot.slane %v941, 1
      %v1236 = vsel %vm1206, %v1234, %v1235
      %v1237 = vrot.slane %v861, 1
      %v1238 = vrot.slane %v942, 1
      %v1239 = vsel %vm1206, %v1237, %v1238
      %v1240 = vrot.slane %v862, 1
      %v1241 = vrot.slane %v943, 1
      %v1242 = vsel %vm1206, %v1240, %v1241
      %v1243 = vrot.slane %v863, 1
      %v1244 = vrot.slane %v944, 1
      %v1245 = vsel %vm1206, %v1243, %v1244
      %v1246 = vrot.slane %v864, 1
      %v1247 = vrot.slane %v945, 1
      %v1248 = vsel %vm1206, %v1246, %v1247
      %v1249 = vrot.slane %v865, 1
      %v1250 = vrot.slane %v946, 1
      %v1251 = vsel %vm1206, %v1249, %v1250
      %v1252 = vrot.slane %v866, 1
      %v1253 = vrot.slane %v947, 1
      %v1254 = vsel %vm1206, %v1252, %v1253
      %1255 = vrot.lane.b32.xlu0 %v1209, 8
      %v1256 = vpop.permute.xlu0 %1255
      %1257 = vrot.lane.b32.xlu0 %v1212, 8
      %v1258 = vpop.permute.xlu0 %1257
      %1259 = vrot.lane.b32.xlu0 %v1215, 8
      %v1260 = vpop.permute.xlu0 %1259
      %1261 = vrot.lane.b32.xlu0 %v1218, 8
      %v1262 = vpop.permute.xlu0 %1261
      %1263 = vrot.lane.b32.xlu0 %v1221, 8
      %v1264 = vpop.permute.xlu0 %1263
      %1265 = vrot.lane.b32.xlu0 %v1224, 8
      %v1266 = vpop.permute.xlu0 %1265
      %1267 = vrot.lane.b32.xlu0 %v1227, 8
      %v1268 = vpop.permute.xlu0 %1267
      %1269 = vrot.lane.b32.xlu0 %v1230, 8
      %v1270 = vpop.permute.xlu0 %1269
      %1271 = vrot.lane.b32.xlu0 %v1233, 8
      %v1272 = vpop.permute.xlu0 %1271
      %1273 = vrot.lane.b32.xlu0 %v1236, 8
      %v1274 = vpop.permute.xlu0 %1273
      %1275 = vrot.lane.b32.xlu0 %v1239, 8
      %v1276 = vpop.permute.xlu0 %1275
      %1277 = vrot.lane.b32.xlu0 %v1242, 8
      %v1278 = vpop.permute.xlu0 %1277
      %1279 = vrot.lane.b32.xlu0 %v1245, 8
      %v1280 = vpop.permute.xlu0 %1279
      %1281 = vrot.lane.b32.xlu0 %v1248, 8
      %v1282 = vpop.permute.xlu0 %1281
      %1283 = vrot.lane.b32.xlu0 %v1251, 8
      %v1284 = vpop.permute.xlu0 %1283
      %1285 = vrot.lane.b32.xlu0 %v1254, 8
      %v1286 = vpop.permute.xlu0 %1285
      %vm1303 = vcmask 97344
      %1304 = vst.msk [vmem:[#allocation3] sm:$0xff] %vm1303, %v1256
      %1305 = vst.msk [vmem:[#allocation3 + $0x8] sm:$0xff] %vm1303, %v1258
      %1306 = vst.msk [vmem:[#allocation3 + $0x10] sm:$0xff] %vm1303, %v1260
      %1307 = vst.msk [vmem:[#allocation3 + $0x18] sm:$0xff] %vm1303, %v1262
      %1308 = vst.msk [vmem:[#allocation3 + $0x20] sm:$0xff] %vm1303, %v1264
      %1309 = vst.msk [vmem:[#allocation3 + $0x28] sm:$0xff] %vm1303, %v1266
      %1310 = vst.msk [vmem:[#allocation3 + $0x30] sm:$0xff] %vm1303, %v1268
      %1311 = vst.msk [vmem:[#allocation3 + $0x38] sm:$0xff] %vm1303, %v1270
      %1312 = vst.msk [vmem:[#allocation3 + $0x40] sm:$0xff] %vm1303, %v1272
      %1313 = vst.msk [vmem:[#allocation3 + $0x48] sm:$0xff] %vm1303, %v1274
      %1314 = vst.msk [vmem:[#allocation3 + $0x50] sm:$0xff] %vm1303, %v1276
      %1315 = vst.msk [vmem:[#allocation3 + $0x58] sm:$0xff] %vm1303, %v1278
      %1316 = vst.msk [vmem:[#allocation3 + $0x60] sm:$0xff] %vm1303, %v1280
      %1317 = vst.msk [vmem:[#allocation3 + $0x68] sm:$0xff] %vm1303, %v1282
      %1318 = vst.msk [vmem:[#allocation3 + $0x70] sm:$0xff] %vm1303, %v1284
      %1319 = vst.msk [vmem:[#allocation3 + $0x78] sm:$0xff] %vm1303, %v1286
      %v1320 = vld [vmem:[%s621] sm:$0xf]
      %v1321 = vld [vmem:[%s621 + $0x4] sm:$0xf]
      %v1322 = vld [vmem:[%s621 + $0x8] sm:$0x1]
      %v1323 = vld [vmem:[%s621 + $0xc] sm:$0xf]
      %v1324 = vld [vmem:[%s621 + $0x10] sm:$0xf]
      %v1325 = vld [vmem:[%s621 + $0x14] sm:$0x1]
      %v1326 = vld [vmem:[%s621 + $0x18] sm:$0xf]
      %v1327 = vld [vmem:[%s621 + $0x1c] sm:$0xf]
      %v1328 = vld [vmem:[%s621 + $0x20] sm:$0x1]
      %v1329 = vld [vmem:[%s621 + $0x24] sm:$0xf]
      %v1330 = vld [vmem:[%s621 + $0x28] sm:$0xf]
      %v1331 = vld [vmem:[%s621 + $0x2c] sm:$0x1]
      %v1332 = vld [vmem:[%s621 + $0x30] sm:$0xf]
      %v1333 = vld [vmem:[%s621 + $0x34] sm:$0xf]
      %v1334 = vld [vmem:[%s621 + $0x38] sm:$0x1]
      %v1335 = vld [vmem:[%s621 + $0x3c] sm:$0xf]
      %v1336 = vld [vmem:[%s621 + $0x40] sm:$0xf]
      %v1337 = vld [vmem:[%s621 + $0x44] sm:$0x1]
      %v1338 = vld [vmem:[%s621 + $0x48] sm:$0xf]
      %v1339 = vld [vmem:[%s621 + $0x4c] sm:$0xf]
      %v1340 = vld [vmem:[%s621 + $0x50] sm:$0x1]
      %v1341 = vld [vmem:[%s621 + $0x54] sm:$0xf]
      %v1342 = vld [vmem:[%s621 + $0x58] sm:$0xf]
      %v1343 = vld [vmem:[%s621 + $0x5c] sm:$0x1]
      %v1344 = vld [vmem:[%s621 + $0x60] sm:$0xf]
      %v1345 = vld [vmem:[%s621 + $0x64] sm:$0xf]
      %v1346 = vld [vmem:[%s621 + $0x68] sm:$0x1]
      %v1347 = vld [vmem:[%s621 + $0x6c] sm:$0xf]
      %v1348 = vld [vmem:[%s621 + $0x70] sm:$0xf]
      %v1349 = vld [vmem:[%s621 + $0x74] sm:$0x1]
      %v1350 = vld [vmem:[%s621 + $0x78] sm:$0xf]
      %v1351 = vld [vmem:[%s621 + $0x7c] sm:$0xf]
      %v1352 = vld [vmem:[%s621 + $0x80] sm:$0x1]
      %v1353 = vld [vmem:[%s621 + $0x84] sm:$0xf]
      %v1354 = vld [vmem:[%s621 + $0x88] sm:$0xf]
      %v1355 = vld [vmem:[%s621 + $0x8c] sm:$0x1]
      %v1356 = vld [vmem:[%s621 + $0x90] sm:$0xf]
      %v1357 = vld [vmem:[%s621 + $0x94] sm:$0xf]
      %v1358 = vld [vmem:[%s621 + $0x98] sm:$0x1]
      %v1359 = vld [vmem:[%s621 + $0x9c] sm:$0xf]
      %v1360 = vld [vmem:[%s621 + $0xa0] sm:$0xf]
      %v1361 = vld [vmem:[%s621 + $0xa4] sm:$0x1]
      %v1362 = vld [vmem:[%s621 + $0xa8] sm:$0xf]
      %v1363 = vld [vmem:[%s621 + $0xac] sm:$0xf]
      %v1364 = vld [vmem:[%s621 + $0xb0] sm:$0x1]
      %v1365 = vld [vmem:[%s621 + $0xb4] sm:$0xf]
      %v1366 = vld [vmem:[%s621 + $0xb8] sm:$0xf]
      %v1367 = vld [vmem:[%s621 + $0xbc] sm:$0x1]
      %v1400 = vunpack.c.l.b16 %v1320
      %v1401 = vunpack.c.l.b16 %v1321
      %v1402 = vunpack.c.l.b16 %v1323
      %v1403 = vunpack.c.l.b16 %v1324
      %v1404 = vunpack.c.l.b16 %v1326
      %v1405 = vunpack.c.l.b16 %v1327
      %v1406 = vunpack.c.l.b16 %v1329
      %v1407 = vunpack.c.l.b16 %v1330
      %v1408 = vunpack.c.l.b16 %v1332
      %v1409 = vunpack.c.l.b16 %v1333
      %v1410 = vunpack.c.l.b16 %v1335
      %v1411 = vunpack.c.l.b16 %v1336
      %v1412 = vunpack.c.l.b16 %v1338
      %v1413 = vunpack.c.l.b16 %v1339
      %v1414 = vunpack.c.l.b16 %v1341
      %v1415 = vunpack.c.l.b16 %v1342
      %v1416 = vunpack.c.l.b16 %v1344
      %v1417 = vunpack.c.l.b16 %v1345
      %v1418 = vunpack.c.l.b16 %v1347
      %v1419 = vunpack.c.l.b16 %v1348
      %v1420 = vunpack.c.l.b16 %v1350
      %v1421 = vunpack.c.l.b16 %v1351
      %v1422 = vunpack.c.l.b16 %v1353
      %v1423 = vunpack.c.l.b16 %v1354
      %v1424 = vunpack.c.l.b16 %v1356
      %v1425 = vunpack.c.l.b16 %v1357
      %v1426 = vunpack.c.l.b16 %v1359
      %v1427 = vunpack.c.l.b16 %v1360
      %v1428 = vunpack.c.l.b16 %v1362
      %v1429 = vunpack.c.l.b16 %v1363
      %v1430 = vunpack.c.l.b16 %v1365
      %v1431 = vunpack.c.l.b16 %v1366
      %v1432 = vpack.c.b16 %v1401, %v1400
      %v1433 = vpack.c.b16 %v1403, %v1402
      %v1434 = vpack.c.b16 %v1405, %v1404
      %v1435 = vpack.c.b16 %v1407, %v1406
      %v1436 = vpack.c.b16 %v1409, %v1408
      %v1437 = vpack.c.b16 %v1411, %v1410
      %v1438 = vpack.c.b16 %v1413, %v1412
      %v1439 = vpack.c.b16 %v1415, %v1414
      %v1440 = vpack.c.b16 %v1417, %v1416
      %v1441 = vpack.c.b16 %v1419, %v1418
      %v1442 = vpack.c.b16 %v1421, %v1420
      %v1443 = vpack.c.b16 %v1423, %v1422
      %v1444 = vpack.c.b16 %v1425, %v1424
      %v1445 = vpack.c.b16 %v1427, %v1426
      %v1446 = vpack.c.b16 %v1429, %v1428
      %v1447 = vpack.c.b16 %v1431, %v1430
      %1448 = vrot.lane.b32.xlu0 %v1432, 12
      %v1449 = vpop.permute.xlu0 %1448
      %1450 = vrot.lane.b32.xlu0 %v1433, 12
      %v1451 = vpop.permute.xlu0 %1450
      %1452 = vrot.lane.b32.xlu0 %v1434, 12
      %v1453 = vpop.permute.xlu0 %1452
      %1454 = vrot.lane.b32.xlu0 %v1435, 12
      %v1455 = vpop.permute.xlu0 %1454
      %1456 = vrot.lane.b32.xlu0 %v1436, 12
      %v1457 = vpop.permute.xlu0 %1456
      %1458 = vrot.lane.b32.xlu0 %v1437, 12
      %v1459 = vpop.permute.xlu0 %1458
      %1460 = vrot.lane.b32.xlu0 %v1438, 12
      %v1461 = vpop.permute.xlu0 %1460
      %1462 = vrot.lane.b32.xlu0 %v1439, 12
      %v1463 = vpop.permute.xlu0 %1462
      %1464 = vrot.lane.b32.xlu0 %v1440, 12
      %v1465 = vpop.permute.xlu0 %1464
      %1466 = vrot.lane.b32.xlu0 %v1441, 12
      %v1467 = vpop.permute.xlu0 %1466
      %1468 = vrot.lane.b32.xlu0 %v1442, 12
      %v1469 = vpop.permute.xlu0 %1468
      %1470 = vrot.lane.b32.xlu0 %v1443, 12
      %v1471 = vpop.permute.xlu0 %1470
      %1472 = vrot.lane.b32.xlu0 %v1444, 12
      %v1473 = vpop.permute.xlu0 %1472
      %1474 = vrot.lane.b32.xlu0 %v1445, 12
      %v1475 = vpop.permute.xlu0 %1474
      %1476 = vrot.lane.b32.xlu0 %v1446, 12
      %v1477 = vpop.permute.xlu0 %1476
      %1478 = vrot.lane.b32.xlu0 %v1447, 12
      %v1479 = vpop.permute.xlu0 %1478
      %vm1496 = vcmask 130144
      %1497 = vst.msk [vmem:[#allocation3] sm:$0xff] %vm1496, %v1449
      %1498 = vst.msk [vmem:[#allocation3 + $0x8] sm:$0xff] %vm1496, %v1451
      %1499 = vst.msk [vmem:[#allocation3 + $0x10] sm:$0xff] %vm1496, %v1453
      %1500 = vst.msk [vmem:[#allocation3 + $0x18] sm:$0xff] %vm1496, %v1455
      %1501 = vst.msk [vmem:[#allocation3 + $0x20] sm:$0xff] %vm1496, %v1457
      %1502 = vst.msk [vmem:[#allocation3 + $0x28] sm:$0xff] %vm1496, %v1459
      %1503 = vst.msk [vmem:[#allocation3 + $0x30] sm:$0xff] %vm1496, %v1461
      %1504 = vst.msk [vmem:[#allocation3 + $0x38] sm:$0xff] %vm1496, %v1463
      %1505 = vst.msk [vmem:[#allocation3 + $0x40] sm:$0xff] %vm1496, %v1465
      %1506 = vst.msk [vmem:[#allocation3 + $0x48] sm:$0xff] %vm1496, %v1467
      %1507 = vst.msk [vmem:[#allocation3 + $0x50] sm:$0xff] %vm1496, %v1469
      %1508 = vst.msk [vmem:[#allocation3 + $0x58] sm:$0xff] %vm1496, %v1471
      %1509 = vst.msk [vmem:[#allocation3 + $0x60] sm:$0xff] %vm1496, %v1473
      %1510 = vst.msk [vmem:[#allocation3 + $0x68] sm:$0xff] %vm1496, %v1475
      %1511 = vst.msk [vmem:[#allocation3 + $0x70] sm:$0xff] %vm1496, %v1477
      %1512 = vst.msk [vmem:[#allocation3 + $0x78] sm:$0xff] %vm1496, %v1479
      %v1529 = vunpack.c.l.b16 %v1322
      %v1530 = vunpack.c.l.b16 %v1325
      %v1531 = vunpack.c.l.b16 %v1328
      %v1532 = vunpack.c.l.b16 %v1331
      %v1533 = vunpack.c.l.b16 %v1334
      %v1534 = vunpack.c.l.b16 %v1337
      %v1535 = vunpack.c.l.b16 %v1340
      %v1536 = vunpack.c.l.b16 %v1343
      %v1537 = vunpack.c.l.b16 %v1346
      %v1538 = vunpack.c.l.b16 %v1349
      %v1539 = vunpack.c.l.b16 %v1352
      %v1540 = vunpack.c.l.b16 %v1355
      %v1541 = vunpack.c.l.b16 %v1358
      %v1542 = vunpack.c.l.b16 %v1361
      %v1543 = vunpack.c.l.b16 %v1364
      %v1544 = vunpack.c.l.b16 %v1367
      %v1545 = vpack.c.b16 %v1529, %v1529
      %v1546 = vpack.c.b16 %v1530, %v1530
      %v1547 = vpack.c.b16 %v1531, %v1531
      %v1548 = vpack.c.b16 %v1532, %v1532
      %v1549 = vpack.c.b16 %v1533, %v1533
      %v1550 = vpack.c.b16 %v1534, %v1534
      %v1551 = vpack.c.b16 %v1535, %v1535
      %v1552 = vpack.c.b16 %v1536, %v1536
      %v1553 = vpack.c.b16 %v1537, %v1537
      %v1554 = vpack.c.b16 %v1538, %v1538
      %v1555 = vpack.c.b16 %v1539, %v1539
      %v1556 = vpack.c.b16 %v1540, %v1540
      %v1557 = vpack.c.b16 %v1541, %v1541
      %v1558 = vpack.c.b16 %v1542, %v1542
      %v1559 = vpack.c.b16 %v1543, %v1543
      %v1560 = vpack.c.b16 %v1544, %v1544
      %v1562 = vshrl.u32 %v1432, 16
      %v1564 = vshll.u32 %v1432, 16
      %v1566 = vrot.slane %v1564, 1
      %v1567 = vor.u32 %v1562, %v1566
      %v1569 = vshll.u32 %v1545, 16
      %v1571 = vrot.slane %v1569, 1
      %v1572 = vsel %vm948, %v1567, %v1571
      %v1574 = vshrl.u32 %v1433, 16
      %v1576 = vshll.u32 %v1433, 16
      %v1578 = vrot.slane %v1576, 1
      %v1579 = vor.u32 %v1574, %v1578
      %v1581 = vshll.u32 %v1546, 16
      %v1583 = vrot.slane %v1581, 1
      %v1584 = vsel %vm948, %v1579, %v1583
      %v1586 = vshrl.u32 %v1434, 16
      %v1588 = vshll.u32 %v1434, 16
      %v1590 = vrot.slane %v1588, 1
      %v1591 = vor.u32 %v1586, %v1590
      %v1593 = vshll.u32 %v1547, 16
      %v1595 = vrot.slane %v1593, 1
      %v1596 = vsel %vm948, %v1591, %v1595
      %v1598 = vshrl.u32 %v1435, 16
      %v1600 = vshll.u32 %v1435, 16
      %v1602 = vrot.slane %v1600, 1
      %v1603 = vor.u32 %v1598, %v1602
      %v1605 = vshll.u32 %v1548, 16
      %v1607 = vrot.slane %v1605, 1
      %v1608 = vsel %vm948, %v1603, %v1607
      %v1610 = vshrl.u32 %v1436, 16
      %v1612 = vshll.u32 %v1436, 16
      %v1614 = vrot.slane %v1612, 1
      %v1615 = vor.u32 %v1610, %v1614
      %v1617 = vshll.u32 %v1549, 16
      %v1619 = vrot.slane %v1617, 1
      %v1620 = vsel %vm948, %v1615, %v1619
      %v1622 = vshrl.u32 %v1437, 16
      %v1624 = vshll.u32 %v1437, 16
      %v1626 = vrot.slane %v1624, 1
      %v1627 = vor.u32 %v1622, %v1626
      %v1629 = vshll.u32 %v1550, 16
      %v1631 = vrot.slane %v1629, 1
      %v1632 = vsel %vm948, %v1627, %v1631
      %v1634 = vshrl.u32 %v1438, 16
      %v1636 = vshll.u32 %v1438, 16
      %v1638 = vrot.slane %v1636, 1
      %v1639 = vor.u32 %v1634, %v1638
      %v1641 = vshll.u32 %v1551, 16
      %v1643 = vrot.slane %v1641, 1
      %v1644 = vsel %vm948, %v1639, %v1643
      %v1646 = vshrl.u32 %v1439, 16
      %v1648 = vshll.u32 %v1439, 16
      %v1650 = vrot.slane %v1648, 1
      %v1651 = vor.u32 %v1646, %v1650
      %v1653 = vshll.u32 %v1552, 16
      %v1655 = vrot.slane %v1653, 1
      %v1656 = vsel %vm948, %v1651, %v1655
      %v1658 = vshrl.u32 %v1440, 16
      %v1660 = vshll.u32 %v1440, 16
      %v1662 = vrot.slane %v1660, 1
      %v1663 = vor.u32 %v1658, %v1662
      %v1665 = vshll.u32 %v1553, 16
      %v1667 = vrot.slane %v1665, 1
      %v1668 = vsel %vm948, %v1663, %v1667
      %v1670 = vshrl.u32 %v1441, 16
      %v1672 = vshll.u32 %v1441, 16
      %v1674 = vrot.slane %v1672, 1
      %v1675 = vor.u32 %v1670, %v1674
      %v1677 = vshll.u32 %v1554, 16
      %v1679 = vrot.slane %v1677, 1
      %v1680 = vsel %vm948, %v1675, %v1679
      %v1682 = vshrl.u32 %v1442, 16
      %v1684 = vshll.u32 %v1442, 16
      %v1686 = vrot.slane %v1684, 1
      %v1687 = vor.u32 %v1682, %v1686
      %v1689 = vshll.u32 %v1555, 16
      %v1691 = vrot.slane %v1689, 1
      %v1692 = vsel %vm948, %v1687, %v1691
      %v1694 = vshrl.u32 %v1443, 16
      %v1696 = vshll.u32 %v1443, 16
      %v1698 = vrot.slane %v1696, 1
      %v1699 = vor.u32 %v1694, %v1698
      %v1701 = vshll.u32 %v1556, 16
      %v1703 = vrot.slane %v1701, 1
      %v1704 = vsel %vm948, %v1699, %v1703
      %v1706 = vshrl.u32 %v1444, 16
      %v1708 = vshll.u32 %v1444, 16
      %v1710 = vrot.slane %v1708, 1
      %v1711 = vor.u32 %v1706, %v1710
      %v1713 = vshll.u32 %v1557, 16
      %v1715 = vrot.slane %v1713, 1
      %v1716 = vsel %vm948, %v1711, %v1715
      %v1718 = vshrl.u32 %v1445, 16
      %v1720 = vshll.u32 %v1445, 16
      %v1722 = vrot.slane %v1720, 1
      %v1723 = vor.u32 %v1718, %v1722
      %v1725 = vshll.u32 %v1558, 16
      %v1727 = vrot.slane %v1725, 1
      %v1728 = vsel %vm948, %v1723, %v1727
      %v1730 = vshrl.u32 %v1446, 16
      %v1732 = vshll.u32 %v1446, 16
      %v1734 = vrot.slane %v1732, 1
      %v1735 = vor.u32 %v1730, %v1734
      %v1737 = vshll.u32 %v1559, 16
      %v1739 = vrot.slane %v1737, 1
      %v1740 = vsel %vm948, %v1735, %v1739
      %v1742 = vshrl.u32 %v1447, 16
      %v1744 = vshll.u32 %v1447, 16
      %v1746 = vrot.slane %v1744, 1
      %v1747 = vor.u32 %v1742, %v1746
      %v1749 = vshll.u32 %v1560, 16
      %v1751 = vrot.slane %v1749, 1
      %v1752 = vsel %vm948, %v1747, %v1751
      %1753 = vrot.lane.b32.xlu0 %v1572, 16
      %v1754 = vpop.permute.xlu0 %1753
      %1755 = vrot.lane.b32.xlu0 %v1584, 16
      %v1756 = vpop.permute.xlu0 %1755
      %1757 = vrot.lane.b32.xlu0 %v1596, 16
      %v1758 = vpop.permute.xlu0 %1757
      %1759 = vrot.lane.b32.xlu0 %v1608, 16
      %v1760 = vpop.permute.xlu0 %1759
      %1761 = vrot.lane.b32.xlu0 %v1620, 16
      %v1762 = vpop.permute.xlu0 %1761
      %1763 = vrot.lane.b32.xlu0 %v1632, 16
      %v1764 = vpop.permute.xlu0 %1763
      %1765 = vrot.lane.b32.xlu0 %v1644, 16
      %v1766 = vpop.permute.xlu0 %1765
      %1767 = vrot.lane.b32.xlu0 %v1656, 16
      %v1768 = vpop.permute.xlu0 %1767
      %1769 = vrot.lane.b32.xlu0 %v1668, 16
      %v1770 = vpop.permute.xlu0 %1769
      %1771 = vrot.lane.b32.xlu0 %v1680, 16
      %v1772 = vpop.permute.xlu0 %1771
      %1773 = vrot.lane.b32.xlu0 %v1692, 16
      %v1774 = vpop.permute.xlu0 %1773
      %1775 = vrot.lane.b32.xlu0 %v1704, 16
      %v1776 = vpop.permute.xlu0 %1775
      %1777 = vrot.lane.b32.xlu0 %v1716, 16
      %v1778 = vpop.permute.xlu0 %1777
      %1779 = vrot.lane.b32.xlu0 %v1728, 16
      %v1780 = vpop.permute.xlu0 %1779
      %1781 = vrot.lane.b32.xlu0 %v1740, 16
      %v1782 = vpop.permute.xlu0 %1781
      %1783 = vrot.lane.b32.xlu0 %v1752, 16
      %v1784 = vpop.permute.xlu0 %1783
      %vm1801 = vcmask 162944
      %1802 = vst.msk [vmem:[#allocation3] sm:$0xff] %vm1801, %v1754
      %1803 = vst.msk [vmem:[#allocation3 + $0x8] sm:$0xff] %vm1801, %v1756
      %1804 = vst.msk [vmem:[#allocation3 + $0x10] sm:$0xff] %vm1801, %v1758
      %1805 = vst.msk [vmem:[#allocation3 + $0x18] sm:$0xff] %vm1801, %v1760
      %1806 = vst.msk [vmem:[#allocation3 + $0x20] sm:$0xff] %vm1801, %v1762
      %1807 = vst.msk [vmem:[#allocation3 + $0x28] sm:$0xff] %vm1801, %v1764
      %1808 = vst.msk [vmem:[#allocation3 + $0x30] sm:$0xff] %vm1801, %v1766
      %1809 = vst.msk [vmem:[#allocation3 + $0x38] sm:$0xff] %vm1801, %v1768
      %1810 = vst.msk [vmem:[#allocation3 + $0x40] sm:$0xff] %vm1801, %v1770
      %1811 = vst.msk [vmem:[#allocation3 + $0x48] sm:$0xff] %vm1801, %v1772
      %1812 = vst.msk [vmem:[#allocation3 + $0x50] sm:$0xff] %vm1801, %v1774
      %1813 = vst.msk [vmem:[#allocation3 + $0x58] sm:$0xff] %vm1801, %v1776
      %1814 = vst.msk [vmem:[#allocation3 + $0x60] sm:$0xff] %vm1801, %v1778
      %1815 = vst.msk [vmem:[#allocation3 + $0x68] sm:$0xff] %vm1801, %v1780
      %1816 = vst.msk [vmem:[#allocation3 + $0x70] sm:$0xff] %vm1801, %v1782
      %1817 = vst.msk [vmem:[#allocation3 + $0x78] sm:$0xff] %vm1801, %v1784
      %v1818 = vrot.slane %v1432, 1
      %v1819 = vrot.slane %v1545, 1
      %v1820 = vsel %vm1206, %v1818, %v1819
      %v1821 = vrot.slane %v1433, 1
      %v1822 = vrot.slane %v1546, 1
      %v1823 = vsel %vm1206, %v1821, %v1822
      %v1824 = vrot.slane %v1434, 1
      %v1825 = vrot.slane %v1547, 1
      %v1826 = vsel %vm1206, %v1824, %v1825
      %v1827 = vrot.slane %v1435, 1
      %v1828 = vrot.slane %v1548, 1
      %v1829 = vsel %vm1206, %v1827, %v1828
      %v1830 = vrot.slane %v1436, 1
      %v1831 = vrot.slane %v1549, 1
      %v1832 = vsel %vm1206, %v1830, %v1831
      %v1833 = vrot.slane %v1437, 1
      %v1834 = vrot.slane %v1550, 1
      %v1835 = vsel %vm1206, %v1833, %v1834
      %v1836 = vrot.slane %v1438, 1
      %v1837 = vrot.slane %v1551, 1
      %v1838 = vsel %vm1206, %v1836, %v1837
      %v1839 = vrot.slane %v1439, 1
      %v1840 = vrot.slane %v1552, 1
      %v1841 = vsel %vm1206, %v1839, %v1840
      %v1842 = vrot.slane %v1440, 1
      %v1843 = vrot.slane %v1553, 1
      %v1844 = vsel %vm1206, %v1842, %v1843
      %v1845 = vrot.slane %v1441, 1
      %v1846 = vrot.slane %v1554, 1
      %v1847 = vsel %vm1206, %v1845, %v1846
      %v1848 = vrot.slane %v1442, 1
      %v1849 = vrot.slane %v1555, 1
      %v1850 = vsel %vm1206, %v1848, %v1849
      %v1851 = vrot.slane %v1443, 1
      %v1852 = vrot.slane %v1556, 1
      %v1853 = vsel %vm1206, %v1851, %v1852
      %v1854 = vrot.slane %v1444, 1
      %v1855 = vrot.slane %v1557, 1
      %v1856 = vsel %vm1206, %v1854, %v1855
      %v1857 = vrot.slane %v1445, 1
      %v1858 = vrot.slane %v1558, 1
      %v1859 = vsel %vm1206, %v1857, %v1858
      %v1860 = vrot.slane %v1446, 1
      %v1861 = vrot.slane %v1559, 1
      %v1862 = vsel %vm1206, %v1860, %v1861
      %v1863 = vrot.slane %v1447, 1
      %v1864 = vrot.slane %v1560, 1
      %v1865 = vsel %vm1206, %v1863, %v1864
      %1866 = vrot.lane.b32.xlu0 %v1820, 20
      %v1867 = vpop.permute.xlu0 %1866
      %1868 = vrot.lane.b32.xlu0 %v1823, 20
      %v1869 = vpop.permute.xlu0 %1868
      %1870 = vrot.lane.b32.xlu0 %v1826, 20
      %v1871 = vpop.permute.xlu0 %1870
      %1872 = vrot.lane.b32.xlu0 %v1829, 20
      %v1873 = vpop.permute.xlu0 %1872
      %1874 = vrot.lane.b32.xlu0 %v1832, 20
      %v1875 = vpop.permute.xlu0 %1874
      %1876 = vrot.lane.b32.xlu0 %v1835, 20
      %v1877 = vpop.permute.xlu0 %1876
      %1878 = vrot.lane.b32.xlu0 %v1838, 20
      %v1879 = vpop.permute.xlu0 %1878
      %1880 = vrot.lane.b32.xlu0 %v1841, 20
      %v1881 = vpop.permute.xlu0 %1880
      %1882 = vrot.lane.b32.xlu0 %v1844, 20
      %v1883 = vpop.permute.xlu0 %1882
      %1884 = vrot.lane.b32.xlu0 %v1847, 20
      %v1885 = vpop.permute.xlu0 %1884
      %1886 = vrot.lane.b32.xlu0 %v1850, 20
      %v1887 = vpop.permute.xlu0 %1886
      %1888 = vrot.lane.b32.xlu0 %v1853, 20
      %v1889 = vpop.permute.xlu0 %1888
      %1890 = vrot.lane.b32.xlu0 %v1856, 20
      %v1891 = vpop.permute.xlu0 %1890
      %1892 = vrot.lane.b32.xlu0 %v1859, 20
      %v1893 = vpop.permute.xlu0 %1892
      %1894 = vrot.lane.b32.xlu0 %v1862, 20
      %v1895 = vpop.permute.xlu0 %1894
      %1896 = vrot.lane.b32.xlu0 %v1865, 20
      %v1897 = vpop.permute.xlu0 %1896
      %vm1914 = vcmask 195744
      %1915 = vst.msk [vmem:[#allocation3] sm:$0xff] %vm1914, %v1867
      %1916 = vst.msk [vmem:[#allocation3 + $0x8] sm:$0xff] %vm1914, %v1869
      %1917 = vst.msk [vmem:[#allocation3 + $0x10] sm:$0xff] %vm1914, %v1871
      %1918 = vst.msk [vmem:[#allocation3 + $0x18] sm:$0xff] %vm1914, %v1873
      %1919 = vst.msk [vmem:[#allocation3 + $0x20] sm:$0xff] %vm1914, %v1875
      %1920 = vst.msk [vmem:[#allocation3 + $0x28] sm:$0xff] %vm1914, %v1877
      %1921 = vst.msk [vmem:[#allocation3 + $0x30] sm:$0xff] %vm1914, %v1879
      %1922 = vst.msk [vmem:[#allocation3 + $0x38] sm:$0xff] %vm1914, %v1881
      %1923 = vst.msk [vmem:[#allocation3 + $0x40] sm:$0xff] %vm1914, %v1883
      %1924 = vst.msk [vmem:[#allocation3 + $0x48] sm:$0xff] %vm1914, %v1885
      %1925 = vst.msk [vmem:[#allocation3 + $0x50] sm:$0xff] %vm1914, %v1887
      %1926 = vst.msk [vmem:[#allocation3 + $0x58] sm:$0xff] %vm1914, %v1889
      %1927 = vst.msk [vmem:[#allocation3 + $0x60] sm:$0xff] %vm1914, %v1891
      %1928 = vst.msk [vmem:[#allocation3 + $0x68] sm:$0xff] %vm1914, %v1893
      %1929 = vst.msk [vmem:[#allocation3 + $0x70] sm:$0xff] %vm1914, %v1895
      %1930 = vst.msk [vmem:[#allocation3 + $0x78] sm:$0xff] %vm1914, %v1897
      %s1931 = scalar_lea.vmem [#allocation2], 24
      %v1932 = vld [vmem:[%s1931] sm:$0xf]
      %v1933 = vld [vmem:[%s1931 + $0x4] sm:$0xf]
      %v1934 = vld [vmem:[%s1931 + $0x8] sm:$0x1]
      %v1935 = vld [vmem:[%s1931 + $0xc] sm:$0xf]
      %v1936 = vld [vmem:[%s1931 + $0x10] sm:$0xf]
      %v1937 = vld [vmem:[%s1931 + $0x14] sm:$0x1]
      %v1938 = vld [vmem:[%s1931 + $0x18] sm:$0xf]
      %v1939 = vld [vmem:[%s1931 + $0x1c] sm:$0xf]
      %v1940 = vld [vmem:[%s1931 + $0x20] sm:$0x1]
      %v1941 = vld [vmem:[%s1931 + $0x24] sm:$0xf]
      %v1942 = vld [vmem:[%s1931 + $0x28] sm:$0xf]
      %v1943 = vld [vmem:[%s1931 + $0x2c] sm:$0x1]
      %v1944 = vld [vmem:[%s1931 + $0x30] sm:$0xf]
      %v1945 = vld [vmem:[%s1931 + $0x34] sm:$0xf]
      %v1946 = vld [vmem:[%s1931 + $0x38] sm:$0x1]
      %v1947 = vld [vmem:[%s1931 + $0x3c] sm:$0xf]
      %v1948 = vld [vmem:[%s1931 + $0x40] sm:$0xf]
      %v1949 = vld [vmem:[%s1931 + $0x44] sm:$0x1]
      %v1950 = vld [vmem:[%s1931 + $0x48] sm:$0xf]
      %v1951 = vld [vmem:[%s1931 + $0x4c] sm:$0xf]
      %v1952 = vld [vmem:[%s1931 + $0x50] sm:$0x1]
      %v1953 = vld [vmem:[%s1931 + $0x54] sm:$0xf]
      %v1954 = vld [vmem:[%s1931 + $0x58] sm:$0xf]
      %v1955 = vld [vmem:[%s1931 + $0x5c] sm:$0x1]
      %v1956 = vld [vmem:[%s1931 + $0x60] sm:$0xf]
      %v1957 = vld [vmem:[%s1931 + $0x64] sm:$0xf]
      %v1958 = vld [vmem:[%s1931 + $0x68] sm:$0x1]
      %v1959 = vld [vmem:[%s1931 + $0x6c] sm:$0xf]
      %v1960 = vld [vmem:[%s1931 + $0x70] sm:$0xf]
      %v1961 = vld [vmem:[%s1931 + $0x74] sm:$0x1]
      %v1962 = vld [vmem:[%s1931 + $0x78] sm:$0xf]
      %v1963 = vld [vmem:[%s1931 + $0x7c] sm:$0xf]
      %v1964 = vld [vmem:[%s1931 + $0x80] sm:$0x1]
      %v1965 = vld [vmem:[%s1931 + $0x84] sm:$0xf]
      %v1966 = vld [vmem:[%s1931 + $0x88] sm:$0xf]
      %v1967 = vld [vmem:[%s1931 + $0x8c] sm:$0x1]
      %v1968 = vld [vmem:[%s1931 + $0x90] sm:$0xf]
      %v1969 = vld [vmem:[%s1931 + $0x94] sm:$0xf]
      %v1970 = vld [vmem:[%s1931 + $0x98] sm:$0x1]
      %v1971 = vld [vmem:[%s1931 + $0x9c] sm:$0xf]
      %v1972 = vld [vmem:[%s1931 + $0xa0] sm:$0xf]
      %v1973 = vld [vmem:[%s1931 + $0xa4] sm:$0x1]
      %v1974 = vld [vmem:[%s1931 + $0xa8] sm:$0xf]
      %v1975 = vld [vmem:[%s1931 + $0xac] sm:$0xf]
      %v1976 = vld [vmem:[%s1931 + $0xb0] sm:$0x1]
      %v1977 = vld [vmem:[%s1931 + $0xb4] sm:$0xf]
      %v1978 = vld [vmem:[%s1931 + $0xb8] sm:$0xf]
      %v1979 = vld [vmem:[%s1931 + $0xbc] sm:$0x1]
      %v2012 = vunpack.c.l.b16 %v1932
      %v2013 = vunpack.c.l.b16 %v1933
      %v2014 = vunpack.c.l.b16 %v1935
      %v2015 = vunpack.c.l.b16 %v1936
      %v2016 = vunpack.c.l.b16 %v1938
      %v2017 = vunpack.c.l.b16 %v1939
      %v2018 = vunpack.c.l.b16 %v1941
      %v2019 = vunpack.c.l.b16 %v1942
      %v2020 = vunpack.c.l.b16 %v1944
      %v2021 = vunpack.c.l.b16 %v1945
      %v2022 = vunpack.c.l.b16 %v1947
      %v2023 = vunpack.c.l.b16 %v1948
      %v2024 = vunpack.c.l.b16 %v1950
      %v2025 = vunpack.c.l.b16 %v1951
      %v2026 = vunpack.c.l.b16 %v1953
      %v2027 = vunpack.c.l.b16 %v1954
      %v2028 = vunpack.c.l.b16 %v1956
      %v2029 = vunpack.c.l.b16 %v1957
      %v2030 = vunpack.c.l.b16 %v1959
      %v2031 = vunpack.c.l.b16 %v1960
      %v2032 = vunpack.c.l.b16 %v1962
      %v2033 = vunpack.c.l.b16 %v1963
      %v2034 = vunpack.c.l.b16 %v1965
      %v2035 = vunpack.c.l.b16 %v1966
      %v2036 = vunpack.c.l.b16 %v1968
      %v2037 = vunpack.c.l.b16 %v1969
      %v2038 = vunpack.c.l.b16 %v1971
      %v2039 = vunpack.c.l.b16 %v1972
      %v2040 = vunpack.c.l.b16 %v1974
      %v2041 = vunpack.c.l.b16 %v1975
      %v2042 = vunpack.c.l.b16 %v1977
      %v2043 = vunpack.c.l.b16 %v1978
      %v2044 = vpack.c.b16 %v2013, %v2012
      %v2045 = vpack.c.b16 %v2015, %v2014
      %v2046 = vpack.c.b16 %v2017, %v2016
      %v2047 = vpack.c.b16 %v2019, %v2018
      %v2048 = vpack.c.b16 %v2021, %v2020
      %v2049 = vpack.c.b16 %v2023, %v2022
      %v2050 = vpack.c.b16 %v2025, %v2024
      %v2051 = vpack.c.b16 %v2027, %v2026
      %v2052 = vpack.c.b16 %v2029, %v2028
      %v2053 = vpack.c.b16 %v2031, %v2030
      %v2054 = vpack.c.b16 %v2033, %v2032
      %v2055 = vpack.c.b16 %v2035, %v2034
      %v2056 = vpack.c.b16 %v2037, %v2036
      %v2057 = vpack.c.b16 %v2039, %v2038
      %v2058 = vpack.c.b16 %v2041, %v2040
      %v2059 = vpack.c.b16 %v2043, %v2042
      %2060 = vrot.lane.b32.xlu0 %v2044, 24
      %v2061 = vpop.permute.xlu0 %2060
      %2062 = vrot.lane.b32.xlu0 %v2045, 24
      %v2063 = vpop.permute.xlu0 %2062
      %2064 = vrot.lane.b32.xlu0 %v2046, 24
      %v2065 = vpop.permute.xlu0 %2064
      %2066 = vrot.lane.b32.xlu0 %v2047, 24
      %v2067 = vpop.permute.xlu0 %2066
      %2068 = vrot.lane.b32.xlu0 %v2048, 24
      %v2069 = vpop.permute.xlu0 %2068
      %2070 = vrot.lane.b32.xlu0 %v2049, 24
      %v2071 = vpop.permute.xlu0 %2070
      %2072 = vrot.lane.b32.xlu0 %v2050, 24
      %v2073 = vpop.permute.xlu0 %2072
      %2074 = vrot.lane.b32.xlu0 %v2051, 24
      %v2075 = vpop.permute.xlu0 %2074
      %2076 = vrot.lane.b32.xlu0 %v2052, 24
      %v2077 = vpop.permute.xlu0 %2076
      %2078 = vrot.lane.b32.xlu0 %v2053, 24
      %v2079 = vpop.permute.xlu0 %2078
      %2080 = vrot.lane.b32.xlu0 %v2054, 24
      %v2081 = vpop.permute.xlu0 %2080
      %2082 = vrot.lane.b32.xlu0 %v2055, 24
      %v2083 = vpop.permute.xlu0 %2082
      %2084 = vrot.lane.b32.xlu0 %v2056, 24
      %v2085 = vpop.permute.xlu0 %2084
      %2086 = vrot.lane.b32.xlu0 %v2057, 24
      %v2087 = vpop.permute.xlu0 %2086
      %2088 = vrot.lane.b32.xlu0 %v2058, 24
      %v2089 = vpop.permute.xlu0 %2088
      %2090 = vrot.lane.b32.xlu0 %v2059, 24
      %v2091 = vpop.permute.xlu0 %2090
      %vm2108 = vcmask 228544
      %2109 = vst.msk [vmem:[#allocation3] sm:$0xff] %vm2108, %v2061
      %2110 = vst.msk [vmem:[#allocation3 + $0x8] sm:$0xff] %vm2108, %v2063
      %2111 = vst.msk [vmem:[#allocation3 + $0x10] sm:$0xff] %vm2108, %v2065
      %2112 = vst.msk [vmem:[#allocation3 + $0x18] sm:$0xff] %vm2108, %v2067
      %2113 = vst.msk [vmem:[#allocation3 + $0x20] sm:$0xff] %vm2108, %v2069
      %2114 = vst.msk [vmem:[#allocation3 + $0x28] sm:$0xff] %vm2108, %v2071
      %2115 = vst.msk [vmem:[#allocation3 + $0x30] sm:$0xff] %vm2108, %v2073
      %2116 = vst.msk [vmem:[#allocation3 + $0x38] sm:$0xff] %vm2108, %v2075
      %2117 = vst.msk [vmem:[#allocation3 + $0x40] sm:$0xff] %vm2108, %v2077
      %2118 = vst.msk [vmem:[#allocation3 + $0x48] sm:$0xff] %vm2108, %v2079
      %2119 = vst.msk [vmem:[#allocation3 + $0x50] sm:$0xff] %vm2108, %v2081
      %2120 = vst.msk [vmem:[#allocation3 + $0x58] sm:$0xff] %vm2108, %v2083
      %2121 = vst.msk [vmem:[#allocation3 + $0x60] sm:$0xff] %vm2108, %v2085
      %2122 = vst.msk [vmem:[#allocation3 + $0x68] sm:$0xff] %vm2108, %v2087
      %2123 = vst.msk [vmem:[#allocation3 + $0x70] sm:$0xff] %vm2108, %v2089
      %2124 = vst.msk [vmem:[#allocation3 + $0x78] sm:$0xff] %vm2108, %v2091
      %v2141 = vunpack.c.l.b16 %v1934
      %v2142 = vunpack.c.l.b16 %v1937
      %v2143 = vunpack.c.l.b16 %v1940
      %v2144 = vunpack.c.l.b16 %v1943
      %v2145 = vunpack.c.l.b16 %v1946
      %v2146 = vunpack.c.l.b16 %v1949
      %v2147 = vunpack.c.l.b16 %v1952
      %v2148 = vunpack.c.l.b16 %v1955
      %v2149 = vunpack.c.l.b16 %v1958
      %v2150 = vunpack.c.l.b16 %v1961
      %v2151 = vunpack.c.l.b16 %v1964
      %v2152 = vunpack.c.l.b16 %v1967
      %v2153 = vunpack.c.l.b16 %v1970
      %v2154 = vunpack.c.l.b16 %v1973
      %v2155 = vunpack.c.l.b16 %v1976
      %v2156 = vunpack.c.l.b16 %v1979
      %v2157 = vpack.c.b16 %v2141, %v2141
      %v2158 = vpack.c.b16 %v2142, %v2142
      %v2159 = vpack.c.b16 %v2143, %v2143
      %v2160 = vpack.c.b16 %v2144, %v2144
      %v2161 = vpack.c.b16 %v2145, %v2145
      %v2162 = vpack.c.b16 %v2146, %v2146
      %v2163 = vpack.c.b16 %v2147, %v2147
      %v2164 = vpack.c.b16 %v2148, %v2148
      %v2165 = vpack.c.b16 %v2149, %v2149
      %v2166 = vpack.c.b16 %v2150, %v2150
      %v2167 = vpack.c.b16 %v2151, %v2151
      %v2168 = vpack.c.b16 %v2152, %v2152
      %v2169 = vpack.c.b16 %v2153, %v2153
      %v2170 = vpack.c.b16 %v2154, %v2154
      %v2171 = vpack.c.b16 %v2155, %v2155
      %v2172 = vpack.c.b16 %v2156, %v2156
      %v2174 = vshrl.u32 %v2044, 16
      %v2176 = vshll.u32 %v2044, 16
      %v2178 = vrot.slane %v2176, 1
      %v2179 = vor.u32 %v2174, %v2178
      %v2181 = vshll.u32 %v2157, 16
      %v2183 = vrot.slane %v2181, 1
      %v2184 = vsel %vm948, %v2179, %v2183
      %v2186 = vshrl.u32 %v2045, 16
      %v2188 = vshll.u32 %v2045, 16
      %v2190 = vrot.slane %v2188, 1
      %v2191 = vor.u32 %v2186, %v2190
      %v2193 = vshll.u32 %v2158, 16
      %v2195 = vrot.slane %v2193, 1
      %v2196 = vsel %vm948, %v2191, %v2195
      %v2198 = vshrl.u32 %v2046, 16
      %v2200 = vshll.u32 %v2046, 16
      %v2202 = vrot.slane %v2200, 1
      %v2203 = vor.u32 %v2198, %v2202
      %v2205 = vshll.u32 %v2159, 16
      %v2207 = vrot.slane %v2205, 1
      %v2208 = vsel %vm948, %v2203, %v2207
      %v2210 = vshrl.u32 %v2047, 16
      %v2212 = vshll.u32 %v2047, 16
      %v2214 = vrot.slane %v2212, 1
      %v2215 = vor.u32 %v2210, %v2214
      %v2217 = vshll.u32 %v2160, 16
      %v2219 = vrot.slane %v2217, 1
      %v2220 = vsel %vm948, %v2215, %v2219
      %v2222 = vshrl.u32 %v2048, 16
      %v2224 = vshll.u32 %v2048, 16
      %v2226 = vrot.slane %v2224, 1
      %v2227 = vor.u32 %v2222, %v2226
      %v2229 = vshll.u32 %v2161, 16
      %v2231 = vrot.slane %v2229, 1
      %v2232 = vsel %vm948, %v2227, %v2231
      %v2234 = vshrl.u32 %v2049, 16
      %v2236 = vshll.u32 %v2049, 16
      %v2238 = vrot.slane %v2236, 1
      %v2239 = vor.u32 %v2234, %v2238
      %v2241 = vshll.u32 %v2162, 16
      %v2243 = vrot.slane %v2241, 1
      %v2244 = vsel %vm948, %v2239, %v2243
      %v2246 = vshrl.u32 %v2050, 16
      %v2248 = vshll.u32 %v2050, 16
      %v2250 = vrot.slane %v2248, 1
      %v2251 = vor.u32 %v2246, %v2250
      %v2253 = vshll.u32 %v2163, 16
      %v2255 = vrot.slane %v2253, 1
      %v2256 = vsel %vm948, %v2251, %v2255
      %v2258 = vshrl.u32 %v2051, 16
      %v2260 = vshll.u32 %v2051, 16
      %v2262 = vrot.slane %v2260, 1
      %v2263 = vor.u32 %v2258, %v2262
      %v2265 = vshll.u32 %v2164, 16
      %v2267 = vrot.slane %v2265, 1
      %v2268 = vsel %vm948, %v2263, %v2267
      %v2270 = vshrl.u32 %v2052, 16
      %v2272 = vshll.u32 %v2052, 16
      %v2274 = vrot.slane %v2272, 1
      %v2275 = vor.u32 %v2270, %v2274
      %v2277 = vshll.u32 %v2165, 16
      %v2279 = vrot.slane %v2277, 1
      %v2280 = vsel %vm948, %v2275, %v2279
      %v2282 = vshrl.u32 %v2053, 16
      %v2284 = vshll.u32 %v2053, 16
      %v2286 = vrot.slane %v2284, 1
      %v2287 = vor.u32 %v2282, %v2286
      %v2289 = vshll.u32 %v2166, 16
      %v2291 = vrot.slane %v2289, 1
      %v2292 = vsel %vm948, %v2287, %v2291
      %v2294 = vshrl.u32 %v2054, 16
      %v2296 = vshll.u32 %v2054, 16
      %v2298 = vrot.slane %v2296, 1
      %v2299 = vor.u32 %v2294, %v2298
      %v2301 = vshll.u32 %v2167, 16
      %v2303 = vrot.slane %v2301, 1
      %v2304 = vsel %vm948, %v2299, %v2303
      %v2306 = vshrl.u32 %v2055, 16
      %v2308 = vshll.u32 %v2055, 16
      %v2310 = vrot.slane %v2308, 1
      %v2311 = vor.u32 %v2306, %v2310
      %v2313 = vshll.u32 %v2168, 16
      %v2315 = vrot.slane %v2313, 1
      %v2316 = vsel %vm948, %v2311, %v2315
      %v2318 = vshrl.u32 %v2056, 16
      %v2320 = vshll.u32 %v2056, 16
      %v2322 = vrot.slane %v2320, 1
      %v2323 = vor.u32 %v2318, %v2322
      %v2325 = vshll.u32 %v2169, 16
      %v2327 = vrot.slane %v2325, 1
      %v2328 = vsel %vm948, %v2323, %v2327
      %v2330 = vshrl.u32 %v2057, 16
      %v2332 = vshll.u32 %v2057, 16
      %v2334 = vrot.slane %v2332, 1
      %v2335 = vor.u32 %v2330, %v2334
      %v2337 = vshll.u32 %v2170, 16
      %v2339 = vrot.slane %v2337, 1
      %v2340 = vsel %vm948, %v2335, %v2339
      %v2342 = vshrl.u32 %v2058, 16
      %v2344 = vshll.u32 %v2058, 16
      %v2346 = vrot.slane %v2344, 1
      %v2347 = vor.u32 %v2342, %v2346
      %v2349 = vshll.u32 %v2171, 16
      %v2351 = vrot.slane %v2349, 1
      %v2352 = vsel %vm948, %v2347, %v2351
      %v2354 = vshrl.u32 %v2059, 16
      %v2356 = vshll.u32 %v2059, 16
      %v2358 = vrot.slane %v2356, 1
      %v2359 = vor.u32 %v2354, %v2358
      %v2361 = vshll.u32 %v2172, 16
      %v2363 = vrot.slane %v2361, 1
      %v2364 = vsel %vm948, %v2359, %v2363
      %2365 = vrot.lane.b32.xlu0 %v2184, 28
      %v2366 = vpop.permute.xlu0 %2365
      %2367 = vrot.lane.b32.xlu0 %v2196, 28
      %v2368 = vpop.permute.xlu0 %2367
      %2369 = vrot.lane.b32.xlu0 %v2208, 28
      %v2370 = vpop.permute.xlu0 %2369
      %2371 = vrot.lane.b32.xlu0 %v2220, 28
      %v2372 = vpop.permute.xlu0 %2371
      %2373 = vrot.lane.b32.xlu0 %v2232, 28
      %v2374 = vpop.permute.xlu0 %2373
      %2375 = vrot.lane.b32.xlu0 %v2244, 28
      %v2376 = vpop.permute.xlu0 %2375
      %2377 = vrot.lane.b32.xlu0 %v2256, 28
      %v2378 = vpop.permute.xlu0 %2377
      %2379 = vrot.lane.b32.xlu0 %v2268, 28
      %v2380 = vpop.permute.xlu0 %2379
      %2381 = vrot.lane.b32.xlu0 %v2280, 28
      %v2382 = vpop.permute.xlu0 %2381
      %2383 = vrot.lane.b32.xlu0 %v2292, 28
      %v2384 = vpop.permute.xlu0 %2383
      %2385 = vrot.lane.b32.xlu0 %v2304, 28
      %v2386 = vpop.permute.xlu0 %2385
      %2387 = vrot.lane.b32.xlu0 %v2316, 28
      %v2388 = vpop.permute.xlu0 %2387
      %2389 = vrot.lane.b32.xlu0 %v2328, 28
      %v2390 = vpop.permute.xlu0 %2389
      %2391 = vrot.lane.b32.xlu0 %v2340, 28
      %v2392 = vpop.permute.xlu0 %2391
      %2393 = vrot.lane.b32.xlu0 %v2352, 28
      %v2394 = vpop.permute.xlu0 %2393
      %2395 = vrot.lane.b32.xlu0 %v2364, 28
      %v2396 = vpop.permute.xlu0 %2395
      %vm2413 = vcmask 261344
      %2414 = vst.msk [vmem:[#allocation3] sm:$0xff] %vm2413, %v2366
      %2415 = vst.msk [vmem:[#allocation3 + $0x8] sm:$0xff] %vm2413, %v2368
      %2416 = vst.msk [vmem:[#allocation3 + $0x10] sm:$0xff] %vm2413, %v2370
      %2417 = vst.msk [vmem:[#allocation3 + $0x18] sm:$0xff] %vm2413, %v2372
      %2418 = vst.msk [vmem:[#allocation3 + $0x20] sm:$0xff] %vm2413, %v2374
      %2419 = vst.msk [vmem:[#allocation3 + $0x28] sm:$0xff] %vm2413, %v2376
      %2420 = vst.msk [vmem:[#allocation3 + $0x30] sm:$0xff] %vm2413, %v2378
      %2421 = vst.msk [vmem:[#allocation3 + $0x38] sm:$0xff] %vm2413, %v2380
      %2422 = vst.msk [vmem:[#allocation3 + $0x40] sm:$0xff] %vm2413, %v2382
      %2423 = vst.msk [vmem:[#allocation3 + $0x48] sm:$0xff] %vm2413, %v2384
      %2424 = vst.msk [vmem:[#allocation3 + $0x50] sm:$0xff] %vm2413, %v2386
      %2425 = vst.msk [vmem:[#allocation3 + $0x58] sm:$0xff] %vm2413, %v2388
      %2426 = vst.msk [vmem:[#allocation3 + $0x60] sm:$0xff] %vm2413, %v2390
      %2427 = vst.msk [vmem:[#allocation3 + $0x68] sm:$0xff] %vm2413, %v2392
      %2428 = vst.msk [vmem:[#allocation3 + $0x70] sm:$0xff] %vm2413, %v2394
      %2429 = vst.msk [vmem:[#allocation3 + $0x78] sm:$0xff] %vm2413, %v2396
      %v2430 = vrot.slane %v2044, 1
      %v2431 = vrot.slane %v2157, 1
      %v2432 = vsel %vm1206, %v2430, %v2431
      %v2433 = vrot.slane %v2045, 1
      %v2434 = vrot.slane %v2158, 1
      %v2435 = vsel %vm1206, %v2433, %v2434
      %v2436 = vrot.slane %v2046, 1
      %v2437 = vrot.slane %v2159, 1
      %v2438 = vsel %vm1206, %v2436, %v2437
      %v2439 = vrot.slane %v2047, 1
      %v2440 = vrot.slane %v2160, 1
      %v2441 = vsel %vm1206, %v2439, %v2440
      %v2442 = vrot.slane %v2048, 1
      %v2443 = vrot.slane %v2161, 1
      %v2444 = vsel %vm1206, %v2442, %v2443
      %v2445 = vrot.slane %v2049, 1
      %v2446 = vrot.slane %v2162, 1
      %v2447 = vsel %vm1206, %v2445, %v2446
      %v2448 = vrot.slane %v2050, 1
      %v2449 = vrot.slane %v2163, 1
      %v2450 = vsel %vm1206, %v2448, %v2449
      %v2451 = vrot.slane %v2051, 1
      %v2452 = vrot.slane %v2164, 1
      %v2453 = vsel %vm1206, %v2451, %v2452
      %v2454 = vrot.slane %v2052, 1
      %v2455 = vrot.slane %v2165, 1
      %v2456 = vsel %vm1206, %v2454, %v2455
      %v2457 = vrot.slane %v2053, 1
      %v2458 = vrot.slane %v2166, 1
      %v2459 = vsel %vm1206, %v2457, %v2458
      %v2460 = vrot.slane %v2054, 1
      %v2461 = vrot.slane %v2167, 1
      %v2462 = vsel %vm1206, %v2460, %v2461
      %v2463 = vrot.slane %v2055, 1
      %v2464 = vrot.slane %v2168, 1
      %v2465 = vsel %vm1206, %v2463, %v2464
      %v2466 = vrot.slane %v2056, 1
      %v2467 = vrot.slane %v2169, 1
      %v2468 = vsel %vm1206, %v2466, %v2467
      %v2469 = vrot.slane %v2057, 1
      %v2470 = vrot.slane %v2170, 1
      %v2471 = vsel %vm1206, %v2469, %v2470
      %v2472 = vrot.slane %v2058, 1
      %v2473 = vrot.slane %v2171, 1
      %v2474 = vsel %vm1206, %v2472, %v2473
      %v2475 = vrot.slane %v2059, 1
      %v2476 = vrot.slane %v2172, 1
      %v2477 = vsel %vm1206, %v2475, %v2476
      %2478 = vrot.lane.b32.xlu0 %v2432, 32
      %v2479 = vpop.permute.xlu0 %2478
      %2480 = vrot.lane.b32.xlu0 %v2435, 32
      %v2481 = vpop.permute.xlu0 %2480
      %2482 = vrot.lane.b32.xlu0 %v2438, 32
      %v2483 = vpop.permute.xlu0 %2482
      %2484 = vrot.lane.b32.xlu0 %v2441, 32
      %v2485 = vpop.permute.xlu0 %2484
      %2486 = vrot.lane.b32.xlu0 %v2444, 32
      %v2487 = vpop.permute.xlu0 %2486
      %2488 = vrot.lane.b32.xlu0 %v2447, 32
      %v2489 = vpop.permute.xlu0 %2488
      %2490 = vrot.lane.b32.xlu0 %v2450, 32
      %v2491 = vpop.permute.xlu0 %2490
      %2492 = vrot.lane.b32.xlu0 %v2453, 32
      %v2493 = vpop.permute.xlu0 %2492
      %2494 = vrot.lane.b32.xlu0 %v2456, 32
      %v2495 = vpop.permute.xlu0 %2494
      %2496 = vrot.lane.b32.xlu0 %v2459, 32
      %v2497 = vpop.permute.xlu0 %2496
      %2498 = vrot.lane.b32.xlu0 %v2462, 32
      %v2499 = vpop.permute.xlu0 %2498
      %2500 = vrot.lane.b32.xlu0 %v2465, 32
      %v2501 = vpop.permute.xlu0 %2500
      %2502 = vrot.lane.b32.xlu0 %v2468, 32
      %v2503 = vpop.permute.xlu0 %2502
      %2504 = vrot.lane.b32.xlu0 %v2471, 32
      %v2505 = vpop.permute.xlu0 %2504
      %2506 = vrot.lane.b32.xlu0 %v2474, 32
      %v2507 = vpop.permute.xlu0 %2506
      %2508 = vrot.lane.b32.xlu0 %v2477, 32
      %v2509 = vpop.permute.xlu0 %2508
      %vm2526 = vcmask 294144
      %2527 = vst.msk [vmem:[#allocation3] sm:$0xff] %vm2526, %v2479
      %2528 = vst.msk [vmem:[#allocation3 + $0x8] sm:$0xff] %vm2526, %v2481
      %2529 = vst.msk [vmem:[#allocation3 + $0x10] sm:$0xff] %vm2526, %v2483
      %2530 = vst.msk [vmem:[#allocation3 + $0x18] sm:$0xff] %vm2526, %v2485
      %2531 = vst.msk [vmem:[#allocation3 + $0x20] sm:$0xff] %vm2526, %v2487
      %2532 = vst.msk [vmem:[#allocation3 + $0x28] sm:$0xff] %vm2526, %v2489
      %2533 = vst.msk [vmem:[#allocation3 + $0x30] sm:$0xff] %vm2526, %v2491
      %2534 = vst.msk [vmem:[#allocation3 + $0x38] sm:$0xff] %vm2526, %v2493
      %2535 = vst.msk [vmem:[#allocation3 + $0x40] sm:$0xff] %vm2526, %v2495
      %2536 = vst.msk [vmem:[#allocation3 + $0x48] sm:$0xff] %vm2526, %v2497
      %2537 = vst.msk [vmem:[#allocation3 + $0x50] sm:$0xff] %vm2526, %v2499
      %2538 = vst.msk [vmem:[#allocation3 + $0x58] sm:$0xff] %vm2526, %v2501
      %2539 = vst.msk [vmem:[#allocation3 + $0x60] sm:$0xff] %vm2526, %v2503
      %2540 = vst.msk [vmem:[#allocation3 + $0x68] sm:$0xff] %vm2526, %v2505
      %2541 = vst.msk [vmem:[#allocation3 + $0x70] sm:$0xff] %vm2526, %v2507
      %2542 = vst.msk [vmem:[#allocation3 + $0x78] sm:$0xff] %vm2526, %v2509
      %v2543 = vld [vmem:[#allocation3] sm:$0xff]
      %v2544 = vld [vmem:[#allocation3 + $0x8] sm:$0xff]
      %v2545 = vld [vmem:[#allocation3 + $0x10] sm:$0xff]
      %v2546 = vld [vmem:[#allocation3 + $0x18] sm:$0xff]
      %v2547 = vld [vmem:[#allocation3 + $0x20] sm:$0xff]
      %v2548 = vld [vmem:[#allocation3 + $0x28] sm:$0xff]
      %v2549 = vld [vmem:[#allocation3 + $0x30] sm:$0xff]
      %v2550 = vld [vmem:[#allocation3 + $0x38] sm:$0xff]
      %v2551 = vld [vmem:[#allocation3 + $0x40] sm:$0xff]
      %v2552 = vld [vmem:[#allocation3 + $0x48] sm:$0xff]
      %v2553 = vld [vmem:[#allocation3 + $0x50] sm:$0xff]
      %v2554 = vld [vmem:[#allocation3 + $0x58] sm:$0xff]
      %v2555 = vld [vmem:[#allocation3 + $0x60] sm:$0xff]
      %v2556 = vld [vmem:[#allocation3 + $0x68] sm:$0xff]
      %v2557 = vld [vmem:[#allocation3 + $0x70] sm:$0xff]
      %v2558 = vld [vmem:[#allocation3 + $0x78] sm:$0xff]
      %v2559 = vld [vmem:[%s1] sm:$0xf]
      %v2560 = vld [vmem:[%s1 + $0x4] sm:$0xf]
      %v2561 = vld [vmem:[%s1 + $0x8] sm:$0xf]
      %v2562 = vld [vmem:[%s1 + $0xc] sm:$0xf]
      %v2563 = vld [vmem:[%s1 + $0x10] sm:$0x3]
      %v2564 = vld [vmem:[%s2] sm:$0x1]
      %v2566 = vlaneseq
      %v2567 = vshrl.u32 %v2566, 7
      %v2568 = vsub.s32 0, %v2567
      %v2569 = vrot.slane %v2564, %v2568
      %v2576 = vunpack.c.l.b16 %v2559
      %v2577 = vunpack.c.l.b16 %v2560
      %v2578 = vunpack.c.l.b16 %v2561
      %v2579 = vunpack.c.l.b16 %v2562
      %v2580 = vunpack.c.l.b16 %v2563
      %v2581 = vpack.c.b16 %v2577, %v2576
      %v2582 = vpack.c.b16 %v2579, %v2578
      %v2583 = vpack.c.b16 %v2580, %v2580
      %vm2586 = vcmask 293888
      %v2588 = vsel %vm2586, %v2543, 0
      %v2591 = vsel %vm2586, %v2544, 0
      %v2594 = vsel %vm2586, %v2545, 0
      %v2597 = vsel %vm2586, %v2546, 0
      %v2600 = vsel %vm2586, %v2547, 0
      %v2603 = vsel %vm2586, %v2548, 0
      %v2606 = vsel %vm2586, %v2549, 0
      %v2609 = vsel %vm2586, %v2550, 0
      %v2612 = vsel %vm2586, %v2551, 0
      %v2615 = vsel %vm2586, %v2552, 0
      %v2618 = vsel %vm2586, %v2553, 0
      %v2621 = vsel %vm2586, %v2554, 0
      %v2624 = vsel %vm2586, %v2555, 0
      %v2627 = vsel %vm2586, %v2556, 0
      %v2630 = vsel %vm2586, %v2557, 0
      %v2633 = vsel %vm2586, %v2558, 0
      %vm2635 = vcmask 1041408
      %v2637 = vsel %vm2635, %v2583, 0
      %2639 = vmatprep.subr.bf16.mxu0 0
      %2640 = vmatpush1.bf16.msra.mxu0 %v2581
      %2641 = vmatprep.subr.bf16.mxu0 0
      %2642 = vmatpush1.bf16.msra.mxu0 %v2582
      %2643 = vmatprep.subr.bf16.mxu0 0
      %2644 = vmatpush1.bf16.msra.mxu0 %v2637
      %2645 = vmatprep.subr.bf16.mxu0 0
      %2646 = vmatpush1.bf16.msra.mxu0 0
      %2647 = vmatprep.subr.bf16.mxu0 0
      %2648 = vmatpush1.bf16.msra.mxu0 0
      %2649 = vmatprep.subr.bf16.mxu0 0
      %2650 = vmatpush1.bf16.msra.mxu0 0
      %2651 = vmatprep.subr.bf16.mxu0 0
      %2652 = vmatpush1.bf16.msra.mxu0 0
      %2653 = vmatprep.subr.bf16.mxu0 0
      %2654 = vmatpush1.bf16.msra.mxu0 0
      %2655 = vmatprep.subr.bf16.mxu0 0
      %2656 = vmatpush1.bf16.msra.mxu0 0
      %2657 = vmatprep.subr.bf16.mxu0 0
      %2658 = vmatpush1.bf16.msra.mxu0 0
      %2659 = vmatprep.subr.bf16.mxu0 0
      %2660 = vmatpush1.bf16.msra.mxu0 0
      %2661 = vmatprep.subr.bf16.mxu0 0
      %2662 = vmatpush1.bf16.msra.mxu0 0
      %2663 = vmatprep.subr.bf16.mxu0 0
      %2664 = vmatpush1.bf16.msra.mxu0 0
      %2665 = vmatprep.subr.bf16.mxu0 0
      %2666 = vmatpush1.bf16.msra.mxu0 0
      %2667 = vmatprep.subr.bf16.mxu0 0
      %2668 = vmatpush1.bf16.msra.mxu0 0
      %2669 = vmatprep.subr.bf16.mxu0 0
      %2670 = vmatpush1.bf16.msra.mxu0 0
      %2671 = vmatprep.mubr.bf16.mxu0 0
      %2672 = vmatmul.mubr.bf16.gmra.mrb[0].mxu0 %v2588
      %v2673 = vpop.f32.mrb[0].mxu0
      %v2674 = vadd.f32 %v2569, %v2673
      %v2675 = vpop.f32.mrb[0].mxu0
      %v2676 = vpop.f32.mrb[0].mxu0
      %v2677 = vadd.f32 %v2569, %v2676
      %v2678 = vpop.f32.mrb[0].mxu0
      %2679 = vmatprep.mubr.bf16.mxu0 0
      %2680 = vmatmul.mubr.bf16.gmra.mrb[0].mxu0 %v2591
      %v2681 = vpop.f32.mrb[0].mxu0
      %v2682 = vadd.f32 %v2569, %v2681
      %v2683 = vpop.f32.mrb[0].mxu0
      %v2684 = vpop.f32.mrb[0].mxu0
      %v2685 = vadd.f32 %v2569, %v2684
      %v2686 = vpop.f32.mrb[0].mxu0
      %2687 = vmatprep.mubr.bf16.mxu0 0
      %2688 = vmatmul.mubr.bf16.gmra.mrb[0].mxu0 %v2594
      %v2689 = vpop.f32.mrb[0].mxu0
      %v2690 = vadd.f32 %v2569, %v2689
      %v2691 = vpop.f32.mrb[0].mxu0
      %v2692 = vpop.f32.mrb[0].mxu0
      %v2693 = vadd.f32 %v2569, %v2692
      %v2694 = vpop.f32.mrb[0].mxu0
      %2695 = vmatprep.mubr.bf16.mxu0 0
      %2696 = vmatmul.mubr.bf16.gmra.mrb[0].mxu0 %v2597
      %v2697 = vpop.f32.mrb[0].mxu0
      %v2698 = vadd.f32 %v2569, %v2697
      %v2699 = vpop.f32.mrb[0].mxu0
      %v2700 = vpop.f32.mrb[0].mxu0
      %v2701 = vadd.f32 %v2569, %v2700
      %v2702 = vpop.f32.mrb[0].mxu0
      %2703 = vmatprep.mubr.bf16.mxu0 0
      %2704 = vmatmul.mubr.bf16.gmra.mrb[0].mxu0 %v2600
      %v2705 = vpop.f32.mrb[0].mxu0
      %v2706 = vadd.f32 %v2569, %v2705
      %v2707 = vpop.f32.mrb[0].mxu0
      %v2708 = vpop.f32.mrb[0].mxu0
      %v2709 = vadd.f32 %v2569, %v2708
      %v2710 = vpop.f32.mrb[0].mxu0
      %2711 = vmatprep.mubr.bf16.mxu0 0
      %2712 = vmatmul.mubr.bf16.gmra.mrb[0].mxu0 %v2603
      %v2713 = vpop.f32.mrb[0].mxu0
      %v2714 = vadd.f32 %v2569, %v2713
      %v2715 = vpop.f32.mrb[0].mxu0
      %v2716 = vpop.f32.mrb[0].mxu0
      %v2717 = vadd.f32 %v2569, %v2716
      %v2718 = vpop.f32.mrb[0].mxu0
      %2719 = vmatprep.mubr.bf16.mxu0 0
      %2720 = vmatmul.mubr.bf16.gmra.mrb[0].mxu0 %v2606
      %v2721 = vpop.f32.mrb[0].mxu0
      %v2722 = vadd.f32 %v2569, %v2721
      %v2723 = vpop.f32.mrb[0].mxu0
      %v2724 = vpop.f32.mrb[0].mxu0
      %v2725 = vadd.f32 %v2569, %v2724
      %v2726 = vpop.f32.mrb[0].mxu0
      %2727 = vmatprep.mubr.bf16.mxu0 0
      %2728 = vmatmul.mubr.bf16.gmra.mrb[0].mxu0 %v2609
      %v2729 = vpop.f32.mrb[0].mxu0
      %v2730 = vadd.f32 %v2569, %v2729
      %v2731 = vpop.f32.mrb[0].mxu0
      %v2732 = vpop.f32.mrb[0].mxu0
      %v2733 = vadd.f32 %v2569, %v2732
      %v2734 = vpop.f32.mrb[0].mxu0
      %2735 = vmatprep.mubr.bf16.mxu0 0
      %2736 = vmatmul.mubr.bf16.gmra.mrb[0].mxu0 %v2612
      %v2737 = vpop.f32.mrb[0].mxu0
      %v2738 = vadd.f32 %v2569, %v2737
      %v2739 = vpop.f32.mrb[0].mxu0
      %v2740 = vpop.f32.mrb[0].mxu0
      %v2741 = vadd.f32 %v2569, %v2740
      %v2742 = vpop.f32.mrb[0].mxu0
      %2743 = vmatprep.mubr.bf16.mxu0 0
      %2744 = vmatmul.mubr.bf16.gmra.mrb[0].mxu0 %v2615
      %v2745 = vpop.f32.mrb[0].mxu0
      %v2746 = vadd.f32 %v2569, %v2745
      %v2747 = vpop.f32.mrb[0].mxu0
      %v2748 = vpop.f32.mrb[0].mxu0
      %v2749 = vadd.f32 %v2569, %v2748
      %v2750 = vpop.f32.mrb[0].mxu0
      %2751 = vmatprep.mubr.bf16.mxu0 0
      %2752 = vmatmul.mubr.bf16.gmra.mrb[0].mxu0 %v2618
      %v2753 = vpop.f32.mrb[0].mxu0
      %v2754 = vadd.f32 %v2569, %v2753
      %v2755 = vpop.f32.mrb[0].mxu0
      %v2756 = vpop.f32.mrb[0].mxu0
      %v2757 = vadd.f32 %v2569, %v2756
      %v2758 = vpop.f32.mrb[0].mxu0
      %2759 = vmatprep.mubr.bf16.mxu0 0
      %2760 = vmatmul.mubr.bf16.gmra.mrb[0].mxu0 %v2621
      %v2761 = vpop.f32.mrb[0].mxu0
      %v2762 = vadd.f32 %v2569, %v2761
      %v2763 = vpop.f32.mrb[0].mxu0
      %v2764 = vpop.f32.mrb[0].mxu0
      %v2765 = vadd.f32 %v2569, %v2764
      %v2766 = vpop.f32.mrb[0].mxu0
      %2767 = vmatprep.mubr.bf16.mxu0 0
      %2768 = vmatmul.mubr.bf16.gmra.mrb[0].mxu0 %v2624
      %v2769 = vpop.f32.mrb[0].mxu0
      %v2770 = vadd.f32 %v2569, %v2769
      %v2771 = vpop.f32.mrb[0].mxu0
      %v2772 = vpop.f32.mrb[0].mxu0
      %v2773 = vadd.f32 %v2569, %v2772
      %v2774 = vpop.f32.mrb[0].mxu0
      %2775 = vmatprep.mubr.bf16.mxu0 0
      %2776 = vmatmul.mubr.bf16.gmra.mrb[0].mxu0 %v2627
      %v2777 = vpop.f32.mrb[0].mxu0
      %v2778 = vadd.f32 %v2569, %v2777
      %v2779 = vpop.f32.mrb[0].mxu0
      %v2780 = vpop.f32.mrb[0].mxu0
      %v2781 = vadd.f32 %v2569, %v2780
      %v2782 = vpop.f32.mrb[0].mxu0
      %2783 = vmatprep.mubr.bf16.mxu0 0
      %2784 = vmatmul.mubr.bf16.gmra.mrb[0].mxu0 %v2630
      %v2785 = vpop.f32.mrb[0].mxu0
      %v2786 = vadd.f32 %v2569, %v2785
      %v2787 = vpop.f32.mrb[0].mxu0
      %v2788 = vpop.f32.mrb[0].mxu0
      %v2789 = vadd.f32 %v2569, %v2788
      %v2790 = vpop.f32.mrb[0].mxu0
      %2791 = vmatprep.mubr.bf16.mxu0 0
      %2792 = vmatmul.mubr.bf16.gmra.mrb[0].mxu0 %v2633
      %v2793 = vpop.f32.mrb[0].mxu0
      %v2794 = vadd.f32 %v2569, %v2793
      %v2795 = vpop.f32.mrb[0].mxu0
      %v2796 = vpop.f32.mrb[0].mxu0
      %v2797 = vadd.f32 %v2569, %v2796
      %v2798 = vpop.f32.mrb[0].mxu0
      %2799 = vdwg.mxu0
      %vm2800 = vcmp.gt.f32.partialorder %v2674, 0.0
      %vm2801 = vcmp.gt.f32.partialorder %v2677, 0.0
      %vm2802 = vcmp.gt.f32.partialorder %v2682, 0.0
      %vm2803 = vcmp.gt.f32.partialorder %v2685, 0.0
      %vm2804 = vcmp.gt.f32.partialorder %v2690, 0.0
      %vm2805 = vcmp.gt.f32.partialorder %v2693, 0.0
      %vm2806 = vcmp.gt.f32.partialorder %v2698, 0.0
      %vm2807 = vcmp.gt.f32.partialorder %v2701, 0.0
      %vm2808 = vcmp.gt.f32.partialorder %v2706, 0.0
      %vm2809 = vcmp.gt.f32.partialorder %v2709, 0.0
      %vm2810 = vcmp.gt.f32.partialorder %v2714, 0.0
      %vm2811 = vcmp.gt.f32.partialorder %v2717, 0.0
      %vm2812 = vcmp.gt.f32.partialorder %v2722, 0.0
      %vm2813 = vcmp.gt.f32.partialorder %v2725, 0.0
      %vm2814 = vcmp.gt.f32.partialorder %v2730, 0.0
      %vm2815 = vcmp.gt.f32.partialorder %v2733, 0.0
      %vm2816 = vcmp.gt.f32.partialorder %v2738, 0.0
      %vm2817 = vcmp.gt.f32.partialorder %v2741, 0.0
      %vm2818 = vcmp.gt.f32.partialorder %v2746, 0.0
      %vm2819 = vcmp.gt.f32.partialorder %v2749, 0.0
      %vm2820 = vcmp.gt.f32.partialorder %v2754, 0.0
      %vm2821 = vcmp.gt.f32.partialorder %v2757, 0.0
      %vm2822 = vcmp.gt.f32.partialorder %v2762, 0.0
      %vm2823 = vcmp.gt.f32.partialorder %v2765, 0.0
      %vm2824 = vcmp.gt.f32.partialorder %v2770, 0.0
      %vm2825 = vcmp.gt.f32.partialorder %v2773, 0.0
      %vm2826 = vcmp.gt.f32.partialorder %v2778, 0.0
      %vm2827 = vcmp.gt.f32.partialorder %v2781, 0.0
      %vm2828 = vcmp.gt.f32.partialorder %v2786, 0.0
      %vm2829 = vcmp.gt.f32.partialorder %v2789, 0.0
      %vm2830 = vcmp.gt.f32.partialorder %v2794, 0.0
      %vm2831 = vcmp.gt.f32.partialorder %v2797, 0.0
      %v2832 = vmul.f32 %v2674, 0.01
      %v2833 = vmul.f32 %v2677, 0.01
      %v2834 = vmul.f32 %v2682, 0.01
      %v2835 = vmul.f32 %v2685, 0.01
      %v2836 = vmul.f32 %v2690, 0.01
      %v2837 = vmul.f32 %v2693, 0.01
      %v2838 = vmul.f32 %v2698, 0.01
      %v2839 = vmul.f32 %v2701, 0.01
      %v2840 = vmul.f32 %v2706, 0.01
      %v2841 = vmul.f32 %v2709, 0.01
      %v2842 = vmul.f32 %v2714, 0.01
      %v2843 = vmul.f32 %v2717, 0.01
      %v2844 = vmul.f32 %v2722, 0.01
      %v2845 = vmul.f32 %v2725, 0.01
      %v2846 = vmul.f32 %v2730, 0.01
      %v2847 = vmul.f32 %v2733, 0.01
      %v2848 = vmul.f32 %v2738, 0.01
      %v2849 = vmul.f32 %v2741, 0.01
      %v2850 = vmul.f32 %v2746, 0.01
      %v2851 = vmul.f32 %v2749, 0.01
      %v2852 = vmul.f32 %v2754, 0.01
      %v2853 = vmul.f32 %v2757, 0.01
      %v2854 = vmul.f32 %v2762, 0.01
      %v2855 = vmul.f32 %v2765, 0.01
      %v2856 = vmul.f32 %v2770, 0.01
      %v2857 = vmul.f32 %v2773, 0.01
      %v2858 = vmul.f32 %v2778, 0.01
      %v2859 = vmul.f32 %v2781, 0.01
      %v2860 = vmul.f32 %v2786, 0.01
      %v2861 = vmul.f32 %v2789, 0.01
      %v2862 = vmul.f32 %v2794, 0.01
      %v2863 = vmul.f32 %v2797, 0.01
      %v2864 = vsel %vm2800, %v2674, %v2832
      %v2865 = vsel %vm2801, %v2677, %v2833
      %v2866 = vsel %vm2802, %v2682, %v2834
      %v2867 = vsel %vm2803, %v2685, %v2835
      %v2868 = vsel %vm2804, %v2690, %v2836
      %v2869 = vsel %vm2805, %v2693, %v2837
      %v2870 = vsel %vm2806, %v2698, %v2838
      %v2871 = vsel %vm2807, %v2701, %v2839
      %v2872 = vsel %vm2808, %v2706, %v2840
      %v2873 = vsel %vm2809, %v2709, %v2841
      %v2874 = vsel %vm2810, %v2714, %v2842
      %v2875 = vsel %vm2811, %v2717, %v2843
      %v2876 = vsel %vm2812, %v2722, %v2844
      %v2877 = vsel %vm2813, %v2725, %v2845
      %v2878 = vsel %vm2814, %v2730, %v2846
      %v2879 = vsel %vm2815, %v2733, %v2847
      %v2880 = vsel %vm2816, %v2738, %v2848
      %v2881 = vsel %vm2817, %v2741, %v2849
      %v2882 = vsel %vm2818, %v2746, %v2850
      %v2883 = vsel %vm2819, %v2749, %v2851
      %v2884 = vsel %vm2820, %v2754, %v2852
      %v2885 = vsel %vm2821, %v2757, %v2853
      %v2886 = vsel %vm2822, %v2762, %v2854
      %v2887 = vsel %vm2823, %v2765, %v2855
      %v2888 = vsel %vm2824, %v2770, %v2856
      %v2889 = vsel %vm2825, %v2773, %v2857
      %v2890 = vsel %vm2826, %v2778, %v2858
      %v2891 = vsel %vm2827, %v2781, %v2859
      %v2892 = vsel %vm2828, %v2786, %v2860
      %v2893 = vsel %vm2829, %v2789, %v2861
      %v2894 = vsel %vm2830, %v2794, %v2862
      %v2895 = vsel %vm2831, %v2797, %v2863
      %v2896 = vadd.f32 %v2864, %v2865
      %v2897 = vadd.f32 %v2896, %v2866
      %v2898 = vadd.f32 %v2897, %v2867
      %v2899 = vadd.f32 %v2898, %v2868
      %v2900 = vadd.f32 %v2899, %v2869
      %v2901 = vadd.f32 %v2900, %v2870
      %v2902 = vadd.f32 %v2901, %v2871
      %v2903 = vadd.f32 %v2902, %v2872
      %v2904 = vadd.f32 %v2903, %v2873
      %v2905 = vadd.f32 %v2904, %v2874
      %v2906 = vadd.f32 %v2905, %v2875
      %v2907 = vadd.f32 %v2906, %v2876
      %v2908 = vadd.f32 %v2907, %v2877
      %v2909 = vadd.f32 %v2908, %v2878
      %v2910 = vadd.f32 %v2909, %v2879
      %v2911 = vadd.f32 %v2910, %v2880
      %v2912 = vadd.f32 %v2911, %v2881
      %v2913 = vadd.f32 %v2912, %v2882
      %v2914 = vadd.f32 %v2913, %v2883
      %v2915 = vadd.f32 %v2914, %v2884
      %v2916 = vadd.f32 %v2915, %v2885
      %v2917 = vadd.f32 %v2916, %v2886
      %v2918 = vadd.f32 %v2917, %v2887
      %v2919 = vadd.f32 %v2918, %v2888
      %v2920 = vadd.f32 %v2919, %v2889
      %v2921 = vadd.f32 %v2920, %v2890
      %v2922 = vadd.f32 %v2921, %v2891
      %v2923 = vadd.f32 %v2922, %v2892
      %v2924 = vadd.f32 %v2923, %v2893
      %v2925 = vadd.f32 %v2924, %v2894
      %v2926 = vadd.f32 %v2925, %v2895
      %v2927 = vrot.slane %v2926, 4
      %v2928 = vadd.f32 %v2926, %v2927
      %v2929 = vrot.slane %v2928, 2
      %v2930 = vadd.f32 %v2928, %v2929
      %v2931 = vrot.slane %v2930, 1
      %v2932 = vadd.f32 %v2930, %v2931
      %2933 = vst [vmem:[%s208] sm:$0x1] %v2932
      %v2934 = vmul.f32 %v2864, %v2864
      %v2935 = vmul.f32 %v2865, %v2865
      %v2936 = vmul.f32 %v2866, %v2866
      %v2937 = vmul.f32 %v2867, %v2867
      %v2938 = vmul.f32 %v2868, %v2868
      %v2939 = vmul.f32 %v2869, %v2869
      %v2940 = vmul.f32 %v2870, %v2870
      %v2941 = vmul.f32 %v2871, %v2871
      %v2942 = vmul.f32 %v2872, %v2872
      %v2943 = vmul.f32 %v2873, %v2873
      %v2944 = vmul.f32 %v2874, %v2874
      %v2945 = vmul.f32 %v2875, %v2875
      %v2946 = vmul.f32 %v2876, %v2876
      %v2947 = vmul.f32 %v2877, %v2877
      %v2948 = vmul.f32 %v2878, %v2878
      %v2949 = vmul.f32 %v2879, %v2879
      %v2950 = vmul.f32 %v2880, %v2880
      %v2951 = vmul.f32 %v2881, %v2881
      %v2952 = vmul.f32 %v2882, %v2882
      %v2953 = vmul.f32 %v2883, %v2883
      %v2954 = vmul.f32 %v2884, %v2884
      %v2955 = vmul.f32 %v2885, %v2885
      %v2956 = vmul.f32 %v2886, %v2886
      %v2957 = vmul.f32 %v2887, %v2887
      %v2958 = vmul.f32 %v2888, %v2888
      %v2959 = vmul.f32 %v2889, %v2889
      %v2960 = vmul.f32 %v2890, %v2890
      %v2961 = vmul.f32 %v2891, %v2891
      %v2962 = vmul.f32 %v2892, %v2892
      %v2963 = vmul.f32 %v2893, %v2893
      %v2964 = vmul.f32 %v2894, %v2894
      %v2965 = vmul.f32 %v2895, %v2895
      %v2966 = vadd.f32 %v2934, %v2935
      %v2967 = vadd.f32 %v2966, %v2936
      %v2968 = vadd.f32 %v2967, %v2937
      %v2969 = vadd.f32 %v2968, %v2938
      %v2970 = vadd.f32 %v2969, %v2939
      %v2971 = vadd.f32 %v2970, %v2940
      %v2972 = vadd.f32 %v2971, %v2941
      %v2973 = vadd.f32 %v2972, %v2942
      %v2974 = vadd.f32 %v2973, %v2943
      %v2975 = vadd.f32 %v2974, %v2944
      %v2976 = vadd.f32 %v2975, %v2945
      %v2977 = vadd.f32 %v2976, %v2946
      %v2978 = vadd.f32 %v2977, %v2947
      %v2979 = vadd.f32 %v2978, %v2948
      %v2980 = vadd.f32 %v2979, %v2949
      %v2981 = vadd.f32 %v2980, %v2950
      %v2982 = vadd.f32 %v2981, %v2951
      %v2983 = vadd.f32 %v2982, %v2952
      %v2984 = vadd.f32 %v2983, %v2953
      %v2985 = vadd.f32 %v2984, %v2954
      %v2986 = vadd.f32 %v2985, %v2955
      %v2987 = vadd.f32 %v2986, %v2956
      %v2988 = vadd.f32 %v2987, %v2957
      %v2989 = vadd.f32 %v2988, %v2958
      %v2990 = vadd.f32 %v2989, %v2959
      %v2991 = vadd.f32 %v2990, %v2960
      %v2992 = vadd.f32 %v2991, %v2961
      %v2993 = vadd.f32 %v2992, %v2962
      %v2994 = vadd.f32 %v2993, %v2963
      %v2995 = vadd.f32 %v2994, %v2964
      %v2996 = vadd.f32 %v2995, %v2965
      %v2997 = vrot.slane %v2996, 4
      %v2998 = vadd.f32 %v2996, %v2997
      %v2999 = vrot.slane %v2998, 2
      %v3000 = vadd.f32 %v2998, %v2999
      %v3001 = vrot.slane %v3000, 1
      %v3002 = vadd.f32 %v3000, %v3001
      %3003 = vst [vmem:[%s208 + $0x1] sm:$0x1] %v3002
      %v3004 = vpack.c.bf16 %v2865, %v2864
      %v3005 = vpack.c.bf16 %v2867, %v2866
      %v3006 = vpack.c.bf16 %v2869, %v2868
      %v3007 = vpack.c.bf16 %v2871, %v2870
      %v3008 = vpack.c.bf16 %v2873, %v2872
      %v3009 = vpack.c.bf16 %v2875, %v2874
      %v3010 = vpack.c.bf16 %v2877, %v2876
      %v3011 = vpack.c.bf16 %v2879, %v2878
      %v3012 = vpack.c.bf16 %v2881, %v2880
      %v3013 = vpack.c.bf16 %v2883, %v2882
      %v3014 = vpack.c.bf16 %v2885, %v2884
      %v3015 = vpack.c.bf16 %v2887, %v2886
      %v3016 = vpack.c.bf16 %v2889, %v2888
      %v3017 = vpack.c.bf16 %v2891, %v2890
      %v3018 = vpack.c.bf16 %v2893, %v2892
      %v3019 = vpack.c.bf16 %v2895, %v2894
      %v3036 = vunpack.c.l.b16 %v3004
      %v3037 = vunpack.c.h.b16 %v3004
      %v3038 = vunpack.c.l.b16 %v3005
      %v3039 = vunpack.c.h.b16 %v3005
      %v3040 = vunpack.c.l.b16 %v3006
      %v3041 = vunpack.c.h.b16 %v3006
      %v3042 = vunpack.c.l.b16 %v3007
      %v3043 = vunpack.c.h.b16 %v3007
      %v3044 = vunpack.c.l.b16 %v3008
      %v3045 = vunpack.c.h.b16 %v3008
      %v3046 = vunpack.c.l.b16 %v3009
      %v3047 = vunpack.c.h.b16 %v3009
      %v3048 = vunpack.c.l.b16 %v3010
      %v3049 = vunpack.c.h.b16 %v3010
      %v3050 = vunpack.c.l.b16 %v3011
      %v3051 = vunpack.c.h.b16 %v3011
      %v3052 = vunpack.c.l.b16 %v3012
      %v3053 = vunpack.c.h.b16 %v3012
      %v3054 = vunpack.c.l.b16 %v3013
      %v3055 = vunpack.c.h.b16 %v3013
      %v3056 = vunpack.c.l.b16 %v3014
      %v3057 = vunpack.c.h.b16 %v3014
      %v3058 = vunpack.c.l.b16 %v3015
      %v3059 = vunpack.c.h.b16 %v3015
      %v3060 = vunpack.c.l.b16 %v3016
      %v3061 = vunpack.c.h.b16 %v3016
      %v3062 = vunpack.c.l.b16 %v3017
      %v3063 = vunpack.c.h.b16 %v3017
      %v3064 = vunpack.c.l.b16 %v3018
      %v3065 = vunpack.c.h.b16 %v3018
      %v3066 = vunpack.c.l.b16 %v3019
      %v3067 = vunpack.c.h.b16 %v3019
      %v3068 = vpack.c.b16 %v3036, %v3036
      %v3069 = vpack.c.b16 %v3037, %v3037
      %v3070 = vpack.c.b16 %v3038, %v3038
      %v3071 = vpack.c.b16 %v3039, %v3039
      %v3072 = vpack.c.b16 %v3040, %v3040
      %v3073 = vpack.c.b16 %v3041, %v3041
      %v3074 = vpack.c.b16 %v3042, %v3042
      %v3075 = vpack.c.b16 %v3043, %v3043
      %v3076 = vpack.c.b16 %v3044, %v3044
      %v3077 = vpack.c.b16 %v3045, %v3045
      %v3078 = vpack.c.b16 %v3046, %v3046
      %v3079 = vpack.c.b16 %v3047, %v3047
      %v3080 = vpack.c.b16 %v3048, %v3048
      %v3081 = vpack.c.b16 %v3049, %v3049
      %v3082 = vpack.c.b16 %v3050, %v3050
      %v3083 = vpack.c.b16 %v3051, %v3051
      %v3084 = vpack.c.b16 %v3052, %v3052
      %v3085 = vpack.c.b16 %v3053, %v3053
      %v3086 = vpack.c.b16 %v3054, %v3054
      %v3087 = vpack.c.b16 %v3055, %v3055
      %v3088 = vpack.c.b16 %v3056, %v3056
      %v3089 = vpack.c.b16 %v3057, %v3057
      %v3090 = vpack.c.b16 %v3058, %v3058
      %v3091 = vpack.c.b16 %v3059, %v3059
      %v3092 = vpack.c.b16 %v3060, %v3060
      %v3093 = vpack.c.b16 %v3061, %v3061
      %v3094 = vpack.c.b16 %v3062, %v3062
      %v3095 = vpack.c.b16 %v3063, %v3063
      %v3096 = vpack.c.b16 %v3064, %v3064
      %v3097 = vpack.c.b16 %v3065, %v3065
      %v3098 = vpack.c.b16 %v3066, %v3066
      %v3099 = vpack.c.b16 %v3067, %v3067
      %3132 = vst [vmem:[%s204] sm:$0xf] %v3068
      %3133 = vst [vmem:[%s204 + $0x4] sm:$0xf] %v3069
      %3134 = vst [vmem:[%s204 + $0x8] sm:$0xf] %v3070
      %3135 = vst [vmem:[%s204 + $0xc] sm:$0xf] %v3071
      %3136 = vst [vmem:[%s204 + $0x10] sm:$0xf] %v3072
      %3137 = vst [vmem:[%s204 + $0x14] sm:$0xf] %v3073
      %3138 = vst [vmem:[%s204 + $0x18] sm:$0xf] %v3074
      %3139 = vst [vmem:[%s204 + $0x1c] sm:$0xf] %v3075
      %3140 = vst [vmem:[%s204 + $0x20] sm:$0xf] %v3076
      %3141 = vst [vmem:[%s204 + $0x24] sm:$0xf] %v3077
      %3142 = vst [vmem:[%s204 + $0x28] sm:$0xf] %v3078
      %3143 = vst [vmem:[%s204 + $0x2c] sm:$0xf] %v3079
      %3144 = vst [vmem:[%s204 + $0x30] sm:$0xf] %v3080
      %3145 = vst [vmem:[%s204 + $0x34] sm:$0xf] %v3081
      %3146 = vst [vmem:[%s204 + $0x38] sm:$0xf] %v3082
      %3147 = vst [vmem:[%s204 + $0x3c] sm:$0xf] %v3083
      %3148 = vst [vmem:[%s204 + $0x40] sm:$0xf] %v3084
      %3149 = vst [vmem:[%s204 + $0x44] sm:$0xf] %v3085
      %3150 = vst [vmem:[%s204 + $0x48] sm:$0xf] %v3086
      %3151 = vst [vmem:[%s204 + $0x4c] sm:$0xf] %v3087
      %3152 = vst [vmem:[%s204 + $0x50] sm:$0xf] %v3088
      %3153 = vst [vmem:[%s204 + $0x54] sm:$0xf] %v3089
      %3154 = vst [vmem:[%s204 + $0x58] sm:$0xf] %v3090
      %3155 = vst [vmem:[%s204 + $0x5c] sm:$0xf] %v3091
      %3156 = vst [vmem:[%s204 + $0x60] sm:$0xf] %v3092
      %3157 = vst [vmem:[%s204 + $0x64] sm:$0xf] %v3093
      %3158 = vst [vmem:[%s204 + $0x68] sm:$0xf] %v3094
      %3159 = vst [vmem:[%s204 + $0x6c] sm:$0xf] %v3095
      %3160 = vst [vmem:[%s204 + $0x70] sm:$0xf] %v3096
      %3161 = vst [vmem:[%s204 + $0x74] sm:$0xf] %v3097
      %3162 = vst [vmem:[%s204 + $0x78] sm:$0xf] %v3098
      %3163 = vst [vmem:[%s204 + $0x7c] sm:$0xf] %v3099
      %p3164 = scmp.lt.s32.totalorder %s16, 1
      %s3165 = scalar_select %p3164, %s16, 1
      %s3166 = smul.addr %s3165, 32
      %s3167 = smul.addr %s3166, 4
      %s3168 = scalar_lea.vmem %s3, %s3167
      %p3169 = scmp.lt.s32.totalorder %s16, 1
      %s3170 = scalar_select %p3169, %s16, 1
      %s3171 = smul.addr %s3170, 2
      %s3172 = scalar_lea.vmem %s4, %s3171
      // Predicated region
      $region33: #{convolution_block_forward.3} parent=31 // pred_check
        %p3173 = pneg %p102
      $region34: #{convolution_block_forward.3} parent=31 // pred_check_branch
        %3175 = sbr.rel (%p3173) target = $region36
      $region35: #{convolution_block_forward.3} parent=31 // pred_region
        _
      $region36: #{convolution_block_forward.3} parent=31 // pred_fallthru
        _
      // Predicated region
      $region37: #{convolution_block_forward.3} parent=31 // pred_check
        %p3176 = pneg %p128
      $region38: #{convolution_block_forward.3} parent=31 // pred_check_branch
        %3178 = sbr.rel (%p3176) target = $region40
      $region39: #{convolution_block_forward.3} parent=31 // pred_region
        _
      $region40: #{convolution_block_forward.3} parent=31 // pred_fallthru
        _
    $region32: #{convolution_block_forward.3} parent=5 // pred_fallthru
      _
    %p3179 = scmp.le.s32.totalorder 2, %s11
    // Predicated region
    $region41: #{convolution_block_forward.3} parent=5 // pred_check
      %p3180 = pneg %p3179
    $region42: #{convolution_block_forward.3} parent=5 // pred_check_branch
      %3182 = sbr.rel (%p3180) target = $region44
    $region43: #{convolution_block_forward.3} parent=5 // pred_region
      %s3183 = ssub.s32 %s11, 2
      // Predicated region
      $region45: #{convolution_block_forward.3} parent=43 // pred_check
        %p3184 = pneg %p108
      $region46: #{convolution_block_forward.3} parent=43 // pred_check_branch
        %3186 = sbr.rel (%p3184) target = $region48
      $region47: #{convolution_block_forward.3} parent=43 // pred_region
        %p3187 = scmp.lt.s32.totalorder %s17, 1
        %s3188 = scalar_select %p3187, %s17, 1
        %s3189 = smul.addr %s3188, 32
        %s3190 = smul.addr %s3189, 4
        %s3191 = scalar_lea.vmem %s3, %s3190
      $region48: #{convolution_block_forward.3} parent=43 // pred_fallthru
        _
      // Predicated region
      $region49: #{convolution_block_forward.3} parent=43 // pred_check
        %p3192 = pneg %p134
      $region50: #{convolution_block_forward.3} parent=43 // pred_check_branch
        %3194 = sbr.rel (%p3192) target = $region52
      $region51: #{convolution_block_forward.3} parent=43 // pred_region
        %p3195 = scmp.lt.s32.totalorder %s17, 1
        %s3196 = scalar_select %p3195, %s17, 1
        %s3197 = smul.addr %s3196, 2
        %s3198 = scalar_lea.vmem %s4, %s3197
      $region52: #{convolution_block_forward.3} parent=43 // pred_fallthru
        _
    $region44: #{convolution_block_forward.3} parent=5 // pred_fallthru
      _
  $region6: #{convolution_block_forward.3} parent=0 // loop_footer
    %s15 = sadd.s32 1, %s11
  $region7: #{convolution_block_forward.3} parent=0 // loop_footer_branch
    %10 = sbr.rel target = $region3
  $region8: #{convolution_block_forward.3} parent=0 // loop_exit
    _

</llo_original>
